<compile_context>
chip_gen: v5e
topology: v5e:2x2
jax: 0.10.0
libtpu: 0.0.40
codegen_flags: <defaults>
</compile_context>

<pallas_src>
import numpy as np
import jax
import jax.numpy as jnp
from jax import lax
from jax.experimental import pallas as pl
from jax.experimental.pallas import tpu as pltpu

# ----------------------------- model configuration --------------------------
BATCH     = 2
CIN       = 3
IMG       = 16
PATCH     = 2
G1        = IMG // PATCH          # 8  (stage-1 grid side)
L1        = G1 * G1               # 64 tokens / image, stage 1
C1        = 32
WS        = 4                     # window size
SHIFTS_S1 = (0, WS // 2)          # W-MSA, SW-MSA
HEADS_S1  = 2
G2        = G1 // 2               # 4
L2        = G2 * G2               # 16 tokens / image, stage 2
C2        = 2 * C1                # 64
SHIFTS_S2 = (0, 0)                # window >= resolution -> no shift (HF rule)
HEADS_S2  = 4
HEAD_DIM  = 16
MLP1      = 4 * C1                # 128
MLP2      = 4 * C2                # 256
EMBED     = 32
OUT_W     = 128                   # lane-dense packed output width
PATCH_DIM = CIN * PATCH * PATCH   # 12
LN_EPS    = 1e-5
SCALE     = HEAD_DIM ** -0.5
NEG       = -1e9

# -------- packed vector-slab row offsets (all the tiny per-block vectors) ----
V32_BPATCH  = 0
V32_LNE_W   = 1
V32_LNE_B   = 2
V32_S1      = 3                    # per block: ln1_w, ln1_b, bo, ln2_w, ln2_b, b2
V32_MERGE_G = V32_S1 + 6 * 2       # 15
V32_MERGE_B = V32_MERGE_G + 4      # 19
N_V32       = V32_MERGE_B + 4      # 23

V64_S2      = 0                    # per block: ln1_w, ln1_b, bo, ln2_w, ln2_b, b2
V64_LNF_W   = 12
V64_LNF_B   = 13
N_V64       = 14


# ------------------------------ kernel helpers -------------------------------
def _ln(x, w, b):
    mu = jnp.mean(x, axis=-1, keepdims=True)
    var = jnp.mean((x - mu) ** 2, axis=-1, keepdims=True)
    return (x - mu) * lax.rsqrt(var + LN_EPS) * w + b


def _erf(x):
    # Abramowitz & Stegun 7.1.26, |err| < 1.5e-7 -> effectively exact erf-GELU.
    a1, a2, a3, a4, a5 = 0.254829592, -0.284496736, 1.421413741, -1.453152027, 1.061405429
    p = 0.3275911
    sgn = jnp.where(x >= 0.0, 1.0, -1.0)
    ax = jnp.abs(x)
    t = pl.reciprocal(1.0 + p * ax, approx=True)           # EUP, not a full divide
    poly = ((((a5 * t + a4) * t + a3) * t + a2) * t + a1) * t
    return sgn * (1.0 - poly * jnp.exp(-ax * ax))


def _gelu(x):
    return 0.5 * x * (1.0 + _erf(x * 0.7071067811865476))


def _mm(a, b):
    """bf16-fed MXU matmul with f32 accumulation."""
    return jnp.dot(a.astype(jnp.bfloat16), b.astype(jnp.bfloat16),
                   preferred_element_type=jnp.float32)


def _mm_nt(a, b):
    """Contract last dims: (m, d) x (n, d) -> (m, n), bf16 in / f32 accum."""
    return lax.dot_general(a.astype(jnp.bfloat16), b.astype(jnp.bfloat16),
                           (((1,), (1,)), ((), ())),
                           preferred_element_type=jnp.float32)


# -------------------------------- Pallas kernel ------------------------------
# The kernel is shape-generic: in fused mode the token axes are B*L1 / B*L2,
# in batch-parallel (per-image) mode they are L1 / L2.
def swin_kernel(patches_ref,                     # (T, PATCH_DIM)       f32
                wpatch_ref,                      # (PATCH_DIM, C1)      bf16
                vec32_ref,                       # (N_V32, C1)          f32
                vec64_ref,                       # (N_V64, C2)          f32
                b1s1_ref, b1s2_ref,              # (2, MLP1), (2, MLP2) f32
                wqkv1_ref, bqkv1_ref,            # (2, C1, 3*H1*16) bf16, (2, 3*H1*16) f32
                wo1_ref, bias1_ref,              # (2, H1*16, C1) bf16, (2*H1, T, T) bf16
                w11_ref, w21_ref,                # (2, C1, MLP1), (2, MLP1, C1) bf16
                sel_ref, wred_ref,               # (4, T2, T) f32, (4, C1, C2) bf16
                wqkv2_ref, bqkv2_ref,            # (2, C2, 3*H2*16) bf16, (2, 3*H2*16) f32
                wo2_ref, bias2_ref,              # (2, H2*16, C2) bf16, (2*H2, T2, T2) bf16
                w12_ref, w22_ref,                # (2, C2, MLP2), (2, MLP2, C2) bf16
                pool_ref,                        # (NPOOL, T2)          f32
                proj_ref,                        # (C2, OUT_W)          bf16
                out_ref):                        # (T2 + NPOOL, OUT_W)  f32
    v32 = lambda r: vec32_ref[r:r + 1, :]
    v64 = lambda r: vec64_ref[r:r + 1, :]

    # ---- patch embedding + embedding LayerNorm ----
    x = _mm(patches_ref[...], wpatch_ref[...]) + v32(V32_BPATCH)          # (T, C1)
    x = _ln(x, v32(V32_LNE_W), v32(V32_LNE_B))

    # ---- generic (S)W-MSA + MLP Swin block ----
    def block(x, heads, ln1w, ln1b, bo, ln2w, ln2b, b2, b1,
              wqkv_ref, bqkv_ref, wo_ref, bias_ref, w1_ref, w2_ref, blk):
        h = _ln(x, ln1w, ln1b)
        # one lane-dense fused QKV matmul per block: (T, 3*heads*HEAD_DIM)
        qkv = _mm(h, wqkv_ref[blk]) + bqkv_ref[blk:blk + 1, :]
        ctxs = []
        for hd in range(heads):                  # statically unrolled, 2-4 heads
            c0 = 3 * hd * HEAD_DIM
            q = qkv[:, c0:c0 + HEAD_DIM]
            k = qkv[:, c0 + HEAD_DIM:c0 + 2 * HEAD_DIM]
            v = qkv[:, c0 + 2 * HEAD_DIM:c0 + 3 * HEAD_DIM]
            # bias already folds: window mask, shift mask, rel-pos bias (and the
            # cross-image mask in fused mode) for this (block, head).
            s = _mm_nt(q, k) * SCALE + bias_ref[blk * heads + hd].astype(jnp.float32)
            e = jnp.exp(s - jnp.max(s, axis=-1, keepdims=True))
            p = (e * pl.reciprocal(jnp.sum(e, axis=-1, keepdims=True),
                                   approx=True)).astype(jnp.bfloat16)
            ctxs.append(_mm(p, v))               # (T, HEAD_DIM) f32
        ctx = ctxs[0] if heads == 1 else jnp.concatenate(ctxs, axis=-1)
        x = x + _mm(ctx, wo_ref[blk]) + bo       # single head-merged output matmul
        h2 = _ln(x, ln2w, ln2b)
        h2 = _gelu(_mm(h2, w1_ref[blk]) + b1)
        return x + _mm(h2, w2_ref[blk]) + b2

    # ---- stage 1: two blocks at (8x8, C1) ----
    for blk in range(2):
        base = V32_S1 + 6 * blk
        x = block(x, HEADS_S1,
                  v32(base + 0), v32(base + 1), v32(base + 2),
                  v32(base + 3), v32(base + 4), v32(base + 5),
                  b1s1_ref[blk:blk + 1, :],
                  wqkv1_ref, bqkv1_ref, wo1_ref, bias1_ref, w11_ref, w21_ref, blk)

    # ---- patch merging: (8x8, C1) -> (4x4, C2); LN over 4*C1 then reduction ----
    # selection matmuls in f32 (pure one-hot gather, tiny) for parity.
    xq_list = [jnp.dot(sel_ref[q], x, preferred_element_type=jnp.float32)
               for q in range(4)]                                        # (T2, C1) each
    ssum = sum(jnp.sum(xq, axis=-1, keepdims=True) for xq in xq_list)
    mu = ssum * (1.0 / (4 * C1))
    sq = sum(jnp.sum((xq - mu) ** 2, axis=-1, keepdims=True) for xq in xq_list)
    inv = lax.rsqrt(sq * (1.0 / (4 * C1)) + LN_EPS)
    xm = None
    for q, xq in enumerate(xq_list):
        nq = (xq - mu) * inv * v32(V32_MERGE_G + q) + v32(V32_MERGE_B + q)
        term = _mm(nq, wred_ref[q])
        xm = term if xm is None else xm + term
    x = xm                                                               # (T2, C2)

    # ---- stage 2: two blocks at (4x4, C2) ----
    for blk in range(2):
        base = V64_S2 + 6 * blk
        x = block(x, HEADS_S2,
                  v64(base + 0), v64(base + 1), v64(base + 2),
                  v64(base + 3), v64(base + 4), v64(base + 5),
                  b1s2_ref[blk:blk + 1, :],
                  wqkv2_ref, bqkv2_ref, wo2_ref, bias2_ref, w12_ref, w22_ref, blk)

    # ---- final LN, lane-dense projection, avg-pool (as f32 matmul), store ----
    t = _ln(x, v64(V64_LNF_W), v64(V64_LNF_B))                           # (T2, C2)
    y = _mm(t, proj_ref[...])                                            # (T2, OUT_W)
    pool = jnp.dot(pool_ref[...], y, preferred_element_type=jnp.float32) # (NPOOL, OUT_W)
    n_tok = y.shape[0]
    out_ref[0:n_tok, :] = y
    out_ref[n_tok:n_tok + pool.shape[0], :] = pool


# ------------------------- host-side precompute helpers ----------------------
def _attn_bias_full(Hs, Ws, ws, shift, rel_table, batch):
    """Fold window partition, cyclic-shift mask, relative-position bias and (if
    batch > 1) the cross-image mask into one additive bias (heads, batch*L, batch*L)."""
    L = Hs * Ws
    rel = np.asarray(rel_table, np.float32)                  # ((2ws-1)^2, heads)
    heads = rel.shape[1]
    rr, cc = np.meshgrid(np.arange(Hs), np.arange(Ws), indexing="ij")
    rs = (rr - shift) % Hs                                   # shifted coords
    cs = (cc - shift) % Ws
    win = (rs // ws) * (Ws // ws) + (cs // ws)
    in_r, in_c = rs % ws, cs % ws
    if shift > 0:
        reg_r = (rs >= Hs - ws).astype(np.int64) + (rs >= Hs - shift).astype(np.int64)
        reg_c = (cs >= Ws - ws).astype(np.int64) + (cs >= Ws - shift).astype(np.int64)
    else:
        reg_r = np.zeros_like(rs)
        reg_c = np.zeros_like(cs)
    win = win.reshape(L)
    reg = (reg_r * 3 + reg_c).reshape(L)
    in_r = in_r.reshape(L)
    in_c = in_c.reshape(L)
    allowed = (win[:, None] == win[None, :]) & (reg[:, None] == reg[None, :])
    ridx = ((in_r[:, None] - in_r[None, :] + ws - 1) * (2 * ws - 1)
            + (in_c[:, None] - in_c[None, :] + ws - 1))
    per_img = np.transpose(rel[ridx], (2, 0, 1))             # (heads, L, L)
    per_img = np.where(allowed[None], per_img, NEG).astype(np.float32)
    T = batch * L
    out = np.full((heads, T, T), NEG, np.float32)
    for b in range(batch):
        out[:, b * L:(b + 1) * L, b * L:(b + 1) * L] = per_img
    return out


def _merge_select(Hs, Ws, batch):
    """One-hot selection matrices for 2x2 patch merging: (4, batch*L/4, batch*L)."""
    L, Lh = Hs * Ws, (Hs // 2) * (Ws // 2)
    sel = np.zeros((4, batch * Lh, batch * L), np.float32)
    offs = [(0, 0), (1, 0), (0, 1), (1, 1)]                  # x0, x1, x2, x3 order
    for b in range(batch):
        for r2 in range(Hs // 2):
            for c2 in range(Ws // 2):
                j = b * Lh + r2 * (Ws // 2) + c2
                for q, (dr, dc) in enumerate(offs):
                    sel[q, j, b * L + (2 * r2 + dr) * Ws + (2 * c2 + dc)] = 1.0
    return sel


def _use_batch_parallel():
    """Split the batch across the grid only on v7x (2 TensorCores / chip).
    On v5e / v6e the fused single-step layout keeps the full-width MXU tile."""
    try:
        kind = jax.devices()[0].device_kind.lower()
    except Exception:
        return False
    return ("v7" in kind) or ("7x" in kind)


# ------------------------- synthetic parameter packing -----------------------
def make_inputs(key, per_image):
    keys = iter(jax.random.split(key, 128))
    nrm = lambda shp, s=0.02: (s * jax.random.normal(next(keys), shp)).astype(jnp.float32)
    f32, bf16 = jnp.float32, jnp.bfloat16

    wpatch = nrm((PATCH_DIM, C1))
    b_patch = nrm((C1,))
    ln_e_w, ln_e_b = 1.0 + nrm((C1,)), nrm((C1,))

    def stage(C, heads, mlp, nblk):
        blks = []
        for _ in range(nblk):
            blks.append(dict(
                ln1_w=1.0 + nrm((C,)), ln1_b=nrm((C,)),
                wq=nrm((heads, C, HEAD_DIM)), wk=nrm((heads, C, HEAD_DIM)),
                wv=nrm((heads, C, HEAD_DIM)),
                bq=nrm((heads, HEAD_DIM)), bk=nrm((heads, HEAD_DIM)),
                bv=nrm((heads, HEAD_DIM)),
                wo=nrm((heads, HEAD_DIM, C)), bo=nrm((C,)),
                ln2_w=1.0 + nrm((C,)), ln2_b=nrm((C,)),
                w1=nrm((C, mlp)), b1=nrm((mlp,)), w2=nrm((mlp, C)), b2=nrm((C,)),
                rel=nrm(((2 * WS - 1) ** 2, heads)),
            ))
        return blks

    s1 = stage(C1, HEADS_S1, MLP1, 2)
    s2 = stage(C2, HEADS_S2, MLP2, 2)

    merge_g, merge_b = 1.0 + nrm((4 * C1,)), nrm((4 * C1,))
    wred = nrm((4 * C1, C2))
    ln_f_w, ln_f_b = 1.0 + nrm((C2,)), nrm((C2,))
    proj = (C2 ** -0.5) * jax.random.normal(next(keys), (C2, EMBED))

    # ---- vec32 / vec64 slabs (the tiny per-block vectors, one DMA each) ----
    rows32 = [b_patch, ln_e_w, ln_e_b]
    for blk in s1:
        rows32 += [blk["ln1_w"], blk["ln1_b"], blk["bo"],
                   blk["ln2_w"], blk["ln2_b"], blk["b2"]]
    rows32 += [merge_g[q * C1:(q + 1) * C1] for q in range(4)]
    rows32 += [merge_b[q * C1:(q + 1) * C1] for q in range(4)]
    vec32 = jnp.stack(rows32).astype(f32)
    assert vec32.shape == (N_V32, C1)

    rows64 = []
    for blk in s2:
        rows64 += [blk["ln1_w"], blk["ln1_b"], blk["bo"],
                   blk["ln2_w"], blk["ln2_b"], blk["b2"]]
    rows64 += [ln_f_w, ln_f_b]
    vec64 = jnp.stack(rows64).astype(f32)
    assert vec64.shape == (N_V64, C2)

    # ---- lane-dense fused QKV: (nblk, C, 3*heads*HEAD_DIM), bias (nblk, width) ----
    def pack_qkv(blocks, heads):
        ws, bs = [], []
        for blk in blocks:
            wcols, bcols = [], []
            for h in range(heads):
                wcols += [blk["wq"][h], blk["wk"][h], blk["wv"][h]]
                bcols += [blk["bq"][h], blk["bk"][h], blk["bv"][h]]
            ws.append(jnp.concatenate(wcols, axis=1))
            bs.append(jnp.concatenate(bcols, axis=0))
        return jnp.stack(ws).astype(bf16), jnp.stack(bs).astype(f32)

    wqkv_s1, bqkv_s1 = pack_qkv(s1, HEADS_S1)
    wqkv_s2, bqkv_s2 = pack_qkv(s2, HEADS_S2)

    # ---- head-merge folded into one (heads*HEAD_DIM, C) weight per block ----
    def pack_wo(blocks):
        return jnp.stack([blk["wo"].reshape(-1, blk["wo"].shape[-1])
                          for blk in blocks]).astype(bf16)

    nimg = 1 if per_image else BATCH             # bias/sel/pool scope per grid step
    bias_s1 = np.concatenate(
        [_attn_bias_full(G1, G1, WS, SHIFTS_S1[i], s1[i]["rel"], nimg)
         for i in range(2)], axis=0)
    bias_s2 = np.concatenate(
        [_attn_bias_full(G2, G2, WS, SHIFTS_S2[i], s2[i]["rel"], nimg)
         for i in range(2)], axis=0)

    t2 = nimg * L2
    pool = np.zeros((nimg, t2), np.float32)
    for b in range(nimg):
        pool[b, b * L2:(b + 1) * L2] = 1.0 / L2

    inputs = dict(
        wpatch=wpatch.astype(bf16),
        vec32=vec32, vec64=vec64,
        b1_s1=jnp.stack([blk["b1"] for blk in s1]).astype(f32),
        b1_s2=jnp.stack([blk["b1"] for blk in s2]).astype(f32),
        wqkv_s1=wqkv_s1, bqkv_s1=bqkv_s1,
        wo_s1=pack_wo(s1),
        bias_s1=jnp.asarray(bias_s1, bf16),      # bf16 bias slabs: HBM bytes halved
        w1_s1=jnp.stack([blk["w1"] for blk in s1]).astype(bf16),
        w2_s1=jnp.stack([blk["w2"] for blk in s1]).astype(bf16),
        sel=jnp.asarray(_merge_select(G1, G1, nimg), f32),
        wred=jnp.stack([wred[q * C1:(q + 1) * C1] for q in range(4)]).astype(bf16),
        wqkv_s2=wqkv_s2, bqkv_s2=bqkv_s2,
        wo_s2=pack_wo(s2),
        bias_s2=jnp.asarray(bias_s2, bf16),
        w1_s2=jnp.stack([blk["w1"] for blk in s2]).astype(bf16),
        w2_s2=jnp.stack([blk["w2"] for blk in s2]).astype(bf16),
        pool=jnp.asarray(pool, f32),
        proj_pad=jnp.zeros((C2, OUT_W), f32).at[:, :EMBED].set(proj).astype(bf16),
    )
    return inputs


# ----------------------------------- wrapper ---------------------------------
def swin_transformer_med(x, inp, per_image):
    """x: (B, C, H, W) f32 NCHW. Returns (tokens, pooled) like the module."""
    assert x.shape == (BATCH, CIN, IMG, IMG)
    # Patch extraction (pure data movement): per token (c, pr, pc) order.
    patches = (x.reshape(BATCH, CIN, G1, PATCH, G1, PATCH)
                 .transpose(0, 2, 4, 1, 3, 5)
                 .reshape(BATCH, L1, PATCH_DIM))

    full = lambda a: pl.BlockSpec(tuple(a.shape), lambda i, n=a.ndim: (0,) * n)

    if per_image:
        # v7x: batch split across the grid, one image per "parallel" step.
        patches_in = patches                                   # (B, L1, PATCH_DIM)
        patches_spec = pl.BlockSpec((None, L1, PATCH_DIM), lambda b: (b, 0, 0))
        out_shape = jax.ShapeDtypeStruct((BATCH, L2 + 1, OUT_W), jnp.float32)
        out_spec = pl.BlockSpec((None, L2 + 1, OUT_W), lambda b: (b, 0, 0))
        grid = (BATCH,)
        sem = ("parallel",)
    else:
        # v5e / v6e: whole batch fused into one grid step (single TensorCore).
        patches_in = patches.reshape(BATCH * L1, PATCH_DIM)
        patches_spec = full(patches_in)
        out_shape = jax.ShapeDtypeStruct((BATCH * L2 + BATCH, OUT_W), jnp.float32)
        out_spec = pl.BlockSpec((BATCH * L2 + BATCH, OUT_W), lambda i: (0, 0))
        grid = (1,)
        sem = ("arbitrary",)

    ordered = [patches_in, inp["wpatch"], inp["vec32"], inp["vec64"],
               inp["b1_s1"], inp["b1_s2"],
               inp["wqkv_s1"], inp["bqkv_s1"], inp["wo_s1"], inp["bias_s1"],
               inp["w1_s1"], inp["w2_s1"],
               inp["sel"], inp["wred"],
               inp["wqkv_s2"], inp["bqkv_s2"], inp["wo_s2"], inp["bias_s2"],
               inp["w1_s2"], inp["w2_s2"],
               inp["pool"], inp["proj_pad"]]
    in_specs = [patches_spec] + [full(a) for a in ordered[1:]]

    out = pl.pallas_call(
        swin_kernel,
        out_shape=out_shape,
        grid=grid,
        in_specs=in_specs,
        out_specs=out_spec,
        compiler_params=pltpu.CompilerParams(dimension_semantics=sem),
        cost_estimate=pl.CostEstimate(flops=20_000_000, transcendentals=150_000,
                                      bytes_accessed=450_000),
    )(*ordered)

    if per_image:
        tokens = out[:, :L2, :EMBED]
        pooled = out[:, L2, :EMBED]
    else:
        tokens = out[:BATCH * L2, :EMBED].reshape(BATCH, L2, EMBED)
        pooled = out[BATCH * L2:BATCH * L2 + BATCH, :EMBED]
    return tokens, pooled


if __name__ == "__main__":
    key = jax.random.PRNGKey(0)
    kx, kp = jax.random.split(key)
    x = jax.random.normal(kx, (BATCH, CIN, IMG, IMG), dtype=jnp.float32)

    per_image = _use_batch_parallel()            # True only on v7x (2 TCs / chip)
    inputs = make_inputs(kp, per_image)

    tokens, pooled = swin_transformer_med(x, inputs, per_image)
    jax.block_until_ready((tokens, pooled))

    assert tokens.shape == (BATCH, L2, EMBED)
    assert pooled.shape == (BATCH, EMBED)
    assert bool(jnp.all(jnp.isfinite(tokens))) and bool(jnp.all(jnp.isfinite(pooled)))
    print("KERNEL_OK")
</pallas_src>

<mosaic_0001>
module attributes {stable_mosaic.version = 11 : i64} {
  func.func @swin_kernel(%arg0: i32, %arg1: memref<128x12xf32, #tpu.memory_space<vmem>>, %arg2: memref<12x32xbf16, #tpu.memory_space<vmem>>, %arg3: memref<23x32xf32, #tpu.memory_space<vmem>>, %arg4: memref<14x64xf32, #tpu.memory_space<vmem>>, %arg5: memref<2x128xf32, #tpu.memory_space<vmem>>, %arg6: memref<2x256xf32, #tpu.memory_space<vmem>>, %arg7: memref<2x32x96xbf16, #tpu.memory_space<vmem>>, %arg8: memref<2x96xf32, #tpu.memory_space<vmem>>, %arg9: memref<2x32x32xbf16, #tpu.memory_space<vmem>>, %arg10: memref<4x128x128xbf16, #tpu.memory_space<vmem>>, %arg11: memref<2x32x128xbf16, #tpu.memory_space<vmem>>, %arg12: memref<2x128x32xbf16, #tpu.memory_space<vmem>>, %arg13: memref<4x32x128xf32, #tpu.memory_space<vmem>>, %arg14: memref<4x32x64xbf16, #tpu.memory_space<vmem>>, %arg15: memref<2x64x192xbf16, #tpu.memory_space<vmem>>, %arg16: memref<2x192xf32, #tpu.memory_space<vmem>>, %arg17: memref<2x64x64xbf16, #tpu.memory_space<vmem>>, %arg18: memref<8x32x32xbf16, #tpu.memory_space<vmem>>, %arg19: memref<2x64x256xbf16, #tpu.memory_space<vmem>>, %arg20: memref<2x256x64xbf16, #tpu.memory_space<vmem>>, %arg21: memref<2x32xf32, #tpu.memory_space<vmem>>, %arg22: memref<64x128xbf16, #tpu.memory_space<vmem>>, %arg23: memref<34x128xf32, #tpu.memory_space<vmem>>) attributes {dimension_semantics = [#tpu.dimension_semantics<arbitrary>], iteration_bounds = array<i64: 1>, scalar_prefetch = 0 : i64, scratch_operands = 0 : i64, tpu.core_type = #tpu.core_type<tc>, window_params = [{pipeline_mode = #tpu.pipeline_mode<synchronous>, transform_indices = @transform_0, window_bounds = array<i64: 128, 12>}, {pipeline_mode = #tpu.pipeline_mode<synchronous>, transform_indices = @transform_1, window_bounds = array<i64: 12, 32>}, {pipeline_mode = #tpu.pipeline_mode<synchronous>, transform_indices = @transform_2, window_bounds = array<i64: 23, 32>}, {pipeline_mode = #tpu.pipeline_mode<synchronous>, transform_indices = @transform_3, window_bounds = array<i64: 14, 64>}, {pipeline_mode = #tpu.pipeline_mode<synchronous>, transform_indices = @transform_4, window_bounds = array<i64: 2, 128>}, {pipeline_mode = #tpu.pipeline_mode<synchronous>, transform_indices = @transform_5, window_bounds = array<i64: 2, 256>}, {pipeline_mode = #tpu.pipeline_mode<synchronous>, transform_indices = @transform_6, window_bounds = array<i64: 2, 32, 96>}, {pipeline_mode = #tpu.pipeline_mode<synchronous>, transform_indices = @transform_7, window_bounds = array<i64: 2, 96>}, {pipeline_mode = #tpu.pipeline_mode<synchronous>, transform_indices = @transform_8, window_bounds = array<i64: 2, 32, 32>}, {pipeline_mode = #tpu.pipeline_mode<synchronous>, transform_indices = @transform_9, window_bounds = array<i64: 4, 128, 128>}, {pipeline_mode = #tpu.pipeline_mode<synchronous>, transform_indices = @transform_10, window_bounds = array<i64: 2, 32, 128>}, {pipeline_mode = #tpu.pipeline_mode<synchronous>, transform_indices = @transform_11, window_bounds = array<i64: 2, 128, 32>}, {pipeline_mode = #tpu.pipeline_mode<synchronous>, transform_indices = @transform_12, window_bounds = array<i64: 4, 32, 128>}, {pipeline_mode = #tpu.pipeline_mode<synchronous>, transform_indices = @transform_13, window_bounds = array<i64: 4, 32, 64>}, {pipeline_mode = #tpu.pipeline_mode<synchronous>, transform_indices = @transform_14, window_bounds = array<i64: 2, 64, 192>}, {pipeline_mode = #tpu.pipeline_mode<synchronous>, transform_indices = @transform_15, window_bounds = array<i64: 2, 192>}, {pipeline_mode = #tpu.pipeline_mode<synchronous>, transform_indices = @transform_16, window_bounds = array<i64: 2, 64, 64>}, {pipeline_mode = #tpu.pipeline_mode<synchronous>, transform_indices = @transform_17, window_bounds = array<i64: 8, 32, 32>}, {pipeline_mode = #tpu.pipeline_mode<synchronous>, transform_indices = @transform_18, window_bounds = array<i64: 2, 64, 256>}, {pipeline_mode = #tpu.pipeline_mode<synchronous>, transform_indices = @transform_19, window_bounds = array<i64: 2, 256, 64>}, {pipeline_mode = #tpu.pipeline_mode<synchronous>, transform_indices = @transform_20, window_bounds = array<i64: 2, 32>}, {pipeline_mode = #tpu.pipeline_mode<synchronous>, transform_indices = @transform_21, window_bounds = array<i64: 64, 128>}, {pipeline_mode = #tpu.pipeline_mode<synchronous>, transform_indices = @transform_22, window_bounds = array<i64: 34, 128>}]} {
    %c0 = arith.constant 0 : index
    %c0_0 = arith.constant 0 : index
    %0 = vector.load %arg1[%c0, %c0_0] : memref<128x12xf32, #tpu.memory_space<vmem>>, vector<128x12xf32>
    %c0_1 = arith.constant 0 : index
    %c0_2 = arith.constant 0 : index
    %1 = vector.load %arg2[%c0_1, %c0_2] : memref<12x32xbf16, #tpu.memory_space<vmem>>, vector<12x32xbf16>
    %2 = arith.truncf %0 : vector<128x12xf32> to vector<128x12xbf16>
    %cst = arith.constant dense<0.000000e+00> : vector<128x32xf32>
    %3 = tpu.matmul %2, %1, %cst {dimension_numbers = #tpu.dot_dimension_numbers<[1], [0], [0], [1], [0, 0, 1, 1], [], []>} : vector<128x12xbf16>, vector<12x32xbf16>, vector<128x32xf32> -> vector<128x32xf32>
    %c0_3 = arith.constant 0 : index
    %c0_4 = arith.constant 0 : index
    %4 = vector.load %arg3[%c0_3, %c0_4] : memref<23x32xf32, #tpu.memory_space<vmem>>, vector<1x32xf32>
    %5 = vector.broadcast %4 : vector<1x32xf32> to vector<128x32xf32>
    %6 = arith.addf %3, %5 : vector<128x32xf32>
    %c1 = arith.constant 1 : index
    %c0_5 = arith.constant 0 : index
    %7 = vector.load %arg3[%c1, %c0_5] : memref<23x32xf32, #tpu.memory_space<vmem>>, vector<1x32xf32>
    %c2 = arith.constant 2 : index
    %c0_6 = arith.constant 0 : index
    %8 = vector.load %arg3[%c2, %c0_6] : memref<23x32xf32, #tpu.memory_space<vmem>>, vector<1x32xf32>
    %cst_7 = arith.constant dense<0.000000e+00> : vector<128xf32>
    %9 = vector.multi_reduction <add>, %6, %cst_7 [1] : vector<128x32xf32> to vector<128xf32>
    %10 = vector.shape_cast %9 : vector<128xf32> to vector<128x1xf32>
    %cst_8 = arith.constant 3.200000e+01 : f32
    %11 = vector.broadcast %cst_8 : f32 to vector<128x1xf32>
    %12 = arith.divf %10, %11 : vector<128x1xf32>
    %13 = vector.broadcast %12 : vector<128x1xf32> to vector<128x32xf32>
    %14 = arith.subf %6, %13 : vector<128x32xf32>
    %15 = arith.mulf %14, %14 : vector<128x32xf32>
    %cst_9 = arith.constant dense<0.000000e+00> : vector<128xf32>
    %16 = vector.multi_reduction <add>, %15, %cst_9 [1] : vector<128x32xf32> to vector<128xf32>
    %17 = vector.shape_cast %16 : vector<128xf32> to vector<128x1xf32>
    %cst_10 = arith.constant 3.200000e+01 : f32
    %18 = vector.broadcast %cst_10 : f32 to vector<128x1xf32>
    %19 = arith.divf %17, %18 : vector<128x1xf32>
    %20 = vector.broadcast %12 : vector<128x1xf32> to vector<128x32xf32>
    %21 = arith.subf %6, %20 : vector<128x32xf32>
    %cst_11 = arith.constant 9.99999974E-6 : f32
    %22 = vector.broadcast %cst_11 : f32 to vector<128x1xf32>
    %23 = arith.addf %19, %22 : vector<128x1xf32>
    %24 = math.rsqrt %23 : vector<128x1xf32>
    %25 = vector.broadcast %24 : vector<128x1xf32> to vector<128x32xf32>
    %26 = arith.mulf %21, %25 : vector<128x32xf32>
    %27 = vector.broadcast %7 : vector<1x32xf32> to vector<128x32xf32>
    %28 = arith.mulf %26, %27 : vector<128x32xf32>
    %29 = vector.broadcast %8 : vector<1x32xf32> to vector<128x32xf32>
    %30 = arith.addf %28, %29 : vector<128x32xf32>
    %c3 = arith.constant 3 : index
    %c0_12 = arith.constant 0 : index
    %31 = vector.load %arg3[%c3, %c0_12] : memref<23x32xf32, #tpu.memory_space<vmem>>, vector<1x32xf32>
    %c4 = arith.constant 4 : index
    %c0_13 = arith.constant 0 : index
    %32 = vector.load %arg3[%c4, %c0_13] : memref<23x32xf32, #tpu.memory_space<vmem>>, vector<1x32xf32>
    %c5 = arith.constant 5 : index
    %c0_14 = arith.constant 0 : index
    %33 = vector.load %arg3[%c5, %c0_14] : memref<23x32xf32, #tpu.memory_space<vmem>>, vector<1x32xf32>
    %c6 = arith.constant 6 : index
    %c0_15 = arith.constant 0 : index
    %34 = vector.load %arg3[%c6, %c0_15] : memref<23x32xf32, #tpu.memory_space<vmem>>, vector<1x32xf32>
    %c7 = arith.constant 7 : index
    %c0_16 = arith.constant 0 : index
    %35 = vector.load %arg3[%c7, %c0_16] : memref<23x32xf32, #tpu.memory_space<vmem>>, vector<1x32xf32>
    %c8 = arith.constant 8 : index
    %c0_17 = arith.constant 0 : index
    %36 = vector.load %arg3[%c8, %c0_17] : memref<23x32xf32, #tpu.memory_space<vmem>>, vector<1x32xf32>
    %c0_18 = arith.constant 0 : index
    %c0_19 = arith.constant 0 : index
    %37 = vector.load %arg5[%c0_18, %c0_19] : memref<2x128xf32, #tpu.memory_space<vmem>>, vector<1x128xf32>
    %cst_20 = arith.constant dense<0.000000e+00> : vector<128xf32>
    %38 = vector.multi_reduction <add>, %30, %cst_20 [1] : vector<128x32xf32> to vector<128xf32>
    %39 = vector.shape_cast %38 : vector<128xf32> to vector<128x1xf32>
    %cst_21 = arith.constant 3.200000e+01 : f32
    %40 = vector.broadcast %cst_21 : f32 to vector<128x1xf32>
    %41 = arith.divf %39, %40 : vector<128x1xf32>
    %42 = vector.broadcast %41 : vector<128x1xf32> to vector<128x32xf32>
    %43 = arith.subf %30, %42 : vector<128x32xf32>
    %44 = arith.mulf %43, %43 : vector<128x32xf32>
    %cst_22 = arith.constant dense<0.000000e+00> : vector<128xf32>
    %45 = vector.multi_reduction <add>, %44, %cst_22 [1] : vector<128x32xf32> to vector<128xf32>
    %46 = vector.shape_cast %45 : vector<128xf32> to vector<128x1xf32>
    %cst_23 = arith.constant 3.200000e+01 : f32
    %47 = vector.broadcast %cst_23 : f32 to vector<128x1xf32>
    %48 = arith.divf %46, %47 : vector<128x1xf32>
    %49 = vector.broadcast %41 : vector<128x1xf32> to vector<128x32xf32>
    %50 = arith.subf %30, %49 : vector<128x32xf32>
    %cst_24 = arith.constant 9.99999974E-6 : f32
    %51 = vector.broadcast %cst_24 : f32 to vector<128x1xf32>
    %52 = arith.addf %48, %51 : vector<128x1xf32>
    %53 = math.rsqrt %52 : vector<128x1xf32>
    %54 = vector.broadcast %53 : vector<128x1xf32> to vector<128x32xf32>
    %55 = arith.mulf %50, %54 : vector<128x32xf32>
    %56 = vector.broadcast %31 : vector<1x32xf32> to vector<128x32xf32>
    %57 = arith.mulf %55, %56 : vector<128x32xf32>
    %58 = vector.broadcast %32 : vector<1x32xf32> to vector<128x32xf32>
    %59 = arith.addf %57, %58 : vector<128x32xf32>
    %c0_25 = arith.constant 0 : index
    %c0_26 = arith.constant 0 : index
    %c0_27 = arith.constant 0 : index
    %60 = vector.load %arg7[%c0_25, %c0_26, %c0_27] : memref<2x32x96xbf16, #tpu.memory_space<vmem>>, vector<1x32x96xbf16>
    %61 = vector.shape_cast %60 : vector<1x32x96xbf16> to vector<32x96xbf16>
    %62 = arith.truncf %59 : vector<128x32xf32> to vector<128x32xbf16>
    %cst_28 = arith.constant dense<0.000000e+00> : vector<128x96xf32>
    %63 = tpu.matmul %62, %61, %cst_28 {dimension_numbers = #tpu.dot_dimension_numbers<[1], [0], [0], [1], [0, 0, 1, 1], [], []>} : vector<128x32xbf16>, vector<32x96xbf16>, vector<128x96xf32> -> vector<128x96xf32>
    %c0_29 = arith.constant 0 : index
    %c0_30 = arith.constant 0 : index
    %64 = vector.load %arg8[%c0_29, %c0_30] : memref<2x96xf32, #tpu.memory_space<vmem>>, vector<1x96xf32>
    %65 = vector.broadcast %64 : vector<1x96xf32> to vector<128x96xf32>
    %66 = arith.addf %63, %65 : vector<128x96xf32>
    %67 = vector.extract_strided_slice %66 {offsets = [0, 0], sizes = [128, 16], strides = [1, 1]} : vector<128x96xf32> to vector<128x16xf32>
    %68 = vector.extract_strided_slice %66 {offsets = [0, 16], sizes = [128, 16], strides = [1, 1]} : vector<128x96xf32> to vector<128x16xf32>
    %69 = vector.extract_strided_slice %66 {offsets = [0, 32], sizes = [128, 16], strides = [1, 1]} : vector<128x96xf32> to vector<128x16xf32>
    %70 = arith.truncf %67 : vector<128x16xf32> to vector<128x16xbf16>
    %71 = arith.truncf %68 : vector<128x16xf32> to vector<128x16xbf16>
    %cst_31 = arith.constant dense<0.000000e+00> : vector<128x128xf32>
    %72 = tpu.matmul %70, %71, %cst_31 {dimension_numbers = #tpu.dot_dimension_numbers<[1], [1], [0], [0], [0, 0, 1, 0], [], []>} : vector<128x16xbf16>, vector<128x16xbf16>, vector<128x128xf32> -> vector<128x128xf32>
    %cst_32 = arith.constant 2.500000e-01 : f32
    %73 = vector.broadcast %cst_32 : f32 to vector<128x128xf32>
    %74 = arith.mulf %72, %73 : vector<128x128xf32>
    %c0_33 = arith.constant 0 : index
    %c0_34 = arith.constant 0 : index
    %c0_35 = arith.constant 0 : index
    %75 = vector.load %arg10[%c0_33, %c0_34, %c0_35] : memref<4x128x128xbf16, #tpu.memory_space<vmem>>, vector<1x128x128xbf16>
    %76 = vector.shape_cast %75 : vector<1x128x128xbf16> to vector<128x128xbf16>
    %77 = arith.extf %76 : vector<128x128xbf16> to vector<128x128xf32>
    %78 = arith.addf %74, %77 : vector<128x128xf32>
    %cst_36 = arith.constant dense<0xFF800000> : vector<128xf32>
    %79 = vector.multi_reduction <maximumf>, %78, %cst_36 [1] : vector<128x128xf32> to vector<128xf32>
    %80 = vector.shape_cast %79 : vector<128xf32> to vector<128x1xf32>
    %81 = vector.broadcast %80 : vector<128x1xf32> to vector<128x128xf32>
    %82 = arith.subf %78, %81 : vector<128x128xf32>
    %83 = math.exp %82 : vector<128x128xf32>
    %cst_37 = arith.constant dense<0.000000e+00> : vector<128xf32>
    %84 = vector.multi_reduction <add>, %83, %cst_37 [1] : vector<128x128xf32> to vector<128xf32>
    %85 = vector.shape_cast %84 : vector<128xf32> to vector<128x1xf32>
    %86 = tpu.reciprocal %85 {approx = true} : vector<128x1xf32> -> vector<128x1xf32>
    %87 = vector.broadcast %86 : vector<128x1xf32> to vector<128x128xf32>
    %88 = arith.mulf %83, %87 : vector<128x128xf32>
    %89 = arith.truncf %88 : vector<128x128xf32> to vector<128x128xbf16>
    %90 = arith.truncf %69 : vector<128x16xf32> to vector<128x16xbf16>
    %cst_38 = arith.constant dense<0.000000e+00> : vector<128x16xf32>
    %91 = tpu.matmul %89, %90, %cst_38 {dimension_numbers = #tpu.dot_dimension_numbers<[1], [0], [0], [1], [0, 0, 1, 1], [], []>} : vector<128x128xbf16>, vector<128x16xbf16>, vector<128x16xf32> -> vector<128x16xf32>
    %92 = vector.extract_strided_slice %66 {offsets = [0, 48], sizes = [128, 16], strides = [1, 1]} : vector<128x96xf32> to vector<128x16xf32>
    %93 = vector.extract_strided_slice %66 {offsets = [0, 64], sizes = [128, 16], strides = [1, 1]} : vector<128x96xf32> to vector<128x16xf32>
    %94 = vector.extract_strided_slice %66 {offsets = [0, 80], sizes = [128, 16], strides = [1, 1]} : vector<128x96xf32> to vector<128x16xf32>
    %95 = arith.truncf %92 : vector<128x16xf32> to vector<128x16xbf16>
    %96 = arith.truncf %93 : vector<128x16xf32> to vector<128x16xbf16>
    %cst_39 = arith.constant dense<0.000000e+00> : vector<128x128xf32>
    %97 = tpu.matmul %95, %96, %cst_39 {dimension_numbers = #tpu.dot_dimension_numbers<[1], [1], [0], [0], [0, 0, 1, 0], [], []>} : vector<128x16xbf16>, vector<128x16xbf16>, vector<128x128xf32> -> vector<128x128xf32>
    %cst_40 = arith.constant 2.500000e-01 : f32
    %98 = vector.broadcast %cst_40 : f32 to vector<128x128xf32>
    %99 = arith.mulf %97, %98 : vector<128x128xf32>
    %c1_41 = arith.constant 1 : index
    %c0_42 = arith.constant 0 : index
    %c0_43 = arith.constant 0 : index
    %100 = vector.load %arg10[%c1_41, %c0_42, %c0_43] : memref<4x128x128xbf16, #tpu.memory_space<vmem>>, vector<1x128x128xbf16>
    %101 = vector.shape_cast %100 : vector<1x128x128xbf16> to vector<128x128xbf16>
    %102 = arith.extf %101 : vector<128x128xbf16> to vector<128x128xf32>
    %103 = arith.addf %99, %102 : vector<128x128xf32>
    %cst_44 = arith.constant dense<0xFF800000> : vector<128xf32>
    %104 = vector.multi_reduction <maximumf>, %103, %cst_44 [1] : vector<128x128xf32> to vector<128xf32>
    %105 = vector.shape_cast %104 : vector<128xf32> to vector<128x1xf32>
    %106 = vector.broadcast %105 : vector<128x1xf32> to vector<128x128xf32>
    %107 = arith.subf %103, %106 : vector<128x128xf32>
    %108 = math.exp %107 : vector<128x128xf32>
    %cst_45 = arith.constant dense<0.000000e+00> : vector<128xf32>
    %109 = vector.multi_reduction <add>, %108, %cst_45 [1] : vector<128x128xf32> to vector<128xf32>
    %110 = vector.shape_cast %109 : vector<128xf32> to vector<128x1xf32>
    %111 = tpu.reciprocal %110 {approx = true} : vector<128x1xf32> -> vector<128x1xf32>
    %112 = vector.broadcast %111 : vector<128x1xf32> to vector<128x128xf32>
    %113 = arith.mulf %108, %112 : vector<128x128xf32>
    %114 = arith.truncf %113 : vector<128x128xf32> to vector<128x128xbf16>
    %115 = arith.truncf %94 : vector<128x16xf32> to vector<128x16xbf16>
    %cst_46 = arith.constant dense<0.000000e+00> : vector<128x16xf32>
    %116 = tpu.matmul %114, %115, %cst_46 {dimension_numbers = #tpu.dot_dimension_numbers<[1], [0], [0], [1], [0, 0, 1, 1], [], []>} : vector<128x128xbf16>, vector<128x16xbf16>, vector<128x16xf32> -> vector<128x16xf32>
    %117 = tpu.concatenate %91, %116 in 1 : vector<128x16xf32>, vector<128x16xf32> -> vector<128x32xf32>
    %c0_47 = arith.constant 0 : index
    %c0_48 = arith.constant 0 : index
    %c0_49 = arith.constant 0 : index
    %118 = vector.load %arg9[%c0_47, %c0_48, %c0_49] : memref<2x32x32xbf16, #tpu.memory_space<vmem>>, vector<1x32x32xbf16>
    %119 = vector.shape_cast %118 : vector<1x32x32xbf16> to vector<32x32xbf16>
    %120 = arith.truncf %117 : vector<128x32xf32> to vector<128x32xbf16>
    %cst_50 = arith.constant dense<0.000000e+00> : vector<128x32xf32>
    %121 = tpu.matmul %120, %119, %cst_50 {dimension_numbers = #tpu.dot_dimension_numbers<[1], [0], [0], [1], [0, 0, 1, 1], [], []>} : vector<128x32xbf16>, vector<32x32xbf16>, vector<128x32xf32> -> vector<128x32xf32>
    %122 = arith.addf %30, %121 : vector<128x32xf32>
    %123 = vector.broadcast %33 : vector<1x32xf32> to vector<128x32xf32>
    %124 = arith.addf %122, %123 : vector<128x32xf32>
    %cst_51 = arith.constant dense<0.000000e+00> : vector<128xf32>
    %125 = vector.multi_reduction <add>, %124, %cst_51 [1] : vector<128x32xf32> to vector<128xf32>
    %126 = vector.shape_cast %125 : vector<128xf32> to vector<128x1xf32>
    %cst_52 = arith.constant 3.200000e+01 : f32
    %127 = vector.broadcast %cst_52 : f32 to vector<128x1xf32>
    %128 = arith.divf %126, %127 : vector<128x1xf32>
    %129 = vector.broadcast %128 : vector<128x1xf32> to vector<128x32xf32>
    %130 = arith.subf %124, %129 : vector<128x32xf32>
    %131 = arith.mulf %130, %130 : vector<128x32xf32>
    %cst_53 = arith.constant dense<0.000000e+00> : vector<128xf32>
    %132 = vector.multi_reduction <add>, %131, %cst_53 [1] : vector<128x32xf32> to vector<128xf32>
    %133 = vector.shape_cast %132 : vector<128xf32> to vector<128x1xf32>
    %cst_54 = arith.constant 3.200000e+01 : f32
    %134 = vector.broadcast %cst_54 : f32 to vector<128x1xf32>
    %135 = arith.divf %133, %134 : vector<128x1xf32>
    %136 = vector.broadcast %128 : vector<128x1xf32> to vector<128x32xf32>
    %137 = arith.subf %124, %136 : vector<128x32xf32>
    %cst_55 = arith.constant 9.99999974E-6 : f32
    %138 = vector.broadcast %cst_55 : f32 to vector<128x1xf32>
    %139 = arith.addf %135, %138 : vector<128x1xf32>
    %140 = math.rsqrt %139 : vector<128x1xf32>
    %141 = vector.broadcast %140 : vector<128x1xf32> to vector<128x32xf32>
    %142 = arith.mulf %137, %141 : vector<128x32xf32>
    %143 = vector.broadcast %34 : vector<1x32xf32> to vector<128x32xf32>
    %144 = arith.mulf %142, %143 : vector<128x32xf32>
    %145 = vector.broadcast %35 : vector<1x32xf32> to vector<128x32xf32>
    %146 = arith.addf %144, %145 : vector<128x32xf32>
    %c0_56 = arith.constant 0 : index
    %c0_57 = arith.constant 0 : index
    %c0_58 = arith.constant 0 : index
    %147 = vector.load %arg11[%c0_56, %c0_57, %c0_58] : memref<2x32x128xbf16, #tpu.memory_space<vmem>>, vector<1x32x128xbf16>
    %148 = vector.shape_cast %147 : vector<1x32x128xbf16> to vector<32x128xbf16>
    %149 = arith.truncf %146 : vector<128x32xf32> to vector<128x32xbf16>
    %cst_59 = arith.constant dense<0.000000e+00> : vector<128x128xf32>
    %150 = tpu.matmul %149, %148, %cst_59 {dimension_numbers = #tpu.dot_dimension_numbers<[1], [0], [0], [1], [0, 0, 1, 1], [], []>} : vector<128x32xbf16>, vector<32x128xbf16>, vector<128x128xf32> -> vector<128x128xf32>
    %151 = vector.broadcast %37 : vector<1x128xf32> to vector<128x128xf32>
    %152 = arith.addf %150, %151 : vector<128x128xf32>
    %cst_60 = arith.constant 5.000000e-01 : f32
    %153 = vector.broadcast %cst_60 : f32 to vector<128x128xf32>
    %154 = arith.mulf %153, %152 : vector<128x128xf32>
    %cst_61 = arith.constant 0.707106769 : f32
    %155 = vector.broadcast %cst_61 : f32 to vector<128x128xf32>
    %156 = arith.mulf %152, %155 : vector<128x128xf32>
    %cst_62 = arith.constant 0.000000e+00 : f32
    %157 = vector.broadcast %cst_62 : f32 to vector<128x128xf32>
    %158 = arith.cmpf oge, %156, %157 : vector<128x128xf32>
    %cst_63 = arith.constant 1.000000e+00 : f32
    %cst_64 = arith.constant -1.000000e+00 : f32
    %159 = vector.broadcast %cst_63 : f32 to vector<128x128xf32>
    %160 = vector.broadcast %cst_64 : f32 to vector<128x128xf32>
    %161 = arith.select %158, %159, %160 : vector<128x128xi1>, vector<128x128xf32>
    %162 = math.absf %156 : vector<128x128xf32>
    %cst_65 = arith.constant 0.327591091 : f32
    %163 = vector.broadcast %cst_65 : f32 to vector<128x128xf32>
    %164 = arith.mulf %163, %162 : vector<128x128xf32>
    %cst_66 = arith.constant 1.000000e+00 : f32
    %165 = vector.broadcast %cst_66 : f32 to vector<128x128xf32>
    %166 = arith.addf %165, %164 : vector<128x128xf32>
    %167 = tpu.reciprocal %166 {approx = true} : vector<128x128xf32> -> vector<128x128xf32>
    %cst_67 = arith.constant 1.06140542 : f32
    %168 = vector.broadcast %cst_67 : f32 to vector<128x128xf32>
    %169 = arith.mulf %168, %167 : vector<128x128xf32>
    %cst_68 = arith.constant -1.45315206 : f32
    %170 = vector.broadcast %cst_68 : f32 to vector<128x128xf32>
    %171 = arith.addf %169, %170 : vector<128x128xf32>
    %172 = arith.mulf %171, %167 : vector<128x128xf32>
    %cst_69 = arith.constant 1.42141378 : f32
    %173 = vector.broadcast %cst_69 : f32 to vector<128x128xf32>
    %174 = arith.addf %172, %173 : vector<128x128xf32>
    %175 = arith.mulf %174, %167 : vector<128x128xf32>
    %cst_70 = arith.constant -0.284496725 : f32
    %176 = vector.broadcast %cst_70 : f32 to vector<128x128xf32>
    %177 = arith.addf %175, %176 : vector<128x128xf32>
    %178 = arith.mulf %177, %167 : vector<128x128xf32>
    %cst_71 = arith.constant 0.254829586 : f32
    %179 = vector.broadcast %cst_71 : f32 to vector<128x128xf32>
    %180 = arith.addf %178, %179 : vector<128x128xf32>
    %181 = arith.mulf %180, %167 : vector<128x128xf32>
    %cst_72 = arith.constant 0.000000e+00 : f32
    %182 = vector.broadcast %cst_72 : f32 to vector<128x128xf32>
    %183 = arith.subf %182, %162 : vector<128x128xf32>
    %184 = arith.mulf %183, %162 : vector<128x128xf32>
    %185 = math.exp %184 : vector<128x128xf32>
    %186 = arith.mulf %181, %185 : vector<128x128xf32>
    %cst_73 = arith.constant 1.000000e+00 : f32
    %187 = vector.broadcast %cst_73 : f32 to vector<128x128xf32>
    %188 = arith.subf %187, %186 : vector<128x128xf32>
    %189 = arith.mulf %161, %188 : vector<128x128xf32>
    %cst_74 = arith.constant 1.000000e+00 : f32
    %190 = vector.broadcast %cst_74 : f32 to vector<128x128xf32>
    %191 = arith.addf %190, %189 : vector<128x128xf32>
    %192 = arith.mulf %154, %191 : vector<128x128xf32>
    %c0_75 = arith.constant 0 : index
    %c0_76 = arith.constant 0 : index
    %c0_77 = arith.constant 0 : index
    %193 = vector.load %arg12[%c0_75, %c0_76, %c0_77] : memref<2x128x32xbf16, #tpu.memory_space<vmem>>, vector<1x128x32xbf16>
    %194 = vector.shape_cast %193 : vector<1x128x32xbf16> to vector<128x32xbf16>
    %195 = arith.truncf %192 : vector<128x128xf32> to vector<128x128xbf16>
    %cst_78 = arith.constant dense<0.000000e+00> : vector<128x32xf32>
    %196 = tpu.matmul %195, %194, %cst_78 {dimension_numbers = #tpu.dot_dimension_numbers<[1], [0], [0], [1], [0, 0, 1, 1], [], []>} : vector<128x128xbf16>, vector<128x32xbf16>, vector<128x32xf32> -> vector<128x32xf32>
    %197 = arith.addf %124, %196 : vector<128x32xf32>
    %198 = vector.broadcast %36 : vector<1x32xf32> to vector<128x32xf32>
    %199 = arith.addf %197, %198 : vector<128x32xf32>
    %c9 = arith.constant 9 : index
    %c0_79 = arith.constant 0 : index
    %200 = vector.load %arg3[%c9, %c0_79] : memref<23x32xf32, #tpu.memory_space<vmem>>, vector<1x32xf32>
    %c10 = arith.constant 10 : index
    %c0_80 = arith.constant 0 : index
    %201 = vector.load %arg3[%c10, %c0_80] : memref<23x32xf32, #tpu.memory_space<vmem>>, vector<1x32xf32>
    %c11 = arith.constant 11 : index
    %c0_81 = arith.constant 0 : index
    %202 = vector.load %arg3[%c11, %c0_81] : memref<23x32xf32, #tpu.memory_space<vmem>>, vector<1x32xf32>
    %c12 = arith.constant 12 : index
    %c0_82 = arith.constant 0 : index
    %203 = vector.load %arg3[%c12, %c0_82] : memref<23x32xf32, #tpu.memory_space<vmem>>, vector<1x32xf32>
    %c13 = arith.constant 13 : index
    %c0_83 = arith.constant 0 : index
    %204 = vector.load %arg3[%c13, %c0_83] : memref<23x32xf32, #tpu.memory_space<vmem>>, vector<1x32xf32>
    %c14 = arith.constant 14 : index
    %c0_84 = arith.constant 0 : index
    %205 = vector.load %arg3[%c14, %c0_84] : memref<23x32xf32, #tpu.memory_space<vmem>>, vector<1x32xf32>
    %c1_85 = arith.constant 1 : index
    %c0_86 = arith.constant 0 : index
    %206 = vector.load %arg5[%c1_85, %c0_86] : memref<2x128xf32, #tpu.memory_space<vmem>>, vector<1x128xf32>
    %cst_87 = arith.constant dense<0.000000e+00> : vector<128xf32>
    %207 = vector.multi_reduction <add>, %199, %cst_87 [1] : vector<128x32xf32> to vector<128xf32>
    %208 = vector.shape_cast %207 : vector<128xf32> to vector<128x1xf32>
    %cst_88 = arith.constant 3.200000e+01 : f32
    %209 = vector.broadcast %cst_88 : f32 to vector<128x1xf32>
    %210 = arith.divf %208, %209 : vector<128x1xf32>
    %211 = vector.broadcast %210 : vector<128x1xf32> to vector<128x32xf32>
    %212 = arith.subf %199, %211 : vector<128x32xf32>
    %213 = arith.mulf %212, %212 : vector<128x32xf32>
    %cst_89 = arith.constant dense<0.000000e+00> : vector<128xf32>
    %214 = vector.multi_reduction <add>, %213, %cst_89 [1] : vector<128x32xf32> to vector<128xf32>
    %215 = vector.shape_cast %214 : vector<128xf32> to vector<128x1xf32>
    %cst_90 = arith.constant 3.200000e+01 : f32
    %216 = vector.broadcast %cst_90 : f32 to vector<128x1xf32>
    %217 = arith.divf %215, %216 : vector<128x1xf32>
    %218 = vector.broadcast %210 : vector<128x1xf32> to vector<128x32xf32>
    %219 = arith.subf %199, %218 : vector<128x32xf32>
    %cst_91 = arith.constant 9.99999974E-6 : f32
    %220 = vector.broadcast %cst_91 : f32 to vector<128x1xf32>
    %221 = arith.addf %217, %220 : vector<128x1xf32>
    %222 = math.rsqrt %221 : vector<128x1xf32>
    %223 = vector.broadcast %222 : vector<128x1xf32> to vector<128x32xf32>
    %224 = arith.mulf %219, %223 : vector<128x32xf32>
    %225 = vector.broadcast %200 : vector<1x32xf32> to vector<128x32xf32>
    %226 = arith.mulf %224, %225 : vector<128x32xf32>
    %227 = vector.broadcast %201 : vector<1x32xf32> to vector<128x32xf32>
    %228 = arith.addf %226, %227 : vector<128x32xf32>
    %c1_92 = arith.constant 1 : index
    %c0_93 = arith.constant 0 : index
    %c0_94 = arith.constant 0 : index
    %229 = vector.load %arg7[%c1_92, %c0_93, %c0_94] : memref<2x32x96xbf16, #tpu.memory_space<vmem>>, vector<1x32x96xbf16>
    %230 = vector.shape_cast %229 : vector<1x32x96xbf16> to vector<32x96xbf16>
    %231 = arith.truncf %228 : vector<128x32xf32> to vector<128x32xbf16>
    %cst_95 = arith.constant dense<0.000000e+00> : vector<128x96xf32>
    %232 = tpu.matmul %231, %230, %cst_95 {dimension_numbers = #tpu.dot_dimension_numbers<[1], [0], [0], [1], [0, 0, 1, 1], [], []>} : vector<128x32xbf16>, vector<32x96xbf16>, vector<128x96xf32> -> vector<128x96xf32>
    %c1_96 = arith.constant 1 : index
    %c0_97 = arith.constant 0 : index
    %233 = vector.load %arg8[%c1_96, %c0_97] : memref<2x96xf32, #tpu.memory_space<vmem>>, vector<1x96xf32>
    %234 = vector.broadcast %233 : vector<1x96xf32> to vector<128x96xf32>
    %235 = arith.addf %232, %234 : vector<128x96xf32>
    %236 = vector.extract_strided_slice %235 {offsets = [0, 0], sizes = [128, 16], strides = [1, 1]} : vector<128x96xf32> to vector<128x16xf32>
    %237 = vector.extract_strided_slice %235 {offsets = [0, 16], sizes = [128, 16], strides = [1, 1]} : vector<128x96xf32> to vector<128x16xf32>
    %238 = vector.extract_strided_slice %235 {offsets = [0, 32], sizes = [128, 16], strides = [1, 1]} : vector<128x96xf32> to vector<128x16xf32>
    %239 = arith.truncf %236 : vector<128x16xf32> to vector<128x16xbf16>
    %240 = arith.truncf %237 : vector<128x16xf32> to vector<128x16xbf16>
    %cst_98 = arith.constant dense<0.000000e+00> : vector<128x128xf32>
    %241 = tpu.matmul %239, %240, %cst_98 {dimension_numbers = #tpu.dot_dimension_numbers<[1], [1], [0], [0], [0, 0, 1, 0], [], []>} : vector<128x16xbf16>, vector<128x16xbf16>, vector<128x128xf32> -> vector<128x128xf32>
    %cst_99 = arith.constant 2.500000e-01 : f32
    %242 = vector.broadcast %cst_99 : f32 to vector<128x128xf32>
    %243 = arith.mulf %241, %242 : vector<128x128xf32>
    %c2_100 = arith.constant 2 : index
    %c0_101 = arith.constant 0 : index
    %c0_102 = arith.constant 0 : index
    %244 = vector.load %arg10[%c2_100, %c0_101, %c0_102] : memref<4x128x128xbf16, #tpu.memory_space<vmem>>, vector<1x128x128xbf16>
    %245 = vector.shape_cast %244 : vector<1x128x128xbf16> to vector<128x128xbf16>
    %246 = arith.extf %245 : vector<128x128xbf16> to vector<128x128xf32>
    %247 = arith.addf %243, %246 : vector<128x128xf32>
    %cst_103 = arith.constant dense<0xFF800000> : vector<128xf32>
    %248 = vector.multi_reduction <maximumf>, %247, %cst_103 [1] : vector<128x128xf32> to vector<128xf32>
    %249 = vector.shape_cast %248 : vector<128xf32> to vector<128x1xf32>
    %250 = vector.broadcast %249 : vector<128x1xf32> to vector<128x128xf32>
    %251 = arith.subf %247, %250 : vector<128x128xf32>
    %252 = math.exp %251 : vector<128x128xf32>
    %cst_104 = arith.constant dense<0.000000e+00> : vector<128xf32>
    %253 = vector.multi_reduction <add>, %252, %cst_104 [1] : vector<128x128xf32> to vector<128xf32>
    %254 = vector.shape_cast %253 : vector<128xf32> to vector<128x1xf32>
    %255 = tpu.reciprocal %254 {approx = true} : vector<128x1xf32> -> vector<128x1xf32>
    %256 = vector.broadcast %255 : vector<128x1xf32> to vector<128x128xf32>
    %257 = arith.mulf %252, %256 : vector<128x128xf32>
    %258 = arith.truncf %257 : vector<128x128xf32> to vector<128x128xbf16>
    %259 = arith.truncf %238 : vector<128x16xf32> to vector<128x16xbf16>
    %cst_105 = arith.constant dense<0.000000e+00> : vector<128x16xf32>
    %260 = tpu.matmul %258, %259, %cst_105 {dimension_numbers = #tpu.dot_dimension_numbers<[1], [0], [0], [1], [0, 0, 1, 1], [], []>} : vector<128x128xbf16>, vector<128x16xbf16>, vector<128x16xf32> -> vector<128x16xf32>
    %261 = vector.extract_strided_slice %235 {offsets = [0, 48], sizes = [128, 16], strides = [1, 1]} : vector<128x96xf32> to vector<128x16xf32>
    %262 = vector.extract_strided_slice %235 {offsets = [0, 64], sizes = [128, 16], strides = [1, 1]} : vector<128x96xf32> to vector<128x16xf32>
    %263 = vector.extract_strided_slice %235 {offsets = [0, 80], sizes = [128, 16], strides = [1, 1]} : vector<128x96xf32> to vector<128x16xf32>
    %264 = arith.truncf %261 : vector<128x16xf32> to vector<128x16xbf16>
    %265 = arith.truncf %262 : vector<128x16xf32> to vector<128x16xbf16>
    %cst_106 = arith.constant dense<0.000000e+00> : vector<128x128xf32>
    %266 = tpu.matmul %264, %265, %cst_106 {dimension_numbers = #tpu.dot_dimension_numbers<[1], [1], [0], [0], [0, 0, 1, 0], [], []>} : vector<128x16xbf16>, vector<128x16xbf16>, vector<128x128xf32> -> vector<128x128xf32>
    %cst_107 = arith.constant 2.500000e-01 : f32
    %267 = vector.broadcast %cst_107 : f32 to vector<128x128xf32>
    %268 = arith.mulf %266, %267 : vector<128x128xf32>
    %c3_108 = arith.constant 3 : index
    %c0_109 = arith.constant 0 : index
    %c0_110 = arith.constant 0 : index
    %269 = vector.load %arg10[%c3_108, %c0_109, %c0_110] : memref<4x128x128xbf16, #tpu.memory_space<vmem>>, vector<1x128x128xbf16>
    %270 = vector.shape_cast %269 : vector<1x128x128xbf16> to vector<128x128xbf16>
    %271 = arith.extf %270 : vector<128x128xbf16> to vector<128x128xf32>
    %272 = arith.addf %268, %271 : vector<128x128xf32>
    %cst_111 = arith.constant dense<0xFF800000> : vector<128xf32>
    %273 = vector.multi_reduction <maximumf>, %272, %cst_111 [1] : vector<128x128xf32> to vector<128xf32>
    %274 = vector.shape_cast %273 : vector<128xf32> to vector<128x1xf32>
    %275 = vector.broadcast %274 : vector<128x1xf32> to vector<128x128xf32>
    %276 = arith.subf %272, %275 : vector<128x128xf32>
    %277 = math.exp %276 : vector<128x128xf32>
    %cst_112 = arith.constant dense<0.000000e+00> : vector<128xf32>
    %278 = vector.multi_reduction <add>, %277, %cst_112 [1] : vector<128x128xf32> to vector<128xf32>
    %279 = vector.shape_cast %278 : vector<128xf32> to vector<128x1xf32>
    %280 = tpu.reciprocal %279 {approx = true} : vector<128x1xf32> -> vector<128x1xf32>
    %281 = vector.broadcast %280 : vector<128x1xf32> to vector<128x128xf32>
    %282 = arith.mulf %277, %281 : vector<128x128xf32>
    %283 = arith.truncf %282 : vector<128x128xf32> to vector<128x128xbf16>
    %284 = arith.truncf %263 : vector<128x16xf32> to vector<128x16xbf16>
    %cst_113 = arith.constant dense<0.000000e+00> : vector<128x16xf32>
    %285 = tpu.matmul %283, %284, %cst_113 {dimension_numbers = #tpu.dot_dimension_numbers<[1], [0], [0], [1], [0, 0, 1, 1], [], []>} : vector<128x128xbf16>, vector<128x16xbf16>, vector<128x16xf32> -> vector<128x16xf32>
    %286 = tpu.concatenate %260, %285 in 1 : vector<128x16xf32>, vector<128x16xf32> -> vector<128x32xf32>
    %c1_114 = arith.constant 1 : index
    %c0_115 = arith.constant 0 : index
    %c0_116 = arith.constant 0 : index
    %287 = vector.load %arg9[%c1_114, %c0_115, %c0_116] : memref<2x32x32xbf16, #tpu.memory_space<vmem>>, vector<1x32x32xbf16>
    %288 = vector.shape_cast %287 : vector<1x32x32xbf16> to vector<32x32xbf16>
    %289 = arith.truncf %286 : vector<128x32xf32> to vector<128x32xbf16>
    %cst_117 = arith.constant dense<0.000000e+00> : vector<128x32xf32>
    %290 = tpu.matmul %289, %288, %cst_117 {dimension_numbers = #tpu.dot_dimension_numbers<[1], [0], [0], [1], [0, 0, 1, 1], [], []>} : vector<128x32xbf16>, vector<32x32xbf16>, vector<128x32xf32> -> vector<128x32xf32>
    %291 = arith.addf %199, %290 : vector<128x32xf32>
    %292 = vector.broadcast %202 : vector<1x32xf32> to vector<128x32xf32>
    %293 = arith.addf %291, %292 : vector<128x32xf32>
    %cst_118 = arith.constant dense<0.000000e+00> : vector<128xf32>
    %294 = vector.multi_reduction <add>, %293, %cst_118 [1] : vector<128x32xf32> to vector<128xf32>
    %295 = vector.shape_cast %294 : vector<128xf32> to vector<128x1xf32>
    %cst_119 = arith.constant 3.200000e+01 : f32
    %296 = vector.broadcast %cst_119 : f32 to vector<128x1xf32>
    %297 = arith.divf %295, %296 : vector<128x1xf32>
    %298 = vector.broadcast %297 : vector<128x1xf32> to vector<128x32xf32>
    %299 = arith.subf %293, %298 : vector<128x32xf32>
    %300 = arith.mulf %299, %299 : vector<128x32xf32>
    %cst_120 = arith.constant dense<0.000000e+00> : vector<128xf32>
    %301 = vector.multi_reduction <add>, %300, %cst_120 [1] : vector<128x32xf32> to vector<128xf32>
    %302 = vector.shape_cast %301 : vector<128xf32> to vector<128x1xf32>
    %cst_121 = arith.constant 3.200000e+01 : f32
    %303 = vector.broadcast %cst_121 : f32 to vector<128x1xf32>
    %304 = arith.divf %302, %303 : vector<128x1xf32>
    %305 = vector.broadcast %297 : vector<128x1xf32> to vector<128x32xf32>
    %306 = arith.subf %293, %305 : vector<128x32xf32>
    %cst_122 = arith.constant 9.99999974E-6 : f32
    %307 = vector.broadcast %cst_122 : f32 to vector<128x1xf32>
    %308 = arith.addf %304, %307 : vector<128x1xf32>
    %309 = math.rsqrt %308 : vector<128x1xf32>
    %310 = vector.broadcast %309 : vector<128x1xf32> to vector<128x32xf32>
    %311 = arith.mulf %306, %310 : vector<128x32xf32>
    %312 = vector.broadcast %203 : vector<1x32xf32> to vector<128x32xf32>
    %313 = arith.mulf %311, %312 : vector<128x32xf32>
    %314 = vector.broadcast %204 : vector<1x32xf32> to vector<128x32xf32>
    %315 = arith.addf %313, %314 : vector<128x32xf32>
    %c1_123 = arith.constant 1 : index
    %c0_124 = arith.constant 0 : index
    %c0_125 = arith.constant 0 : index
    %316 = vector.load %arg11[%c1_123, %c0_124, %c0_125] : memref<2x32x128xbf16, #tpu.memory_space<vmem>>, vector<1x32x128xbf16>
    %317 = vector.shape_cast %316 : vector<1x32x128xbf16> to vector<32x128xbf16>
    %318 = arith.truncf %315 : vector<128x32xf32> to vector<128x32xbf16>
    %cst_126 = arith.constant dense<0.000000e+00> : vector<128x128xf32>
    %319 = tpu.matmul %318, %317, %cst_126 {dimension_numbers = #tpu.dot_dimension_numbers<[1], [0], [0], [1], [0, 0, 1, 1], [], []>} : vector<128x32xbf16>, vector<32x128xbf16>, vector<128x128xf32> -> vector<128x128xf32>
    %320 = vector.broadcast %206 : vector<1x128xf32> to vector<128x128xf32>
    %321 = arith.addf %319, %320 : vector<128x128xf32>
    %cst_127 = arith.constant 5.000000e-01 : f32
    %322 = vector.broadcast %cst_127 : f32 to vector<128x128xf32>
    %323 = arith.mulf %322, %321 : vector<128x128xf32>
    %cst_128 = arith.constant 0.707106769 : f32
    %324 = vector.broadcast %cst_128 : f32 to vector<128x128xf32>
    %325 = arith.mulf %321, %324 : vector<128x128xf32>
    %cst_129 = arith.constant 0.000000e+00 : f32
    %326 = vector.broadcast %cst_129 : f32 to vector<128x128xf32>
    %327 = arith.cmpf oge, %325, %326 : vector<128x128xf32>
    %cst_130 = arith.constant 1.000000e+00 : f32
    %cst_131 = arith.constant -1.000000e+00 : f32
    %328 = vector.broadcast %cst_130 : f32 to vector<128x128xf32>
    %329 = vector.broadcast %cst_131 : f32 to vector<128x128xf32>
    %330 = arith.select %327, %328, %329 : vector<128x128xi1>, vector<128x128xf32>
    %331 = math.absf %325 : vector<128x128xf32>
    %cst_132 = arith.constant 0.327591091 : f32
    %332 = vector.broadcast %cst_132 : f32 to vector<128x128xf32>
    %333 = arith.mulf %332, %331 : vector<128x128xf32>
    %cst_133 = arith.constant 1.000000e+00 : f32
    %334 = vector.broadcast %cst_133 : f32 to vector<128x128xf32>
    %335 = arith.addf %334, %333 : vector<128x128xf32>
    %336 = tpu.reciprocal %335 {approx = true} : vector<128x128xf32> -> vector<128x128xf32>
    %cst_134 = arith.constant 1.06140542 : f32
    %337 = vector.broadcast %cst_134 : f32 to vector<128x128xf32>
    %338 = arith.mulf %337, %336 : vector<128x128xf32>
    %cst_135 = arith.constant -1.45315206 : f32
    %339 = vector.broadcast %cst_135 : f32 to vector<128x128xf32>
    %340 = arith.addf %338, %339 : vector<128x128xf32>
    %341 = arith.mulf %340, %336 : vector<128x128xf32>
    %cst_136 = arith.constant 1.42141378 : f32
    %342 = vector.broadcast %cst_136 : f32 to vector<128x128xf32>
    %343 = arith.addf %341, %342 : vector<128x128xf32>
    %344 = arith.mulf %343, %336 : vector<128x128xf32>
    %cst_137 = arith.constant -0.284496725 : f32
    %345 = vector.broadcast %cst_137 : f32 to vector<128x128xf32>
    %346 = arith.addf %344, %345 : vector<128x128xf32>
    %347 = arith.mulf %346, %336 : vector<128x128xf32>
    %cst_138 = arith.constant 0.254829586 : f32
    %348 = vector.broadcast %cst_138 : f32 to vector<128x128xf32>
    %349 = arith.addf %347, %348 : vector<128x128xf32>
    %350 = arith.mulf %349, %336 : vector<128x128xf32>
    %cst_139 = arith.constant 0.000000e+00 : f32
    %351 = vector.broadcast %cst_139 : f32 to vector<128x128xf32>
    %352 = arith.subf %351, %331 : vector<128x128xf32>
    %353 = arith.mulf %352, %331 : vector<128x128xf32>
    %354 = math.exp %353 : vector<128x128xf32>
    %355 = arith.mulf %350, %354 : vector<128x128xf32>
    %cst_140 = arith.constant 1.000000e+00 : f32
    %356 = vector.broadcast %cst_140 : f32 to vector<128x128xf32>
    %357 = arith.subf %356, %355 : vector<128x128xf32>
    %358 = arith.mulf %330, %357 : vector<128x128xf32>
    %cst_141 = arith.constant 1.000000e+00 : f32
    %359 = vector.broadcast %cst_141 : f32 to vector<128x128xf32>
    %360 = arith.addf %359, %358 : vector<128x128xf32>
    %361 = arith.mulf %323, %360 : vector<128x128xf32>
    %c1_142 = arith.constant 1 : index
    %c0_143 = arith.constant 0 : index
    %c0_144 = arith.constant 0 : index
    %362 = vector.load %arg12[%c1_142, %c0_143, %c0_144] : memref<2x128x32xbf16, #tpu.memory_space<vmem>>, vector<1x128x32xbf16>
    %363 = vector.shape_cast %362 : vector<1x128x32xbf16> to vector<128x32xbf16>
    %364 = arith.truncf %361 : vector<128x128xf32> to vector<128x128xbf16>
    %cst_145 = arith.constant dense<0.000000e+00> : vector<128x32xf32>
    %365 = tpu.matmul %364, %363, %cst_145 {dimension_numbers = #tpu.dot_dimension_numbers<[1], [0], [0], [1], [0, 0, 1, 1], [], []>} : vector<128x128xbf16>, vector<128x32xbf16>, vector<128x32xf32> -> vector<128x32xf32>
    %366 = arith.addf %293, %365 : vector<128x32xf32>
    %367 = vector.broadcast %205 : vector<1x32xf32> to vector<128x32xf32>
    %368 = arith.addf %366, %367 : vector<128x32xf32>
    %c0_146 = arith.constant 0 : index
    %c0_147 = arith.constant 0 : index
    %c0_148 = arith.constant 0 : index
    %369 = vector.load %arg13[%c0_146, %c0_147, %c0_148] : memref<4x32x128xf32, #tpu.memory_space<vmem>>, vector<1x32x128xf32>
    %370 = vector.shape_cast %369 : vector<1x32x128xf32> to vector<32x128xf32>
    %cst_149 = arith.constant dense<0.000000e+00> : vector<32x32xf32>
    %371 = tpu.matmul %370, %368, %cst_149 {dimension_numbers = #tpu.dot_dimension_numbers<[1], [0], [0], [1], [0, 0, 1, 1], [], []>} : vector<32x128xf32>, vector<128x32xf32>, vector<32x32xf32> -> vector<32x32xf32>
    %c1_150 = arith.constant 1 : index
    %c0_151 = arith.constant 0 : index
    %c0_152 = arith.constant 0 : index
    %372 = vector.load %arg13[%c1_150, %c0_151, %c0_152] : memref<4x32x128xf32, #tpu.memory_space<vmem>>, vector<1x32x128xf32>
    %373 = vector.shape_cast %372 : vector<1x32x128xf32> to vector<32x128xf32>
    %cst_153 = arith.constant dense<0.000000e+00> : vector<32x32xf32>
    %374 = tpu.matmul %373, %368, %cst_153 {dimension_numbers = #tpu.dot_dimension_numbers<[1], [0], [0], [1], [0, 0, 1, 1], [], []>} : vector<32x128xf32>, vector<128x32xf32>, vector<32x32xf32> -> vector<32x32xf32>
    %c2_154 = arith.constant 2 : index
    %c0_155 = arith.constant 0 : index
    %c0_156 = arith.constant 0 : index
    %375 = vector.load %arg13[%c2_154, %c0_155, %c0_156] : memref<4x32x128xf32, #tpu.memory_space<vmem>>, vector<1x32x128xf32>
    %376 = vector.shape_cast %375 : vector<1x32x128xf32> to vector<32x128xf32>
    %cst_157 = arith.constant dense<0.000000e+00> : vector<32x32xf32>
    %377 = tpu.matmul %376, %368, %cst_157 {dimension_numbers = #tpu.dot_dimension_numbers<[1], [0], [0], [1], [0, 0, 1, 1], [], []>} : vector<32x128xf32>, vector<128x32xf32>, vector<32x32xf32> -> vector<32x32xf32>
    %c3_158 = arith.constant 3 : index
    %c0_159 = arith.constant 0 : index
    %c0_160 = arith.constant 0 : index
    %378 = vector.load %arg13[%c3_158, %c0_159, %c0_160] : memref<4x32x128xf32, #tpu.memory_space<vmem>>, vector<1x32x128xf32>
    %379 = vector.shape_cast %378 : vector<1x32x128xf32> to vector<32x128xf32>
    %cst_161 = arith.constant dense<0.000000e+00> : vector<32x32xf32>
    %380 = tpu.matmul %379, %368, %cst_161 {dimension_numbers = #tpu.dot_dimension_numbers<[1], [0], [0], [1], [0, 0, 1, 1], [], []>} : vector<32x128xf32>, vector<128x32xf32>, vector<32x32xf32> -> vector<32x32xf32>
    %cst_162 = arith.constant dense<0.000000e+00> : vector<32xf32>
    %381 = vector.multi_reduction <add>, %371, %cst_162 [1] : vector<32x32xf32> to vector<32xf32>
    %382 = vector.shape_cast %381 : vector<32xf32> to vector<32x1xf32>
    %cst_163 = arith.constant 0.000000e+00 : f32
    %383 = vector.broadcast %cst_163 : f32 to vector<32x1xf32>
    %384 = arith.addf %383, %382 : vector<32x1xf32>
    %cst_164 = arith.constant dense<0.000000e+00> : vector<32xf32>
    %385 = vector.multi_reduction <add>, %374, %cst_164 [1] : vector<32x32xf32> to vector<32xf32>
    %386 = vector.shape_cast %385 : vector<32xf32> to vector<32x1xf32>
    %387 = arith.addf %384, %386 : vector<32x1xf32>
    %cst_165 = arith.constant dense<0.000000e+00> : vector<32xf32>
    %388 = vector.multi_reduction <add>, %377, %cst_165 [1] : vector<32x32xf32> to vector<32xf32>
    %389 = vector.shape_cast %388 : vector<32xf32> to vector<32x1xf32>
    %390 = arith.addf %387, %389 : vector<32x1xf32>
    %cst_166 = arith.constant dense<0.000000e+00> : vector<32xf32>
    %391 = vector.multi_reduction <add>, %380, %cst_166 [1] : vector<32x32xf32> to vector<32xf32>
    %392 = vector.shape_cast %391 : vector<32xf32> to vector<32x1xf32>
    %393 = arith.addf %390, %392 : vector<32x1xf32>
    %cst_167 = arith.constant 7.812500e-03 : f32
    %394 = vector.broadcast %cst_167 : f32 to vector<32x1xf32>
    %395 = arith.mulf %393, %394 : vector<32x1xf32>
    %396 = vector.broadcast %395 : vector<32x1xf32> to vector<32x32xf32>
    %397 = arith.subf %371, %396 : vector<32x32xf32>
    %398 = arith.mulf %397, %397 : vector<32x32xf32>
    %cst_168 = arith.constant dense<0.000000e+00> : vector<32xf32>
    %399 = vector.multi_reduction <add>, %398, %cst_168 [1] : vector<32x32xf32> to vector<32xf32>
    %400 = vector.shape_cast %399 : vector<32xf32> to vector<32x1xf32>
    %cst_169 = arith.constant 0.000000e+00 : f32
    %401 = vector.broadcast %cst_169 : f32 to vector<32x1xf32>
    %402 = arith.addf %401, %400 : vector<32x1xf32>
    %403 = vector.broadcast %395 : vector<32x1xf32> to vector<32x32xf32>
    %404 = arith.subf %374, %403 : vector<32x32xf32>
    %405 = arith.mulf %404, %404 : vector<32x32xf32>
    %cst_170 = arith.constant dense<0.000000e+00> : vector<32xf32>
    %406 = vector.multi_reduction <add>, %405, %cst_170 [1] : vector<32x32xf32> to vector<32xf32>
    %407 = vector.shape_cast %406 : vector<32xf32> to vector<32x1xf32>
    %408 = arith.addf %402, %407 : vector<32x1xf32>
    %409 = vector.broadcast %395 : vector<32x1xf32> to vector<32x32xf32>
    %410 = arith.subf %377, %409 : vector<32x32xf32>
    %411 = arith.mulf %410, %410 : vector<32x32xf32>
    %cst_171 = arith.constant dense<0.000000e+00> : vector<32xf32>
    %412 = vector.multi_reduction <add>, %411, %cst_171 [1] : vector<32x32xf32> to vector<32xf32>
    %413 = vector.shape_cast %412 : vector<32xf32> to vector<32x1xf32>
    %414 = arith.addf %408, %413 : vector<32x1xf32>
    %415 = vector.broadcast %395 : vector<32x1xf32> to vector<32x32xf32>
    %416 = arith.subf %380, %415 : vector<32x32xf32>
    %417 = arith.mulf %416, %416 : vector<32x32xf32>
    %cst_172 = arith.constant dense<0.000000e+00> : vector<32xf32>
    %418 = vector.multi_reduction <add>, %417, %cst_172 [1] : vector<32x32xf32> to vector<32xf32>
    %419 = vector.shape_cast %418 : vector<32xf32> to vector<32x1xf32>
    %420 = arith.addf %414, %419 : vector<32x1xf32>
    %cst_173 = arith.constant 7.812500e-03 : f32
    %421 = vector.broadcast %cst_173 : f32 to vector<32x1xf32>
    %422 = arith.mulf %420, %421 : vector<32x1xf32>
    %cst_174 = arith.constant 9.99999974E-6 : f32
    %423 = vector.broadcast %cst_174 : f32 to vector<32x1xf32>
    %424 = arith.addf %422, %423 : vector<32x1xf32>
    %425 = math.rsqrt %424 : vector<32x1xf32>
    %426 = vector.broadcast %395 : vector<32x1xf32> to vector<32x32xf32>
    %427 = arith.subf %371, %426 : vector<32x32xf32>
    %428 = vector.broadcast %425 : vector<32x1xf32> to vector<32x32xf32>
    %429 = arith.mulf %427, %428 : vector<32x32xf32>
    %c15 = arith.constant 15 : index
    %c0_175 = arith.constant 0 : index
    %430 = vector.load %arg3[%c15, %c0_175] : memref<23x32xf32, #tpu.memory_space<vmem>>, vector<1x32xf32>
    %431 = vector.broadcast %430 : vector<1x32xf32> to vector<32x32xf32>
    %432 = arith.mulf %429, %431 : vector<32x32xf32>
    %c19 = arith.constant 19 : index
    %c0_176 = arith.constant 0 : index
    %433 = vector.load %arg3[%c19, %c0_176] : memref<23x32xf32, #tpu.memory_space<vmem>>, vector<1x32xf32>
    %434 = vector.broadcast %433 : vector<1x32xf32> to vector<32x32xf32>
    %435 = arith.addf %432, %434 : vector<32x32xf32>
    %c0_177 = arith.constant 0 : index
    %c0_178 = arith.constant 0 : index
    %c0_179 = arith.constant 0 : index
    %436 = vector.load %arg14[%c0_177, %c0_178, %c0_179] : memref<4x32x64xbf16, #tpu.memory_space<vmem>>, vector<1x32x64xbf16>
    %437 = vector.shape_cast %436 : vector<1x32x64xbf16> to vector<32x64xbf16>
    %438 = arith.truncf %435 : vector<32x32xf32> to vector<32x32xbf16>
    %cst_180 = arith.constant dense<0.000000e+00> : vector<32x64xf32>
    %439 = tpu.matmul %438, %437, %cst_180 {dimension_numbers = #tpu.dot_dimension_numbers<[1], [0], [0], [1], [0, 0, 1, 1], [], []>} : vector<32x32xbf16>, vector<32x64xbf16>, vector<32x64xf32> -> vector<32x64xf32>
    %440 = vector.broadcast %395 : vector<32x1xf32> to vector<32x32xf32>
    %441 = arith.subf %374, %440 : vector<32x32xf32>
    %442 = vector.broadcast %425 : vector<32x1xf32> to vector<32x32xf32>
    %443 = arith.mulf %441, %442 : vector<32x32xf32>
    %c16 = arith.constant 16 : index
    %c0_181 = arith.constant 0 : index
    %444 = vector.load %arg3[%c16, %c0_181] : memref<23x32xf32, #tpu.memory_space<vmem>>, vector<1x32xf32>
    %445 = vector.broadcast %444 : vector<1x32xf32> to vector<32x32xf32>
    %446 = arith.mulf %443, %445 : vector<32x32xf32>
    %c20 = arith.constant 20 : index
    %c0_182 = arith.constant 0 : index
    %447 = vector.load %arg3[%c20, %c0_182] : memref<23x32xf32, #tpu.memory_space<vmem>>, vector<1x32xf32>
    %448 = vector.broadcast %447 : vector<1x32xf32> to vector<32x32xf32>
    %449 = arith.addf %446, %448 : vector<32x32xf32>
    %c1_183 = arith.constant 1 : index
    %c0_184 = arith.constant 0 : index
    %c0_185 = arith.constant 0 : index
    %450 = vector.load %arg14[%c1_183, %c0_184, %c0_185] : memref<4x32x64xbf16, #tpu.memory_space<vmem>>, vector<1x32x64xbf16>
    %451 = vector.shape_cast %450 : vector<1x32x64xbf16> to vector<32x64xbf16>
    %452 = arith.truncf %449 : vector<32x32xf32> to vector<32x32xbf16>
    %cst_186 = arith.constant dense<0.000000e+00> : vector<32x64xf32>
    %453 = tpu.matmul %452, %451, %cst_186 {dimension_numbers = #tpu.dot_dimension_numbers<[1], [0], [0], [1], [0, 0, 1, 1], [], []>} : vector<32x32xbf16>, vector<32x64xbf16>, vector<32x64xf32> -> vector<32x64xf32>
    %454 = arith.addf %439, %453 : vector<32x64xf32>
    %455 = vector.broadcast %395 : vector<32x1xf32> to vector<32x32xf32>
    %456 = arith.subf %377, %455 : vector<32x32xf32>
    %457 = vector.broadcast %425 : vector<32x1xf32> to vector<32x32xf32>
    %458 = arith.mulf %456, %457 : vector<32x32xf32>
    %c17 = arith.constant 17 : index
    %c0_187 = arith.constant 0 : index
    %459 = vector.load %arg3[%c17, %c0_187] : memref<23x32xf32, #tpu.memory_space<vmem>>, vector<1x32xf32>
    %460 = vector.broadcast %459 : vector<1x32xf32> to vector<32x32xf32>
    %461 = arith.mulf %458, %460 : vector<32x32xf32>
    %c21 = arith.constant 21 : index
    %c0_188 = arith.constant 0 : index
    %462 = vector.load %arg3[%c21, %c0_188] : memref<23x32xf32, #tpu.memory_space<vmem>>, vector<1x32xf32>
    %463 = vector.broadcast %462 : vector<1x32xf32> to vector<32x32xf32>
    %464 = arith.addf %461, %463 : vector<32x32xf32>
    %c2_189 = arith.constant 2 : index
    %c0_190 = arith.constant 0 : index
    %c0_191 = arith.constant 0 : index
    %465 = vector.load %arg14[%c2_189, %c0_190, %c0_191] : memref<4x32x64xbf16, #tpu.memory_space<vmem>>, vector<1x32x64xbf16>
    %466 = vector.shape_cast %465 : vector<1x32x64xbf16> to vector<32x64xbf16>
    %467 = arith.truncf %464 : vector<32x32xf32> to vector<32x32xbf16>
    %cst_192 = arith.constant dense<0.000000e+00> : vector<32x64xf32>
    %468 = tpu.matmul %467, %466, %cst_192 {dimension_numbers = #tpu.dot_dimension_numbers<[1], [0], [0], [1], [0, 0, 1, 1], [], []>} : vector<32x32xbf16>, vector<32x64xbf16>, vector<32x64xf32> -> vector<32x64xf32>
    %469 = arith.addf %454, %468 : vector<32x64xf32>
    %470 = vector.broadcast %395 : vector<32x1xf32> to vector<32x32xf32>
    %471 = arith.subf %380, %470 : vector<32x32xf32>
    %472 = vector.broadcast %425 : vector<32x1xf32> to vector<32x32xf32>
    %473 = arith.mulf %471, %472 : vector<32x32xf32>
    %c18 = arith.constant 18 : index
    %c0_193 = arith.constant 0 : index
    %474 = vector.load %arg3[%c18, %c0_193] : memref<23x32xf32, #tpu.memory_space<vmem>>, vector<1x32xf32>
    %475 = vector.broadcast %474 : vector<1x32xf32> to vector<32x32xf32>
    %476 = arith.mulf %473, %475 : vector<32x32xf32>
    %c22 = arith.constant 22 : index
    %c0_194 = arith.constant 0 : index
    %477 = vector.load %arg3[%c22, %c0_194] : memref<23x32xf32, #tpu.memory_space<vmem>>, vector<1x32xf32>
    %478 = vector.broadcast %477 : vector<1x32xf32> to vector<32x32xf32>
    %479 = arith.addf %476, %478 : vector<32x32xf32>
    %c3_195 = arith.constant 3 : index
    %c0_196 = arith.constant 0 : index
    %c0_197 = arith.constant 0 : index
    %480 = vector.load %arg14[%c3_195, %c0_196, %c0_197] : memref<4x32x64xbf16, #tpu.memory_space<vmem>>, vector<1x32x64xbf16>
    %481 = vector.shape_cast %480 : vector<1x32x64xbf16> to vector<32x64xbf16>
    %482 = arith.truncf %479 : vector<32x32xf32> to vector<32x32xbf16>
    %cst_198 = arith.constant dense<0.000000e+00> : vector<32x64xf32>
    %483 = tpu.matmul %482, %481, %cst_198 {dimension_numbers = #tpu.dot_dimension_numbers<[1], [0], [0], [1], [0, 0, 1, 1], [], []>} : vector<32x32xbf16>, vector<32x64xbf16>, vector<32x64xf32> -> vector<32x64xf32>
    %484 = arith.addf %469, %483 : vector<32x64xf32>
    %c0_199 = arith.constant 0 : index
    %c0_200 = arith.constant 0 : index
    %485 = vector.load %arg4[%c0_199, %c0_200] : memref<14x64xf32, #tpu.memory_space<vmem>>, vector<1x64xf32>
    %c1_201 = arith.constant 1 : index
    %c0_202 = arith.constant 0 : index
    %486 = vector.load %arg4[%c1_201, %c0_202] : memref<14x64xf32, #tpu.memory_space<vmem>>, vector<1x64xf32>
    %c2_203 = arith.constant 2 : index
    %c0_204 = arith.constant 0 : index
    %487 = vector.load %arg4[%c2_203, %c0_204] : memref<14x64xf32, #tpu.memory_space<vmem>>, vector<1x64xf32>
    %c3_205 = arith.constant 3 : index
    %c0_206 = arith.constant 0 : index
    %488 = vector.load %arg4[%c3_205, %c0_206] : memref<14x64xf32, #tpu.memory_space<vmem>>, vector<1x64xf32>
    %c4_207 = arith.constant 4 : index
    %c0_208 = arith.constant 0 : index
    %489 = vector.load %arg4[%c4_207, %c0_208] : memref<14x64xf32, #tpu.memory_space<vmem>>, vector<1x64xf32>
    %c5_209 = arith.constant 5 : index
    %c0_210 = arith.constant 0 : index
    %490 = vector.load %arg4[%c5_209, %c0_210] : memref<14x64xf32, #tpu.memory_space<vmem>>, vector<1x64xf32>
    %c0_211 = arith.constant 0 : index
    %c0_212 = arith.constant 0 : index
    %491 = vector.load %arg6[%c0_211, %c0_212] : memref<2x256xf32, #tpu.memory_space<vmem>>, vector<1x256xf32>
    %cst_213 = arith.constant dense<0.000000e+00> : vector<32xf32>
    %492 = vector.multi_reduction <add>, %484, %cst_213 [1] : vector<32x64xf32> to vector<32xf32>
    %493 = vector.shape_cast %492 : vector<32xf32> to vector<32x1xf32>
    %cst_214 = arith.constant 6.400000e+01 : f32
    %494 = vector.broadcast %cst_214 : f32 to vector<32x1xf32>
    %495 = arith.divf %493, %494 : vector<32x1xf32>
    %496 = vector.broadcast %495 : vector<32x1xf32> to vector<32x64xf32>
    %497 = arith.subf %484, %496 : vector<32x64xf32>
    %498 = arith.mulf %497, %497 : vector<32x64xf32>
    %cst_215 = arith.constant dense<0.000000e+00> : vector<32xf32>
    %499 = vector.multi_reduction <add>, %498, %cst_215 [1] : vector<32x64xf32> to vector<32xf32>
    %500 = vector.shape_cast %499 : vector<32xf32> to vector<32x1xf32>
    %cst_216 = arith.constant 6.400000e+01 : f32
    %501 = vector.broadcast %cst_216 : f32 to vector<32x1xf32>
    %502 = arith.divf %500, %501 : vector<32x1xf32>
    %503 = vector.broadcast %495 : vector<32x1xf32> to vector<32x64xf32>
    %504 = arith.subf %484, %503 : vector<32x64xf32>
    %cst_217 = arith.constant 9.99999974E-6 : f32
    %505 = vector.broadcast %cst_217 : f32 to vector<32x1xf32>
    %506 = arith.addf %502, %505 : vector<32x1xf32>
    %507 = math.rsqrt %506 : vector<32x1xf32>
    %508 = vector.broadcast %507 : vector<32x1xf32> to vector<32x64xf32>
    %509 = arith.mulf %504, %508 : vector<32x64xf32>
    %510 = vector.broadcast %485 : vector<1x64xf32> to vector<32x64xf32>
    %511 = arith.mulf %509, %510 : vector<32x64xf32>
    %512 = vector.broadcast %486 : vector<1x64xf32> to vector<32x64xf32>
    %513 = arith.addf %511, %512 : vector<32x64xf32>
    %c0_218 = arith.constant 0 : index
    %c0_219 = arith.constant 0 : index
    %c0_220 = arith.constant 0 : index
    %514 = vector.load %arg15[%c0_218, %c0_219, %c0_220] : memref<2x64x192xbf16, #tpu.memory_space<vmem>>, vector<1x64x192xbf16>
    %515 = vector.shape_cast %514 : vector<1x64x192xbf16> to vector<64x192xbf16>
    %516 = arith.truncf %513 : vector<32x64xf32> to vector<32x64xbf16>
    %cst_221 = arith.constant dense<0.000000e+00> : vector<32x192xf32>
    %517 = tpu.matmul %516, %515, %cst_221 {dimension_numbers = #tpu.dot_dimension_numbers<[1], [0], [0], [1], [0, 0, 1, 1], [], []>} : vector<32x64xbf16>, vector<64x192xbf16>, vector<32x192xf32> -> vector<32x192xf32>
    %c0_222 = arith.constant 0 : index
    %c0_223 = arith.constant 0 : index
    %518 = vector.load %arg16[%c0_222, %c0_223] : memref<2x192xf32, #tpu.memory_space<vmem>>, vector<1x192xf32>
    %519 = vector.broadcast %518 : vector<1x192xf32> to vector<32x192xf32>
    %520 = arith.addf %517, %519 : vector<32x192xf32>
    %521 = vector.extract_strided_slice %520 {offsets = [0, 0], sizes = [32, 16], strides = [1, 1]} : vector<32x192xf32> to vector<32x16xf32>
    %522 = vector.extract_strided_slice %520 {offsets = [0, 16], sizes = [32, 16], strides = [1, 1]} : vector<32x192xf32> to vector<32x16xf32>
    %523 = vector.extract_strided_slice %520 {offsets = [0, 32], sizes = [32, 16], strides = [1, 1]} : vector<32x192xf32> to vector<32x16xf32>
    %524 = arith.truncf %521 : vector<32x16xf32> to vector<32x16xbf16>
    %525 = arith.truncf %522 : vector<32x16xf32> to vector<32x16xbf16>
    %cst_224 = arith.constant dense<0.000000e+00> : vector<32x32xf32>
    %526 = tpu.matmul %524, %525, %cst_224 {dimension_numbers = #tpu.dot_dimension_numbers<[1], [1], [0], [0], [0, 0, 1, 0], [], []>} : vector<32x16xbf16>, vector<32x16xbf16>, vector<32x32xf32> -> vector<32x32xf32>
    %cst_225 = arith.constant 2.500000e-01 : f32
    %527 = vector.broadcast %cst_225 : f32 to vector<32x32xf32>
    %528 = arith.mulf %526, %527 : vector<32x32xf32>
    %c0_226 = arith.constant 0 : index
    %c0_227 = arith.constant 0 : index
    %c0_228 = arith.constant 0 : index
    %529 = vector.load %arg18[%c0_226, %c0_227, %c0_228] : memref<8x32x32xbf16, #tpu.memory_space<vmem>>, vector<1x32x32xbf16>
    %530 = vector.shape_cast %529 : vector<1x32x32xbf16> to vector<32x32xbf16>
    %531 = arith.extf %530 : vector<32x32xbf16> to vector<32x32xf32>
    %532 = arith.addf %528, %531 : vector<32x32xf32>
    %cst_229 = arith.constant dense<0xFF800000> : vector<32xf32>
    %533 = vector.multi_reduction <maximumf>, %532, %cst_229 [1] : vector<32x32xf32> to vector<32xf32>
    %534 = vector.shape_cast %533 : vector<32xf32> to vector<32x1xf32>
    %535 = vector.broadcast %534 : vector<32x1xf32> to vector<32x32xf32>
    %536 = arith.subf %532, %535 : vector<32x32xf32>
    %537 = math.exp %536 : vector<32x32xf32>
    %cst_230 = arith.constant dense<0.000000e+00> : vector<32xf32>
    %538 = vector.multi_reduction <add>, %537, %cst_230 [1] : vector<32x32xf32> to vector<32xf32>
    %539 = vector.shape_cast %538 : vector<32xf32> to vector<32x1xf32>
    %540 = tpu.reciprocal %539 {approx = true} : vector<32x1xf32> -> vector<32x1xf32>
    %541 = vector.broadcast %540 : vector<32x1xf32> to vector<32x32xf32>
    %542 = arith.mulf %537, %541 : vector<32x32xf32>
    %543 = arith.truncf %542 : vector<32x32xf32> to vector<32x32xbf16>
    %544 = arith.truncf %523 : vector<32x16xf32> to vector<32x16xbf16>
    %cst_231 = arith.constant dense<0.000000e+00> : vector<32x16xf32>
    %545 = tpu.matmul %543, %544, %cst_231 {dimension_numbers = #tpu.dot_dimension_numbers<[1], [0], [0], [1], [0, 0, 1, 1], [], []>} : vector<32x32xbf16>, vector<32x16xbf16>, vector<32x16xf32> -> vector<32x16xf32>
    %546 = vector.extract_strided_slice %520 {offsets = [0, 48], sizes = [32, 16], strides = [1, 1]} : vector<32x192xf32> to vector<32x16xf32>
    %547 = vector.extract_strided_slice %520 {offsets = [0, 64], sizes = [32, 16], strides = [1, 1]} : vector<32x192xf32> to vector<32x16xf32>
    %548 = vector.extract_strided_slice %520 {offsets = [0, 80], sizes = [32, 16], strides = [1, 1]} : vector<32x192xf32> to vector<32x16xf32>
    %549 = arith.truncf %546 : vector<32x16xf32> to vector<32x16xbf16>
    %550 = arith.truncf %547 : vector<32x16xf32> to vector<32x16xbf16>
    %cst_232 = arith.constant dense<0.000000e+00> : vector<32x32xf32>
    %551 = tpu.matmul %549, %550, %cst_232 {dimension_numbers = #tpu.dot_dimension_numbers<[1], [1], [0], [0], [0, 0, 1, 0], [], []>} : vector<32x16xbf16>, vector<32x16xbf16>, vector<32x32xf32> -> vector<32x32xf32>
    %cst_233 = arith.constant 2.500000e-01 : f32
    %552 = vector.broadcast %cst_233 : f32 to vector<32x32xf32>
    %553 = arith.mulf %551, %552 : vector<32x32xf32>
    %c1_234 = arith.constant 1 : index
    %c0_235 = arith.constant 0 : index
    %c0_236 = arith.constant 0 : index
    %554 = vector.load %arg18[%c1_234, %c0_235, %c0_236] : memref<8x32x32xbf16, #tpu.memory_space<vmem>>, vector<1x32x32xbf16>
    %555 = vector.shape_cast %554 : vector<1x32x32xbf16> to vector<32x32xbf16>
    %556 = arith.extf %555 : vector<32x32xbf16> to vector<32x32xf32>
    %557 = arith.addf %553, %556 : vector<32x32xf32>
    %cst_237 = arith.constant dense<0xFF800000> : vector<32xf32>
    %558 = vector.multi_reduction <maximumf>, %557, %cst_237 [1] : vector<32x32xf32> to vector<32xf32>
    %559 = vector.shape_cast %558 : vector<32xf32> to vector<32x1xf32>
    %560 = vector.broadcast %559 : vector<32x1xf32> to vector<32x32xf32>
    %561 = arith.subf %557, %560 : vector<32x32xf32>
    %562 = math.exp %561 : vector<32x32xf32>
    %cst_238 = arith.constant dense<0.000000e+00> : vector<32xf32>
    %563 = vector.multi_reduction <add>, %562, %cst_238 [1] : vector<32x32xf32> to vector<32xf32>
    %564 = vector.shape_cast %563 : vector<32xf32> to vector<32x1xf32>
    %565 = tpu.reciprocal %564 {approx = true} : vector<32x1xf32> -> vector<32x1xf32>
    %566 = vector.broadcast %565 : vector<32x1xf32> to vector<32x32xf32>
    %567 = arith.mulf %562, %566 : vector<32x32xf32>
    %568 = arith.truncf %567 : vector<32x32xf32> to vector<32x32xbf16>
    %569 = arith.truncf %548 : vector<32x16xf32> to vector<32x16xbf16>
    %cst_239 = arith.constant dense<0.000000e+00> : vector<32x16xf32>
    %570 = tpu.matmul %568, %569, %cst_239 {dimension_numbers = #tpu.dot_dimension_numbers<[1], [0], [0], [1], [0, 0, 1, 1], [], []>} : vector<32x32xbf16>, vector<32x16xbf16>, vector<32x16xf32> -> vector<32x16xf32>
    %571 = vector.extract_strided_slice %520 {offsets = [0, 96], sizes = [32, 16], strides = [1, 1]} : vector<32x192xf32> to vector<32x16xf32>
    %572 = vector.extract_strided_slice %520 {offsets = [0, 112], sizes = [32, 16], strides = [1, 1]} : vector<32x192xf32> to vector<32x16xf32>
    %573 = vector.extract_strided_slice %520 {offsets = [0, 128], sizes = [32, 16], strides = [1, 1]} : vector<32x192xf32> to vector<32x16xf32>
    %574 = arith.truncf %571 : vector<32x16xf32> to vector<32x16xbf16>
    %575 = arith.truncf %572 : vector<32x16xf32> to vector<32x16xbf16>
    %cst_240 = arith.constant dense<0.000000e+00> : vector<32x32xf32>
    %576 = tpu.matmul %574, %575, %cst_240 {dimension_numbers = #tpu.dot_dimension_numbers<[1], [1], [0], [0], [0, 0, 1, 0], [], []>} : vector<32x16xbf16>, vector<32x16xbf16>, vector<32x32xf32> -> vector<32x32xf32>
    %cst_241 = arith.constant 2.500000e-01 : f32
    %577 = vector.broadcast %cst_241 : f32 to vector<32x32xf32>
    %578 = arith.mulf %576, %577 : vector<32x32xf32>
    %c2_242 = arith.constant 2 : index
    %c0_243 = arith.constant 0 : index
    %c0_244 = arith.constant 0 : index
    %579 = vector.load %arg18[%c2_242, %c0_243, %c0_244] : memref<8x32x32xbf16, #tpu.memory_space<vmem>>, vector<1x32x32xbf16>
    %580 = vector.shape_cast %579 : vector<1x32x32xbf16> to vector<32x32xbf16>
    %581 = arith.extf %580 : vector<32x32xbf16> to vector<32x32xf32>
    %582 = arith.addf %578, %581 : vector<32x32xf32>
    %cst_245 = arith.constant dense<0xFF800000> : vector<32xf32>
    %583 = vector.multi_reduction <maximumf>, %582, %cst_245 [1] : vector<32x32xf32> to vector<32xf32>
    %584 = vector.shape_cast %583 : vector<32xf32> to vector<32x1xf32>
    %585 = vector.broadcast %584 : vector<32x1xf32> to vector<32x32xf32>
    %586 = arith.subf %582, %585 : vector<32x32xf32>
    %587 = math.exp %586 : vector<32x32xf32>
    %cst_246 = arith.constant dense<0.000000e+00> : vector<32xf32>
    %588 = vector.multi_reduction <add>, %587, %cst_246 [1] : vector<32x32xf32> to vector<32xf32>
    %589 = vector.shape_cast %588 : vector<32xf32> to vector<32x1xf32>
    %590 = tpu.reciprocal %589 {approx = true} : vector<32x1xf32> -> vector<32x1xf32>
    %591 = vector.broadcast %590 : vector<32x1xf32> to vector<32x32xf32>
    %592 = arith.mulf %587, %591 : vector<32x32xf32>
    %593 = arith.truncf %592 : vector<32x32xf32> to vector<32x32xbf16>
    %594 = arith.truncf %573 : vector<32x16xf32> to vector<32x16xbf16>
    %cst_247 = arith.constant dense<0.000000e+00> : vector<32x16xf32>
    %595 = tpu.matmul %593, %594, %cst_247 {dimension_numbers = #tpu.dot_dimension_numbers<[1], [0], [0], [1], [0, 0, 1, 1], [], []>} : vector<32x32xbf16>, vector<32x16xbf16>, vector<32x16xf32> -> vector<32x16xf32>
    %596 = vector.extract_strided_slice %520 {offsets = [0, 144], sizes = [32, 16], strides = [1, 1]} : vector<32x192xf32> to vector<32x16xf32>
    %597 = vector.extract_strided_slice %520 {offsets = [0, 160], sizes = [32, 16], strides = [1, 1]} : vector<32x192xf32> to vector<32x16xf32>
    %598 = vector.extract_strided_slice %520 {offsets = [0, 176], sizes = [32, 16], strides = [1, 1]} : vector<32x192xf32> to vector<32x16xf32>
    %599 = arith.truncf %596 : vector<32x16xf32> to vector<32x16xbf16>
    %600 = arith.truncf %597 : vector<32x16xf32> to vector<32x16xbf16>
    %cst_248 = arith.constant dense<0.000000e+00> : vector<32x32xf32>
    %601 = tpu.matmul %599, %600, %cst_248 {dimension_numbers = #tpu.dot_dimension_numbers<[1], [1], [0], [0], [0, 0, 1, 0], [], []>} : vector<32x16xbf16>, vector<32x16xbf16>, vector<32x32xf32> -> vector<32x32xf32>
    %cst_249 = arith.constant 2.500000e-01 : f32
    %602 = vector.broadcast %cst_249 : f32 to vector<32x32xf32>
    %603 = arith.mulf %601, %602 : vector<32x32xf32>
    %c3_250 = arith.constant 3 : index
    %c0_251 = arith.constant 0 : index
    %c0_252 = arith.constant 0 : index
    %604 = vector.load %arg18[%c3_250, %c0_251, %c0_252] : memref<8x32x32xbf16, #tpu.memory_space<vmem>>, vector<1x32x32xbf16>
    %605 = vector.shape_cast %604 : vector<1x32x32xbf16> to vector<32x32xbf16>
    %606 = arith.extf %605 : vector<32x32xbf16> to vector<32x32xf32>
    %607 = arith.addf %603, %606 : vector<32x32xf32>
    %cst_253 = arith.constant dense<0xFF800000> : vector<32xf32>
    %608 = vector.multi_reduction <maximumf>, %607, %cst_253 [1] : vector<32x32xf32> to vector<32xf32>
    %609 = vector.shape_cast %608 : vector<32xf32> to vector<32x1xf32>
    %610 = vector.broadcast %609 : vector<32x1xf32> to vector<32x32xf32>
    %611 = arith.subf %607, %610 : vector<32x32xf32>
    %612 = math.exp %611 : vector<32x32xf32>
    %cst_254 = arith.constant dense<0.000000e+00> : vector<32xf32>
    %613 = vector.multi_reduction <add>, %612, %cst_254 [1] : vector<32x32xf32> to vector<32xf32>
    %614 = vector.shape_cast %613 : vector<32xf32> to vector<32x1xf32>
    %615 = tpu.reciprocal %614 {approx = true} : vector<32x1xf32> -> vector<32x1xf32>
    %616 = vector.broadcast %615 : vector<32x1xf32> to vector<32x32xf32>
    %617 = arith.mulf %612, %616 : vector<32x32xf32>
    %618 = arith.truncf %617 : vector<32x32xf32> to vector<32x32xbf16>
    %619 = arith.truncf %598 : vector<32x16xf32> to vector<32x16xbf16>
    %cst_255 = arith.constant dense<0.000000e+00> : vector<32x16xf32>
    %620 = tpu.matmul %618, %619, %cst_255 {dimension_numbers = #tpu.dot_dimension_numbers<[1], [0], [0], [1], [0, 0, 1, 1], [], []>} : vector<32x32xbf16>, vector<32x16xbf16>, vector<32x16xf32> -> vector<32x16xf32>
    %621 = tpu.concatenate %545, %570, %595, %620 in 1 : vector<32x16xf32>, vector<32x16xf32>, vector<32x16xf32>, vector<32x16xf32> -> vector<32x64xf32>
    %c0_256 = arith.constant 0 : index
    %c0_257 = arith.constant 0 : index
    %c0_258 = arith.constant 0 : index
    %622 = vector.load %arg17[%c0_256, %c0_257, %c0_258] : memref<2x64x64xbf16, #tpu.memory_space<vmem>>, vector<1x64x64xbf16>
    %623 = vector.shape_cast %622 : vector<1x64x64xbf16> to vector<64x64xbf16>
    %624 = arith.truncf %621 : vector<32x64xf32> to vector<32x64xbf16>
    %cst_259 = arith.constant dense<0.000000e+00> : vector<32x64xf32>
    %625 = tpu.matmul %624, %623, %cst_259 {dimension_numbers = #tpu.dot_dimension_numbers<[1], [0], [0], [1], [0, 0, 1, 1], [], []>} : vector<32x64xbf16>, vector<64x64xbf16>, vector<32x64xf32> -> vector<32x64xf32>
    %626 = arith.addf %484, %625 : vector<32x64xf32>
    %627 = vector.broadcast %487 : vector<1x64xf32> to vector<32x64xf32>
    %628 = arith.addf %626, %627 : vector<32x64xf32>
    %cst_260 = arith.constant dense<0.000000e+00> : vector<32xf32>
    %629 = vector.multi_reduction <add>, %628, %cst_260 [1] : vector<32x64xf32> to vector<32xf32>
    %630 = vector.shape_cast %629 : vector<32xf32> to vector<32x1xf32>
    %cst_261 = arith.constant 6.400000e+01 : f32
    %631 = vector.broadcast %cst_261 : f32 to vector<32x1xf32>
    %632 = arith.divf %630, %631 : vector<32x1xf32>
    %633 = vector.broadcast %632 : vector<32x1xf32> to vector<32x64xf32>
    %634 = arith.subf %628, %633 : vector<32x64xf32>
    %635 = arith.mulf %634, %634 : vector<32x64xf32>
    %cst_262 = arith.constant dense<0.000000e+00> : vector<32xf32>
    %636 = vector.multi_reduction <add>, %635, %cst_262 [1] : vector<32x64xf32> to vector<32xf32>
    %637 = vector.shape_cast %636 : vector<32xf32> to vector<32x1xf32>
    %cst_263 = arith.constant 6.400000e+01 : f32
    %638 = vector.broadcast %cst_263 : f32 to vector<32x1xf32>
    %639 = arith.divf %637, %638 : vector<32x1xf32>
    %640 = vector.broadcast %632 : vector<32x1xf32> to vector<32x64xf32>
    %641 = arith.subf %628, %640 : vector<32x64xf32>
    %cst_264 = arith.constant 9.99999974E-6 : f32
    %642 = vector.broadcast %cst_264 : f32 to vector<32x1xf32>
    %643 = arith.addf %639, %642 : vector<32x1xf32>
    %644 = math.rsqrt %643 : vector<32x1xf32>
    %645 = vector.broadcast %644 : vector<32x1xf32> to vector<32x64xf32>
    %646 = arith.mulf %641, %645 : vector<32x64xf32>
    %647 = vector.broadcast %488 : vector<1x64xf32> to vector<32x64xf32>
    %648 = arith.mulf %646, %647 : vector<32x64xf32>
    %649 = vector.broadcast %489 : vector<1x64xf32> to vector<32x64xf32>
    %650 = arith.addf %648, %649 : vector<32x64xf32>
    %c0_265 = arith.constant 0 : index
    %c0_266 = arith.constant 0 : index
    %c0_267 = arith.constant 0 : index
    %651 = vector.load %arg19[%c0_265, %c0_266, %c0_267] : memref<2x64x256xbf16, #tpu.memory_space<vmem>>, vector<1x64x256xbf16>
    %652 = vector.shape_cast %651 : vector<1x64x256xbf16> to vector<64x256xbf16>
    %653 = arith.truncf %650 : vector<32x64xf32> to vector<32x64xbf16>
    %cst_268 = arith.constant dense<0.000000e+00> : vector<32x256xf32>
    %654 = tpu.matmul %653, %652, %cst_268 {dimension_numbers = #tpu.dot_dimension_numbers<[1], [0], [0], [1], [0, 0, 1, 1], [], []>} : vector<32x64xbf16>, vector<64x256xbf16>, vector<32x256xf32> -> vector<32x256xf32>
    %655 = vector.broadcast %491 : vector<1x256xf32> to vector<32x256xf32>
    %656 = arith.addf %654, %655 : vector<32x256xf32>
    %cst_269 = arith.constant 5.000000e-01 : f32
    %657 = vector.broadcast %cst_269 : f32 to vector<32x256xf32>
    %658 = arith.mulf %657, %656 : vector<32x256xf32>
    %cst_270 = arith.constant 0.707106769 : f32
    %659 = vector.broadcast %cst_270 : f32 to vector<32x256xf32>
    %660 = arith.mulf %656, %659 : vector<32x256xf32>
    %cst_271 = arith.constant 0.000000e+00 : f32
    %661 = vector.broadcast %cst_271 : f32 to vector<32x256xf32>
    %662 = arith.cmpf oge, %660, %661 : vector<32x256xf32>
    %cst_272 = arith.constant 1.000000e+00 : f32
    %cst_273 = arith.constant -1.000000e+00 : f32
    %663 = vector.broadcast %cst_272 : f32 to vector<32x256xf32>
    %664 = vector.broadcast %cst_273 : f32 to vector<32x256xf32>
    %665 = arith.select %662, %663, %664 : vector<32x256xi1>, vector<32x256xf32>
    %666 = math.absf %660 : vector<32x256xf32>
    %cst_274 = arith.constant 0.327591091 : f32
    %667 = vector.broadcast %cst_274 : f32 to vector<32x256xf32>
    %668 = arith.mulf %667, %666 : vector<32x256xf32>
    %cst_275 = arith.constant 1.000000e+00 : f32
    %669 = vector.broadcast %cst_275 : f32 to vector<32x256xf32>
    %670 = arith.addf %669, %668 : vector<32x256xf32>
    %671 = tpu.reciprocal %670 {approx = true} : vector<32x256xf32> -> vector<32x256xf32>
    %cst_276 = arith.constant 1.06140542 : f32
    %672 = vector.broadcast %cst_276 : f32 to vector<32x256xf32>
    %673 = arith.mulf %672, %671 : vector<32x256xf32>
    %cst_277 = arith.constant -1.45315206 : f32
    %674 = vector.broadcast %cst_277 : f32 to vector<32x256xf32>
    %675 = arith.addf %673, %674 : vector<32x256xf32>
    %676 = arith.mulf %675, %671 : vector<32x256xf32>
    %cst_278 = arith.constant 1.42141378 : f32
    %677 = vector.broadcast %cst_278 : f32 to vector<32x256xf32>
    %678 = arith.addf %676, %677 : vector<32x256xf32>
    %679 = arith.mulf %678, %671 : vector<32x256xf32>
    %cst_279 = arith.constant -0.284496725 : f32
    %680 = vector.broadcast %cst_279 : f32 to vector<32x256xf32>
    %681 = arith.addf %679, %680 : vector<32x256xf32>
    %682 = arith.mulf %681, %671 : vector<32x256xf32>
    %cst_280 = arith.constant 0.254829586 : f32
    %683 = vector.broadcast %cst_280 : f32 to vector<32x256xf32>
    %684 = arith.addf %682, %683 : vector<32x256xf32>
    %685 = arith.mulf %684, %671 : vector<32x256xf32>
    %cst_281 = arith.constant 0.000000e+00 : f32
    %686 = vector.broadcast %cst_281 : f32 to vector<32x256xf32>
    %687 = arith.subf %686, %666 : vector<32x256xf32>
    %688 = arith.mulf %687, %666 : vector<32x256xf32>
    %689 = math.exp %688 : vector<32x256xf32>
    %690 = arith.mulf %685, %689 : vector<32x256xf32>
    %cst_282 = arith.constant 1.000000e+00 : f32
    %691 = vector.broadcast %cst_282 : f32 to vector<32x256xf32>
    %692 = arith.subf %691, %690 : vector<32x256xf32>
    %693 = arith.mulf %665, %692 : vector<32x256xf32>
    %cst_283 = arith.constant 1.000000e+00 : f32
    %694 = vector.broadcast %cst_283 : f32 to vector<32x256xf32>
    %695 = arith.addf %694, %693 : vector<32x256xf32>
    %696 = arith.mulf %658, %695 : vector<32x256xf32>
    %c0_284 = arith.constant 0 : index
    %c0_285 = arith.constant 0 : index
    %c0_286 = arith.constant 0 : index
    %697 = vector.load %arg20[%c0_284, %c0_285, %c0_286] : memref<2x256x64xbf16, #tpu.memory_space<vmem>>, vector<1x256x64xbf16>
    %698 = vector.shape_cast %697 : vector<1x256x64xbf16> to vector<256x64xbf16>
    %699 = arith.truncf %696 : vector<32x256xf32> to vector<32x256xbf16>
    %cst_287 = arith.constant dense<0.000000e+00> : vector<32x64xf32>
    %700 = tpu.matmul %699, %698, %cst_287 {dimension_numbers = #tpu.dot_dimension_numbers<[1], [0], [0], [1], [0, 0, 1, 1], [], []>} : vector<32x256xbf16>, vector<256x64xbf16>, vector<32x64xf32> -> vector<32x64xf32>
    %701 = arith.addf %628, %700 : vector<32x64xf32>
    %702 = vector.broadcast %490 : vector<1x64xf32> to vector<32x64xf32>
    %703 = arith.addf %701, %702 : vector<32x64xf32>
    %c6_288 = arith.constant 6 : index
    %c0_289 = arith.constant 0 : index
    %704 = vector.load %arg4[%c6_288, %c0_289] : memref<14x64xf32, #tpu.memory_space<vmem>>, vector<1x64xf32>
    %c7_290 = arith.constant 7 : index
    %c0_291 = arith.constant 0 : index
    %705 = vector.load %arg4[%c7_290, %c0_291] : memref<14x64xf32, #tpu.memory_space<vmem>>, vector<1x64xf32>
    %c8_292 = arith.constant 8 : index
    %c0_293 = arith.constant 0 : index
    %706 = vector.load %arg4[%c8_292, %c0_293] : memref<14x64xf32, #tpu.memory_space<vmem>>, vector<1x64xf32>
    %c9_294 = arith.constant 9 : index
    %c0_295 = arith.constant 0 : index
    %707 = vector.load %arg4[%c9_294, %c0_295] : memref<14x64xf32, #tpu.memory_space<vmem>>, vector<1x64xf32>
    %c10_296 = arith.constant 10 : index
    %c0_297 = arith.constant 0 : index
    %708 = vector.load %arg4[%c10_296, %c0_297] : memref<14x64xf32, #tpu.memory_space<vmem>>, vector<1x64xf32>
    %c11_298 = arith.constant 11 : index
    %c0_299 = arith.constant 0 : index
    %709 = vector.load %arg4[%c11_298, %c0_299] : memref<14x64xf32, #tpu.memory_space<vmem>>, vector<1x64xf32>
    %c1_300 = arith.constant 1 : index
    %c0_301 = arith.constant 0 : index
    %710 = vector.load %arg6[%c1_300, %c0_301] : memref<2x256xf32, #tpu.memory_space<vmem>>, vector<1x256xf32>
    %cst_302 = arith.constant dense<0.000000e+00> : vector<32xf32>
    %711 = vector.multi_reduction <add>, %703, %cst_302 [1] : vector<32x64xf32> to vector<32xf32>
    %712 = vector.shape_cast %711 : vector<32xf32> to vector<32x1xf32>
    %cst_303 = arith.constant 6.400000e+01 : f32
    %713 = vector.broadcast %cst_303 : f32 to vector<32x1xf32>
    %714 = arith.divf %712, %713 : vector<32x1xf32>
    %715 = vector.broadcast %714 : vector<32x1xf32> to vector<32x64xf32>
    %716 = arith.subf %703, %715 : vector<32x64xf32>
    %717 = arith.mulf %716, %716 : vector<32x64xf32>
    %cst_304 = arith.constant dense<0.000000e+00> : vector<32xf32>
    %718 = vector.multi_reduction <add>, %717, %cst_304 [1] : vector<32x64xf32> to vector<32xf32>
    %719 = vector.shape_cast %718 : vector<32xf32> to vector<32x1xf32>
    %cst_305 = arith.constant 6.400000e+01 : f32
    %720 = vector.broadcast %cst_305 : f32 to vector<32x1xf32>
    %721 = arith.divf %719, %720 : vector<32x1xf32>
    %722 = vector.broadcast %714 : vector<32x1xf32> to vector<32x64xf32>
    %723 = arith.subf %703, %722 : vector<32x64xf32>
    %cst_306 = arith.constant 9.99999974E-6 : f32
    %724 = vector.broadcast %cst_306 : f32 to vector<32x1xf32>
    %725 = arith.addf %721, %724 : vector<32x1xf32>
    %726 = math.rsqrt %725 : vector<32x1xf32>
    %727 = vector.broadcast %726 : vector<32x1xf32> to vector<32x64xf32>
    %728 = arith.mulf %723, %727 : vector<32x64xf32>
    %729 = vector.broadcast %704 : vector<1x64xf32> to vector<32x64xf32>
    %730 = arith.mulf %728, %729 : vector<32x64xf32>
    %731 = vector.broadcast %705 : vector<1x64xf32> to vector<32x64xf32>
    %732 = arith.addf %730, %731 : vector<32x64xf32>
    %c1_307 = arith.constant 1 : index
    %c0_308 = arith.constant 0 : index
    %c0_309 = arith.constant 0 : index
    %733 = vector.load %arg15[%c1_307, %c0_308, %c0_309] : memref<2x64x192xbf16, #tpu.memory_space<vmem>>, vector<1x64x192xbf16>
    %734 = vector.shape_cast %733 : vector<1x64x192xbf16> to vector<64x192xbf16>
    %735 = arith.truncf %732 : vector<32x64xf32> to vector<32x64xbf16>
    %cst_310 = arith.constant dense<0.000000e+00> : vector<32x192xf32>
    %736 = tpu.matmul %735, %734, %cst_310 {dimension_numbers = #tpu.dot_dimension_numbers<[1], [0], [0], [1], [0, 0, 1, 1], [], []>} : vector<32x64xbf16>, vector<64x192xbf16>, vector<32x192xf32> -> vector<32x192xf32>
    %c1_311 = arith.constant 1 : index
    %c0_312 = arith.constant 0 : index
    %737 = vector.load %arg16[%c1_311, %c0_312] : memref<2x192xf32, #tpu.memory_space<vmem>>, vector<1x192xf32>
    %738 = vector.broadcast %737 : vector<1x192xf32> to vector<32x192xf32>
    %739 = arith.addf %736, %738 : vector<32x192xf32>
    %740 = vector.extract_strided_slice %739 {offsets = [0, 0], sizes = [32, 16], strides = [1, 1]} : vector<32x192xf32> to vector<32x16xf32>
    %741 = vector.extract_strided_slice %739 {offsets = [0, 16], sizes = [32, 16], strides = [1, 1]} : vector<32x192xf32> to vector<32x16xf32>
    %742 = vector.extract_strided_slice %739 {offsets = [0, 32], sizes = [32, 16], strides = [1, 1]} : vector<32x192xf32> to vector<32x16xf32>
    %743 = arith.truncf %740 : vector<32x16xf32> to vector<32x16xbf16>
    %744 = arith.truncf %741 : vector<32x16xf32> to vector<32x16xbf16>
    %cst_313 = arith.constant dense<0.000000e+00> : vector<32x32xf32>
    %745 = tpu.matmul %743, %744, %cst_313 {dimension_numbers = #tpu.dot_dimension_numbers<[1], [1], [0], [0], [0, 0, 1, 0], [], []>} : vector<32x16xbf16>, vector<32x16xbf16>, vector<32x32xf32> -> vector<32x32xf32>
    %cst_314 = arith.constant 2.500000e-01 : f32
    %746 = vector.broadcast %cst_314 : f32 to vector<32x32xf32>
    %747 = arith.mulf %745, %746 : vector<32x32xf32>
    %c4_315 = arith.constant 4 : index
    %c0_316 = arith.constant 0 : index
    %c0_317 = arith.constant 0 : index
    %748 = vector.load %arg18[%c4_315, %c0_316, %c0_317] : memref<8x32x32xbf16, #tpu.memory_space<vmem>>, vector<1x32x32xbf16>
    %749 = vector.shape_cast %748 : vector<1x32x32xbf16> to vector<32x32xbf16>
    %750 = arith.extf %749 : vector<32x32xbf16> to vector<32x32xf32>
    %751 = arith.addf %747, %750 : vector<32x32xf32>
    %cst_318 = arith.constant dense<0xFF800000> : vector<32xf32>
    %752 = vector.multi_reduction <maximumf>, %751, %cst_318 [1] : vector<32x32xf32> to vector<32xf32>
    %753 = vector.shape_cast %752 : vector<32xf32> to vector<32x1xf32>
    %754 = vector.broadcast %753 : vector<32x1xf32> to vector<32x32xf32>
    %755 = arith.subf %751, %754 : vector<32x32xf32>
    %756 = math.exp %755 : vector<32x32xf32>
    %cst_319 = arith.constant dense<0.000000e+00> : vector<32xf32>
    %757 = vector.multi_reduction <add>, %756, %cst_319 [1] : vector<32x32xf32> to vector<32xf32>
    %758 = vector.shape_cast %757 : vector<32xf32> to vector<32x1xf32>
    %759 = tpu.reciprocal %758 {approx = true} : vector<32x1xf32> -> vector<32x1xf32>
    %760 = vector.broadcast %759 : vector<32x1xf32> to vector<32x32xf32>
    %761 = arith.mulf %756, %760 : vector<32x32xf32>
    %762 = arith.truncf %761 : vector<32x32xf32> to vector<32x32xbf16>
    %763 = arith.truncf %742 : vector<32x16xf32> to vector<32x16xbf16>
    %cst_320 = arith.constant dense<0.000000e+00> : vector<32x16xf32>
    %764 = tpu.matmul %762, %763, %cst_320 {dimension_numbers = #tpu.dot_dimension_numbers<[1], [0], [0], [1], [0, 0, 1, 1], [], []>} : vector<32x32xbf16>, vector<32x16xbf16>, vector<32x16xf32> -> vector<32x16xf32>
    %765 = vector.extract_strided_slice %739 {offsets = [0, 48], sizes = [32, 16], strides = [1, 1]} : vector<32x192xf32> to vector<32x16xf32>
    %766 = vector.extract_strided_slice %739 {offsets = [0, 64], sizes = [32, 16], strides = [1, 1]} : vector<32x192xf32> to vector<32x16xf32>
    %767 = vector.extract_strided_slice %739 {offsets = [0, 80], sizes = [32, 16], strides = [1, 1]} : vector<32x192xf32> to vector<32x16xf32>
    %768 = arith.truncf %765 : vector<32x16xf32> to vector<32x16xbf16>
    %769 = arith.truncf %766 : vector<32x16xf32> to vector<32x16xbf16>
    %cst_321 = arith.constant dense<0.000000e+00> : vector<32x32xf32>
    %770 = tpu.matmul %768, %769, %cst_321 {dimension_numbers = #tpu.dot_dimension_numbers<[1], [1], [0], [0], [0, 0, 1, 0], [], []>} : vector<32x16xbf16>, vector<32x16xbf16>, vector<32x32xf32> -> vector<32x32xf32>
    %cst_322 = arith.constant 2.500000e-01 : f32
    %771 = vector.broadcast %cst_322 : f32 to vector<32x32xf32>
    %772 = arith.mulf %770, %771 : vector<32x32xf32>
    %c5_323 = arith.constant 5 : index
    %c0_324 = arith.constant 0 : index
    %c0_325 = arith.constant 0 : index
    %773 = vector.load %arg18[%c5_323, %c0_324, %c0_325] : memref<8x32x32xbf16, #tpu.memory_space<vmem>>, vector<1x32x32xbf16>
    %774 = vector.shape_cast %773 : vector<1x32x32xbf16> to vector<32x32xbf16>
    %775 = arith.extf %774 : vector<32x32xbf16> to vector<32x32xf32>
    %776 = arith.addf %772, %775 : vector<32x32xf32>
    %cst_326 = arith.constant dense<0xFF800000> : vector<32xf32>
    %777 = vector.multi_reduction <maximumf>, %776, %cst_326 [1] : vector<32x32xf32> to vector<32xf32>
    %778 = vector.shape_cast %777 : vector<32xf32> to vector<32x1xf32>
    %779 = vector.broadcast %778 : vector<32x1xf32> to vector<32x32xf32>
    %780 = arith.subf %776, %779 : vector<32x32xf32>
    %781 = math.exp %780 : vector<32x32xf32>
    %cst_327 = arith.constant dense<0.000000e+00> : vector<32xf32>
    %782 = vector.multi_reduction <add>, %781, %cst_327 [1] : vector<32x32xf32> to vector<32xf32>
    %783 = vector.shape_cast %782 : vector<32xf32> to vector<32x1xf32>
    %784 = tpu.reciprocal %783 {approx = true} : vector<32x1xf32> -> vector<32x1xf32>
    %785 = vector.broadcast %784 : vector<32x1xf32> to vector<32x32xf32>
    %786 = arith.mulf %781, %785 : vector<32x32xf32>
    %787 = arith.truncf %786 : vector<32x32xf32> to vector<32x32xbf16>
    %788 = arith.truncf %767 : vector<32x16xf32> to vector<32x16xbf16>
    %cst_328 = arith.constant dense<0.000000e+00> : vector<32x16xf32>
    %789 = tpu.matmul %787, %788, %cst_328 {dimension_numbers = #tpu.dot_dimension_numbers<[1], [0], [0], [1], [0, 0, 1, 1], [], []>} : vector<32x32xbf16>, vector<32x16xbf16>, vector<32x16xf32> -> vector<32x16xf32>
    %790 = vector.extract_strided_slice %739 {offsets = [0, 96], sizes = [32, 16], strides = [1, 1]} : vector<32x192xf32> to vector<32x16xf32>
    %791 = vector.extract_strided_slice %739 {offsets = [0, 112], sizes = [32, 16], strides = [1, 1]} : vector<32x192xf32> to vector<32x16xf32>
    %792 = vector.extract_strided_slice %739 {offsets = [0, 128], sizes = [32, 16], strides = [1, 1]} : vector<32x192xf32> to vector<32x16xf32>
    %793 = arith.truncf %790 : vector<32x16xf32> to vector<32x16xbf16>
    %794 = arith.truncf %791 : vector<32x16xf32> to vector<32x16xbf16>
    %cst_329 = arith.constant dense<0.000000e+00> : vector<32x32xf32>
    %795 = tpu.matmul %793, %794, %cst_329 {dimension_numbers = #tpu.dot_dimension_numbers<[1], [1], [0], [0], [0, 0, 1, 0], [], []>} : vector<32x16xbf16>, vector<32x16xbf16>, vector<32x32xf32> -> vector<32x32xf32>
    %cst_330 = arith.constant 2.500000e-01 : f32
    %796 = vector.broadcast %cst_330 : f32 to vector<32x32xf32>
    %797 = arith.mulf %795, %796 : vector<32x32xf32>
    %c6_331 = arith.constant 6 : index
    %c0_332 = arith.constant 0 : index
    %c0_333 = arith.constant 0 : index
    %798 = vector.load %arg18[%c6_331, %c0_332, %c0_333] : memref<8x32x32xbf16, #tpu.memory_space<vmem>>, vector<1x32x32xbf16>
    %799 = vector.shape_cast %798 : vector<1x32x32xbf16> to vector<32x32xbf16>
    %800 = arith.extf %799 : vector<32x32xbf16> to vector<32x32xf32>
    %801 = arith.addf %797, %800 : vector<32x32xf32>
    %cst_334 = arith.constant dense<0xFF800000> : vector<32xf32>
    %802 = vector.multi_reduction <maximumf>, %801, %cst_334 [1] : vector<32x32xf32> to vector<32xf32>
    %803 = vector.shape_cast %802 : vector<32xf32> to vector<32x1xf32>
    %804 = vector.broadcast %803 : vector<32x1xf32> to vector<32x32xf32>
    %805 = arith.subf %801, %804 : vector<32x32xf32>
    %806 = math.exp %805 : vector<32x32xf32>
    %cst_335 = arith.constant dense<0.000000e+00> : vector<32xf32>
    %807 = vector.multi_reduction <add>, %806, %cst_335 [1] : vector<32x32xf32> to vector<32xf32>
    %808 = vector.shape_cast %807 : vector<32xf32> to vector<32x1xf32>
    %809 = tpu.reciprocal %808 {approx = true} : vector<32x1xf32> -> vector<32x1xf32>
    %810 = vector.broadcast %809 : vector<32x1xf32> to vector<32x32xf32>
    %811 = arith.mulf %806, %810 : vector<32x32xf32>
    %812 = arith.truncf %811 : vector<32x32xf32> to vector<32x32xbf16>
    %813 = arith.truncf %792 : vector<32x16xf32> to vector<32x16xbf16>
    %cst_336 = arith.constant dense<0.000000e+00> : vector<32x16xf32>
    %814 = tpu.matmul %812, %813, %cst_336 {dimension_numbers = #tpu.dot_dimension_numbers<[1], [0], [0], [1], [0, 0, 1, 1], [], []>} : vector<32x32xbf16>, vector<32x16xbf16>, vector<32x16xf32> -> vector<32x16xf32>
    %815 = vector.extract_strided_slice %739 {offsets = [0, 144], sizes = [32, 16], strides = [1, 1]} : vector<32x192xf32> to vector<32x16xf32>
    %816 = vector.extract_strided_slice %739 {offsets = [0, 160], sizes = [32, 16], strides = [1, 1]} : vector<32x192xf32> to vector<32x16xf32>
    %817 = vector.extract_strided_slice %739 {offsets = [0, 176], sizes = [32, 16], strides = [1, 1]} : vector<32x192xf32> to vector<32x16xf32>
    %818 = arith.truncf %815 : vector<32x16xf32> to vector<32x16xbf16>
    %819 = arith.truncf %816 : vector<32x16xf32> to vector<32x16xbf16>
    %cst_337 = arith.constant dense<0.000000e+00> : vector<32x32xf32>
    %820 = tpu.matmul %818, %819, %cst_337 {dimension_numbers = #tpu.dot_dimension_numbers<[1], [1], [0], [0], [0, 0, 1, 0], [], []>} : vector<32x16xbf16>, vector<32x16xbf16>, vector<32x32xf32> -> vector<32x32xf32>
    %cst_338 = arith.constant 2.500000e-01 : f32
    %821 = vector.broadcast %cst_338 : f32 to vector<32x32xf32>
    %822 = arith.mulf %820, %821 : vector<32x32xf32>
    %c7_339 = arith.constant 7 : index
    %c0_340 = arith.constant 0 : index
    %c0_341 = arith.constant 0 : index
    %823 = vector.load %arg18[%c7_339, %c0_340, %c0_341] : memref<8x32x32xbf16, #tpu.memory_space<vmem>>, vector<1x32x32xbf16>
    %824 = vector.shape_cast %823 : vector<1x32x32xbf16> to vector<32x32xbf16>
    %825 = arith.extf %824 : vector<32x32xbf16> to vector<32x32xf32>
    %826 = arith.addf %822, %825 : vector<32x32xf32>
    %cst_342 = arith.constant dense<0xFF800000> : vector<32xf32>
    %827 = vector.multi_reduction <maximumf>, %826, %cst_342 [1] : vector<32x32xf32> to vector<32xf32>
    %828 = vector.shape_cast %827 : vector<32xf32> to vector<32x1xf32>
    %829 = vector.broadcast %828 : vector<32x1xf32> to vector<32x32xf32>
    %830 = arith.subf %826, %829 : vector<32x32xf32>
    %831 = math.exp %830 : vector<32x32xf32>
    %cst_343 = arith.constant dense<0.000000e+00> : vector<32xf32>
    %832 = vector.multi_reduction <add>, %831, %cst_343 [1] : vector<32x32xf32> to vector<32xf32>
    %833 = vector.shape_cast %832 : vector<32xf32> to vector<32x1xf32>
    %834 = tpu.reciprocal %833 {approx = true} : vector<32x1xf32> -> vector<32x1xf32>
    %835 = vector.broadcast %834 : vector<32x1xf32> to vector<32x32xf32>
    %836 = arith.mulf %831, %835 : vector<32x32xf32>
    %837 = arith.truncf %836 : vector<32x32xf32> to vector<32x32xbf16>
    %838 = arith.truncf %817 : vector<32x16xf32> to vector<32x16xbf16>
    %cst_344 = arith.constant dense<0.000000e+00> : vector<32x16xf32>
    %839 = tpu.matmul %837, %838, %cst_344 {dimension_numbers = #tpu.dot_dimension_numbers<[1], [0], [0], [1], [0, 0, 1, 1], [], []>} : vector<32x32xbf16>, vector<32x16xbf16>, vector<32x16xf32> -> vector<32x16xf32>
    %840 = tpu.concatenate %764, %789, %814, %839 in 1 : vector<32x16xf32>, vector<32x16xf32>, vector<32x16xf32>, vector<32x16xf32> -> vector<32x64xf32>
    %c1_345 = arith.constant 1 : index
    %c0_346 = arith.constant 0 : index
    %c0_347 = arith.constant 0 : index
    %841 = vector.load %arg17[%c1_345, %c0_346, %c0_347] : memref<2x64x64xbf16, #tpu.memory_space<vmem>>, vector<1x64x64xbf16>
    %842 = vector.shape_cast %841 : vector<1x64x64xbf16> to vector<64x64xbf16>
    %843 = arith.truncf %840 : vector<32x64xf32> to vector<32x64xbf16>
    %cst_348 = arith.constant dense<0.000000e+00> : vector<32x64xf32>
    %844 = tpu.matmul %843, %842, %cst_348 {dimension_numbers = #tpu.dot_dimension_numbers<[1], [0], [0], [1], [0, 0, 1, 1], [], []>} : vector<32x64xbf16>, vector<64x64xbf16>, vector<32x64xf32> -> vector<32x64xf32>
    %845 = arith.addf %703, %844 : vector<32x64xf32>
    %846 = vector.broadcast %706 : vector<1x64xf32> to vector<32x64xf32>
    %847 = arith.addf %845, %846 : vector<32x64xf32>
    %cst_349 = arith.constant dense<0.000000e+00> : vector<32xf32>
    %848 = vector.multi_reduction <add>, %847, %cst_349 [1] : vector<32x64xf32> to vector<32xf32>
    %849 = vector.shape_cast %848 : vector<32xf32> to vector<32x1xf32>
    %cst_350 = arith.constant 6.400000e+01 : f32
    %850 = vector.broadcast %cst_350 : f32 to vector<32x1xf32>
    %851 = arith.divf %849, %850 : vector<32x1xf32>
    %852 = vector.broadcast %851 : vector<32x1xf32> to vector<32x64xf32>
    %853 = arith.subf %847, %852 : vector<32x64xf32>
    %854 = arith.mulf %853, %853 : vector<32x64xf32>
    %cst_351 = arith.constant dense<0.000000e+00> : vector<32xf32>
    %855 = vector.multi_reduction <add>, %854, %cst_351 [1] : vector<32x64xf32> to vector<32xf32>
    %856 = vector.shape_cast %855 : vector<32xf32> to vector<32x1xf32>
    %cst_352 = arith.constant 6.400000e+01 : f32
    %857 = vector.broadcast %cst_352 : f32 to vector<32x1xf32>
    %858 = arith.divf %856, %857 : vector<32x1xf32>
    %859 = vector.broadcast %851 : vector<32x1xf32> to vector<32x64xf32>
    %860 = arith.subf %847, %859 : vector<32x64xf32>
    %cst_353 = arith.constant 9.99999974E-6 : f32
    %861 = vector.broadcast %cst_353 : f32 to vector<32x1xf32>
    %862 = arith.addf %858, %861 : vector<32x1xf32>
    %863 = math.rsqrt %862 : vector<32x1xf32>
    %864 = vector.broadcast %863 : vector<32x1xf32> to vector<32x64xf32>
    %865 = arith.mulf %860, %864 : vector<32x64xf32>
    %866 = vector.broadcast %707 : vector<1x64xf32> to vector<32x64xf32>
    %867 = arith.mulf %865, %866 : vector<32x64xf32>
    %868 = vector.broadcast %708 : vector<1x64xf32> to vector<32x64xf32>
    %869 = arith.addf %867, %868 : vector<32x64xf32>
    %c1_354 = arith.constant 1 : index
    %c0_355 = arith.constant 0 : index
    %c0_356 = arith.constant 0 : index
    %870 = vector.load %arg19[%c1_354, %c0_355, %c0_356] : memref<2x64x256xbf16, #tpu.memory_space<vmem>>, vector<1x64x256xbf16>
    %871 = vector.shape_cast %870 : vector<1x64x256xbf16> to vector<64x256xbf16>
    %872 = arith.truncf %869 : vector<32x64xf32> to vector<32x64xbf16>
    %cst_357 = arith.constant dense<0.000000e+00> : vector<32x256xf32>
    %873 = tpu.matmul %872, %871, %cst_357 {dimension_numbers = #tpu.dot_dimension_numbers<[1], [0], [0], [1], [0, 0, 1, 1], [], []>} : vector<32x64xbf16>, vector<64x256xbf16>, vector<32x256xf32> -> vector<32x256xf32>
    %874 = vector.broadcast %710 : vector<1x256xf32> to vector<32x256xf32>
    %875 = arith.addf %873, %874 : vector<32x256xf32>
    %cst_358 = arith.constant 5.000000e-01 : f32
    %876 = vector.broadcast %cst_358 : f32 to vector<32x256xf32>
    %877 = arith.mulf %876, %875 : vector<32x256xf32>
    %cst_359 = arith.constant 0.707106769 : f32
    %878 = vector.broadcast %cst_359 : f32 to vector<32x256xf32>
    %879 = arith.mulf %875, %878 : vector<32x256xf32>
    %cst_360 = arith.constant 0.000000e+00 : f32
    %880 = vector.broadcast %cst_360 : f32 to vector<32x256xf32>
    %881 = arith.cmpf oge, %879, %880 : vector<32x256xf32>
    %cst_361 = arith.constant 1.000000e+00 : f32
    %cst_362 = arith.constant -1.000000e+00 : f32
    %882 = vector.broadcast %cst_361 : f32 to vector<32x256xf32>
    %883 = vector.broadcast %cst_362 : f32 to vector<32x256xf32>
    %884 = arith.select %881, %882, %883 : vector<32x256xi1>, vector<32x256xf32>
    %885 = math.absf %879 : vector<32x256xf32>
    %cst_363 = arith.constant 0.327591091 : f32
    %886 = vector.broadcast %cst_363 : f32 to vector<32x256xf32>
    %887 = arith.mulf %886, %885 : vector<32x256xf32>
    %cst_364 = arith.constant 1.000000e+00 : f32
    %888 = vector.broadcast %cst_364 : f32 to vector<32x256xf32>
    %889 = arith.addf %888, %887 : vector<32x256xf32>
    %890 = tpu.reciprocal %889 {approx = true} : vector<32x256xf32> -> vector<32x256xf32>
    %cst_365 = arith.constant 1.06140542 : f32
    %891 = vector.broadcast %cst_365 : f32 to vector<32x256xf32>
    %892 = arith.mulf %891, %890 : vector<32x256xf32>
    %cst_366 = arith.constant -1.45315206 : f32
    %893 = vector.broadcast %cst_366 : f32 to vector<32x256xf32>
    %894 = arith.addf %892, %893 : vector<32x256xf32>
    %895 = arith.mulf %894, %890 : vector<32x256xf32>
    %cst_367 = arith.constant 1.42141378 : f32
    %896 = vector.broadcast %cst_367 : f32 to vector<32x256xf32>
    %897 = arith.addf %895, %896 : vector<32x256xf32>
    %898 = arith.mulf %897, %890 : vector<32x256xf32>
    %cst_368 = arith.constant -0.284496725 : f32
    %899 = vector.broadcast %cst_368 : f32 to vector<32x256xf32>
    %900 = arith.addf %898, %899 : vector<32x256xf32>
    %901 = arith.mulf %900, %890 : vector<32x256xf32>
    %cst_369 = arith.constant 0.254829586 : f32
    %902 = vector.broadcast %cst_369 : f32 to vector<32x256xf32>
    %903 = arith.addf %901, %902 : vector<32x256xf32>
    %904 = arith.mulf %903, %890 : vector<32x256xf32>
    %cst_370 = arith.constant 0.000000e+00 : f32
    %905 = vector.broadcast %cst_370 : f32 to vector<32x256xf32>
    %906 = arith.subf %905, %885 : vector<32x256xf32>
    %907 = arith.mulf %906, %885 : vector<32x256xf32>
    %908 = math.exp %907 : vector<32x256xf32>
    %909 = arith.mulf %904, %908 : vector<32x256xf32>
    %cst_371 = arith.constant 1.000000e+00 : f32
    %910 = vector.broadcast %cst_371 : f32 to vector<32x256xf32>
    %911 = arith.subf %910, %909 : vector<32x256xf32>
    %912 = arith.mulf %884, %911 : vector<32x256xf32>
    %cst_372 = arith.constant 1.000000e+00 : f32
    %913 = vector.broadcast %cst_372 : f32 to vector<32x256xf32>
    %914 = arith.addf %913, %912 : vector<32x256xf32>
    %915 = arith.mulf %877, %914 : vector<32x256xf32>
    %c1_373 = arith.constant 1 : index
    %c0_374 = arith.constant 0 : index
    %c0_375 = arith.constant 0 : index
    %916 = vector.load %arg20[%c1_373, %c0_374, %c0_375] : memref<2x256x64xbf16, #tpu.memory_space<vmem>>, vector<1x256x64xbf16>
    %917 = vector.shape_cast %916 : vector<1x256x64xbf16> to vector<256x64xbf16>
    %918 = arith.truncf %915 : vector<32x256xf32> to vector<32x256xbf16>
    %cst_376 = arith.constant dense<0.000000e+00> : vector<32x64xf32>
    %919 = tpu.matmul %918, %917, %cst_376 {dimension_numbers = #tpu.dot_dimension_numbers<[1], [0], [0], [1], [0, 0, 1, 1], [], []>} : vector<32x256xbf16>, vector<256x64xbf16>, vector<32x64xf32> -> vector<32x64xf32>
    %920 = arith.addf %847, %919 : vector<32x64xf32>
    %921 = vector.broadcast %709 : vector<1x64xf32> to vector<32x64xf32>
    %922 = arith.addf %920, %921 : vector<32x64xf32>
    %c12_377 = arith.constant 12 : index
    %c0_378 = arith.constant 0 : index
    %923 = vector.load %arg4[%c12_377, %c0_378] : memref<14x64xf32, #tpu.memory_space<vmem>>, vector<1x64xf32>
    %c13_379 = arith.constant 13 : index
    %c0_380 = arith.constant 0 : index
    %924 = vector.load %arg4[%c13_379, %c0_380] : memref<14x64xf32, #tpu.memory_space<vmem>>, vector<1x64xf32>
    %cst_381 = arith.constant dense<0.000000e+00> : vector<32xf32>
    %925 = vector.multi_reduction <add>, %922, %cst_381 [1] : vector<32x64xf32> to vector<32xf32>
    %926 = vector.shape_cast %925 : vector<32xf32> to vector<32x1xf32>
    %cst_382 = arith.constant 6.400000e+01 : f32
    %927 = vector.broadcast %cst_382 : f32 to vector<32x1xf32>
    %928 = arith.divf %926, %927 : vector<32x1xf32>
    %929 = vector.broadcast %928 : vector<32x1xf32> to vector<32x64xf32>
    %930 = arith.subf %922, %929 : vector<32x64xf32>
    %931 = arith.mulf %930, %930 : vector<32x64xf32>
    %cst_383 = arith.constant dense<0.000000e+00> : vector<32xf32>
    %932 = vector.multi_reduction <add>, %931, %cst_383 [1] : vector<32x64xf32> to vector<32xf32>
    %933 = vector.shape_cast %932 : vector<32xf32> to vector<32x1xf32>
    %cst_384 = arith.constant 6.400000e+01 : f32
    %934 = vector.broadcast %cst_384 : f32 to vector<32x1xf32>
    %935 = arith.divf %933, %934 : vector<32x1xf32>
    %936 = vector.broadcast %928 : vector<32x1xf32> to vector<32x64xf32>
    %937 = arith.subf %922, %936 : vector<32x64xf32>
    %cst_385 = arith.constant 9.99999974E-6 : f32
    %938 = vector.broadcast %cst_385 : f32 to vector<32x1xf32>
    %939 = arith.addf %935, %938 : vector<32x1xf32>
    %940 = math.rsqrt %939 : vector<32x1xf32>
    %941 = vector.broadcast %940 : vector<32x1xf32> to vector<32x64xf32>
    %942 = arith.mulf %937, %941 : vector<32x64xf32>
    %943 = vector.broadcast %923 : vector<1x64xf32> to vector<32x64xf32>
    %944 = arith.mulf %942, %943 : vector<32x64xf32>
    %945 = vector.broadcast %924 : vector<1x64xf32> to vector<32x64xf32>
    %946 = arith.addf %944, %945 : vector<32x64xf32>
    %c0_386 = arith.constant 0 : index
    %c0_387 = arith.constant 0 : index
    %947 = vector.load %arg22[%c0_386, %c0_387] : memref<64x128xbf16, #tpu.memory_space<vmem>>, vector<64x128xbf16>
    %948 = arith.truncf %946 : vector<32x64xf32> to vector<32x64xbf16>
    %cst_388 = arith.constant dense<0.000000e+00> : vector<32x128xf32>
    %949 = tpu.matmul %948, %947, %cst_388 {dimension_numbers = #tpu.dot_dimension_numbers<[1], [0], [0], [1], [0, 0, 1, 1], [], []>} : vector<32x64xbf16>, vector<64x128xbf16>, vector<32x128xf32> -> vector<32x128xf32>
    %c0_389 = arith.constant 0 : index
    %c0_390 = arith.constant 0 : index
    %950 = vector.load %arg21[%c0_389, %c0_390] : memref<2x32xf32, #tpu.memory_space<vmem>>, vector<2x32xf32>
    %cst_391 = arith.constant dense<0.000000e+00> : vector<2x128xf32>
    %951 = tpu.matmul %950, %949, %cst_391 {dimension_numbers = #tpu.dot_dimension_numbers<[1], [0], [0], [1], [0, 0, 1, 1], [], []>} : vector<2x32xf32>, vector<32x128xf32>, vector<2x128xf32> -> vector<2x128xf32>
    %c0_392 = arith.constant 0 : index
    %c0_393 = arith.constant 0 : index
    %952 = vector.load %arg23[%c0_392, %c0_393] : memref<34x128xf32, #tpu.memory_space<vmem>>, vector<32x128xf32>
    tpu.vector_store %arg23[%c0_392, %c0_393], %949 {strides = array<i32>} : memref<34x128xf32, #tpu.memory_space<vmem>>, vector<32x128xf32>,
    %c32 = arith.constant 32 : index
    %c0_394 = arith.constant 0 : index
    %953 = vector.load %arg23[%c32, %c0_394] : memref<34x128xf32, #tpu.memory_space<vmem>>, vector<2x128xf32>
    tpu.vector_store %arg23[%c32, %c0_394], %951 {strides = array<i32>} : memref<34x128xf32, #tpu.memory_space<vmem>>, vector<2x128xf32>,
    return
  }
  func.func @transform_0(%arg0: i32) -> (i32, i32) {
    %c0_i32 = arith.constant 0 : i32
    %c0_i32_0 = arith.constant 0 : i32
    %c0_i32_1 = arith.constant 0 : i32
    return %c0_i32, %c0_i32_0 : i32, i32
  }
  func.func @transform_1(%arg0: i32) -> (i32, i32) {
    %c0_i32 = arith.constant 0 : i32
    %c0_i32_0 = arith.constant 0 : i32
    %c0_i32_1 = arith.constant 0 : i32
    return %c0_i32, %c0_i32_0 : i32, i32
  }
  func.func @transform_2(%arg0: i32) -> (i32, i32) {
    %c0_i32 = arith.constant 0 : i32
    %c0_i32_0 = arith.constant 0 : i32
    %c0_i32_1 = arith.constant 0 : i32
    return %c0_i32, %c0_i32_0 : i32, i32
  }
  func.func @transform_3(%arg0: i32) -> (i32, i32) {
    %c0_i32 = arith.constant 0 : i32
    %c0_i32_0 = arith.constant 0 : i32
    %c0_i32_1 = arith.constant 0 : i32
    return %c0_i32, %c0_i32_0 : i32, i32
  }
  func.func @transform_4(%arg0: i32) -> (i32, i32) {
    %c0_i32 = arith.constant 0 : i32
    %c0_i32_0 = arith.constant 0 : i32
    %c0_i32_1 = arith.constant 0 : i32
    return %c0_i32, %c0_i32_0 : i32, i32
  }
  func.func @transform_5(%arg0: i32) -> (i32, i32) {
    %c0_i32 = arith.constant 0 : i32
    %c0_i32_0 = arith.constant 0 : i32
    %c0_i32_1 = arith.constant 0 : i32
    return %c0_i32, %c0_i32_0 : i32, i32
  }
  func.func @transform_6(%arg0: i32) -> (i32, i32, i32) {
    %c0_i32 = arith.constant 0 : i32
    %c0_i32_0 = arith.constant 0 : i32
    %c0_i32_1 = arith.constant 0 : i32
    %c0_i32_2 = arith.constant 0 : i32
    return %c0_i32, %c0_i32_0, %c0_i32_1 : i32, i32, i32
  }
  func.func @transform_7(%arg0: i32) -> (i32, i32) {
    %c0_i32 = arith.constant 0 : i32
    %c0_i32_0 = arith.constant 0 : i32
    %c0_i32_1 = arith.constant 0 : i32
    return %c0_i32, %c0_i32_0 : i32, i32
  }
  func.func @transform_8(%arg0: i32) -> (i32, i32, i32) {
    %c0_i32 = arith.constant 0 : i32
    %c0_i32_0 = arith.constant 0 : i32
    %c0_i32_1 = arith.constant 0 : i32
    %c0_i32_2 = arith.constant 0 : i32
    return %c0_i32, %c0_i32_0, %c0_i32_1 : i32, i32, i32
  }
  func.func @transform_9(%arg0: i32) -> (i32, i32, i32) {
    %c0_i32 = arith.constant 0 : i32
    %c0_i32_0 = arith.constant 0 : i32
    %c0_i32_1 = arith.constant 0 : i32
    %c0_i32_2 = arith.constant 0 : i32
    return %c0_i32, %c0_i32_0, %c0_i32_1 : i32, i32, i32
  }
  func.func @transform_10(%arg0: i32) -> (i32, i32, i32) {
    %c0_i32 = arith.constant 0 : i32
    %c0_i32_0 = arith.constant 0 : i32
    %c0_i32_1 = arith.constant 0 : i32
    %c0_i32_2 = arith.constant 0 : i32
    return %c0_i32, %c0_i32_0, %c0_i32_1 : i32, i32, i32
  }
  func.func @transform_11(%arg0: i32) -> (i32, i32, i32) {
    %c0_i32 = arith.constant 0 : i32
    %c0_i32_0 = arith.constant 0 : i32
    %c0_i32_1 = arith.constant 0 : i32
    %c0_i32_2 = arith.constant 0 : i32
    return %c0_i32, %c0_i32_0, %c0_i32_1 : i32, i32, i32
  }
  func.func @transform_12(%arg0: i32) -> (i32, i32, i32) {
    %c0_i32 = arith.constant 0 : i32
    %c0_i32_0 = arith.constant 0 : i32
    %c0_i32_1 = arith.constant 0 : i32
    %c0_i32_2 = arith.constant 0 : i32
    return %c0_i32, %c0_i32_0, %c0_i32_1 : i32, i32, i32
  }
  func.func @transform_13(%arg0: i32) -> (i32, i32, i32) {
    %c0_i32 = arith.constant 0 : i32
    %c0_i32_0 = arith.constant 0 : i32
    %c0_i32_1 = arith.constant 0 : i32
    %c0_i32_2 = arith.constant 0 : i32
    return %c0_i32, %c0_i32_0, %c0_i32_1 : i32, i32, i32
  }
  func.func @transform_14(%arg0: i32) -> (i32, i32, i32) {
    %c0_i32 = arith.constant 0 : i32
    %c0_i32_0 = arith.constant 0 : i32
    %c0_i32_1 = arith.constant 0 : i32
    %c0_i32_2 = arith.constant 0 : i32
    return %c0_i32, %c0_i32_0, %c0_i32_1 : i32, i32, i32
  }
  func.func @transform_15(%arg0: i32) -> (i32, i32) {
    %c0_i32 = arith.constant 0 : i32
    %c0_i32_0 = arith.constant 0 : i32
    %c0_i32_1 = arith.constant 0 : i32
    return %c0_i32, %c0_i32_0 : i32, i32
  }
  func.func @transform_16(%arg0: i32) -> (i32, i32, i32) {
    %c0_i32 = arith.constant 0 : i32
    %c0_i32_0 = arith.constant 0 : i32
    %c0_i32_1 = arith.constant 0 : i32
    %c0_i32_2 = arith.constant 0 : i32
    return %c0_i32, %c0_i32_0, %c0_i32_1 : i32, i32, i32
  }
  func.func @transform_17(%arg0: i32) -> (i32, i32, i32) {
    %c0_i32 = arith.constant 0 : i32
    %c0_i32_0 = arith.constant 0 : i32
    %c0_i32_1 = arith.constant 0 : i32
    %c0_i32_2 = arith.constant 0 : i32
    return %c0_i32, %c0_i32_0, %c0_i32_1 : i32, i32, i32
  }
  func.func @transform_18(%arg0: i32) -> (i32, i32, i32) {
    %c0_i32 = arith.constant 0 : i32
    %c0_i32_0 = arith.constant 0 : i32
    %c0_i32_1 = arith.constant 0 : i32
    %c0_i32_2 = arith.constant 0 : i32
    return %c0_i32, %c0_i32_0, %c0_i32_1 : i32, i32, i32
  }
  func.func @transform_19(%arg0: i32) -> (i32, i32, i32) {
    %c0_i32 = arith.constant 0 : i32
    %c0_i32_0 = arith.constant 0 : i32
    %c0_i32_1 = arith.constant 0 : i32
    %c0_i32_2 = arith.constant 0 : i32
    return %c0_i32, %c0_i32_0, %c0_i32_1 : i32, i32, i32
  }
  func.func @transform_20(%arg0: i32) -> (i32, i32) {
    %c0_i32 = arith.constant 0 : i32
    %c0_i32_0 = arith.constant 0 : i32
    %c0_i32_1 = arith.constant 0 : i32
    return %c0_i32, %c0_i32_0 : i32, i32
  }
  func.func @transform_21(%arg0: i32) -> (i32, i32) {
    %c0_i32 = arith.constant 0 : i32
    %c0_i32_0 = arith.constant 0 : i32
    %c0_i32_1 = arith.constant 0 : i32
    return %c0_i32, %c0_i32_0 : i32, i32
  }
  func.func @transform_22(%arg0: i32) -> (i32, i32) {
    %c0_i32 = arith.constant 0 : i32
    %c0_i32_0 = arith.constant 0 : i32
    %c0_i32_1 = arith.constant 0 : i32
    return %c0_i32, %c0_i32_0 : i32, i32
  }
}

</mosaic_0001>

<llo_original>
// kernel: tpu_custom_call.1
$region0: #{tpu_custom_call.1}
  #allocation0 [shape = 'u32[]', space=smem, size = 0x4, offset = 0x4, fixed_abs, tag = 'smem constant byte address 0x4 - core index']
  #allocation1 [shape = 'u32[72,128]{1,0:T(1,128)}', space=vmem, size = 0x9000, scoped, tag = 'internal scratch']
  %s0 = inlined_call_operand.vmem [shape: f32[128,12], index: 0, kind: input, shape index: {}]
  %s1 = inlined_call_operand.hbm [shape: bf16[12,32], index: 1, kind: input, shape index: {}]
  %s2 = inlined_call_operand.hbm [shape: f32[23,32], index: 2, kind: input, shape index: {}]
  %s3 = inlined_call_operand.vmem [shape: f32[14,64], index: 3, kind: input, shape index: {}]
  %s4 = inlined_call_operand.hbm [shape: f32[2,128], index: 4, kind: input, shape index: {}]
  %s5 = inlined_call_operand.hbm [shape: f32[2,256], index: 5, kind: input, shape index: {}]
  %s6 = inlined_call_operand.vmem [shape: bf16[2,32,96], index: 6, kind: input, shape index: {}]
  %s7 = inlined_call_operand.hbm [shape: f32[2,96], index: 7, kind: input, shape index: {}]
  %s8 = inlined_call_operand.hbm [shape: bf16[2,32,32], index: 8, kind: input, shape index: {}]
  %s9 = inlined_call_operand.vmem [shape: bf16[4,128,128], index: 9, kind: input, shape index: {}]
  %s10 = inlined_call_operand.hbm [shape: bf16[2,32,128], index: 10, kind: input, shape index: {}]
  %s11 = inlined_call_operand.vmem [shape: bf16[2,128,32], index: 11, kind: input, shape index: {}]
  %s12 = inlined_call_operand.vmem [shape: f32[4,32,128], index: 12, kind: input, shape index: {}]
  %s13 = inlined_call_operand.hbm [shape: bf16[4,32,64], index: 13, kind: input, shape index: {}]
  %s14 = inlined_call_operand.vmem [shape: bf16[2,64,192], index: 14, kind: input, shape index: {}]
  %s15 = inlined_call_operand.vmem [shape: f32[2,192], index: 15, kind: input, shape index: {}]
  %s16 = inlined_call_operand.hbm [shape: bf16[2,64,64], index: 16, kind: input, shape index: {}]
  %s17 = inlined_call_operand.vmem [shape: bf16[8,32,32], index: 17, kind: input, shape index: {}]
  %s18 = inlined_call_operand.hbm [shape: bf16[2,64,256], index: 18, kind: input, shape index: {}]
  %s19 = inlined_call_operand.vmem [shape: bf16[2,256,64], index: 19, kind: input, shape index: {}]
  %s20 = inlined_call_operand.vmem [shape: f32[2,32], index: 20, kind: input, shape index: {}]
  %s21 = inlined_call_operand.hbm [shape: bf16[64,128], index: 21, kind: input, shape index: {}]
  %s22 = inlined_call_operand.hbm [shape: f32[34,128], index: 22, kind: output, shape index: {}]
  %s23 = sld [smem:[#allocation0]]
  $region142: #{tpu_custom_call.1} parent=0
    _
  %s25 = ssub.s32 1, %s23
  %s26 = scalar_select 0, %s25, %s23
  $region1: #{tpu_custom_call.1} parent=0
    #allocation2 [shape = 'u8[4096]{0}', space=vmem, size = 0x1000, scoped, tag = 'input window, operand 1, single buffered']
    #allocation3 [shape = 's32[1]{0}', space=sflag, size = 0x4, scoped, tag = 'scoped memory for tpu_custom_call.1']
    #allocation4 [shape = 's32[1]{0}', space=sflag, size = 0x4, scoped, tag = 'scoped memory for tpu_custom_call.1']
    #allocation5 [shape = 'u8[12288]{0}', space=vmem, size = 0x3000, scoped, tag = 'input window, operand 2, single buffered']
    #allocation6 [shape = 's32[1]{0}', space=sflag, size = 0x4, scoped, tag = 'scoped memory for tpu_custom_call.1']
    #allocation7 [shape = 'u8[1024]{0}', space=vmem, size = 0x400, scoped, tag = 'input window, operand 4, single buffered']
    #allocation8 [shape = 'u8[2048]{0}', space=vmem, size = 0x800, scoped, tag = 'input window, operand 5, single buffered']
    #allocation9 [shape = 's32[1]{0}', space=sflag, size = 0x4, scoped, tag = 'scoped memory for tpu_custom_call.1']
    #allocation10 [shape = 'u8[1024]{0}', space=vmem, size = 0x400, scoped, tag = 'input window, operand 7, single buffered']
    #allocation11 [shape = 'u8[16384]{0}', space=vmem, size = 0x4000, scoped, tag = 'input window, operand 8, single buffered']
    #allocation12 [shape = 's32[1]{0}', space=sflag, size = 0x4, scoped, tag = 'scoped memory for tpu_custom_call.1']
    #allocation13 [shape = 'u8[16384]{0}', space=vmem, size = 0x4000, scoped, tag = 'input window, operand 10, single buffered']
    #allocation14 [shape = 'u8[32768]{0}', space=vmem, size = 0x8000, scoped, tag = 'input window, operand 13, single buffered']
    #allocation15 [shape = 's32[1]{0}', space=sflag, size = 0x4, scoped, tag = 'scoped memory for tpu_custom_call.1']
    #allocation16 [shape = 'u8[32768]{0}', space=vmem, size = 0x8000, scoped, tag = 'input window, operand 16, single buffered']
    #allocation17 [shape = 'u8[65536]{0}', space=vmem, size = 0x10000, scoped, tag = 'input window, operand 18, single buffered']
    #allocation18 [shape = 's32[1]{0}', space=sflag, size = 0x4, scoped, tag = 'scoped memory for tpu_custom_call.1']
    #allocation19 [shape = 'u8[16384]{0}', space=vmem, size = 0x4000, scoped, tag = 'input window, operand 21, single buffered']
    #allocation20 [shape = 'u8[20480]{0}', space=vmem, size = 0x5000, scoped, tag = 'output window, operand 0, single buffered']
    %27 = vsyncpa [#allocation3], 0
    %28 = vsyncpa [#allocation6], 0
    %29 = vsyncpa [#allocation9], 0
    %30 = vsyncpa [#allocation12], 0
    %31 = vsyncpa [#allocation15], 0
    %32 = vsyncpa [#allocation18], 0
    %33 = vsyncpa [#allocation4], 0
    // Predicated region
    $region2: #{tpu_custom_call.1} parent=1 // pred_check
      _
    $region3: #{tpu_custom_call.1} parent=1 // pred_check_branch
      %35 = sbr.rel (0) target = $region5
    $region4: #{tpu_custom_call.1} parent=1 // pred_region
      _
    $region5: #{tpu_custom_call.1} parent=1 // pred_fallthru
      _
    // Predicated region
    $region6: #{tpu_custom_call.1} parent=1 // pred_check
      _
    $region7: #{tpu_custom_call.1} parent=1 // pred_check_branch
      %37 = sbr.rel (0) target = $region9
    $region8: #{tpu_custom_call.1} parent=1 // pred_region
      %39 = vsyncadd [#allocation3], 0
      %s40 = sshll.u32 %s1, 4
      %s41 = int_to_ptr.hbm [resolvable:$true] %s40
      %s42 = sshll.u32 [#allocation2], 4
      %s43 = int_to_ptr.vmem [resolvable:$true] %s42
      %48 = dma.hbm_to_vmem [thread:$0]  %s41, 128, %s43, [#allocation3], 64, 64, 4
    $region9: #{tpu_custom_call.1} parent=1 // pred_fallthru
      _
    // Predicated region
    $region10: #{tpu_custom_call.1} parent=1 // pred_check
      _
    $region11: #{tpu_custom_call.1} parent=1 // pred_check_branch
      %50 = sbr.rel (0) target = $region13
    $region12: #{tpu_custom_call.1} parent=1 // pred_region
      %52 = vsyncadd [#allocation6], 0
      %s53 = sshll.u32 %s2, 4
      %s54 = int_to_ptr.hbm [resolvable:$true] %s53
      %s55 = sshll.u32 [#allocation5], 4
      %s56 = int_to_ptr.vmem [resolvable:$true] %s55
      %61 = dma.hbm_to_vmem [thread:$0]  %s54, 384, %s56, [#allocation6], 128, 128, 8
    $region13: #{tpu_custom_call.1} parent=1 // pred_fallthru
      _
    // Predicated region
    $region14: #{tpu_custom_call.1} parent=1 // pred_check
      _
    $region15: #{tpu_custom_call.1} parent=1 // pred_check_branch
      %63 = sbr.rel (0) target = $region17
    $region16: #{tpu_custom_call.1} parent=1 // pred_region
      _
    $region17: #{tpu_custom_call.1} parent=1 // pred_fallthru
      _
    // Predicated region
    $region18: #{tpu_custom_call.1} parent=1 // pred_check
      _
    $region19: #{tpu_custom_call.1} parent=1 // pred_check_branch
      %65 = sbr.rel (0) target = $region21
    $region20: #{tpu_custom_call.1} parent=1 // pred_region
      %67 = vsyncadd [#allocation6], 0
      %s69 = sshll.u32 %s4, 4
      %s70 = int_to_ptr.hbm [resolvable:$true] %s69
      %s71 = sshll.u32 [#allocation7], 4
      %s72 = int_to_ptr.vmem [resolvable:$true] %s71
      %74 = dma.hbm_to_vmem [thread:$0]  %s70, 32, %s72, [#allocation6]
    $region21: #{tpu_custom_call.1} parent=1 // pred_fallthru
      _
    // Predicated region
    $region22: #{tpu_custom_call.1} parent=1 // pred_check
      _
    $region23: #{tpu_custom_call.1} parent=1 // pred_check_branch
      %76 = sbr.rel (0) target = $region25
    $region24: #{tpu_custom_call.1} parent=1 // pred_region
      %78 = vsyncadd [#allocation9], 0
      %s80 = sshll.u32 %s5, 4
      %s81 = int_to_ptr.hbm [resolvable:$true] %s80
      %s82 = sshll.u32 [#allocation8], 4
      %s83 = int_to_ptr.vmem [resolvable:$true] %s82
      %85 = dma.hbm_to_vmem [thread:$0]  %s81, 64, %s83, [#allocation9]
    $region25: #{tpu_custom_call.1} parent=1 // pred_fallthru
      _
    // Predicated region
    $region26: #{tpu_custom_call.1} parent=1 // pred_check
      _
    $region27: #{tpu_custom_call.1} parent=1 // pred_check_branch
      %87 = sbr.rel (0) target = $region29
    $region28: #{tpu_custom_call.1} parent=1 // pred_region
      _
    $region29: #{tpu_custom_call.1} parent=1 // pred_fallthru
      _
    // Predicated region
    $region30: #{tpu_custom_call.1} parent=1 // pred_check
      _
    $region31: #{tpu_custom_call.1} parent=1 // pred_check_branch
      %89 = sbr.rel (0) target = $region33
    $region32: #{tpu_custom_call.1} parent=1 // pred_region
      %91 = vsyncadd [#allocation9], 0
      %s93 = sshll.u32 %s7, 4
      %s94 = int_to_ptr.hbm [resolvable:$true] %s93
      %s95 = sshll.u32 [#allocation10], 4
      %s96 = int_to_ptr.vmem [resolvable:$true] %s95
      %98 = dma.hbm_to_vmem [thread:$0]  %s94, 32, %s96, [#allocation9]
    $region33: #{tpu_custom_call.1} parent=1 // pred_fallthru
      _
    // Predicated region
    $region34: #{tpu_custom_call.1} parent=1 // pred_check
      _
    $region35: #{tpu_custom_call.1} parent=1 // pred_check_branch
      %100 = sbr.rel (0) target = $region37
    $region36: #{tpu_custom_call.1} parent=1 // pred_region
      %102 = vsyncadd [#allocation12], 0
      %s103 = sshll.u32 %s8, 4
      %s104 = int_to_ptr.hbm [resolvable:$true] %s103
      %s105 = sshll.u32 [#allocation11], 4
      %s106 = int_to_ptr.vmem [resolvable:$true] %s105
      %111 = dma.hbm_to_vmem [thread:$0]  %s104, 512, %s106, [#allocation12], 64, 64, 4
    $region37: #{tpu_custom_call.1} parent=1 // pred_fallthru
      _
    // Predicated region
    $region38: #{tpu_custom_call.1} parent=1 // pred_check
      _
    $region39: #{tpu_custom_call.1} parent=1 // pred_check_branch
      %113 = sbr.rel (0) target = $region41
    $region40: #{tpu_custom_call.1} parent=1 // pred_region
      _
    $region41: #{tpu_custom_call.1} parent=1 // pred_fallthru
      _
    // Predicated region
    $region42: #{tpu_custom_call.1} parent=1 // pred_check
      _
    $region43: #{tpu_custom_call.1} parent=1 // pred_check_branch
      %115 = sbr.rel (0) target = $region45
    $region44: #{tpu_custom_call.1} parent=1 // pred_region
      %117 = vsyncadd [#allocation12], 0
      %s118 = sshll.u32 %s10, 4
      %s119 = int_to_ptr.hbm [resolvable:$true] %s118
      %s120 = sshll.u32 [#allocation13], 4
      %s121 = int_to_ptr.vmem [resolvable:$true] %s120
      %126 = dma.hbm_to_vmem [thread:$0]  %s119, 512, %s121, [#allocation12], 64, 64, 4
    $region45: #{tpu_custom_call.1} parent=1 // pred_fallthru
      _
    // Predicated region
    $region46: #{tpu_custom_call.1} parent=1 // pred_check
      _
    $region47: #{tpu_custom_call.1} parent=1 // pred_check_branch
      %128 = sbr.rel (0) target = $region49
    $region48: #{tpu_custom_call.1} parent=1 // pred_region
      _
    $region49: #{tpu_custom_call.1} parent=1 // pred_fallthru
      _
    // Predicated region
    $region50: #{tpu_custom_call.1} parent=1 // pred_check
      _
    $region51: #{tpu_custom_call.1} parent=1 // pred_check_branch
      %130 = sbr.rel (0) target = $region53
    $region52: #{tpu_custom_call.1} parent=1 // pred_region
      _
    $region53: #{tpu_custom_call.1} parent=1 // pred_fallthru
      _
    // Predicated region
    $region54: #{tpu_custom_call.1} parent=1 // pred_check
      _
    $region55: #{tpu_custom_call.1} parent=1 // pred_check_branch
      %132 = sbr.rel (0) target = $region57
    $region56: #{tpu_custom_call.1} parent=1 // pred_region
      %134 = vsyncadd [#allocation15], 0
      %s135 = sshll.u32 %s13, 4
      %s136 = int_to_ptr.hbm [resolvable:$true] %s135
      %s137 = sshll.u32 [#allocation14], 4
      %s138 = int_to_ptr.vmem [resolvable:$true] %s137
      %143 = dma.hbm_to_vmem [thread:$0]  %s136, 1024, %s138, [#allocation15], 64, 64, 4
    $region57: #{tpu_custom_call.1} parent=1 // pred_fallthru
      _
    // Predicated region
    $region58: #{tpu_custom_call.1} parent=1 // pred_check
      _
    $region59: #{tpu_custom_call.1} parent=1 // pred_check_branch
      %145 = sbr.rel (0) target = $region61
    $region60: #{tpu_custom_call.1} parent=1 // pred_region
      _
    $region61: #{tpu_custom_call.1} parent=1 // pred_fallthru
      _
    // Predicated region
    $region62: #{tpu_custom_call.1} parent=1 // pred_check
      _
    $region63: #{tpu_custom_call.1} parent=1 // pred_check_branch
      %147 = sbr.rel (0) target = $region65
    $region64: #{tpu_custom_call.1} parent=1 // pred_region
      _
    $region65: #{tpu_custom_call.1} parent=1 // pred_fallthru
      _
    // Predicated region
    $region66: #{tpu_custom_call.1} parent=1 // pred_check
      _
    $region67: #{tpu_custom_call.1} parent=1 // pred_check_branch
      %149 = sbr.rel (0) target = $region69
    $region68: #{tpu_custom_call.1} parent=1 // pred_region
      %151 = vsyncadd [#allocation15], 0
      %s152 = sshll.u32 %s16, 4
      %s153 = int_to_ptr.hbm [resolvable:$true] %s152
      %s154 = sshll.u32 [#allocation16], 4
      %s155 = int_to_ptr.vmem [resolvable:$true] %s154
      %160 = dma.hbm_to_vmem [thread:$0]  %s153, 1024, %s155, [#allocation15], 64, 64, 4
    $region69: #{tpu_custom_call.1} parent=1 // pred_fallthru
      _
    // Predicated region
    $region70: #{tpu_custom_call.1} parent=1 // pred_check
      _
    $region71: #{tpu_custom_call.1} parent=1 // pred_check_branch
      %162 = sbr.rel (0) target = $region73
    $region72: #{tpu_custom_call.1} parent=1 // pred_region
      _
    $region73: #{tpu_custom_call.1} parent=1 // pred_fallthru
      _
    // Predicated region
    $region74: #{tpu_custom_call.1} parent=1 // pred_check
      _
    $region75: #{tpu_custom_call.1} parent=1 // pred_check_branch
      %164 = sbr.rel (0) target = $region77
    $region76: #{tpu_custom_call.1} parent=1 // pred_region
      %166 = vsyncadd [#allocation18], 0
      %s167 = sshll.u32 %s18, 4
      %s168 = int_to_ptr.hbm [resolvable:$true] %s167
      %s169 = sshll.u32 [#allocation17], 4
      %s170 = int_to_ptr.vmem [resolvable:$true] %s169
      %175 = dma.hbm_to_vmem [thread:$0]  %s168, 2048, %s170, [#allocation18], 128, 128, 8
    $region77: #{tpu_custom_call.1} parent=1 // pred_fallthru
      _
    // Predicated region
    $region78: #{tpu_custom_call.1} parent=1 // pred_check
      _
    $region79: #{tpu_custom_call.1} parent=1 // pred_check_branch
      %177 = sbr.rel (0) target = $region81
    $region80: #{tpu_custom_call.1} parent=1 // pred_region
      _
    $region81: #{tpu_custom_call.1} parent=1 // pred_fallthru
      _
    // Predicated region
    $region82: #{tpu_custom_call.1} parent=1 // pred_check
      _
    $region83: #{tpu_custom_call.1} parent=1 // pred_check_branch
      %179 = sbr.rel (0) target = $region85
    $region84: #{tpu_custom_call.1} parent=1 // pred_region
      _
    $region85: #{tpu_custom_call.1} parent=1 // pred_fallthru
      _
    // Predicated region
    $region86: #{tpu_custom_call.1} parent=1 // pred_check
      _
    $region87: #{tpu_custom_call.1} parent=1 // pred_check_branch
      %181 = sbr.rel (0) target = $region89
    $region88: #{tpu_custom_call.1} parent=1 // pred_region
      %183 = vsyncadd [#allocation18], 0
      %s184 = sshll.u32 %s21, 4
      %s185 = int_to_ptr.hbm [resolvable:$true] %s184
      %s186 = sshll.u32 [#allocation19], 4
      %s187 = int_to_ptr.vmem [resolvable:$true] %s186
      %192 = dma.hbm_to_vmem [thread:$0]  %s185, 512, %s187, [#allocation18], 64, 64, 4
    $region89: #{tpu_custom_call.1} parent=1 // pred_fallthru
      _
    // Predicated region
    $region90: #{tpu_custom_call.1} parent=1 // pred_check
      _
    $region91: #{tpu_custom_call.1} parent=1 // pred_check_branch
      %194 = sbr.rel (0) target = $region93
    $region92: #{tpu_custom_call.1} parent=1 // pred_region
      %196 = dma.done [#allocation3], 128
    $region93: #{tpu_custom_call.1} parent=1 // pred_fallthru
      _
    // Predicated region
    $region94: #{tpu_custom_call.1} parent=1 // pred_check
      _
    $region95: #{tpu_custom_call.1} parent=1 // pred_check_branch
      %198 = sbr.rel (0) target = $region97
    $region96: #{tpu_custom_call.1} parent=1 // pred_region
      %200 = dma.done [#allocation6], 384
    $region97: #{tpu_custom_call.1} parent=1 // pred_fallthru
      _
    // Predicated region
    $region98: #{tpu_custom_call.1} parent=1 // pred_check
      _
    $region99: #{tpu_custom_call.1} parent=1 // pred_check_branch
      %202 = sbr.rel (0) target = $region101
    $region100: #{tpu_custom_call.1} parent=1 // pred_region
      %204 = dma.done [#allocation6], 32
    $region101: #{tpu_custom_call.1} parent=1 // pred_fallthru
      _
    // Predicated region
    $region102: #{tpu_custom_call.1} parent=1 // pred_check
      _
    $region103: #{tpu_custom_call.1} parent=1 // pred_check_branch
      %206 = sbr.rel (0) target = $region105
    $region104: #{tpu_custom_call.1} parent=1 // pred_region
      %208 = dma.done [#allocation9], 64
    $region105: #{tpu_custom_call.1} parent=1 // pred_fallthru
      _
    // Predicated region
    $region106: #{tpu_custom_call.1} parent=1 // pred_check
      _
    $region107: #{tpu_custom_call.1} parent=1 // pred_check_branch
      %210 = sbr.rel (0) target = $region109
    $region108: #{tpu_custom_call.1} parent=1 // pred_region
      %212 = dma.done [#allocation9], 32
    $region109: #{tpu_custom_call.1} parent=1 // pred_fallthru
      _
    // Predicated region
    $region110: #{tpu_custom_call.1} parent=1 // pred_check
      _
    $region111: #{tpu_custom_call.1} parent=1 // pred_check_branch
      %214 = sbr.rel (0) target = $region113
    $region112: #{tpu_custom_call.1} parent=1 // pred_region
      %216 = dma.done [#allocation12], 512
    $region113: #{tpu_custom_call.1} parent=1 // pred_fallthru
      _
    // Predicated region
    $region114: #{tpu_custom_call.1} parent=1 // pred_check
      _
    $region115: #{tpu_custom_call.1} parent=1 // pred_check_branch
      %218 = sbr.rel (0) target = $region117
    $region116: #{tpu_custom_call.1} parent=1 // pred_region
      %220 = dma.done [#allocation12], 512
    $region117: #{tpu_custom_call.1} parent=1 // pred_fallthru
      _
    // Predicated region
    $region118: #{tpu_custom_call.1} parent=1 // pred_check
      _
    $region119: #{tpu_custom_call.1} parent=1 // pred_check_branch
      %222 = sbr.rel (0) target = $region121
    $region120: #{tpu_custom_call.1} parent=1 // pred_region
      %224 = dma.done [#allocation15], 1024
    $region121: #{tpu_custom_call.1} parent=1 // pred_fallthru
      _
    // Predicated region
    $region122: #{tpu_custom_call.1} parent=1 // pred_check
      _
    $region123: #{tpu_custom_call.1} parent=1 // pred_check_branch
      %226 = sbr.rel (0) target = $region125
    $region124: #{tpu_custom_call.1} parent=1 // pred_region
      %228 = dma.done [#allocation15], 1024
    $region125: #{tpu_custom_call.1} parent=1 // pred_fallthru
      _
    // Predicated region
    $region126: #{tpu_custom_call.1} parent=1 // pred_check
      _
    $region127: #{tpu_custom_call.1} parent=1 // pred_check_branch
      %230 = sbr.rel (0) target = $region129
    $region128: #{tpu_custom_call.1} parent=1 // pred_region
      %232 = dma.done [#allocation18], 2048
    $region129: #{tpu_custom_call.1} parent=1 // pred_fallthru
      _
    // Predicated region
    $region130: #{tpu_custom_call.1} parent=1 // pred_check
      _
    $region131: #{tpu_custom_call.1} parent=1 // pred_check_branch
      %234 = sbr.rel (0) target = $region133
    $region132: #{tpu_custom_call.1} parent=1 // pred_region
      %236 = dma.done [#allocation18], 512
    $region133: #{tpu_custom_call.1} parent=1 // pred_fallthru
      _
    %v238 = vld [vmem:[%s0] sm:$0xff]
    %v239 = vld [vmem:[%s0 + $0x8] sm:$0xff]
    %v240 = vld [vmem:[%s0 + $0x10] sm:$0xff]
    %v241 = vld [vmem:[%s0 + $0x18] sm:$0xff]
    %v242 = vld [vmem:[%s0 + $0x20] sm:$0xff]
    %v243 = vld [vmem:[%s0 + $0x28] sm:$0xff]
    %v244 = vld [vmem:[%s0 + $0x30] sm:$0xff]
    %v245 = vld [vmem:[%s0 + $0x38] sm:$0xff]
    %v246 = vld [vmem:[%s0 + $0x40] sm:$0xff]
    %v247 = vld [vmem:[%s0 + $0x48] sm:$0xff]
    %v248 = vld [vmem:[%s0 + $0x50] sm:$0xff]
    %v249 = vld [vmem:[%s0 + $0x58] sm:$0xff]
    %v250 = vld [vmem:[%s0 + $0x60] sm:$0xff]
    %v251 = vld [vmem:[%s0 + $0x68] sm:$0xff]
    %v252 = vld [vmem:[%s0 + $0x70] sm:$0xff]
    %v253 = vld [vmem:[%s0 + $0x78] sm:$0xff]
    %v254 = vld [vmem:[#allocation2] sm:$0xf]
    %v255 = vld [vmem:[#allocation2 + $0x4] sm:$0x3]
    %v256 = vpack.c.bf16 %v239, %v238
    %v257 = vpack.c.bf16 %v241, %v240
    %v258 = vpack.c.bf16 %v243, %v242
    %v259 = vpack.c.bf16 %v245, %v244
    %v260 = vpack.c.bf16 %v247, %v246
    %v261 = vpack.c.bf16 %v249, %v248
    %v262 = vpack.c.bf16 %v251, %v250
    %v263 = vpack.c.bf16 %v253, %v252
    %v264 = vld [vmem:[#allocation5] sm:$0x1]
    %v265 = vperm.slane %v264, 0
    %v268 = vunpack.c.l.b16 %v254
    %v269 = vunpack.c.l.b16 %v255
    %v270 = vpack.c.b16 %v269, %v268
    %vm271 = vcmask 97280
    %v273 = vsel %vm271, %v256, 0
    %v276 = vsel %vm271, %v257, 0
    %v279 = vsel %vm271, %v258, 0
    %v282 = vsel %vm271, %v259, 0
    %v285 = vsel %vm271, %v260, 0
    %v288 = vsel %vm271, %v261, 0
    %v291 = vsel %vm271, %v262, 0
    %v294 = vsel %vm271, %v263, 0
    %vm296 = vcmask 1045504
    %v298 = vsel %vm296, %v270, 0
    %300 = vmatpush.bf16.msra.mxu0 0
    %301 = vmatpush.bf16.msra.mxu0 0
    %302 = vmatpush.bf16.msra.mxu0 0
    %303 = vmatpush.bf16.msra.mxu0 0
    %304 = vmatpush.bf16.msra.mxu0 0
    %305 = vmatpush.bf16.msra.mxu0 0
    %306 = vmatpush.bf16.msra.mxu0 0
    %307 = vmatpush.bf16.msra.mxu0 %v298
    %308 = vmatmul.bf16.gmra.mxu0 %v273
    %v309 = vpop.f32.mrf.mxu0
    %v310 = vadd.f32 %v265, %v309
    %v311 = vpop.f32.mrf.mxu0
    %v312 = vadd.f32 %v265, %v311
    %313 = vmatmul.bf16.gmra.mxu0 %v276
    %v314 = vpop.f32.mrf.mxu0
    %v315 = vadd.f32 %v265, %v314
    %v316 = vpop.f32.mrf.mxu0
    %v317 = vadd.f32 %v265, %v316
    %318 = vmatmul.bf16.gmra.mxu0 %v279
    %v319 = vpop.f32.mrf.mxu0
    %v320 = vadd.f32 %v265, %v319
    %v321 = vpop.f32.mrf.mxu0
    %v322 = vadd.f32 %v265, %v321
    %323 = vmatmul.bf16.gmra.mxu0 %v282
    %v324 = vpop.f32.mrf.mxu0
    %v325 = vadd.f32 %v265, %v324
    %v326 = vpop.f32.mrf.mxu0
    %v327 = vadd.f32 %v265, %v326
    %328 = vmatmul.bf16.gmra.mxu0 %v285
    %v329 = vpop.f32.mrf.mxu0
    %v330 = vadd.f32 %v265, %v329
    %v331 = vpop.f32.mrf.mxu0
    %v332 = vadd.f32 %v265, %v331
    %333 = vmatmul.bf16.gmra.mxu0 %v288
    %v334 = vpop.f32.mrf.mxu0
    %v335 = vadd.f32 %v265, %v334
    %v336 = vpop.f32.mrf.mxu0
    %v337 = vadd.f32 %v265, %v336
    %338 = vmatmul.bf16.gmra.mxu0 %v291
    %v339 = vpop.f32.mrf.mxu0
    %v340 = vadd.f32 %v265, %v339
    %v341 = vpop.f32.mrf.mxu0
    %v342 = vadd.f32 %v265, %v341
    %343 = vmatmul.bf16.gmra.mxu0 %v294
    %v344 = vpop.f32.mrf.mxu0
    %v345 = vadd.f32 %v265, %v344
    %v346 = vpop.f32.mrf.mxu0
    %v347 = vadd.f32 %v265, %v346
    %348 = vdwg.mxu0
    %v349 = vld [vmem:[#allocation5 + $0x1] sm:$0x1]
    %v350 = vld [vmem:[#allocation5 + $0x2] sm:$0x1]
    %vm351 = vcmask 261120
    %v352 = vsel %vm351, %v310, 0.0
    %353 = vadd.xlane.f32.xlu0 %v352
    %v354 = vpop.xlane.xlu0 %353
    %v355 = vsel %vm351, %v312, 0.0
    %356 = vadd.xlane.f32.xlu0 %v355
    %v357 = vpop.xlane.xlu0 %356
    %v358 = vsel %vm351, %v315, 0.0
    %359 = vadd.xlane.f32.xlu0 %v358
    %v360 = vpop.xlane.xlu0 %359
    %v361 = vsel %vm351, %v317, 0.0
    %362 = vadd.xlane.f32.xlu0 %v361
    %v363 = vpop.xlane.xlu0 %362
    %v364 = vsel %vm351, %v320, 0.0
    %365 = vadd.xlane.f32.xlu0 %v364
    %v366 = vpop.xlane.xlu0 %365
    %v367 = vsel %vm351, %v322, 0.0
    %368 = vadd.xlane.f32.xlu0 %v367
    %v369 = vpop.xlane.xlu0 %368
    %v370 = vsel %vm351, %v325, 0.0
    %371 = vadd.xlane.f32.xlu0 %v370
    %v372 = vpop.xlane.xlu0 %371
    %v373 = vsel %vm351, %v327, 0.0
    %374 = vadd.xlane.f32.xlu0 %v373
    %v375 = vpop.xlane.xlu0 %374
    %v376 = vsel %vm351, %v330, 0.0
    %377 = vadd.xlane.f32.xlu0 %v376
    %v378 = vpop.xlane.xlu0 %377
    %v379 = vsel %vm351, %v332, 0.0
    %380 = vadd.xlane.f32.xlu0 %v379
    %v381 = vpop.xlane.xlu0 %380
    %v382 = vsel %vm351, %v335, 0.0
    %383 = vadd.xlane.f32.xlu0 %v382
    %v384 = vpop.xlane.xlu0 %383
    %v385 = vsel %vm351, %v337, 0.0
    %386 = vadd.xlane.f32.xlu0 %v385
    %v387 = vpop.xlane.xlu0 %386
    %v388 = vsel %vm351, %v340, 0.0
    %389 = vadd.xlane.f32.xlu0 %v388
    %v390 = vpop.xlane.xlu0 %389
    %v391 = vsel %vm351, %v342, 0.0
    %392 = vadd.xlane.f32.xlu0 %v391
    %v393 = vpop.xlane.xlu0 %392
    %v394 = vsel %vm351, %v345, 0.0
    %395 = vadd.xlane.f32.xlu0 %v394
    %v396 = vpop.xlane.xlu0 %395
    %v397 = vsel %vm351, %v347, 0.0
    %398 = vadd.xlane.f32.xlu0 %v397
    %v399 = vpop.xlane.xlu0 %398
    %v400 = vrcp.pop 32.0
    %v401 = vmul.f32 32.0, %v400
    %v402 = vsub.f32 1.0, %v401
    %v403 = vmul.f32 %v400, %v402
    %v404 = vadd.f32 %v400, %v403
    %vm405 = vweird.f32 %v400
    %v406 = vsel %vm405, %v400, %v404
    %v407 = vmul.f32 %v354, %v406
    %v408 = vmul.f32 %v357, %v406
    %v409 = vmul.f32 %v360, %v406
    %v410 = vmul.f32 %v363, %v406
    %v411 = vmul.f32 %v366, %v406
    %v412 = vmul.f32 %v369, %v406
    %v413 = vmul.f32 %v372, %v406
    %v414 = vmul.f32 %v375, %v406
    %v415 = vmul.f32 %v378, %v406
    %v416 = vmul.f32 %v381, %v406
    %v417 = vmul.f32 %v384, %v406
    %v418 = vmul.f32 %v387, %v406
    %v419 = vmul.f32 %v390, %v406
    %v420 = vmul.f32 %v393, %v406
    %v421 = vmul.f32 %v396, %v406
    %v422 = vmul.f32 %v399, %v406
    %v423 = vsub.f32 %v310, %v407
    %v424 = vsub.f32 %v312, %v408
    %v425 = vsub.f32 %v315, %v409
    %v426 = vsub.f32 %v317, %v410
    %v427 = vsub.f32 %v320, %v411
    %v428 = vsub.f32 %v322, %v412
    %v429 = vsub.f32 %v325, %v413
    %v430 = vsub.f32 %v327, %v414
    %v431 = vsub.f32 %v330, %v415
    %v432 = vsub.f32 %v332, %v416
    %v433 = vsub.f32 %v335, %v417
    %v434 = vsub.f32 %v337, %v418
    %v435 = vsub.f32 %v340, %v419
    %v436 = vsub.f32 %v342, %v420
    %v437 = vsub.f32 %v345, %v421
    %v438 = vsub.f32 %v347, %v422
    %v439 = vmul.f32 %v423, %v423
    %v440 = vmul.f32 %v424, %v424
    %v441 = vmul.f32 %v425, %v425
    %v442 = vmul.f32 %v426, %v426
    %v443 = vmul.f32 %v427, %v427
    %v444 = vmul.f32 %v428, %v428
    %v445 = vmul.f32 %v429, %v429
    %v446 = vmul.f32 %v430, %v430
    %v447 = vmul.f32 %v431, %v431
    %v448 = vmul.f32 %v432, %v432
    %v449 = vmul.f32 %v433, %v433
    %v450 = vmul.f32 %v434, %v434
    %v451 = vmul.f32 %v435, %v435
    %v452 = vmul.f32 %v436, %v436
    %v453 = vmul.f32 %v437, %v437
    %v454 = vmul.f32 %v438, %v438
    %v455 = vsel %vm351, %v439, 0.0
    %456 = vadd.xlane.f32.xlu0 %v455
    %v457 = vpop.xlane.xlu0 %456
    %v458 = vsel %vm351, %v440, 0.0
    %459 = vadd.xlane.f32.xlu0 %v458
    %v460 = vpop.xlane.xlu0 %459
    %v461 = vsel %vm351, %v441, 0.0
    %462 = vadd.xlane.f32.xlu0 %v461
    %v463 = vpop.xlane.xlu0 %462
    %v464 = vsel %vm351, %v442, 0.0
    %465 = vadd.xlane.f32.xlu0 %v464
    %v466 = vpop.xlane.xlu0 %465
    %v467 = vsel %vm351, %v443, 0.0
    %468 = vadd.xlane.f32.xlu0 %v467
    %v469 = vpop.xlane.xlu0 %468
    %v470 = vsel %vm351, %v444, 0.0
    %471 = vadd.xlane.f32.xlu0 %v470
    %v472 = vpop.xlane.xlu0 %471
    %v473 = vsel %vm351, %v445, 0.0
    %474 = vadd.xlane.f32.xlu0 %v473
    %v475 = vpop.xlane.xlu0 %474
    %v476 = vsel %vm351, %v446, 0.0
    %477 = vadd.xlane.f32.xlu0 %v476
    %v478 = vpop.xlane.xlu0 %477
    %v479 = vsel %vm351, %v447, 0.0
    %480 = vadd.xlane.f32.xlu0 %v479
    %v481 = vpop.xlane.xlu0 %480
    %v482 = vsel %vm351, %v448, 0.0
    %483 = vadd.xlane.f32.xlu0 %v482
    %v484 = vpop.xlane.xlu0 %483
    %v485 = vsel %vm351, %v449, 0.0
    %486 = vadd.xlane.f32.xlu0 %v485
    %v487 = vpop.xlane.xlu0 %486
    %v488 = vsel %vm351, %v450, 0.0
    %489 = vadd.xlane.f32.xlu0 %v488
    %v490 = vpop.xlane.xlu0 %489
    %v491 = vsel %vm351, %v451, 0.0
    %492 = vadd.xlane.f32.xlu0 %v491
    %v493 = vpop.xlane.xlu0 %492
    %v494 = vsel %vm351, %v452, 0.0
    %495 = vadd.xlane.f32.xlu0 %v494
    %v496 = vpop.xlane.xlu0 %495
    %v497 = vsel %vm351, %v453, 0.0
    %498 = vadd.xlane.f32.xlu0 %v497
    %v499 = vpop.xlane.xlu0 %498
    %v500 = vsel %vm351, %v454, 0.0
    %501 = vadd.xlane.f32.xlu0 %v500
    %v502 = vpop.xlane.xlu0 %501
    %v503 = vmul.f32 %v457, %v406
    %v504 = vmul.f32 %v460, %v406
    %v505 = vmul.f32 %v463, %v406
    %v506 = vmul.f32 %v466, %v406
    %v507 = vmul.f32 %v469, %v406
    %v508 = vmul.f32 %v472, %v406
    %v509 = vmul.f32 %v475, %v406
    %v510 = vmul.f32 %v478, %v406
    %v511 = vmul.f32 %v481, %v406
    %v512 = vmul.f32 %v484, %v406
    %v513 = vmul.f32 %v487, %v406
    %v514 = vmul.f32 %v490, %v406
    %v515 = vmul.f32 %v493, %v406
    %v516 = vmul.f32 %v496, %v406
    %v517 = vmul.f32 %v499, %v406
    %v518 = vmul.f32 %v502, %v406
    %v519 = vadd.f32 %v503, 1e-05
    %v520 = vadd.f32 %v504, 1e-05
    %v521 = vadd.f32 %v505, 1e-05
    %v522 = vadd.f32 %v506, 1e-05
    %v523 = vadd.f32 %v507, 1e-05
    %v524 = vadd.f32 %v508, 1e-05
    %v525 = vadd.f32 %v509, 1e-05
    %v526 = vadd.f32 %v510, 1e-05
    %v527 = vadd.f32 %v511, 1e-05
    %v528 = vadd.f32 %v512, 1e-05
    %v529 = vadd.f32 %v513, 1e-05
    %v530 = vadd.f32 %v514, 1e-05
    %v531 = vadd.f32 %v515, 1e-05
    %v532 = vadd.f32 %v516, 1e-05
    %v533 = vadd.f32 %v517, 1e-05
    %v534 = vadd.f32 %v518, 1e-05
    %v535 = vrsqrt.pop %v519
    %v536 = vmul.f32 %v535, %v519
    %v537 = vmul.f32 %v536, %v535
    %v538 = vmul.f32 0.5, %v537
    %v539 = vsub.f32 1.5, %v538
    %v540 = vmul.f32 %v535, %v539
    %vm541 = vweird.f32 %v519
    %vm542 = vweird.f32 %v535
    %vm543 = vmor %vm541, %vm542
    %v544 = vsel %vm543, %v535, %v540
    %v545 = vrsqrt.pop %v520
    %v546 = vmul.f32 %v545, %v520
    %v547 = vmul.f32 %v546, %v545
    %v548 = vmul.f32 0.5, %v547
    %v549 = vsub.f32 1.5, %v548
    %v550 = vmul.f32 %v545, %v549
    %vm551 = vweird.f32 %v520
    %vm552 = vweird.f32 %v545
    %vm553 = vmor %vm551, %vm552
    %v554 = vsel %vm553, %v545, %v550
    %v555 = vrsqrt.pop %v521
    %v556 = vmul.f32 %v555, %v521
    %v557 = vmul.f32 %v556, %v555
    %v558 = vmul.f32 0.5, %v557
    %v559 = vsub.f32 1.5, %v558
    %v560 = vmul.f32 %v555, %v559
    %vm561 = vweird.f32 %v521
    %vm562 = vweird.f32 %v555
    %vm563 = vmor %vm561, %vm562
    %v564 = vsel %vm563, %v555, %v560
    %v565 = vrsqrt.pop %v522
    %v566 = vmul.f32 %v565, %v522
    %v567 = vmul.f32 %v566, %v565
    %v568 = vmul.f32 0.5, %v567
    %v569 = vsub.f32 1.5, %v568
    %v570 = vmul.f32 %v565, %v569
    %vm571 = vweird.f32 %v522
    %vm572 = vweird.f32 %v565
    %vm573 = vmor %vm571, %vm572
    %v574 = vsel %vm573, %v565, %v570
    %v575 = vrsqrt.pop %v523
    %v576 = vmul.f32 %v575, %v523
    %v577 = vmul.f32 %v576, %v575
    %v578 = vmul.f32 0.5, %v577
    %v579 = vsub.f32 1.5, %v578
    %v580 = vmul.f32 %v575, %v579
    %vm581 = vweird.f32 %v523
    %vm582 = vweird.f32 %v575
    %vm583 = vmor %vm581, %vm582
    %v584 = vsel %vm583, %v575, %v580
    %v585 = vrsqrt.pop %v524
    %v586 = vmul.f32 %v585, %v524
    %v587 = vmul.f32 %v586, %v585
    %v588 = vmul.f32 0.5, %v587
    %v589 = vsub.f32 1.5, %v588
    %v590 = vmul.f32 %v585, %v589
    %vm591 = vweird.f32 %v524
    %vm592 = vweird.f32 %v585
    %vm593 = vmor %vm591, %vm592
    %v594 = vsel %vm593, %v585, %v590
    %v595 = vrsqrt.pop %v525
    %v596 = vmul.f32 %v595, %v525
    %v597 = vmul.f32 %v596, %v595
    %v598 = vmul.f32 0.5, %v597
    %v599 = vsub.f32 1.5, %v598
    %v600 = vmul.f32 %v595, %v599
    %vm601 = vweird.f32 %v525
    %vm602 = vweird.f32 %v595
    %vm603 = vmor %vm601, %vm602
    %v604 = vsel %vm603, %v595, %v600
    %v605 = vrsqrt.pop %v526
    %v606 = vmul.f32 %v605, %v526
    %v607 = vmul.f32 %v606, %v605
    %v608 = vmul.f32 0.5, %v607
    %v609 = vsub.f32 1.5, %v608
    %v610 = vmul.f32 %v605, %v609
    %vm611 = vweird.f32 %v526
    %vm612 = vweird.f32 %v605
    %vm613 = vmor %vm611, %vm612
    %v614 = vsel %vm613, %v605, %v610
    %v615 = vrsqrt.pop %v527
    %v616 = vmul.f32 %v615, %v527
    %v617 = vmul.f32 %v616, %v615
    %v618 = vmul.f32 0.5, %v617
    %v619 = vsub.f32 1.5, %v618
    %v620 = vmul.f32 %v615, %v619
    %vm621 = vweird.f32 %v527
    %vm622 = vweird.f32 %v615
    %vm623 = vmor %vm621, %vm622
    %v624 = vsel %vm623, %v615, %v620
    %v625 = vrsqrt.pop %v528
    %v626 = vmul.f32 %v625, %v528
    %v627 = vmul.f32 %v626, %v625
    %v628 = vmul.f32 0.5, %v627
    %v629 = vsub.f32 1.5, %v628
    %v630 = vmul.f32 %v625, %v629
    %vm631 = vweird.f32 %v528
    %vm632 = vweird.f32 %v625
    %vm633 = vmor %vm631, %vm632
    %v634 = vsel %vm633, %v625, %v630
    %v635 = vrsqrt.pop %v529
    %v636 = vmul.f32 %v635, %v529
    %v637 = vmul.f32 %v636, %v635
    %v638 = vmul.f32 0.5, %v637
    %v639 = vsub.f32 1.5, %v638
    %v640 = vmul.f32 %v635, %v639
    %vm641 = vweird.f32 %v529
    %vm642 = vweird.f32 %v635
    %vm643 = vmor %vm641, %vm642
    %v644 = vsel %vm643, %v635, %v640
    %v645 = vrsqrt.pop %v530
    %v646 = vmul.f32 %v645, %v530
    %v647 = vmul.f32 %v646, %v645
    %v648 = vmul.f32 0.5, %v647
    %v649 = vsub.f32 1.5, %v648
    %v650 = vmul.f32 %v645, %v649
    %vm651 = vweird.f32 %v530
    %vm652 = vweird.f32 %v645
    %vm653 = vmor %vm651, %vm652
    %v654 = vsel %vm653, %v645, %v650
    %v655 = vrsqrt.pop %v531
    %v656 = vmul.f32 %v655, %v531
    %v657 = vmul.f32 %v656, %v655
    %v658 = vmul.f32 0.5, %v657
    %v659 = vsub.f32 1.5, %v658
    %v660 = vmul.f32 %v655, %v659
    %vm661 = vweird.f32 %v531
    %vm662 = vweird.f32 %v655
    %vm663 = vmor %vm661, %vm662
    %v664 = vsel %vm663, %v655, %v660
    %v665 = vrsqrt.pop %v532
    %v666 = vmul.f32 %v665, %v532
    %v667 = vmul.f32 %v666, %v665
    %v668 = vmul.f32 0.5, %v667
    %v669 = vsub.f32 1.5, %v668
    %v670 = vmul.f32 %v665, %v669
    %vm671 = vweird.f32 %v532
    %vm672 = vweird.f32 %v665
    %vm673 = vmor %vm671, %vm672
    %v674 = vsel %vm673, %v665, %v670
    %v675 = vrsqrt.pop %v533
    %v676 = vmul.f32 %v675, %v533
    %v677 = vmul.f32 %v676, %v675
    %v678 = vmul.f32 0.5, %v677
    %v679 = vsub.f32 1.5, %v678
    %v680 = vmul.f32 %v675, %v679
    %vm681 = vweird.f32 %v533
    %vm682 = vweird.f32 %v675
    %vm683 = vmor %vm681, %vm682
    %v684 = vsel %vm683, %v675, %v680
    %v685 = vrsqrt.pop %v534
    %v686 = vmul.f32 %v685, %v534
    %v687 = vmul.f32 %v686, %v685
    %v688 = vmul.f32 0.5, %v687
    %v689 = vsub.f32 1.5, %v688
    %v690 = vmul.f32 %v685, %v689
    %vm691 = vweird.f32 %v534
    %vm692 = vweird.f32 %v685
    %vm693 = vmor %vm691, %vm692
    %v694 = vsel %vm693, %v685, %v690
    %v695 = vmul.f32 %v423, %v544
    %v696 = vmul.f32 %v424, %v554
    %v697 = vmul.f32 %v425, %v564
    %v698 = vmul.f32 %v426, %v574
    %v699 = vmul.f32 %v427, %v584
    %v700 = vmul.f32 %v428, %v594
    %v701 = vmul.f32 %v429, %v604
    %v702 = vmul.f32 %v430, %v614
    %v703 = vmul.f32 %v431, %v624
    %v704 = vmul.f32 %v432, %v634
    %v705 = vmul.f32 %v433, %v644
    %v706 = vmul.f32 %v434, %v654
    %v707 = vmul.f32 %v435, %v664
    %v708 = vmul.f32 %v436, %v674
    %v709 = vmul.f32 %v437, %v684
    %v710 = vmul.f32 %v438, %v694
    %v711 = vperm.slane %v349, 0
    %v712 = vmul.f32 %v695, %v711
    %v713 = vmul.f32 %v696, %v711
    %v714 = vmul.f32 %v697, %v711
    %v715 = vmul.f32 %v698, %v711
    %v716 = vmul.f32 %v699, %v711
    %v717 = vmul.f32 %v700, %v711
    %v718 = vmul.f32 %v701, %v711
    %v719 = vmul.f32 %v702, %v711
    %v720 = vmul.f32 %v703, %v711
    %v721 = vmul.f32 %v704, %v711
    %v722 = vmul.f32 %v705, %v711
    %v723 = vmul.f32 %v706, %v711
    %v724 = vmul.f32 %v707, %v711
    %v725 = vmul.f32 %v708, %v711
    %v726 = vmul.f32 %v709, %v711
    %v727 = vmul.f32 %v710, %v711
    %v728 = vperm.slane %v350, 0
    %v729 = vadd.f32 %v712, %v728
    %v730 = vadd.f32 %v713, %v728
    %v731 = vadd.f32 %v714, %v728
    %v732 = vadd.f32 %v715, %v728
    %v733 = vadd.f32 %v716, %v728
    %v734 = vadd.f32 %v717, %v728
    %v735 = vadd.f32 %v718, %v728
    %v736 = vadd.f32 %v719, %v728
    %v737 = vadd.f32 %v720, %v728
    %v738 = vadd.f32 %v721, %v728
    %v739 = vadd.f32 %v722, %v728
    %v740 = vadd.f32 %v723, %v728
    %v741 = vadd.f32 %v724, %v728
    %v742 = vadd.f32 %v725, %v728
    %v743 = vadd.f32 %v726, %v728
    %v744 = vadd.f32 %v727, %v728
    %v745 = vld [vmem:[#allocation5 + $0x3] sm:$0x1]
    %v746 = vld [vmem:[#allocation5 + $0x4] sm:$0x1]
    %v747 = vld [vmem:[#allocation5 + $0x5] sm:$0x1]
    %v748 = vld [vmem:[#allocation5 + $0x6] sm:$0x1]
    %v749 = vld [vmem:[#allocation5 + $0x7] sm:$0x1]
    %v750 = vld [vmem:[#allocation5 + $0x8] sm:$0x1]
    %v751 = vld [vmem:[#allocation7] sm:$0x1]
    %v752 = vsel %vm351, %v729, 0.0
    %753 = vadd.xlane.f32.xlu0 %v752
    %v754 = vpop.xlane.xlu0 %753
    %v755 = vsel %vm351, %v730, 0.0
    %756 = vadd.xlane.f32.xlu0 %v755
    %v757 = vpop.xlane.xlu0 %756
    %v758 = vsel %vm351, %v731, 0.0
    %759 = vadd.xlane.f32.xlu0 %v758
    %v760 = vpop.xlane.xlu0 %759
    %v761 = vsel %vm351, %v732, 0.0
    %762 = vadd.xlane.f32.xlu0 %v761
    %v763 = vpop.xlane.xlu0 %762
    %v764 = vsel %vm351, %v733, 0.0
    %765 = vadd.xlane.f32.xlu0 %v764
    %v766 = vpop.xlane.xlu0 %765
    %v767 = vsel %vm351, %v734, 0.0
    %768 = vadd.xlane.f32.xlu0 %v767
    %v769 = vpop.xlane.xlu0 %768
    %v770 = vsel %vm351, %v735, 0.0
    %771 = vadd.xlane.f32.xlu0 %v770
    %v772 = vpop.xlane.xlu0 %771
    %v773 = vsel %vm351, %v736, 0.0
    %774 = vadd.xlane.f32.xlu0 %v773
    %v775 = vpop.xlane.xlu0 %774
    %v776 = vsel %vm351, %v737, 0.0
    %777 = vadd.xlane.f32.xlu0 %v776
    %v778 = vpop.xlane.xlu0 %777
    %v779 = vsel %vm351, %v738, 0.0
    %780 = vadd.xlane.f32.xlu0 %v779
    %v781 = vpop.xlane.xlu0 %780
    %v782 = vsel %vm351, %v739, 0.0
    %783 = vadd.xlane.f32.xlu0 %v782
    %v784 = vpop.xlane.xlu0 %783
    %v785 = vsel %vm351, %v740, 0.0
    %786 = vadd.xlane.f32.xlu0 %v785
    %v787 = vpop.xlane.xlu0 %786
    %v788 = vsel %vm351, %v741, 0.0
    %789 = vadd.xlane.f32.xlu0 %v788
    %v790 = vpop.xlane.xlu0 %789
    %v791 = vsel %vm351, %v742, 0.0
    %792 = vadd.xlane.f32.xlu0 %v791
    %v793 = vpop.xlane.xlu0 %792
    %v794 = vsel %vm351, %v743, 0.0
    %795 = vadd.xlane.f32.xlu0 %v794
    %v796 = vpop.xlane.xlu0 %795
    %v797 = vsel %vm351, %v744, 0.0
    %798 = vadd.xlane.f32.xlu0 %v797
    %v799 = vpop.xlane.xlu0 %798
    %v800 = vmul.f32 %v754, %v406
    %v801 = vmul.f32 %v757, %v406
    %v802 = vmul.f32 %v760, %v406
    %v803 = vmul.f32 %v763, %v406
    %v804 = vmul.f32 %v766, %v406
    %v805 = vmul.f32 %v769, %v406
    %v806 = vmul.f32 %v772, %v406
    %v807 = vmul.f32 %v775, %v406
    %v808 = vmul.f32 %v778, %v406
    %v809 = vmul.f32 %v781, %v406
    %v810 = vmul.f32 %v784, %v406
    %v811 = vmul.f32 %v787, %v406
    %v812 = vmul.f32 %v790, %v406
    %v813 = vmul.f32 %v793, %v406
    %v814 = vmul.f32 %v796, %v406
    %v815 = vmul.f32 %v799, %v406
    %v816 = vsub.f32 %v729, %v800
    %v817 = vsub.f32 %v730, %v801
    %v818 = vsub.f32 %v731, %v802
    %v819 = vsub.f32 %v732, %v803
    %v820 = vsub.f32 %v733, %v804
    %v821 = vsub.f32 %v734, %v805
    %v822 = vsub.f32 %v735, %v806
    %v823 = vsub.f32 %v736, %v807
    %v824 = vsub.f32 %v737, %v808
    %v825 = vsub.f32 %v738, %v809
    %v826 = vsub.f32 %v739, %v810
    %v827 = vsub.f32 %v740, %v811
    %v828 = vsub.f32 %v741, %v812
    %v829 = vsub.f32 %v742, %v813
    %v830 = vsub.f32 %v743, %v814
    %v831 = vsub.f32 %v744, %v815
    %v832 = vmul.f32 %v816, %v816
    %v833 = vmul.f32 %v817, %v817
    %v834 = vmul.f32 %v818, %v818
    %v835 = vmul.f32 %v819, %v819
    %v836 = vmul.f32 %v820, %v820
    %v837 = vmul.f32 %v821, %v821
    %v838 = vmul.f32 %v822, %v822
    %v839 = vmul.f32 %v823, %v823
    %v840 = vmul.f32 %v824, %v824
    %v841 = vmul.f32 %v825, %v825
    %v842 = vmul.f32 %v826, %v826
    %v843 = vmul.f32 %v827, %v827
    %v844 = vmul.f32 %v828, %v828
    %v845 = vmul.f32 %v829, %v829
    %v846 = vmul.f32 %v830, %v830
    %v847 = vmul.f32 %v831, %v831
    %v848 = vsel %vm351, %v832, 0.0
    %849 = vadd.xlane.f32.xlu0 %v848
    %v850 = vpop.xlane.xlu0 %849
    %v851 = vsel %vm351, %v833, 0.0
    %852 = vadd.xlane.f32.xlu0 %v851
    %v853 = vpop.xlane.xlu0 %852
    %v854 = vsel %vm351, %v834, 0.0
    %855 = vadd.xlane.f32.xlu0 %v854
    %v856 = vpop.xlane.xlu0 %855
    %v857 = vsel %vm351, %v835, 0.0
    %858 = vadd.xlane.f32.xlu0 %v857
    %v859 = vpop.xlane.xlu0 %858
    %v860 = vsel %vm351, %v836, 0.0
    %861 = vadd.xlane.f32.xlu0 %v860
    %v862 = vpop.xlane.xlu0 %861
    %v863 = vsel %vm351, %v837, 0.0
    %864 = vadd.xlane.f32.xlu0 %v863
    %v865 = vpop.xlane.xlu0 %864
    %v866 = vsel %vm351, %v838, 0.0
    %867 = vadd.xlane.f32.xlu0 %v866
    %v868 = vpop.xlane.xlu0 %867
    %v869 = vsel %vm351, %v839, 0.0
    %870 = vadd.xlane.f32.xlu0 %v869
    %v871 = vpop.xlane.xlu0 %870
    %v872 = vsel %vm351, %v840, 0.0
    %873 = vadd.xlane.f32.xlu0 %v872
    %v874 = vpop.xlane.xlu0 %873
    %v875 = vsel %vm351, %v841, 0.0
    %876 = vadd.xlane.f32.xlu0 %v875
    %v877 = vpop.xlane.xlu0 %876
    %v878 = vsel %vm351, %v842, 0.0
    %879 = vadd.xlane.f32.xlu0 %v878
    %v880 = vpop.xlane.xlu0 %879
    %v881 = vsel %vm351, %v843, 0.0
    %882 = vadd.xlane.f32.xlu0 %v881
    %v883 = vpop.xlane.xlu0 %882
    %v884 = vsel %vm351, %v844, 0.0
    %885 = vadd.xlane.f32.xlu0 %v884
    %v886 = vpop.xlane.xlu0 %885
    %v887 = vsel %vm351, %v845, 0.0
    %888 = vadd.xlane.f32.xlu0 %v887
    %v889 = vpop.xlane.xlu0 %888
    %v890 = vsel %vm351, %v846, 0.0
    %891 = vadd.xlane.f32.xlu0 %v890
    %v892 = vpop.xlane.xlu0 %891
    %v893 = vsel %vm351, %v847, 0.0
    %894 = vadd.xlane.f32.xlu0 %v893
    %v895 = vpop.xlane.xlu0 %894
    %v896 = vmul.f32 %v850, %v406
    %v897 = vmul.f32 %v853, %v406
    %v898 = vmul.f32 %v856, %v406
    %v899 = vmul.f32 %v859, %v406
    %v900 = vmul.f32 %v862, %v406
    %v901 = vmul.f32 %v865, %v406
    %v902 = vmul.f32 %v868, %v406
    %v903 = vmul.f32 %v871, %v406
    %v904 = vmul.f32 %v874, %v406
    %v905 = vmul.f32 %v877, %v406
    %v906 = vmul.f32 %v880, %v406
    %v907 = vmul.f32 %v883, %v406
    %v908 = vmul.f32 %v886, %v406
    %v909 = vmul.f32 %v889, %v406
    %v910 = vmul.f32 %v892, %v406
    %v911 = vmul.f32 %v895, %v406
    %v912 = vadd.f32 %v896, 1e-05
    %v913 = vadd.f32 %v897, 1e-05
    %v914 = vadd.f32 %v898, 1e-05
    %v915 = vadd.f32 %v899, 1e-05
    %v916 = vadd.f32 %v900, 1e-05
    %v917 = vadd.f32 %v901, 1e-05
    %v918 = vadd.f32 %v902, 1e-05
    %v919 = vadd.f32 %v903, 1e-05
    %v920 = vadd.f32 %v904, 1e-05
    %v921 = vadd.f32 %v905, 1e-05
    %v922 = vadd.f32 %v906, 1e-05
    %v923 = vadd.f32 %v907, 1e-05
    %v924 = vadd.f32 %v908, 1e-05
    %v925 = vadd.f32 %v909, 1e-05
    %v926 = vadd.f32 %v910, 1e-05
    %v927 = vadd.f32 %v911, 1e-05
    %v928 = vrsqrt.pop %v912
    %v929 = vmul.f32 %v928, %v912
    %v930 = vmul.f32 %v929, %v928
    %v931 = vmul.f32 0.5, %v930
    %v932 = vsub.f32 1.5, %v931
    %v933 = vmul.f32 %v928, %v932
    %vm934 = vweird.f32 %v912
    %vm935 = vweird.f32 %v928
    %vm936 = vmor %vm934, %vm935
    %v937 = vsel %vm936, %v928, %v933
    %v938 = vrsqrt.pop %v913
    %v939 = vmul.f32 %v938, %v913
    %v940 = vmul.f32 %v939, %v938
    %v941 = vmul.f32 0.5, %v940
    %v942 = vsub.f32 1.5, %v941
    %v943 = vmul.f32 %v938, %v942
    %vm944 = vweird.f32 %v913
    %vm945 = vweird.f32 %v938
    %vm946 = vmor %vm944, %vm945
    %v947 = vsel %vm946, %v938, %v943
    %v948 = vrsqrt.pop %v914
    %v949 = vmul.f32 %v948, %v914
    %v950 = vmul.f32 %v949, %v948
    %v951 = vmul.f32 0.5, %v950
    %v952 = vsub.f32 1.5, %v951
    %v953 = vmul.f32 %v948, %v952
    %vm954 = vweird.f32 %v914
    %vm955 = vweird.f32 %v948
    %vm956 = vmor %vm954, %vm955
    %v957 = vsel %vm956, %v948, %v953
    %v958 = vrsqrt.pop %v915
    %v959 = vmul.f32 %v958, %v915
    %v960 = vmul.f32 %v959, %v958
    %v961 = vmul.f32 0.5, %v960
    %v962 = vsub.f32 1.5, %v961
    %v963 = vmul.f32 %v958, %v962
    %vm964 = vweird.f32 %v915
    %vm965 = vweird.f32 %v958
    %vm966 = vmor %vm964, %vm965
    %v967 = vsel %vm966, %v958, %v963
    %v968 = vrsqrt.pop %v916
    %v969 = vmul.f32 %v968, %v916
    %v970 = vmul.f32 %v969, %v968
    %v971 = vmul.f32 0.5, %v970
    %v972 = vsub.f32 1.5, %v971
    %v973 = vmul.f32 %v968, %v972
    %vm974 = vweird.f32 %v916
    %vm975 = vweird.f32 %v968
    %vm976 = vmor %vm974, %vm975
    %v977 = vsel %vm976, %v968, %v973
    %v978 = vrsqrt.pop %v917
    %v979 = vmul.f32 %v978, %v917
    %v980 = vmul.f32 %v979, %v978
    %v981 = vmul.f32 0.5, %v980
    %v982 = vsub.f32 1.5, %v981
    %v983 = vmul.f32 %v978, %v982
    %vm984 = vweird.f32 %v917
    %vm985 = vweird.f32 %v978
    %vm986 = vmor %vm984, %vm985
    %v987 = vsel %vm986, %v978, %v983
    %v988 = vrsqrt.pop %v918
    %v989 = vmul.f32 %v988, %v918
    %v990 = vmul.f32 %v989, %v988
    %v991 = vmul.f32 0.5, %v990
    %v992 = vsub.f32 1.5, %v991
    %v993 = vmul.f32 %v988, %v992
    %vm994 = vweird.f32 %v918
    %vm995 = vweird.f32 %v988
    %vm996 = vmor %vm994, %vm995
    %v997 = vsel %vm996, %v988, %v993
    %v998 = vrsqrt.pop %v919
    %v999 = vmul.f32 %v998, %v919
    %v1000 = vmul.f32 %v999, %v998
    %v1001 = vmul.f32 0.5, %v1000
    %v1002 = vsub.f32 1.5, %v1001
    %v1003 = vmul.f32 %v998, %v1002
    %vm1004 = vweird.f32 %v919
    %vm1005 = vweird.f32 %v998
    %vm1006 = vmor %vm1004, %vm1005
    %v1007 = vsel %vm1006, %v998, %v1003
    %v1008 = vrsqrt.pop %v920
    %v1009 = vmul.f32 %v1008, %v920
    %v1010 = vmul.f32 %v1009, %v1008
    %v1011 = vmul.f32 0.5, %v1010
    %v1012 = vsub.f32 1.5, %v1011
    %v1013 = vmul.f32 %v1008, %v1012
    %vm1014 = vweird.f32 %v920
    %vm1015 = vweird.f32 %v1008
    %vm1016 = vmor %vm1014, %vm1015
    %v1017 = vsel %vm1016, %v1008, %v1013
    %v1018 = vrsqrt.pop %v921
    %v1019 = vmul.f32 %v1018, %v921
    %v1020 = vmul.f32 %v1019, %v1018
    %v1021 = vmul.f32 0.5, %v1020
    %v1022 = vsub.f32 1.5, %v1021
    %v1023 = vmul.f32 %v1018, %v1022
    %vm1024 = vweird.f32 %v921
    %vm1025 = vweird.f32 %v1018
    %vm1026 = vmor %vm1024, %vm1025
    %v1027 = vsel %vm1026, %v1018, %v1023
    %v1028 = vrsqrt.pop %v922
    %v1029 = vmul.f32 %v1028, %v922
    %v1030 = vmul.f32 %v1029, %v1028
    %v1031 = vmul.f32 0.5, %v1030
    %v1032 = vsub.f32 1.5, %v1031
    %v1033 = vmul.f32 %v1028, %v1032
    %vm1034 = vweird.f32 %v922
    %vm1035 = vweird.f32 %v1028
    %vm1036 = vmor %vm1034, %vm1035
    %v1037 = vsel %vm1036, %v1028, %v1033
    %v1038 = vrsqrt.pop %v923
    %v1039 = vmul.f32 %v1038, %v923
    %v1040 = vmul.f32 %v1039, %v1038
    %v1041 = vmul.f32 0.5, %v1040
    %v1042 = vsub.f32 1.5, %v1041
    %v1043 = vmul.f32 %v1038, %v1042
    %vm1044 = vweird.f32 %v923
    %vm1045 = vweird.f32 %v1038
    %vm1046 = vmor %vm1044, %vm1045
    %v1047 = vsel %vm1046, %v1038, %v1043
    %v1048 = vrsqrt.pop %v924
    %v1049 = vmul.f32 %v1048, %v924
    %v1050 = vmul.f32 %v1049, %v1048
    %v1051 = vmul.f32 0.5, %v1050
    %v1052 = vsub.f32 1.5, %v1051
    %v1053 = vmul.f32 %v1048, %v1052
    %vm1054 = vweird.f32 %v924
    %vm1055 = vweird.f32 %v1048
    %vm1056 = vmor %vm1054, %vm1055
    %v1057 = vsel %vm1056, %v1048, %v1053
    %v1058 = vrsqrt.pop %v925
    %v1059 = vmul.f32 %v1058, %v925
    %v1060 = vmul.f32 %v1059, %v1058
    %v1061 = vmul.f32 0.5, %v1060
    %v1062 = vsub.f32 1.5, %v1061
    %v1063 = vmul.f32 %v1058, %v1062
    %vm1064 = vweird.f32 %v925
    %vm1065 = vweird.f32 %v1058
    %vm1066 = vmor %vm1064, %vm1065
    %v1067 = vsel %vm1066, %v1058, %v1063
    %v1068 = vrsqrt.pop %v926
    %v1069 = vmul.f32 %v1068, %v926
    %v1070 = vmul.f32 %v1069, %v1068
    %v1071 = vmul.f32 0.5, %v1070
    %v1072 = vsub.f32 1.5, %v1071
    %v1073 = vmul.f32 %v1068, %v1072
    %vm1074 = vweird.f32 %v926
    %vm1075 = vweird.f32 %v1068
    %vm1076 = vmor %vm1074, %vm1075
    %v1077 = vsel %vm1076, %v1068, %v1073
    %v1078 = vrsqrt.pop %v927
    %v1079 = vmul.f32 %v1078, %v927
    %v1080 = vmul.f32 %v1079, %v1078
    %v1081 = vmul.f32 0.5, %v1080
    %v1082 = vsub.f32 1.5, %v1081
    %v1083 = vmul.f32 %v1078, %v1082
    %vm1084 = vweird.f32 %v927
    %vm1085 = vweird.f32 %v1078
    %vm1086 = vmor %vm1084, %vm1085
    %v1087 = vsel %vm1086, %v1078, %v1083
    %v1088 = vmul.f32 %v816, %v937
    %v1089 = vmul.f32 %v817, %v947
    %v1090 = vmul.f32 %v818, %v957
    %v1091 = vmul.f32 %v819, %v967
    %v1092 = vmul.f32 %v820, %v977
    %v1093 = vmul.f32 %v821, %v987
    %v1094 = vmul.f32 %v822, %v997
    %v1095 = vmul.f32 %v823, %v1007
    %v1096 = vmul.f32 %v824, %v1017
    %v1097 = vmul.f32 %v825, %v1027
    %v1098 = vmul.f32 %v826, %v1037
    %v1099 = vmul.f32 %v827, %v1047
    %v1100 = vmul.f32 %v828, %v1057
    %v1101 = vmul.f32 %v829, %v1067
    %v1102 = vmul.f32 %v830, %v1077
    %v1103 = vmul.f32 %v831, %v1087
    %v1104 = vperm.slane %v745, 0
    %v1105 = vmul.f32 %v1088, %v1104
    %v1106 = vmul.f32 %v1089, %v1104
    %v1107 = vmul.f32 %v1090, %v1104
    %v1108 = vmul.f32 %v1091, %v1104
    %v1109 = vmul.f32 %v1092, %v1104
    %v1110 = vmul.f32 %v1093, %v1104
    %v1111 = vmul.f32 %v1094, %v1104
    %v1112 = vmul.f32 %v1095, %v1104
    %v1113 = vmul.f32 %v1096, %v1104
    %v1114 = vmul.f32 %v1097, %v1104
    %v1115 = vmul.f32 %v1098, %v1104
    %v1116 = vmul.f32 %v1099, %v1104
    %v1117 = vmul.f32 %v1100, %v1104
    %v1118 = vmul.f32 %v1101, %v1104
    %v1119 = vmul.f32 %v1102, %v1104
    %v1120 = vmul.f32 %v1103, %v1104
    %v1121 = vperm.slane %v746, 0
    %v1122 = vadd.f32 %v1105, %v1121
    %v1123 = vadd.f32 %v1106, %v1121
    %v1124 = vadd.f32 %v1107, %v1121
    %v1125 = vadd.f32 %v1108, %v1121
    %v1126 = vadd.f32 %v1109, %v1121
    %v1127 = vadd.f32 %v1110, %v1121
    %v1128 = vadd.f32 %v1111, %v1121
    %v1129 = vadd.f32 %v1112, %v1121
    %v1130 = vadd.f32 %v1113, %v1121
    %v1131 = vadd.f32 %v1114, %v1121
    %v1132 = vadd.f32 %v1115, %v1121
    %v1133 = vadd.f32 %v1116, %v1121
    %v1134 = vadd.f32 %v1117, %v1121
    %v1135 = vadd.f32 %v1118, %v1121
    %v1136 = vadd.f32 %v1119, %v1121
    %v1137 = vadd.f32 %v1120, %v1121
    %v1138 = vld [vmem:[%s6] sm:$0xf]
    %v1139 = vld [vmem:[%s6 + $0x4] sm:$0xf]
    %v1140 = vld [vmem:[%s6 + $0x8] sm:$0xf]
    %v1141 = vld [vmem:[%s6 + $0xc] sm:$0xf]
    %v1142 = vpack.c.bf16 %v1123, %v1122
    %v1143 = vpack.c.bf16 %v1125, %v1124
    %v1144 = vpack.c.bf16 %v1127, %v1126
    %v1145 = vpack.c.bf16 %v1129, %v1128
    %v1146 = vpack.c.bf16 %v1131, %v1130
    %v1147 = vpack.c.bf16 %v1133, %v1132
    %v1148 = vpack.c.bf16 %v1135, %v1134
    %v1149 = vpack.c.bf16 %v1137, %v1136
    %v1150 = vld [vmem:[#allocation10] sm:$0x1]
    %v1151 = vperm.slane %v1150, 0
    %v1156 = vunpack.c.l.b16 %v1138
    %v1157 = vunpack.c.l.b16 %v1139
    %v1158 = vunpack.c.l.b16 %v1140
    %v1159 = vunpack.c.l.b16 %v1141
    %v1160 = vpack.c.b16 %v1157, %v1156
    %v1161 = vpack.c.b16 %v1159, %v1158
    %v1165 = vsel %vm351, %v1142, 0
    %v1168 = vsel %vm351, %v1143, 0
    %v1171 = vsel %vm351, %v1144, 0
    %v1174 = vsel %vm351, %v1145, 0
    %v1177 = vsel %vm351, %v1146, 0
    %v1180 = vsel %vm351, %v1147, 0
    %v1183 = vsel %vm351, %v1148, 0
    %v1186 = vsel %vm351, %v1149, 0
    %1188 = vmatpush.bf16.msra.mxu0 0
    %1189 = vmatpush.bf16.msra.mxu0 0
    %1190 = vmatpush.bf16.msra.mxu0 0
    %1191 = vmatpush.bf16.msra.mxu0 0
    %1192 = vmatpush.bf16.msra.mxu0 0
    %1193 = vmatpush.bf16.msra.mxu0 0
    %1194 = vmatpush.bf16.msra.mxu0 %v1161
    %1195 = vmatpush.bf16.msra.mxu0 %v1160
    %1196 = vmatmul.bf16.gmra.mxu0 %v1165
    %v1197 = vpop.f32.mrf.mxu0
    %v1198 = vadd.f32 %v1151, %v1197
    %v1199 = vpop.f32.mrf.mxu0
    %v1200 = vadd.f32 %v1151, %v1199
    %1201 = vmatmul.bf16.gmra.mxu0 %v1168
    %v1202 = vpop.f32.mrf.mxu0
    %v1203 = vadd.f32 %v1151, %v1202
    %v1204 = vpop.f32.mrf.mxu0
    %v1205 = vadd.f32 %v1151, %v1204
    %1206 = vmatmul.bf16.gmra.mxu0 %v1171
    %v1207 = vpop.f32.mrf.mxu0
    %v1208 = vadd.f32 %v1151, %v1207
    %v1209 = vpop.f32.mrf.mxu0
    %v1210 = vadd.f32 %v1151, %v1209
    %1211 = vmatmul.bf16.gmra.mxu0 %v1174
    %v1212 = vpop.f32.mrf.mxu0
    %v1213 = vadd.f32 %v1151, %v1212
    %v1214 = vpop.f32.mrf.mxu0
    %v1215 = vadd.f32 %v1151, %v1214
    %1216 = vmatmul.bf16.gmra.mxu0 %v1177
    %v1217 = vpop.f32.mrf.mxu0
    %v1218 = vadd.f32 %v1151, %v1217
    %v1219 = vpop.f32.mrf.mxu0
    %v1220 = vadd.f32 %v1151, %v1219
    %1221 = vmatmul.bf16.gmra.mxu0 %v1180
    %v1222 = vpop.f32.mrf.mxu0
    %v1223 = vadd.f32 %v1151, %v1222
    %v1224 = vpop.f32.mrf.mxu0
    %v1225 = vadd.f32 %v1151, %v1224
    %1226 = vmatmul.bf16.gmra.mxu0 %v1183
    %v1227 = vpop.f32.mrf.mxu0
    %v1228 = vadd.f32 %v1151, %v1227
    %v1229 = vpop.f32.mrf.mxu0
    %v1230 = vadd.f32 %v1151, %v1229
    %1231 = vmatmul.bf16.gmra.mxu0 %v1186
    %v1232 = vpop.f32.mrf.mxu0
    %v1233 = vadd.f32 %v1151, %v1232
    %v1234 = vpop.f32.mrf.mxu0
    %v1235 = vadd.f32 %v1151, %v1234
    %1236 = vdwg.mxu0
    %v1237 = vpack.c.bf16 %v1200, %v1198
    %v1238 = vpack.c.bf16 %v1205, %v1203
    %v1239 = vpack.c.bf16 %v1210, %v1208
    %v1240 = vpack.c.bf16 %v1215, %v1213
    %v1241 = vpack.c.bf16 %v1220, %v1218
    %v1242 = vpack.c.bf16 %v1225, %v1223
    %v1243 = vpack.c.bf16 %v1230, %v1228
    %v1244 = vpack.c.bf16 %v1235, %v1233
    %1253 = vrot.lane.b32.xlu0 %v1237, 112
    %v1254 = vpop.permute.xlu0 %1253
    %1255 = vrot.lane.b32.xlu0 %v1238, 112
    %v1256 = vpop.permute.xlu0 %1255
    %1257 = vrot.lane.b32.xlu0 %v1239, 112
    %v1258 = vpop.permute.xlu0 %1257
    %1259 = vrot.lane.b32.xlu0 %v1240, 112
    %v1260 = vpop.permute.xlu0 %1259
    %1261 = vrot.lane.b32.xlu0 %v1241, 112
    %v1262 = vpop.permute.xlu0 %1261
    %1263 = vrot.lane.b32.xlu0 %v1242, 112
    %v1264 = vpop.permute.xlu0 %1263
    %1265 = vrot.lane.b32.xlu0 %v1243, 112
    %v1266 = vpop.permute.xlu0 %1265
    %1267 = vrot.lane.b32.xlu0 %v1244, 112
    %v1268 = vpop.permute.xlu0 %1267
    %vm1269 = vcmask 130048
    %v1271 = vsel %vm1269, %v1237, 0
    %v1274 = vsel %vm1269, %v1238, 0
    %v1277 = vsel %vm1269, %v1239, 0
    %v1280 = vsel %vm1269, %v1240, 0
    %v1283 = vsel %vm1269, %v1241, 0
    %v1286 = vsel %vm1269, %v1242, 0
    %v1289 = vsel %vm1269, %v1243, 0
    %v1292 = vsel %vm1269, %v1244, 0
    %v1295 = vsel %vm1269, %v1254, 0
    %v1298 = vsel %vm1269, %v1256, 0
    %v1301 = vsel %vm1269, %v1258, 0
    %v1304 = vsel %vm1269, %v1260, 0
    %v1307 = vsel %vm1269, %v1262, 0
    %v1310 = vsel %vm1269, %v1264, 0
    %v1313 = vsel %vm1269, %v1266, 0
    %v1316 = vsel %vm1269, %v1268, 0
    %1318 = vmatpush.bf16.xpose.msra.mxu0 %v1316
    %1319 = vmatpush.bf16.xpose.msra.mxu0 %v1313
    %1320 = vmatpush.bf16.xpose.msra.mxu0 %v1310
    %1321 = vmatpush.bf16.xpose.msra.mxu0 %v1307
    %1322 = vmatpush.bf16.xpose.msra.mxu0 %v1304
    %1323 = vmatpush.bf16.xpose.msra.mxu0 %v1301
    %1324 = vmatpush.bf16.xpose.msra.mxu0 %v1298
    %1325 = vmatpush.bf16.xpose.msra.mxu0 %v1295
    %1326 = vmatmul.bf16.gmra.mxu0 %v1271
    %v1327 = vpop.f32.mrf.mxu0
    %v1328 = vadd.f32 0.0, %v1327
    %v1329 = vpop.f32.mrf.mxu0
    %v1330 = vadd.f32 0.0, %v1329
    %1331 = vmatmul.bf16.gmra.mxu0 %v1274
    %v1332 = vpop.f32.mrf.mxu0
    %v1333 = vadd.f32 0.0, %v1332
    %v1334 = vpop.f32.mrf.mxu0
    %v1335 = vadd.f32 0.0, %v1334
    %1336 = vmatmul.bf16.gmra.mxu0 %v1277
    %v1337 = vpop.f32.mrf.mxu0
    %v1338 = vadd.f32 0.0, %v1337
    %v1339 = vpop.f32.mrf.mxu0
    %v1340 = vadd.f32 0.0, %v1339
    %1341 = vmatmul.bf16.gmra.mxu0 %v1280
    %v1342 = vpop.f32.mrf.mxu0
    %v1343 = vadd.f32 0.0, %v1342
    %v1344 = vpop.f32.mrf.mxu0
    %v1345 = vadd.f32 0.0, %v1344
    %1346 = vmatmul.bf16.gmra.mxu0 %v1283
    %v1347 = vpop.f32.mrf.mxu0
    %v1348 = vadd.f32 0.0, %v1347
    %v1349 = vpop.f32.mrf.mxu0
    %v1350 = vadd.f32 0.0, %v1349
    %1351 = vmatmul.bf16.gmra.mxu0 %v1286
    %v1352 = vpop.f32.mrf.mxu0
    %v1353 = vadd.f32 0.0, %v1352
    %v1354 = vpop.f32.mrf.mxu0
    %v1355 = vadd.f32 0.0, %v1354
    %1356 = vmatmul.bf16.gmra.mxu0 %v1289
    %v1357 = vpop.f32.mrf.mxu0
    %v1358 = vadd.f32 0.0, %v1357
    %v1359 = vpop.f32.mrf.mxu0
    %v1360 = vadd.f32 0.0, %v1359
    %1361 = vmatmul.bf16.gmra.mxu0 %v1292
    %v1362 = vpop.f32.mrf.mxu0
    %v1363 = vadd.f32 0.0, %v1362
    %v1364 = vpop.f32.mrf.mxu0
    %v1365 = vadd.f32 0.0, %v1364
    %1366 = vdwg.mxu0
    %v1367 = vmul.f32 %v1328, 0.25
    %v1368 = vmul.f32 %v1330, 0.25
    %v1369 = vmul.f32 %v1333, 0.25
    %v1370 = vmul.f32 %v1335, 0.25
    %v1371 = vmul.f32 %v1338, 0.25
    %v1372 = vmul.f32 %v1340, 0.25
    %v1373 = vmul.f32 %v1343, 0.25
    %v1374 = vmul.f32 %v1345, 0.25
    %v1375 = vmul.f32 %v1348, 0.25
    %v1376 = vmul.f32 %v1350, 0.25
    %v1377 = vmul.f32 %v1353, 0.25
    %v1378 = vmul.f32 %v1355, 0.25
    %v1379 = vmul.f32 %v1358, 0.25
    %v1380 = vmul.f32 %v1360, 0.25
    %v1381 = vmul.f32 %v1363, 0.25
    %v1382 = vmul.f32 %v1365, 0.25
    %v1383 = vld [vmem:[%s9] sm:$0xf]
    %v1384 = vld [vmem:[%s9 + $0x4] sm:$0xf]
    %v1385 = vld [vmem:[%s9 + $0x8] sm:$0xf]
    %v1386 = vld [vmem:[%s9 + $0xc] sm:$0xf]
    %v1387 = vld [vmem:[%s9 + $0x10] sm:$0xf]
    %v1388 = vld [vmem:[%s9 + $0x14] sm:$0xf]
    %v1389 = vld [vmem:[%s9 + $0x18] sm:$0xf]
    %v1390 = vld [vmem:[%s9 + $0x1c] sm:$0xf]
    %v1391 = vld [vmem:[%s9 + $0x20] sm:$0xf]
    %v1392 = vld [vmem:[%s9 + $0x24] sm:$0xf]
    %v1393 = vld [vmem:[%s9 + $0x28] sm:$0xf]
    %v1394 = vld [vmem:[%s9 + $0x2c] sm:$0xf]
    %v1395 = vld [vmem:[%s9 + $0x30] sm:$0xf]
    %v1396 = vld [vmem:[%s9 + $0x34] sm:$0xf]
    %v1397 = vld [vmem:[%s9 + $0x38] sm:$0xf]
    %v1398 = vld [vmem:[%s9 + $0x3c] sm:$0xf]
    %v1399 = vunpack.c.l.bf16 %v1383
    %v1400 = vunpack.c.l.bf16 %v1384
    %v1401 = vunpack.c.l.bf16 %v1385
    %v1402 = vunpack.c.l.bf16 %v1386
    %v1403 = vunpack.c.l.bf16 %v1387
    %v1404 = vunpack.c.l.bf16 %v1388
    %v1405 = vunpack.c.l.bf16 %v1389
    %v1406 = vunpack.c.l.bf16 %v1390
    %v1407 = vunpack.c.l.bf16 %v1391
    %v1408 = vunpack.c.l.bf16 %v1392
    %v1409 = vunpack.c.l.bf16 %v1393
    %v1410 = vunpack.c.l.bf16 %v1394
    %v1411 = vunpack.c.l.bf16 %v1395
    %v1412 = vunpack.c.l.bf16 %v1396
    %v1413 = vunpack.c.l.bf16 %v1397
    %v1414 = vunpack.c.l.bf16 %v1398
    %v1415 = vadd.f32 %v1367, %v1399
    %v1416 = vadd.f32 %v1368, %v1400
    %v1417 = vadd.f32 %v1369, %v1401
    %v1418 = vadd.f32 %v1370, %v1402
    %v1419 = vadd.f32 %v1371, %v1403
    %v1420 = vadd.f32 %v1372, %v1404
    %v1421 = vadd.f32 %v1373, %v1405
    %v1422 = vadd.f32 %v1374, %v1406
    %v1423 = vadd.f32 %v1375, %v1407
    %v1424 = vadd.f32 %v1376, %v1408
    %v1425 = vadd.f32 %v1377, %v1409
    %v1426 = vadd.f32 %v1378, %v1410
    %v1427 = vadd.f32 %v1379, %v1411
    %v1428 = vadd.f32 %v1380, %v1412
    %v1429 = vadd.f32 %v1381, %v1413
    %v1430 = vadd.f32 %v1382, %v1414
    %1431 = vmax.xlane.f32.xlu0 %v1415
    %v1432 = vpop.xlane.xlu0 %1431
    %1433 = vmax.xlane.f32.xlu0 %v1416
    %v1434 = vpop.xlane.xlu0 %1433
    %1435 = vmax.xlane.f32.xlu0 %v1417
    %v1436 = vpop.xlane.xlu0 %1435
    %1437 = vmax.xlane.f32.xlu0 %v1418
    %v1438 = vpop.xlane.xlu0 %1437
    %1439 = vmax.xlane.f32.xlu0 %v1419
    %v1440 = vpop.xlane.xlu0 %1439
    %1441 = vmax.xlane.f32.xlu0 %v1420
    %v1442 = vpop.xlane.xlu0 %1441
    %1443 = vmax.xlane.f32.xlu0 %v1421
    %v1444 = vpop.xlane.xlu0 %1443
    %1445 = vmax.xlane.f32.xlu0 %v1422
    %v1446 = vpop.xlane.xlu0 %1445
    %1447 = vmax.xlane.f32.xlu0 %v1423
    %v1448 = vpop.xlane.xlu0 %1447
    %1449 = vmax.xlane.f32.xlu0 %v1424
    %v1450 = vpop.xlane.xlu0 %1449
    %1451 = vmax.xlane.f32.xlu0 %v1425
    %v1452 = vpop.xlane.xlu0 %1451
    %1453 = vmax.xlane.f32.xlu0 %v1426
    %v1454 = vpop.xlane.xlu0 %1453
    %1455 = vmax.xlane.f32.xlu0 %v1427
    %v1456 = vpop.xlane.xlu0 %1455
    %1457 = vmax.xlane.f32.xlu0 %v1428
    %v1458 = vpop.xlane.xlu0 %1457
    %1459 = vmax.xlane.f32.xlu0 %v1429
    %v1460 = vpop.xlane.xlu0 %1459
    %1461 = vmax.xlane.f32.xlu0 %v1430
    %v1462 = vpop.xlane.xlu0 %1461
    %v1463 = vsub.f32 %v1415, %v1432
    %v1464 = vsub.f32 %v1416, %v1434
    %v1465 = vsub.f32 %v1417, %v1436
    %v1466 = vsub.f32 %v1418, %v1438
    %v1467 = vsub.f32 %v1419, %v1440
    %v1468 = vsub.f32 %v1420, %v1442
    %v1469 = vsub.f32 %v1421, %v1444
    %v1470 = vsub.f32 %v1422, %v1446
    %v1471 = vsub.f32 %v1423, %v1448
    %v1472 = vsub.f32 %v1424, %v1450
    %v1473 = vsub.f32 %v1425, %v1452
    %v1474 = vsub.f32 %v1426, %v1454
    %v1475 = vsub.f32 %v1427, %v1456
    %v1476 = vsub.f32 %v1428, %v1458
    %v1477 = vsub.f32 %v1429, %v1460
    %v1478 = vsub.f32 %v1430, %v1462
    %v1479 = vmul.f32 %v1463, 1.442695
    %v1480 = vpow.pop %v1479
    %v1481 = vmul.f32 %v1464, 1.442695
    %v1482 = vpow.pop %v1481
    %v1483 = vmul.f32 %v1465, 1.442695
    %v1484 = vpow.pop %v1483
    %v1485 = vmul.f32 %v1466, 1.442695
    %v1486 = vpow.pop %v1485
    %v1487 = vmul.f32 %v1467, 1.442695
    %v1488 = vpow.pop %v1487
    %v1489 = vmul.f32 %v1468, 1.442695
    %v1490 = vpow.pop %v1489
    %v1491 = vmul.f32 %v1469, 1.442695
    %v1492 = vpow.pop %v1491
    %v1493 = vmul.f32 %v1470, 1.442695
    %v1494 = vpow.pop %v1493
    %v1495 = vmul.f32 %v1471, 1.442695
    %v1496 = vpow.pop %v1495
    %v1497 = vmul.f32 %v1472, 1.442695
    %v1498 = vpow.pop %v1497
    %v1499 = vmul.f32 %v1473, 1.442695
    %v1500 = vpow.pop %v1499
    %v1501 = vmul.f32 %v1474, 1.442695
    %v1502 = vpow.pop %v1501
    %v1503 = vmul.f32 %v1475, 1.442695
    %v1504 = vpow.pop %v1503
    %v1505 = vmul.f32 %v1476, 1.442695
    %v1506 = vpow.pop %v1505
    %v1507 = vmul.f32 %v1477, 1.442695
    %v1508 = vpow.pop %v1507
    %v1509 = vmul.f32 %v1478, 1.442695
    %v1510 = vpow.pop %v1509
    %1511 = vadd.xlane.f32.xlu0 %v1480
    %v1512 = vpop.xlane.xlu0 %1511
    %1513 = vadd.xlane.f32.xlu0 %v1482
    %v1514 = vpop.xlane.xlu0 %1513
    %1515 = vadd.xlane.f32.xlu0 %v1484
    %v1516 = vpop.xlane.xlu0 %1515
    %1517 = vadd.xlane.f32.xlu0 %v1486
    %v1518 = vpop.xlane.xlu0 %1517
    %1519 = vadd.xlane.f32.xlu0 %v1488
    %v1520 = vpop.xlane.xlu0 %1519
    %1521 = vadd.xlane.f32.xlu0 %v1490
    %v1522 = vpop.xlane.xlu0 %1521
    %1523 = vadd.xlane.f32.xlu0 %v1492
    %v1524 = vpop.xlane.xlu0 %1523
    %1525 = vadd.xlane.f32.xlu0 %v1494
    %v1526 = vpop.xlane.xlu0 %1525
    %1527 = vadd.xlane.f32.xlu0 %v1496
    %v1528 = vpop.xlane.xlu0 %1527
    %1529 = vadd.xlane.f32.xlu0 %v1498
    %v1530 = vpop.xlane.xlu0 %1529
    %1531 = vadd.xlane.f32.xlu0 %v1500
    %v1532 = vpop.xlane.xlu0 %1531
    %1533 = vadd.xlane.f32.xlu0 %v1502
    %v1534 = vpop.xlane.xlu0 %1533
    %1535 = vadd.xlane.f32.xlu0 %v1504
    %v1536 = vpop.xlane.xlu0 %1535
    %1537 = vadd.xlane.f32.xlu0 %v1506
    %v1538 = vpop.xlane.xlu0 %1537
    %1539 = vadd.xlane.f32.xlu0 %v1508
    %v1540 = vpop.xlane.xlu0 %1539
    %1541 = vadd.xlane.f32.xlu0 %v1510
    %v1542 = vpop.xlane.xlu0 %1541
    %v1543 = vrcp.pop %v1512
    %v1544 = vrcp.pop %v1514
    %v1545 = vrcp.pop %v1516
    %v1546 = vrcp.pop %v1518
    %v1547 = vrcp.pop %v1520
    %v1548 = vrcp.pop %v1522
    %v1549 = vrcp.pop %v1524
    %v1550 = vrcp.pop %v1526
    %v1551 = vrcp.pop %v1528
    %v1552 = vrcp.pop %v1530
    %v1553 = vrcp.pop %v1532
    %v1554 = vrcp.pop %v1534
    %v1555 = vrcp.pop %v1536
    %v1556 = vrcp.pop %v1538
    %v1557 = vrcp.pop %v1540
    %v1558 = vrcp.pop %v1542
    %v1559 = vmul.f32 %v1480, %v1543
    %v1560 = vmul.f32 %v1482, %v1544
    %v1561 = vmul.f32 %v1484, %v1545
    %v1562 = vmul.f32 %v1486, %v1546
    %v1563 = vmul.f32 %v1488, %v1547
    %v1564 = vmul.f32 %v1490, %v1548
    %v1565 = vmul.f32 %v1492, %v1549
    %v1566 = vmul.f32 %v1494, %v1550
    %v1567 = vmul.f32 %v1496, %v1551
    %v1568 = vmul.f32 %v1498, %v1552
    %v1569 = vmul.f32 %v1500, %v1553
    %v1570 = vmul.f32 %v1502, %v1554
    %v1571 = vmul.f32 %v1504, %v1555
    %v1572 = vmul.f32 %v1506, %v1556
    %v1573 = vmul.f32 %v1508, %v1557
    %v1574 = vmul.f32 %v1510, %v1558
    %v1575 = vpack.c.bf16 %v1560, %v1559
    %v1576 = vpack.c.bf16 %v1562, %v1561
    %v1577 = vpack.c.bf16 %v1564, %v1563
    %v1578 = vpack.c.bf16 %v1566, %v1565
    %v1579 = vpack.c.bf16 %v1568, %v1567
    %v1580 = vpack.c.bf16 %v1570, %v1569
    %v1581 = vpack.c.bf16 %v1572, %v1571
    %v1582 = vpack.c.bf16 %v1574, %v1573
    %1583 = vrot.lane.b32.xlu0 %v1237, 96
    %v1584 = vpop.permute.xlu0 %1583
    %1585 = vrot.lane.b32.xlu0 %v1238, 96
    %v1586 = vpop.permute.xlu0 %1585
    %1587 = vrot.lane.b32.xlu0 %v1239, 96
    %v1588 = vpop.permute.xlu0 %1587
    %1589 = vrot.lane.b32.xlu0 %v1240, 96
    %v1590 = vpop.permute.xlu0 %1589
    %1591 = vrot.lane.b32.xlu0 %v1241, 96
    %v1592 = vpop.permute.xlu0 %1591
    %1593 = vrot.lane.b32.xlu0 %v1242, 96
    %v1594 = vpop.permute.xlu0 %1593
    %1595 = vrot.lane.b32.xlu0 %v1243, 96
    %v1596 = vpop.permute.xlu0 %1595
    %1597 = vrot.lane.b32.xlu0 %v1244, 96
    %v1598 = vpop.permute.xlu0 %1597
    %1607 = vmatpush.bf16.msra.mxu0 %v1598
    %1608 = vmatpush.bf16.msra.mxu0 %v1596
    %1609 = vmatpush.bf16.msra.mxu0 %v1594
    %1610 = vmatpush.bf16.msra.mxu0 %v1592
    %1611 = vmatpush.bf16.msra.mxu0 %v1590
    %1612 = vmatpush.bf16.msra.mxu0 %v1588
    %1613 = vmatpush.bf16.msra.mxu0 %v1586
    %1614 = vmatpush.bf16.msra.mxu0 %v1584
    %1615 = vmatmul.bf16.gmra.mxu0 %v1575
    %v1616 = vpop.f32.mrf.mxu0
    %v1617 = vadd.f32 0.0, %v1616
    %v1618 = vpop.f32.mrf.mxu0
    %v1619 = vadd.f32 0.0, %v1618
    %1620 = vmatmul.bf16.gmra.mxu0 %v1576
    %v1621 = vpop.f32.mrf.mxu0
    %v1622 = vadd.f32 0.0, %v1621
    %v1623 = vpop.f32.mrf.mxu0
    %v1624 = vadd.f32 0.0, %v1623
    %1625 = vmatmul.bf16.gmra.mxu0 %v1577
    %v1626 = vpop.f32.mrf.mxu0
    %v1627 = vadd.f32 0.0, %v1626
    %v1628 = vpop.f32.mrf.mxu0
    %v1629 = vadd.f32 0.0, %v1628
    %1630 = vmatmul.bf16.gmra.mxu0 %v1578
    %v1631 = vpop.f32.mrf.mxu0
    %v1632 = vadd.f32 0.0, %v1631
    %v1633 = vpop.f32.mrf.mxu0
    %v1634 = vadd.f32 0.0, %v1633
    %1635 = vmatmul.bf16.gmra.mxu0 %v1579
    %v1636 = vpop.f32.mrf.mxu0
    %v1637 = vadd.f32 0.0, %v1636
    %v1638 = vpop.f32.mrf.mxu0
    %v1639 = vadd.f32 0.0, %v1638
    %1640 = vmatmul.bf16.gmra.mxu0 %v1580
    %v1641 = vpop.f32.mrf.mxu0
    %v1642 = vadd.f32 0.0, %v1641
    %v1643 = vpop.f32.mrf.mxu0
    %v1644 = vadd.f32 0.0, %v1643
    %1645 = vmatmul.bf16.gmra.mxu0 %v1581
    %v1646 = vpop.f32.mrf.mxu0
    %v1647 = vadd.f32 0.0, %v1646
    %v1648 = vpop.f32.mrf.mxu0
    %v1649 = vadd.f32 0.0, %v1648
    %1650 = vmatmul.bf16.gmra.mxu0 %v1582
    %v1651 = vpop.f32.mrf.mxu0
    %v1652 = vadd.f32 0.0, %v1651
    %v1653 = vpop.f32.mrf.mxu0
    %v1654 = vadd.f32 0.0, %v1653
    %1655 = vdwg.mxu0
    %1656 = vrot.lane.b32.xlu0 %v1237, 80
    %v1657 = vpop.permute.xlu0 %1656
    %1658 = vrot.lane.b32.xlu0 %v1238, 80
    %v1659 = vpop.permute.xlu0 %1658
    %1660 = vrot.lane.b32.xlu0 %v1239, 80
    %v1661 = vpop.permute.xlu0 %1660
    %1662 = vrot.lane.b32.xlu0 %v1240, 80
    %v1663 = vpop.permute.xlu0 %1662
    %1664 = vrot.lane.b32.xlu0 %v1241, 80
    %v1665 = vpop.permute.xlu0 %1664
    %1666 = vrot.lane.b32.xlu0 %v1242, 80
    %v1667 = vpop.permute.xlu0 %1666
    %1668 = vrot.lane.b32.xlu0 %v1243, 80
    %v1669 = vpop.permute.xlu0 %1668
    %1670 = vrot.lane.b32.xlu0 %v1244, 80
    %v1671 = vpop.permute.xlu0 %1670
    %1672 = vrot.lane.b32.xlu0 %v1237, 64
    %v1673 = vpop.permute.xlu0 %1672
    %1674 = vrot.lane.b32.xlu0 %v1238, 64
    %v1675 = vpop.permute.xlu0 %1674
    %1676 = vrot.lane.b32.xlu0 %v1239, 64
    %v1677 = vpop.permute.xlu0 %1676
    %1678 = vrot.lane.b32.xlu0 %v1240, 64
    %v1679 = vpop.permute.xlu0 %1678
    %1680 = vrot.lane.b32.xlu0 %v1241, 64
    %v1681 = vpop.permute.xlu0 %1680
    %1682 = vrot.lane.b32.xlu0 %v1242, 64
    %v1683 = vpop.permute.xlu0 %1682
    %1684 = vrot.lane.b32.xlu0 %v1243, 64
    %v1685 = vpop.permute.xlu0 %1684
    %1686 = vrot.lane.b32.xlu0 %v1244, 64
    %v1687 = vpop.permute.xlu0 %1686
    %v1689 = vsel %vm1269, %v1657, 0
    %v1692 = vsel %vm1269, %v1659, 0
    %v1695 = vsel %vm1269, %v1661, 0
    %v1698 = vsel %vm1269, %v1663, 0
    %v1701 = vsel %vm1269, %v1665, 0
    %v1704 = vsel %vm1269, %v1667, 0
    %v1707 = vsel %vm1269, %v1669, 0
    %v1710 = vsel %vm1269, %v1671, 0
    %v1713 = vsel %vm1269, %v1673, 0
    %v1716 = vsel %vm1269, %v1675, 0
    %v1719 = vsel %vm1269, %v1677, 0
    %v1722 = vsel %vm1269, %v1679, 0
    %v1725 = vsel %vm1269, %v1681, 0
    %v1728 = vsel %vm1269, %v1683, 0
    %v1731 = vsel %vm1269, %v1685, 0
    %v1734 = vsel %vm1269, %v1687, 0
    %1736 = vmatpush.bf16.xpose.msra.mxu0 %v1734
    %1737 = vmatpush.bf16.xpose.msra.mxu0 %v1731
    %1738 = vmatpush.bf16.xpose.msra.mxu0 %v1728
    %1739 = vmatpush.bf16.xpose.msra.mxu0 %v1725
    %1740 = vmatpush.bf16.xpose.msra.mxu0 %v1722
    %1741 = vmatpush.bf16.xpose.msra.mxu0 %v1719
    %1742 = vmatpush.bf16.xpose.msra.mxu0 %v1716
    %1743 = vmatpush.bf16.xpose.msra.mxu0 %v1713
    %1744 = vmatmul.bf16.gmra.mxu0 %v1689
    %v1745 = vpop.f32.mrf.mxu0
    %v1746 = vadd.f32 0.0, %v1745
    %v1747 = vpop.f32.mrf.mxu0
    %v1748 = vadd.f32 0.0, %v1747
    %1749 = vmatmul.bf16.gmra.mxu0 %v1692
    %v1750 = vpop.f32.mrf.mxu0
    %v1751 = vadd.f32 0.0, %v1750
    %v1752 = vpop.f32.mrf.mxu0
    %v1753 = vadd.f32 0.0, %v1752
    %1754 = vmatmul.bf16.gmra.mxu0 %v1695
    %v1755 = vpop.f32.mrf.mxu0
    %v1756 = vadd.f32 0.0, %v1755
    %v1757 = vpop.f32.mrf.mxu0
    %v1758 = vadd.f32 0.0, %v1757
    %1759 = vmatmul.bf16.gmra.mxu0 %v1698
    %v1760 = vpop.f32.mrf.mxu0
    %v1761 = vadd.f32 0.0, %v1760
    %v1762 = vpop.f32.mrf.mxu0
    %v1763 = vadd.f32 0.0, %v1762
    %1764 = vmatmul.bf16.gmra.mxu0 %v1701
    %v1765 = vpop.f32.mrf.mxu0
    %v1766 = vadd.f32 0.0, %v1765
    %v1767 = vpop.f32.mrf.mxu0
    %v1768 = vadd.f32 0.0, %v1767
    %1769 = vmatmul.bf16.gmra.mxu0 %v1704
    %v1770 = vpop.f32.mrf.mxu0
    %v1771 = vadd.f32 0.0, %v1770
    %v1772 = vpop.f32.mrf.mxu0
    %v1773 = vadd.f32 0.0, %v1772
    %1774 = vmatmul.bf16.gmra.mxu0 %v1707
    %v1775 = vpop.f32.mrf.mxu0
    %v1776 = vadd.f32 0.0, %v1775
    %v1777 = vpop.f32.mrf.mxu0
    %v1778 = vadd.f32 0.0, %v1777
    %1779 = vmatmul.bf16.gmra.mxu0 %v1710
    %v1780 = vpop.f32.mrf.mxu0
    %v1781 = vadd.f32 0.0, %v1780
    %v1782 = vpop.f32.mrf.mxu0
    %v1783 = vadd.f32 0.0, %v1782
    %1784 = vdwg.mxu0
    %v1785 = vmul.f32 %v1746, 0.25
    %v1786 = vmul.f32 %v1748, 0.25
    %v1787 = vmul.f32 %v1751, 0.25
    %v1788 = vmul.f32 %v1753, 0.25
    %v1789 = vmul.f32 %v1756, 0.25
    %v1790 = vmul.f32 %v1758, 0.25
    %v1791 = vmul.f32 %v1761, 0.25
    %v1792 = vmul.f32 %v1763, 0.25
    %v1793 = vmul.f32 %v1766, 0.25
    %v1794 = vmul.f32 %v1768, 0.25
    %v1795 = vmul.f32 %v1771, 0.25
    %v1796 = vmul.f32 %v1773, 0.25
    %v1797 = vmul.f32 %v1776, 0.25
    %v1798 = vmul.f32 %v1778, 0.25
    %v1799 = vmul.f32 %v1781, 0.25
    %v1800 = vmul.f32 %v1783, 0.25
    %s1801 = scalar_lea.vmem %s9, 64
    %v1802 = vld [vmem:[%s1801] sm:$0xf]
    %v1803 = vld [vmem:[%s1801 + $0x4] sm:$0xf]
    %v1804 = vld [vmem:[%s1801 + $0x8] sm:$0xf]
    %v1805 = vld [vmem:[%s1801 + $0xc] sm:$0xf]
    %v1806 = vld [vmem:[%s1801 + $0x10] sm:$0xf]
    %v1807 = vld [vmem:[%s1801 + $0x14] sm:$0xf]
    %v1808 = vld [vmem:[%s1801 + $0x18] sm:$0xf]
    %v1809 = vld [vmem:[%s1801 + $0x1c] sm:$0xf]
    %v1810 = vld [vmem:[%s1801 + $0x20] sm:$0xf]
    %v1811 = vld [vmem:[%s1801 + $0x24] sm:$0xf]
    %v1812 = vld [vmem:[%s1801 + $0x28] sm:$0xf]
    %v1813 = vld [vmem:[%s1801 + $0x2c] sm:$0xf]
    %v1814 = vld [vmem:[%s1801 + $0x30] sm:$0xf]
    %v1815 = vld [vmem:[%s1801 + $0x34] sm:$0xf]
    %v1816 = vld [vmem:[%s1801 + $0x38] sm:$0xf]
    %v1817 = vld [vmem:[%s1801 + $0x3c] sm:$0xf]
    %v1818 = vunpack.c.l.bf16 %v1802
    %v1819 = vunpack.c.l.bf16 %v1803
    %v1820 = vunpack.c.l.bf16 %v1804
    %v1821 = vunpack.c.l.bf16 %v1805
    %v1822 = vunpack.c.l.bf16 %v1806
    %v1823 = vunpack.c.l.bf16 %v1807
    %v1824 = vunpack.c.l.bf16 %v1808
    %v1825 = vunpack.c.l.bf16 %v1809
    %v1826 = vunpack.c.l.bf16 %v1810
    %v1827 = vunpack.c.l.bf16 %v1811
    %v1828 = vunpack.c.l.bf16 %v1812
    %v1829 = vunpack.c.l.bf16 %v1813
    %v1830 = vunpack.c.l.bf16 %v1814
    %v1831 = vunpack.c.l.bf16 %v1815
    %v1832 = vunpack.c.l.bf16 %v1816
    %v1833 = vunpack.c.l.bf16 %v1817
    %v1834 = vadd.f32 %v1785, %v1818
    %v1835 = vadd.f32 %v1786, %v1819
    %v1836 = vadd.f32 %v1787, %v1820
    %v1837 = vadd.f32 %v1788, %v1821
    %v1838 = vadd.f32 %v1789, %v1822
    %v1839 = vadd.f32 %v1790, %v1823
    %v1840 = vadd.f32 %v1791, %v1824
    %v1841 = vadd.f32 %v1792, %v1825
    %v1842 = vadd.f32 %v1793, %v1826
    %v1843 = vadd.f32 %v1794, %v1827
    %v1844 = vadd.f32 %v1795, %v1828
    %v1845 = vadd.f32 %v1796, %v1829
    %v1846 = vadd.f32 %v1797, %v1830
    %v1847 = vadd.f32 %v1798, %v1831
    %v1848 = vadd.f32 %v1799, %v1832
    %v1849 = vadd.f32 %v1800, %v1833
    %1850 = vmax.xlane.f32.xlu0 %v1834
    %v1851 = vpop.xlane.xlu0 %1850
    %1852 = vmax.xlane.f32.xlu0 %v1835
    %v1853 = vpop.xlane.xlu0 %1852
    %1854 = vmax.xlane.f32.xlu0 %v1836
    %v1855 = vpop.xlane.xlu0 %1854
    %1856 = vmax.xlane.f32.xlu0 %v1837
    %v1857 = vpop.xlane.xlu0 %1856
    %1858 = vmax.xlane.f32.xlu0 %v1838
    %v1859 = vpop.xlane.xlu0 %1858
    %1860 = vmax.xlane.f32.xlu0 %v1839
    %v1861 = vpop.xlane.xlu0 %1860
    %1862 = vmax.xlane.f32.xlu0 %v1840
    %v1863 = vpop.xlane.xlu0 %1862
    %1864 = vmax.xlane.f32.xlu0 %v1841
    %v1865 = vpop.xlane.xlu0 %1864
    %1866 = vmax.xlane.f32.xlu0 %v1842
    %v1867 = vpop.xlane.xlu0 %1866
    %1868 = vmax.xlane.f32.xlu0 %v1843
    %v1869 = vpop.xlane.xlu0 %1868
    %1870 = vmax.xlane.f32.xlu0 %v1844
    %v1871 = vpop.xlane.xlu0 %1870
    %1872 = vmax.xlane.f32.xlu0 %v1845
    %v1873 = vpop.xlane.xlu0 %1872
    %1874 = vmax.xlane.f32.xlu0 %v1846
    %v1875 = vpop.xlane.xlu0 %1874
    %1876 = vmax.xlane.f32.xlu0 %v1847
    %v1877 = vpop.xlane.xlu0 %1876
    %1878 = vmax.xlane.f32.xlu0 %v1848
    %v1879 = vpop.xlane.xlu0 %1878
    %1880 = vmax.xlane.f32.xlu0 %v1849
    %v1881 = vpop.xlane.xlu0 %1880
    %v1882 = vsub.f32 %v1834, %v1851
    %v1883 = vsub.f32 %v1835, %v1853
    %v1884 = vsub.f32 %v1836, %v1855
    %v1885 = vsub.f32 %v1837, %v1857
    %v1886 = vsub.f32 %v1838, %v1859
    %v1887 = vsub.f32 %v1839, %v1861
    %v1888 = vsub.f32 %v1840, %v1863
    %v1889 = vsub.f32 %v1841, %v1865
    %v1890 = vsub.f32 %v1842, %v1867
    %v1891 = vsub.f32 %v1843, %v1869
    %v1892 = vsub.f32 %v1844, %v1871
    %v1893 = vsub.f32 %v1845, %v1873
    %v1894 = vsub.f32 %v1846, %v1875
    %v1895 = vsub.f32 %v1847, %v1877
    %v1896 = vsub.f32 %v1848, %v1879
    %v1897 = vsub.f32 %v1849, %v1881
    %v1898 = vmul.f32 %v1882, 1.442695
    %v1899 = vpow.pop %v1898
    %v1900 = vmul.f32 %v1883, 1.442695
    %v1901 = vpow.pop %v1900
    %v1902 = vmul.f32 %v1884, 1.442695
    %v1903 = vpow.pop %v1902
    %v1904 = vmul.f32 %v1885, 1.442695
    %v1905 = vpow.pop %v1904
    %v1906 = vmul.f32 %v1886, 1.442695
    %v1907 = vpow.pop %v1906
    %v1908 = vmul.f32 %v1887, 1.442695
    %v1909 = vpow.pop %v1908
    %v1910 = vmul.f32 %v1888, 1.442695
    %v1911 = vpow.pop %v1910
    %v1912 = vmul.f32 %v1889, 1.442695
    %v1913 = vpow.pop %v1912
    %v1914 = vmul.f32 %v1890, 1.442695
    %v1915 = vpow.pop %v1914
    %v1916 = vmul.f32 %v1891, 1.442695
    %v1917 = vpow.pop %v1916
    %v1918 = vmul.f32 %v1892, 1.442695
    %v1919 = vpow.pop %v1918
    %v1920 = vmul.f32 %v1893, 1.442695
    %v1921 = vpow.pop %v1920
    %v1922 = vmul.f32 %v1894, 1.442695
    %v1923 = vpow.pop %v1922
    %v1924 = vmul.f32 %v1895, 1.442695
    %v1925 = vpow.pop %v1924
    %v1926 = vmul.f32 %v1896, 1.442695
    %v1927 = vpow.pop %v1926
    %v1928 = vmul.f32 %v1897, 1.442695
    %v1929 = vpow.pop %v1928
    %1930 = vadd.xlane.f32.xlu0 %v1899
    %v1931 = vpop.xlane.xlu0 %1930
    %1932 = vadd.xlane.f32.xlu0 %v1901
    %v1933 = vpop.xlane.xlu0 %1932
    %1934 = vadd.xlane.f32.xlu0 %v1903
    %v1935 = vpop.xlane.xlu0 %1934
    %1936 = vadd.xlane.f32.xlu0 %v1905
    %v1937 = vpop.xlane.xlu0 %1936
    %1938 = vadd.xlane.f32.xlu0 %v1907
    %v1939 = vpop.xlane.xlu0 %1938
    %1940 = vadd.xlane.f32.xlu0 %v1909
    %v1941 = vpop.xlane.xlu0 %1940
    %1942 = vadd.xlane.f32.xlu0 %v1911
    %v1943 = vpop.xlane.xlu0 %1942
    %1944 = vadd.xlane.f32.xlu0 %v1913
    %v1945 = vpop.xlane.xlu0 %1944
    %1946 = vadd.xlane.f32.xlu0 %v1915
    %v1947 = vpop.xlane.xlu0 %1946
    %1948 = vadd.xlane.f32.xlu0 %v1917
    %v1949 = vpop.xlane.xlu0 %1948
    %1950 = vadd.xlane.f32.xlu0 %v1919
    %v1951 = vpop.xlane.xlu0 %1950
    %1952 = vadd.xlane.f32.xlu0 %v1921
    %v1953 = vpop.xlane.xlu0 %1952
    %1954 = vadd.xlane.f32.xlu0 %v1923
    %v1955 = vpop.xlane.xlu0 %1954
    %1956 = vadd.xlane.f32.xlu0 %v1925
    %v1957 = vpop.xlane.xlu0 %1956
    %1958 = vadd.xlane.f32.xlu0 %v1927
    %v1959 = vpop.xlane.xlu0 %1958
    %1960 = vadd.xlane.f32.xlu0 %v1929
    %v1961 = vpop.xlane.xlu0 %1960
    %v1962 = vrcp.pop %v1931
    %v1963 = vrcp.pop %v1933
    %v1964 = vrcp.pop %v1935
    %v1965 = vrcp.pop %v1937
    %v1966 = vrcp.pop %v1939
    %v1967 = vrcp.pop %v1941
    %v1968 = vrcp.pop %v1943
    %v1969 = vrcp.pop %v1945
    %v1970 = vrcp.pop %v1947
    %v1971 = vrcp.pop %v1949
    %v1972 = vrcp.pop %v1951
    %v1973 = vrcp.pop %v1953
    %v1974 = vrcp.pop %v1955
    %v1975 = vrcp.pop %v1957
    %v1976 = vrcp.pop %v1959
    %v1977 = vrcp.pop %v1961
    %v1978 = vmul.f32 %v1899, %v1962
    %v1979 = vmul.f32 %v1901, %v1963
    %v1980 = vmul.f32 %v1903, %v1964
    %v1981 = vmul.f32 %v1905, %v1965
    %v1982 = vmul.f32 %v1907, %v1966
    %v1983 = vmul.f32 %v1909, %v1967
    %v1984 = vmul.f32 %v1911, %v1968
    %v1985 = vmul.f32 %v1913, %v1969
    %v1986 = vmul.f32 %v1915, %v1970
    %v1987 = vmul.f32 %v1917, %v1971
    %v1988 = vmul.f32 %v1919, %v1972
    %v1989 = vmul.f32 %v1921, %v1973
    %v1990 = vmul.f32 %v1923, %v1974
    %v1991 = vmul.f32 %v1925, %v1975
    %v1992 = vmul.f32 %v1927, %v1976
    %v1993 = vmul.f32 %v1929, %v1977
    %v1994 = vpack.c.bf16 %v1979, %v1978
    %v1995 = vpack.c.bf16 %v1981, %v1980
    %v1996 = vpack.c.bf16 %v1983, %v1982
    %v1997 = vpack.c.bf16 %v1985, %v1984
    %v1998 = vpack.c.bf16 %v1987, %v1986
    %v1999 = vpack.c.bf16 %v1989, %v1988
    %v2000 = vpack.c.bf16 %v1991, %v1990
    %v2001 = vpack.c.bf16 %v1993, %v1992
    %2002 = vrot.lane.b32.xlu0 %v1237, 48
    %v2003 = vpop.permute.xlu0 %2002
    %2004 = vrot.lane.b32.xlu0 %v1238, 48
    %v2005 = vpop.permute.xlu0 %2004
    %2006 = vrot.lane.b32.xlu0 %v1239, 48
    %v2007 = vpop.permute.xlu0 %2006
    %2008 = vrot.lane.b32.xlu0 %v1240, 48
    %v2009 = vpop.permute.xlu0 %2008
    %2010 = vrot.lane.b32.xlu0 %v1241, 48
    %v2011 = vpop.permute.xlu0 %2010
    %2012 = vrot.lane.b32.xlu0 %v1242, 48
    %v2013 = vpop.permute.xlu0 %2012
    %2014 = vrot.lane.b32.xlu0 %v1243, 48
    %v2015 = vpop.permute.xlu0 %2014
    %2016 = vrot.lane.b32.xlu0 %v1244, 48
    %v2017 = vpop.permute.xlu0 %2016
    %2026 = vmatpush.bf16.msra.mxu0 %v2017
    %2027 = vmatpush.bf16.msra.mxu0 %v2015
    %2028 = vmatpush.bf16.msra.mxu0 %v2013
    %2029 = vmatpush.bf16.msra.mxu0 %v2011
    %2030 = vmatpush.bf16.msra.mxu0 %v2009
    %2031 = vmatpush.bf16.msra.mxu0 %v2007
    %2032 = vmatpush.bf16.msra.mxu0 %v2005
    %2033 = vmatpush.bf16.msra.mxu0 %v2003
    %2034 = vmatmul.bf16.gmra.mxu0 %v1994
    %v2035 = vpop.f32.mrf.mxu0
    %v2036 = vadd.f32 0.0, %v2035
    %v2037 = vpop.f32.mrf.mxu0
    %v2038 = vadd.f32 0.0, %v2037
    %2039 = vmatmul.bf16.gmra.mxu0 %v1995
    %v2040 = vpop.f32.mrf.mxu0
    %v2041 = vadd.f32 0.0, %v2040
    %v2042 = vpop.f32.mrf.mxu0
    %v2043 = vadd.f32 0.0, %v2042
    %2044 = vmatmul.bf16.gmra.mxu0 %v1996
    %v2045 = vpop.f32.mrf.mxu0
    %v2046 = vadd.f32 0.0, %v2045
    %v2047 = vpop.f32.mrf.mxu0
    %v2048 = vadd.f32 0.0, %v2047
    %2049 = vmatmul.bf16.gmra.mxu0 %v1997
    %v2050 = vpop.f32.mrf.mxu0
    %v2051 = vadd.f32 0.0, %v2050
    %v2052 = vpop.f32.mrf.mxu0
    %v2053 = vadd.f32 0.0, %v2052
    %2054 = vmatmul.bf16.gmra.mxu0 %v1998
    %v2055 = vpop.f32.mrf.mxu0
    %v2056 = vadd.f32 0.0, %v2055
    %v2057 = vpop.f32.mrf.mxu0
    %v2058 = vadd.f32 0.0, %v2057
    %2059 = vmatmul.bf16.gmra.mxu0 %v1999
    %v2060 = vpop.f32.mrf.mxu0
    %v2061 = vadd.f32 0.0, %v2060
    %v2062 = vpop.f32.mrf.mxu0
    %v2063 = vadd.f32 0.0, %v2062
    %2064 = vmatmul.bf16.gmra.mxu0 %v2000
    %v2065 = vpop.f32.mrf.mxu0
    %v2066 = vadd.f32 0.0, %v2065
    %v2067 = vpop.f32.mrf.mxu0
    %v2068 = vadd.f32 0.0, %v2067
    %2069 = vmatmul.bf16.gmra.mxu0 %v2001
    %v2070 = vpop.f32.mrf.mxu0
    %v2071 = vadd.f32 0.0, %v2070
    %v2072 = vpop.f32.mrf.mxu0
    %v2073 = vadd.f32 0.0, %v2072
    %2074 = vdwg.mxu0
    %2091 = vrot.lane.b32.xlu0 %v2036, 16
    %v2092 = vpop.permute.xlu0 %2091
    %2093 = vrot.lane.b32.xlu0 %v2038, 16
    %v2094 = vpop.permute.xlu0 %2093
    %2095 = vrot.lane.b32.xlu0 %v2041, 16
    %v2096 = vpop.permute.xlu0 %2095
    %2097 = vrot.lane.b32.xlu0 %v2043, 16
    %v2098 = vpop.permute.xlu0 %2097
    %2099 = vrot.lane.b32.xlu0 %v2046, 16
    %v2100 = vpop.permute.xlu0 %2099
    %2101 = vrot.lane.b32.xlu0 %v2048, 16
    %v2102 = vpop.permute.xlu0 %2101
    %2103 = vrot.lane.b32.xlu0 %v2051, 16
    %v2104 = vpop.permute.xlu0 %2103
    %2105 = vrot.lane.b32.xlu0 %v2053, 16
    %v2106 = vpop.permute.xlu0 %2105
    %2107 = vrot.lane.b32.xlu0 %v2056, 16
    %v2108 = vpop.permute.xlu0 %2107
    %2109 = vrot.lane.b32.xlu0 %v2058, 16
    %v2110 = vpop.permute.xlu0 %2109
    %2111 = vrot.lane.b32.xlu0 %v2061, 16
    %v2112 = vpop.permute.xlu0 %2111
    %2113 = vrot.lane.b32.xlu0 %v2063, 16
    %v2114 = vpop.permute.xlu0 %2113
    %2115 = vrot.lane.b32.xlu0 %v2066, 16
    %v2116 = vpop.permute.xlu0 %2115
    %2117 = vrot.lane.b32.xlu0 %v2068, 16
    %v2118 = vpop.permute.xlu0 %2117
    %2119 = vrot.lane.b32.xlu0 %v2071, 16
    %v2120 = vpop.permute.xlu0 %2119
    %2121 = vrot.lane.b32.xlu0 %v2073, 16
    %v2122 = vpop.permute.xlu0 %2121
    %v2139 = vsel %vm1269, %v1617, %v2092
    %v2140 = vsel %vm1269, %v1619, %v2094
    %v2141 = vsel %vm1269, %v1622, %v2096
    %v2142 = vsel %vm1269, %v1624, %v2098
    %v2143 = vsel %vm1269, %v1627, %v2100
    %v2144 = vsel %vm1269, %v1629, %v2102
    %v2145 = vsel %vm1269, %v1632, %v2104
    %v2146 = vsel %vm1269, %v1634, %v2106
    %v2147 = vsel %vm1269, %v1637, %v2108
    %v2148 = vsel %vm1269, %v1639, %v2110
    %v2149 = vsel %vm1269, %v1642, %v2112
    %v2150 = vsel %vm1269, %v1644, %v2114
    %v2151 = vsel %vm1269, %v1647, %v2116
    %v2152 = vsel %vm1269, %v1649, %v2118
    %v2153 = vsel %vm1269, %v1652, %v2120
    %v2154 = vsel %vm1269, %v1654, %v2122
    %v2155 = vld [vmem:[#allocation11] sm:$0xf]
    %v2156 = vld [vmem:[#allocation11 + $0x4] sm:$0xf]
    %v2157 = vld [vmem:[#allocation11 + $0x8] sm:$0xf]
    %v2158 = vld [vmem:[#allocation11 + $0xc] sm:$0xf]
    %v2159 = vpack.c.bf16 %v2140, %v2139
    %v2160 = vpack.c.bf16 %v2142, %v2141
    %v2161 = vpack.c.bf16 %v2144, %v2143
    %v2162 = vpack.c.bf16 %v2146, %v2145
    %v2163 = vpack.c.bf16 %v2148, %v2147
    %v2164 = vpack.c.bf16 %v2150, %v2149
    %v2165 = vpack.c.bf16 %v2152, %v2151
    %v2166 = vpack.c.bf16 %v2154, %v2153
    %v2171 = vunpack.c.l.b16 %v2155
    %v2172 = vunpack.c.l.b16 %v2156
    %v2173 = vunpack.c.l.b16 %v2157
    %v2174 = vunpack.c.l.b16 %v2158
    %v2175 = vpack.c.b16 %v2172, %v2171
    %v2176 = vpack.c.b16 %v2174, %v2173
    %v2180 = vsel %vm351, %v2159, 0
    %v2183 = vsel %vm351, %v2160, 0
    %v2186 = vsel %vm351, %v2161, 0
    %v2189 = vsel %vm351, %v2162, 0
    %v2192 = vsel %vm351, %v2163, 0
    %v2195 = vsel %vm351, %v2164, 0
    %v2198 = vsel %vm351, %v2165, 0
    %v2201 = vsel %vm351, %v2166, 0
    %2203 = vmatpush.bf16.msra.mxu0 0
    %2204 = vmatpush.bf16.msra.mxu0 0
    %2205 = vmatpush.bf16.msra.mxu0 0
    %2206 = vmatpush.bf16.msra.mxu0 0
    %2207 = vmatpush.bf16.msra.mxu0 0
    %2208 = vmatpush.bf16.msra.mxu0 0
    %2209 = vmatpush.bf16.msra.mxu0 %v2176
    %2210 = vmatpush.bf16.msra.mxu0 %v2175
    %2211 = vmatmul.bf16.gmra.mxu0 %v2180
    %v2212 = vpop.f32.mrf.mxu0
    %v2213 = vadd.f32 0.0, %v2212
    %v2214 = vpop.f32.mrf.mxu0
    %v2215 = vadd.f32 0.0, %v2214
    %2216 = vmatmul.bf16.gmra.mxu0 %v2183
    %v2217 = vpop.f32.mrf.mxu0
    %v2218 = vadd.f32 0.0, %v2217
    %v2219 = vpop.f32.mrf.mxu0
    %v2220 = vadd.f32 0.0, %v2219
    %2221 = vmatmul.bf16.gmra.mxu0 %v2186
    %v2222 = vpop.f32.mrf.mxu0
    %v2223 = vadd.f32 0.0, %v2222
    %v2224 = vpop.f32.mrf.mxu0
    %v2225 = vadd.f32 0.0, %v2224
    %2226 = vmatmul.bf16.gmra.mxu0 %v2189
    %v2227 = vpop.f32.mrf.mxu0
    %v2228 = vadd.f32 0.0, %v2227
    %v2229 = vpop.f32.mrf.mxu0
    %v2230 = vadd.f32 0.0, %v2229
    %2231 = vmatmul.bf16.gmra.mxu0 %v2192
    %v2232 = vpop.f32.mrf.mxu0
    %v2233 = vadd.f32 0.0, %v2232
    %v2234 = vpop.f32.mrf.mxu0
    %v2235 = vadd.f32 0.0, %v2234
    %2236 = vmatmul.bf16.gmra.mxu0 %v2195
    %v2237 = vpop.f32.mrf.mxu0
    %v2238 = vadd.f32 0.0, %v2237
    %v2239 = vpop.f32.mrf.mxu0
    %v2240 = vadd.f32 0.0, %v2239
    %2241 = vmatmul.bf16.gmra.mxu0 %v2198
    %v2242 = vpop.f32.mrf.mxu0
    %v2243 = vadd.f32 0.0, %v2242
    %v2244 = vpop.f32.mrf.mxu0
    %v2245 = vadd.f32 0.0, %v2244
    %2246 = vmatmul.bf16.gmra.mxu0 %v2201
    %v2247 = vpop.f32.mrf.mxu0
    %v2248 = vadd.f32 0.0, %v2247
    %v2249 = vpop.f32.mrf.mxu0
    %v2250 = vadd.f32 0.0, %v2249
    %2251 = vdwg.mxu0
    %v2252 = vadd.f32 %v729, %v2213
    %v2253 = vadd.f32 %v730, %v2215
    %v2254 = vadd.f32 %v731, %v2218
    %v2255 = vadd.f32 %v732, %v2220
    %v2256 = vadd.f32 %v733, %v2223
    %v2257 = vadd.f32 %v734, %v2225
    %v2258 = vadd.f32 %v735, %v2228
    %v2259 = vadd.f32 %v736, %v2230
    %v2260 = vadd.f32 %v737, %v2233
    %v2261 = vadd.f32 %v738, %v2235
    %v2262 = vadd.f32 %v739, %v2238
    %v2263 = vadd.f32 %v740, %v2240
    %v2264 = vadd.f32 %v741, %v2243
    %v2265 = vadd.f32 %v742, %v2245
    %v2266 = vadd.f32 %v743, %v2248
    %v2267 = vadd.f32 %v744, %v2250
    %v2268 = vperm.slane %v747, 0
    %v2269 = vadd.f32 %v2252, %v2268
    %v2270 = vadd.f32 %v2253, %v2268
    %v2271 = vadd.f32 %v2254, %v2268
    %v2272 = vadd.f32 %v2255, %v2268
    %v2273 = vadd.f32 %v2256, %v2268
    %v2274 = vadd.f32 %v2257, %v2268
    %v2275 = vadd.f32 %v2258, %v2268
    %v2276 = vadd.f32 %v2259, %v2268
    %v2277 = vadd.f32 %v2260, %v2268
    %v2278 = vadd.f32 %v2261, %v2268
    %v2279 = vadd.f32 %v2262, %v2268
    %v2280 = vadd.f32 %v2263, %v2268
    %v2281 = vadd.f32 %v2264, %v2268
    %v2282 = vadd.f32 %v2265, %v2268
    %v2283 = vadd.f32 %v2266, %v2268
    %v2284 = vadd.f32 %v2267, %v2268
    %v2285 = vsel %vm351, %v2269, 0.0
    %2286 = vadd.xlane.f32.xlu0 %v2285
    %v2287 = vpop.xlane.xlu0 %2286
    %v2288 = vsel %vm351, %v2270, 0.0
    %2289 = vadd.xlane.f32.xlu0 %v2288
    %v2290 = vpop.xlane.xlu0 %2289
    %v2291 = vsel %vm351, %v2271, 0.0
    %2292 = vadd.xlane.f32.xlu0 %v2291
    %v2293 = vpop.xlane.xlu0 %2292
    %v2294 = vsel %vm351, %v2272, 0.0
    %2295 = vadd.xlane.f32.xlu0 %v2294
    %v2296 = vpop.xlane.xlu0 %2295
    %v2297 = vsel %vm351, %v2273, 0.0
    %2298 = vadd.xlane.f32.xlu0 %v2297
    %v2299 = vpop.xlane.xlu0 %2298
    %v2300 = vsel %vm351, %v2274, 0.0
    %2301 = vadd.xlane.f32.xlu0 %v2300
    %v2302 = vpop.xlane.xlu0 %2301
    %v2303 = vsel %vm351, %v2275, 0.0
    %2304 = vadd.xlane.f32.xlu0 %v2303
    %v2305 = vpop.xlane.xlu0 %2304
    %v2306 = vsel %vm351, %v2276, 0.0
    %2307 = vadd.xlane.f32.xlu0 %v2306
    %v2308 = vpop.xlane.xlu0 %2307
    %v2309 = vsel %vm351, %v2277, 0.0
    %2310 = vadd.xlane.f32.xlu0 %v2309
    %v2311 = vpop.xlane.xlu0 %2310
    %v2312 = vsel %vm351, %v2278, 0.0
    %2313 = vadd.xlane.f32.xlu0 %v2312
    %v2314 = vpop.xlane.xlu0 %2313
    %v2315 = vsel %vm351, %v2279, 0.0
    %2316 = vadd.xlane.f32.xlu0 %v2315
    %v2317 = vpop.xlane.xlu0 %2316
    %v2318 = vsel %vm351, %v2280, 0.0
    %2319 = vadd.xlane.f32.xlu0 %v2318
    %v2320 = vpop.xlane.xlu0 %2319
    %v2321 = vsel %vm351, %v2281, 0.0
    %2322 = vadd.xlane.f32.xlu0 %v2321
    %v2323 = vpop.xlane.xlu0 %2322
    %v2324 = vsel %vm351, %v2282, 0.0
    %2325 = vadd.xlane.f32.xlu0 %v2324
    %v2326 = vpop.xlane.xlu0 %2325
    %v2327 = vsel %vm351, %v2283, 0.0
    %2328 = vadd.xlane.f32.xlu0 %v2327
    %v2329 = vpop.xlane.xlu0 %2328
    %v2330 = vsel %vm351, %v2284, 0.0
    %2331 = vadd.xlane.f32.xlu0 %v2330
    %v2332 = vpop.xlane.xlu0 %2331
    %v2333 = vmul.f32 %v2287, %v406
    %v2334 = vmul.f32 %v2290, %v406
    %v2335 = vmul.f32 %v2293, %v406
    %v2336 = vmul.f32 %v2296, %v406
    %v2337 = vmul.f32 %v2299, %v406
    %v2338 = vmul.f32 %v2302, %v406
    %v2339 = vmul.f32 %v2305, %v406
    %v2340 = vmul.f32 %v2308, %v406
    %v2341 = vmul.f32 %v2311, %v406
    %v2342 = vmul.f32 %v2314, %v406
    %v2343 = vmul.f32 %v2317, %v406
    %v2344 = vmul.f32 %v2320, %v406
    %v2345 = vmul.f32 %v2323, %v406
    %v2346 = vmul.f32 %v2326, %v406
    %v2347 = vmul.f32 %v2329, %v406
    %v2348 = vmul.f32 %v2332, %v406
    %v2349 = vsub.f32 %v2269, %v2333
    %v2350 = vsub.f32 %v2270, %v2334
    %v2351 = vsub.f32 %v2271, %v2335
    %v2352 = vsub.f32 %v2272, %v2336
    %v2353 = vsub.f32 %v2273, %v2337
    %v2354 = vsub.f32 %v2274, %v2338
    %v2355 = vsub.f32 %v2275, %v2339
    %v2356 = vsub.f32 %v2276, %v2340
    %v2357 = vsub.f32 %v2277, %v2341
    %v2358 = vsub.f32 %v2278, %v2342
    %v2359 = vsub.f32 %v2279, %v2343
    %v2360 = vsub.f32 %v2280, %v2344
    %v2361 = vsub.f32 %v2281, %v2345
    %v2362 = vsub.f32 %v2282, %v2346
    %v2363 = vsub.f32 %v2283, %v2347
    %v2364 = vsub.f32 %v2284, %v2348
    %v2365 = vmul.f32 %v2349, %v2349
    %v2366 = vmul.f32 %v2350, %v2350
    %v2367 = vmul.f32 %v2351, %v2351
    %v2368 = vmul.f32 %v2352, %v2352
    %v2369 = vmul.f32 %v2353, %v2353
    %v2370 = vmul.f32 %v2354, %v2354
    %v2371 = vmul.f32 %v2355, %v2355
    %v2372 = vmul.f32 %v2356, %v2356
    %v2373 = vmul.f32 %v2357, %v2357
    %v2374 = vmul.f32 %v2358, %v2358
    %v2375 = vmul.f32 %v2359, %v2359
    %v2376 = vmul.f32 %v2360, %v2360
    %v2377 = vmul.f32 %v2361, %v2361
    %v2378 = vmul.f32 %v2362, %v2362
    %v2379 = vmul.f32 %v2363, %v2363
    %v2380 = vmul.f32 %v2364, %v2364
    %v2381 = vsel %vm351, %v2365, 0.0
    %2382 = vadd.xlane.f32.xlu0 %v2381
    %v2383 = vpop.xlane.xlu0 %2382
    %v2384 = vsel %vm351, %v2366, 0.0
    %2385 = vadd.xlane.f32.xlu0 %v2384
    %v2386 = vpop.xlane.xlu0 %2385
    %v2387 = vsel %vm351, %v2367, 0.0
    %2388 = vadd.xlane.f32.xlu0 %v2387
    %v2389 = vpop.xlane.xlu0 %2388
    %v2390 = vsel %vm351, %v2368, 0.0
    %2391 = vadd.xlane.f32.xlu0 %v2390
    %v2392 = vpop.xlane.xlu0 %2391
    %v2393 = vsel %vm351, %v2369, 0.0
    %2394 = vadd.xlane.f32.xlu0 %v2393
    %v2395 = vpop.xlane.xlu0 %2394
    %v2396 = vsel %vm351, %v2370, 0.0
    %2397 = vadd.xlane.f32.xlu0 %v2396
    %v2398 = vpop.xlane.xlu0 %2397
    %v2399 = vsel %vm351, %v2371, 0.0
    %2400 = vadd.xlane.f32.xlu0 %v2399
    %v2401 = vpop.xlane.xlu0 %2400
    %v2402 = vsel %vm351, %v2372, 0.0
    %2403 = vadd.xlane.f32.xlu0 %v2402
    %v2404 = vpop.xlane.xlu0 %2403
    %v2405 = vsel %vm351, %v2373, 0.0
    %2406 = vadd.xlane.f32.xlu0 %v2405
    %v2407 = vpop.xlane.xlu0 %2406
    %v2408 = vsel %vm351, %v2374, 0.0
    %2409 = vadd.xlane.f32.xlu0 %v2408
    %v2410 = vpop.xlane.xlu0 %2409
    %v2411 = vsel %vm351, %v2375, 0.0
    %2412 = vadd.xlane.f32.xlu0 %v2411
    %v2413 = vpop.xlane.xlu0 %2412
    %v2414 = vsel %vm351, %v2376, 0.0
    %2415 = vadd.xlane.f32.xlu0 %v2414
    %v2416 = vpop.xlane.xlu0 %2415
    %v2417 = vsel %vm351, %v2377, 0.0
    %2418 = vadd.xlane.f32.xlu0 %v2417
    %v2419 = vpop.xlane.xlu0 %2418
    %v2420 = vsel %vm351, %v2378, 0.0
    %2421 = vadd.xlane.f32.xlu0 %v2420
    %v2422 = vpop.xlane.xlu0 %2421
    %v2423 = vsel %vm351, %v2379, 0.0
    %2424 = vadd.xlane.f32.xlu0 %v2423
    %v2425 = vpop.xlane.xlu0 %2424
    %v2426 = vsel %vm351, %v2380, 0.0
    %2427 = vadd.xlane.f32.xlu0 %v2426
    %v2428 = vpop.xlane.xlu0 %2427
    %v2429 = vmul.f32 %v2383, %v406
    %v2430 = vmul.f32 %v2386, %v406
    %v2431 = vmul.f32 %v2389, %v406
    %v2432 = vmul.f32 %v2392, %v406
    %v2433 = vmul.f32 %v2395, %v406
    %v2434 = vmul.f32 %v2398, %v406
    %v2435 = vmul.f32 %v2401, %v406
    %v2436 = vmul.f32 %v2404, %v406
    %v2437 = vmul.f32 %v2407, %v406
    %v2438 = vmul.f32 %v2410, %v406
    %v2439 = vmul.f32 %v2413, %v406
    %v2440 = vmul.f32 %v2416, %v406
    %v2441 = vmul.f32 %v2419, %v406
    %v2442 = vmul.f32 %v2422, %v406
    %v2443 = vmul.f32 %v2425, %v406
    %v2444 = vmul.f32 %v2428, %v406
    %v2445 = vadd.f32 %v2429, 1e-05
    %v2446 = vadd.f32 %v2430, 1e-05
    %v2447 = vadd.f32 %v2431, 1e-05
    %v2448 = vadd.f32 %v2432, 1e-05
    %v2449 = vadd.f32 %v2433, 1e-05
    %v2450 = vadd.f32 %v2434, 1e-05
    %v2451 = vadd.f32 %v2435, 1e-05
    %v2452 = vadd.f32 %v2436, 1e-05
    %v2453 = vadd.f32 %v2437, 1e-05
    %v2454 = vadd.f32 %v2438, 1e-05
    %v2455 = vadd.f32 %v2439, 1e-05
    %v2456 = vadd.f32 %v2440, 1e-05
    %v2457 = vadd.f32 %v2441, 1e-05
    %v2458 = vadd.f32 %v2442, 1e-05
    %v2459 = vadd.f32 %v2443, 1e-05
    %v2460 = vadd.f32 %v2444, 1e-05
    %v2461 = vrsqrt.pop %v2445
    %v2462 = vmul.f32 %v2461, %v2445
    %v2463 = vmul.f32 %v2462, %v2461
    %v2464 = vmul.f32 0.5, %v2463
    %v2465 = vsub.f32 1.5, %v2464
    %v2466 = vmul.f32 %v2461, %v2465
    %vm2467 = vweird.f32 %v2445
    %vm2468 = vweird.f32 %v2461
    %vm2469 = vmor %vm2467, %vm2468
    %v2470 = vsel %vm2469, %v2461, %v2466
    %v2471 = vrsqrt.pop %v2446
    %v2472 = vmul.f32 %v2471, %v2446
    %v2473 = vmul.f32 %v2472, %v2471
    %v2474 = vmul.f32 0.5, %v2473
    %v2475 = vsub.f32 1.5, %v2474
    %v2476 = vmul.f32 %v2471, %v2475
    %vm2477 = vweird.f32 %v2446
    %vm2478 = vweird.f32 %v2471
    %vm2479 = vmor %vm2477, %vm2478
    %v2480 = vsel %vm2479, %v2471, %v2476
    %v2481 = vrsqrt.pop %v2447
    %v2482 = vmul.f32 %v2481, %v2447
    %v2483 = vmul.f32 %v2482, %v2481
    %v2484 = vmul.f32 0.5, %v2483
    %v2485 = vsub.f32 1.5, %v2484
    %v2486 = vmul.f32 %v2481, %v2485
    %vm2487 = vweird.f32 %v2447
    %vm2488 = vweird.f32 %v2481
    %vm2489 = vmor %vm2487, %vm2488
    %v2490 = vsel %vm2489, %v2481, %v2486
    %v2491 = vrsqrt.pop %v2448
    %v2492 = vmul.f32 %v2491, %v2448
    %v2493 = vmul.f32 %v2492, %v2491
    %v2494 = vmul.f32 0.5, %v2493
    %v2495 = vsub.f32 1.5, %v2494
    %v2496 = vmul.f32 %v2491, %v2495
    %vm2497 = vweird.f32 %v2448
    %vm2498 = vweird.f32 %v2491
    %vm2499 = vmor %vm2497, %vm2498
    %v2500 = vsel %vm2499, %v2491, %v2496
    %v2501 = vrsqrt.pop %v2449
    %v2502 = vmul.f32 %v2501, %v2449
    %v2503 = vmul.f32 %v2502, %v2501
    %v2504 = vmul.f32 0.5, %v2503
    %v2505 = vsub.f32 1.5, %v2504
    %v2506 = vmul.f32 %v2501, %v2505
    %vm2507 = vweird.f32 %v2449
    %vm2508 = vweird.f32 %v2501
    %vm2509 = vmor %vm2507, %vm2508
    %v2510 = vsel %vm2509, %v2501, %v2506
    %v2511 = vrsqrt.pop %v2450
    %v2512 = vmul.f32 %v2511, %v2450
    %v2513 = vmul.f32 %v2512, %v2511
    %v2514 = vmul.f32 0.5, %v2513
    %v2515 = vsub.f32 1.5, %v2514
    %v2516 = vmul.f32 %v2511, %v2515
    %vm2517 = vweird.f32 %v2450
    %vm2518 = vweird.f32 %v2511
    %vm2519 = vmor %vm2517, %vm2518
    %v2520 = vsel %vm2519, %v2511, %v2516
    %v2521 = vrsqrt.pop %v2451
    %v2522 = vmul.f32 %v2521, %v2451
    %v2523 = vmul.f32 %v2522, %v2521
    %v2524 = vmul.f32 0.5, %v2523
    %v2525 = vsub.f32 1.5, %v2524
    %v2526 = vmul.f32 %v2521, %v2525
    %vm2527 = vweird.f32 %v2451
    %vm2528 = vweird.f32 %v2521
    %vm2529 = vmor %vm2527, %vm2528
    %v2530 = vsel %vm2529, %v2521, %v2526
    %v2531 = vrsqrt.pop %v2452
    %v2532 = vmul.f32 %v2531, %v2452
    %v2533 = vmul.f32 %v2532, %v2531
    %v2534 = vmul.f32 0.5, %v2533
    %v2535 = vsub.f32 1.5, %v2534
    %v2536 = vmul.f32 %v2531, %v2535
    %vm2537 = vweird.f32 %v2452
    %vm2538 = vweird.f32 %v2531
    %vm2539 = vmor %vm2537, %vm2538
    %v2540 = vsel %vm2539, %v2531, %v2536
    %v2541 = vrsqrt.pop %v2453
    %v2542 = vmul.f32 %v2541, %v2453
    %v2543 = vmul.f32 %v2542, %v2541
    %v2544 = vmul.f32 0.5, %v2543
    %v2545 = vsub.f32 1.5, %v2544
    %v2546 = vmul.f32 %v2541, %v2545
    %vm2547 = vweird.f32 %v2453
    %vm2548 = vweird.f32 %v2541
    %vm2549 = vmor %vm2547, %vm2548
    %v2550 = vsel %vm2549, %v2541, %v2546
    %v2551 = vrsqrt.pop %v2454
    %v2552 = vmul.f32 %v2551, %v2454
    %v2553 = vmul.f32 %v2552, %v2551
    %v2554 = vmul.f32 0.5, %v2553
    %v2555 = vsub.f32 1.5, %v2554
    %v2556 = vmul.f32 %v2551, %v2555
    %vm2557 = vweird.f32 %v2454
    %vm2558 = vweird.f32 %v2551
    %vm2559 = vmor %vm2557, %vm2558
    %v2560 = vsel %vm2559, %v2551, %v2556
    %v2561 = vrsqrt.pop %v2455
    %v2562 = vmul.f32 %v2561, %v2455
    %v2563 = vmul.f32 %v2562, %v2561
    %v2564 = vmul.f32 0.5, %v2563
    %v2565 = vsub.f32 1.5, %v2564
    %v2566 = vmul.f32 %v2561, %v2565
    %vm2567 = vweird.f32 %v2455
    %vm2568 = vweird.f32 %v2561
    %vm2569 = vmor %vm2567, %vm2568
    %v2570 = vsel %vm2569, %v2561, %v2566
    %v2571 = vrsqrt.pop %v2456
    %v2572 = vmul.f32 %v2571, %v2456
    %v2573 = vmul.f32 %v2572, %v2571
    %v2574 = vmul.f32 0.5, %v2573
    %v2575 = vsub.f32 1.5, %v2574
    %v2576 = vmul.f32 %v2571, %v2575
    %vm2577 = vweird.f32 %v2456
    %vm2578 = vweird.f32 %v2571
    %vm2579 = vmor %vm2577, %vm2578
    %v2580 = vsel %vm2579, %v2571, %v2576
    %v2581 = vrsqrt.pop %v2457
    %v2582 = vmul.f32 %v2581, %v2457
    %v2583 = vmul.f32 %v2582, %v2581
    %v2584 = vmul.f32 0.5, %v2583
    %v2585 = vsub.f32 1.5, %v2584
    %v2586 = vmul.f32 %v2581, %v2585
    %vm2587 = vweird.f32 %v2457
    %vm2588 = vweird.f32 %v2581
    %vm2589 = vmor %vm2587, %vm2588
    %v2590 = vsel %vm2589, %v2581, %v2586
    %v2591 = vrsqrt.pop %v2458
    %v2592 = vmul.f32 %v2591, %v2458
    %v2593 = vmul.f32 %v2592, %v2591
    %v2594 = vmul.f32 0.5, %v2593
    %v2595 = vsub.f32 1.5, %v2594
    %v2596 = vmul.f32 %v2591, %v2595
    %vm2597 = vweird.f32 %v2458
    %vm2598 = vweird.f32 %v2591
    %vm2599 = vmor %vm2597, %vm2598
    %v2600 = vsel %vm2599, %v2591, %v2596
    %v2601 = vrsqrt.pop %v2459
    %v2602 = vmul.f32 %v2601, %v2459
    %v2603 = vmul.f32 %v2602, %v2601
    %v2604 = vmul.f32 0.5, %v2603
    %v2605 = vsub.f32 1.5, %v2604
    %v2606 = vmul.f32 %v2601, %v2605
    %vm2607 = vweird.f32 %v2459
    %vm2608 = vweird.f32 %v2601
    %vm2609 = vmor %vm2607, %vm2608
    %v2610 = vsel %vm2609, %v2601, %v2606
    %v2611 = vrsqrt.pop %v2460
    %v2612 = vmul.f32 %v2611, %v2460
    %v2613 = vmul.f32 %v2612, %v2611
    %v2614 = vmul.f32 0.5, %v2613
    %v2615 = vsub.f32 1.5, %v2614
    %v2616 = vmul.f32 %v2611, %v2615
    %vm2617 = vweird.f32 %v2460
    %vm2618 = vweird.f32 %v2611
    %vm2619 = vmor %vm2617, %vm2618
    %v2620 = vsel %vm2619, %v2611, %v2616
    %v2621 = vmul.f32 %v2349, %v2470
    %v2622 = vmul.f32 %v2350, %v2480
    %v2623 = vmul.f32 %v2351, %v2490
    %v2624 = vmul.f32 %v2352, %v2500
    %v2625 = vmul.f32 %v2353, %v2510
    %v2626 = vmul.f32 %v2354, %v2520
    %v2627 = vmul.f32 %v2355, %v2530
    %v2628 = vmul.f32 %v2356, %v2540
    %v2629 = vmul.f32 %v2357, %v2550
    %v2630 = vmul.f32 %v2358, %v2560
    %v2631 = vmul.f32 %v2359, %v2570
    %v2632 = vmul.f32 %v2360, %v2580
    %v2633 = vmul.f32 %v2361, %v2590
    %v2634 = vmul.f32 %v2362, %v2600
    %v2635 = vmul.f32 %v2363, %v2610
    %v2636 = vmul.f32 %v2364, %v2620
    %v2637 = vperm.slane %v748, 0
    %v2638 = vmul.f32 %v2621, %v2637
    %v2639 = vmul.f32 %v2622, %v2637
    %v2640 = vmul.f32 %v2623, %v2637
    %v2641 = vmul.f32 %v2624, %v2637
    %v2642 = vmul.f32 %v2625, %v2637
    %v2643 = vmul.f32 %v2626, %v2637
    %v2644 = vmul.f32 %v2627, %v2637
    %v2645 = vmul.f32 %v2628, %v2637
    %v2646 = vmul.f32 %v2629, %v2637
    %v2647 = vmul.f32 %v2630, %v2637
    %v2648 = vmul.f32 %v2631, %v2637
    %v2649 = vmul.f32 %v2632, %v2637
    %v2650 = vmul.f32 %v2633, %v2637
    %v2651 = vmul.f32 %v2634, %v2637
    %v2652 = vmul.f32 %v2635, %v2637
    %v2653 = vmul.f32 %v2636, %v2637
    %v2654 = vperm.slane %v749, 0
    %v2655 = vadd.f32 %v2638, %v2654
    %v2656 = vadd.f32 %v2639, %v2654
    %v2657 = vadd.f32 %v2640, %v2654
    %v2658 = vadd.f32 %v2641, %v2654
    %v2659 = vadd.f32 %v2642, %v2654
    %v2660 = vadd.f32 %v2643, %v2654
    %v2661 = vadd.f32 %v2644, %v2654
    %v2662 = vadd.f32 %v2645, %v2654
    %v2663 = vadd.f32 %v2646, %v2654
    %v2664 = vadd.f32 %v2647, %v2654
    %v2665 = vadd.f32 %v2648, %v2654
    %v2666 = vadd.f32 %v2649, %v2654
    %v2667 = vadd.f32 %v2650, %v2654
    %v2668 = vadd.f32 %v2651, %v2654
    %v2669 = vadd.f32 %v2652, %v2654
    %v2670 = vadd.f32 %v2653, %v2654
    %v2671 = vld [vmem:[#allocation13] sm:$0xf]
    %v2672 = vld [vmem:[#allocation13 + $0x4] sm:$0xf]
    %v2673 = vld [vmem:[#allocation13 + $0x8] sm:$0xf]
    %v2674 = vld [vmem:[#allocation13 + $0xc] sm:$0xf]
    %v2675 = vpack.c.bf16 %v2656, %v2655
    %v2676 = vpack.c.bf16 %v2658, %v2657
    %v2677 = vpack.c.bf16 %v2660, %v2659
    %v2678 = vpack.c.bf16 %v2662, %v2661
    %v2679 = vpack.c.bf16 %v2664, %v2663
    %v2680 = vpack.c.bf16 %v2666, %v2665
    %v2681 = vpack.c.bf16 %v2668, %v2667
    %v2682 = vpack.c.bf16 %v2670, %v2669
    %v2683 = vperm.slane %v751, 0
    %v2688 = vunpack.c.l.b16 %v2671
    %v2689 = vunpack.c.l.b16 %v2672
    %v2690 = vunpack.c.l.b16 %v2673
    %v2691 = vunpack.c.l.b16 %v2674
    %v2692 = vpack.c.b16 %v2689, %v2688
    %v2693 = vpack.c.b16 %v2691, %v2690
    %v2697 = vsel %vm351, %v2675, 0
    %v2700 = vsel %vm351, %v2676, 0
    %v2703 = vsel %vm351, %v2677, 0
    %v2706 = vsel %vm351, %v2678, 0
    %v2709 = vsel %vm351, %v2679, 0
    %v2712 = vsel %vm351, %v2680, 0
    %v2715 = vsel %vm351, %v2681, 0
    %v2718 = vsel %vm351, %v2682, 0
    %2720 = vmatpush.bf16.msra.mxu0 0
    %2721 = vmatpush.bf16.msra.mxu0 0
    %2722 = vmatpush.bf16.msra.mxu0 0
    %2723 = vmatpush.bf16.msra.mxu0 0
    %2724 = vmatpush.bf16.msra.mxu0 0
    %2725 = vmatpush.bf16.msra.mxu0 0
    %2726 = vmatpush.bf16.msra.mxu0 %v2693
    %2727 = vmatpush.bf16.msra.mxu0 %v2692
    %2728 = vmatmul.bf16.gmra.mxu0 %v2697
    %v2729 = vpop.f32.mrf.mxu0
    %v2730 = vadd.f32 %v2683, %v2729
    %v2731 = vpop.f32.mrf.mxu0
    %v2732 = vadd.f32 %v2683, %v2731
    %2733 = vmatmul.bf16.gmra.mxu0 %v2700
    %v2734 = vpop.f32.mrf.mxu0
    %v2735 = vadd.f32 %v2683, %v2734
    %v2736 = vpop.f32.mrf.mxu0
    %v2737 = vadd.f32 %v2683, %v2736
    %2738 = vmatmul.bf16.gmra.mxu0 %v2703
    %v2739 = vpop.f32.mrf.mxu0
    %v2740 = vadd.f32 %v2683, %v2739
    %v2741 = vpop.f32.mrf.mxu0
    %v2742 = vadd.f32 %v2683, %v2741
    %2743 = vmatmul.bf16.gmra.mxu0 %v2706
    %v2744 = vpop.f32.mrf.mxu0
    %v2745 = vadd.f32 %v2683, %v2744
    %v2746 = vpop.f32.mrf.mxu0
    %v2747 = vadd.f32 %v2683, %v2746
    %2748 = vmatmul.bf16.gmra.mxu0 %v2709
    %v2749 = vpop.f32.mrf.mxu0
    %v2750 = vadd.f32 %v2683, %v2749
    %v2751 = vpop.f32.mrf.mxu0
    %v2752 = vadd.f32 %v2683, %v2751
    %2753 = vmatmul.bf16.gmra.mxu0 %v2712
    %v2754 = vpop.f32.mrf.mxu0
    %v2755 = vadd.f32 %v2683, %v2754
    %v2756 = vpop.f32.mrf.mxu0
    %v2757 = vadd.f32 %v2683, %v2756
    %2758 = vmatmul.bf16.gmra.mxu0 %v2715
    %v2759 = vpop.f32.mrf.mxu0
    %v2760 = vadd.f32 %v2683, %v2759
    %v2761 = vpop.f32.mrf.mxu0
    %v2762 = vadd.f32 %v2683, %v2761
    %2763 = vmatmul.bf16.gmra.mxu0 %v2718
    %v2764 = vpop.f32.mrf.mxu0
    %v2765 = vadd.f32 %v2683, %v2764
    %v2766 = vpop.f32.mrf.mxu0
    %v2767 = vadd.f32 %v2683, %v2766
    %2768 = vdwg.mxu0
    %v2769 = vmul.f32 %v2730, 0.5
    %v2770 = vmul.f32 %v2732, 0.5
    %v2771 = vmul.f32 %v2735, 0.5
    %v2772 = vmul.f32 %v2737, 0.5
    %v2773 = vmul.f32 %v2740, 0.5
    %v2774 = vmul.f32 %v2742, 0.5
    %v2775 = vmul.f32 %v2745, 0.5
    %v2776 = vmul.f32 %v2747, 0.5
    %v2777 = vmul.f32 %v2750, 0.5
    %v2778 = vmul.f32 %v2752, 0.5
    %v2779 = vmul.f32 %v2755, 0.5
    %v2780 = vmul.f32 %v2757, 0.5
    %v2781 = vmul.f32 %v2760, 0.5
    %v2782 = vmul.f32 %v2762, 0.5
    %v2783 = vmul.f32 %v2765, 0.5
    %v2784 = vmul.f32 %v2767, 0.5
    %v2785 = vmul.f32 %v2730, 0.70710677
    %v2786 = vmul.f32 %v2732, 0.70710677
    %v2787 = vmul.f32 %v2735, 0.70710677
    %v2788 = vmul.f32 %v2737, 0.70710677
    %v2789 = vmul.f32 %v2740, 0.70710677
    %v2790 = vmul.f32 %v2742, 0.70710677
    %v2791 = vmul.f32 %v2745, 0.70710677
    %v2792 = vmul.f32 %v2747, 0.70710677
    %v2793 = vmul.f32 %v2750, 0.70710677
    %v2794 = vmul.f32 %v2752, 0.70710677
    %v2795 = vmul.f32 %v2755, 0.70710677
    %v2796 = vmul.f32 %v2757, 0.70710677
    %v2797 = vmul.f32 %v2760, 0.70710677
    %v2798 = vmul.f32 %v2762, 0.70710677
    %v2799 = vmul.f32 %v2765, 0.70710677
    %v2800 = vmul.f32 %v2767, 0.70710677
    %vm2801 = vcmp.ge.f32.partialorder %v2785, 0.0
    %vm2802 = vcmp.ge.f32.partialorder %v2786, 0.0
    %vm2803 = vcmp.ge.f32.partialorder %v2787, 0.0
    %vm2804 = vcmp.ge.f32.partialorder %v2788, 0.0
    %vm2805 = vcmp.ge.f32.partialorder %v2789, 0.0
    %vm2806 = vcmp.ge.f32.partialorder %v2790, 0.0
    %vm2807 = vcmp.ge.f32.partialorder %v2791, 0.0
    %vm2808 = vcmp.ge.f32.partialorder %v2792, 0.0
    %vm2809 = vcmp.ge.f32.partialorder %v2793, 0.0
    %vm2810 = vcmp.ge.f32.partialorder %v2794, 0.0
    %vm2811 = vcmp.ge.f32.partialorder %v2795, 0.0
    %vm2812 = vcmp.ge.f32.partialorder %v2796, 0.0
    %vm2813 = vcmp.ge.f32.partialorder %v2797, 0.0
    %vm2814 = vcmp.ge.f32.partialorder %v2798, 0.0
    %vm2815 = vcmp.ge.f32.partialorder %v2799, 0.0
    %vm2816 = vcmp.ge.f32.partialorder %v2800, 0.0
    %v2817 = vsel %vm2801, 1.0, -1.0
    %v2818 = vsel %vm2802, 1.0, -1.0
    %v2819 = vsel %vm2803, 1.0, -1.0
    %v2820 = vsel %vm2804, 1.0, -1.0
    %v2821 = vsel %vm2805, 1.0, -1.0
    %v2822 = vsel %vm2806, 1.0, -1.0
    %v2823 = vsel %vm2807, 1.0, -1.0
    %v2824 = vsel %vm2808, 1.0, -1.0
    %v2825 = vsel %vm2809, 1.0, -1.0
    %v2826 = vsel %vm2810, 1.0, -1.0
    %v2827 = vsel %vm2811, 1.0, -1.0
    %v2828 = vsel %vm2812, 1.0, -1.0
    %v2829 = vsel %vm2813, 1.0, -1.0
    %v2830 = vsel %vm2814, 1.0, -1.0
    %v2831 = vsel %vm2815, 1.0, -1.0
    %v2832 = vsel %vm2816, 1.0, -1.0
    %v2833 = vand.u32 2147483647, %v2785
    %v2834 = vand.u32 2147483647, %v2786
    %v2835 = vand.u32 2147483647, %v2787
    %v2836 = vand.u32 2147483647, %v2788
    %v2837 = vand.u32 2147483647, %v2789
    %v2838 = vand.u32 2147483647, %v2790
    %v2839 = vand.u32 2147483647, %v2791
    %v2840 = vand.u32 2147483647, %v2792
    %v2841 = vand.u32 2147483647, %v2793
    %v2842 = vand.u32 2147483647, %v2794
    %v2843 = vand.u32 2147483647, %v2795
    %v2844 = vand.u32 2147483647, %v2796
    %v2845 = vand.u32 2147483647, %v2797
    %v2846 = vand.u32 2147483647, %v2798
    %v2847 = vand.u32 2147483647, %v2799
    %v2848 = vand.u32 2147483647, %v2800
    %v2849 = vmul.f32 %v2833, 0.3275911
    %v2850 = vmul.f32 %v2834, 0.3275911
    %v2851 = vmul.f32 %v2835, 0.3275911
    %v2852 = vmul.f32 %v2836, 0.3275911
    %v2853 = vmul.f32 %v2837, 0.3275911
    %v2854 = vmul.f32 %v2838, 0.3275911
    %v2855 = vmul.f32 %v2839, 0.3275911
    %v2856 = vmul.f32 %v2840, 0.3275911
    %v2857 = vmul.f32 %v2841, 0.3275911
    %v2858 = vmul.f32 %v2842, 0.3275911
    %v2859 = vmul.f32 %v2843, 0.3275911
    %v2860 = vmul.f32 %v2844, 0.3275911
    %v2861 = vmul.f32 %v2845, 0.3275911
    %v2862 = vmul.f32 %v2846, 0.3275911
    %v2863 = vmul.f32 %v2847, 0.3275911
    %v2864 = vmul.f32 %v2848, 0.3275911
    %v2865 = vadd.f32 %v2849, 1.0
    %v2866 = vadd.f32 %v2850, 1.0
    %v2867 = vadd.f32 %v2851, 1.0
    %v2868 = vadd.f32 %v2852, 1.0
    %v2869 = vadd.f32 %v2853, 1.0
    %v2870 = vadd.f32 %v2854, 1.0
    %v2871 = vadd.f32 %v2855, 1.0
    %v2872 = vadd.f32 %v2856, 1.0
    %v2873 = vadd.f32 %v2857, 1.0
    %v2874 = vadd.f32 %v2858, 1.0
    %v2875 = vadd.f32 %v2859, 1.0
    %v2876 = vadd.f32 %v2860, 1.0
    %v2877 = vadd.f32 %v2861, 1.0
    %v2878 = vadd.f32 %v2862, 1.0
    %v2879 = vadd.f32 %v2863, 1.0
    %v2880 = vadd.f32 %v2864, 1.0
    %v2881 = vrcp.pop %v2865
    %v2882 = vrcp.pop %v2866
    %v2883 = vrcp.pop %v2867
    %v2884 = vrcp.pop %v2868
    %v2885 = vrcp.pop %v2869
    %v2886 = vrcp.pop %v2870
    %v2887 = vrcp.pop %v2871
    %v2888 = vrcp.pop %v2872
    %v2889 = vrcp.pop %v2873
    %v2890 = vrcp.pop %v2874
    %v2891 = vrcp.pop %v2875
    %v2892 = vrcp.pop %v2876
    %v2893 = vrcp.pop %v2877
    %v2894 = vrcp.pop %v2878
    %v2895 = vrcp.pop %v2879
    %v2896 = vrcp.pop %v2880
    %v2897 = vmul.f32 %v2881, 1.0614054
    %v2898 = vmul.f32 %v2882, 1.0614054
    %v2899 = vmul.f32 %v2883, 1.0614054
    %v2900 = vmul.f32 %v2884, 1.0614054
    %v2901 = vmul.f32 %v2885, 1.0614054
    %v2902 = vmul.f32 %v2886, 1.0614054
    %v2903 = vmul.f32 %v2887, 1.0614054
    %v2904 = vmul.f32 %v2888, 1.0614054
    %v2905 = vmul.f32 %v2889, 1.0614054
    %v2906 = vmul.f32 %v2890, 1.0614054
    %v2907 = vmul.f32 %v2891, 1.0614054
    %v2908 = vmul.f32 %v2892, 1.0614054
    %v2909 = vmul.f32 %v2893, 1.0614054
    %v2910 = vmul.f32 %v2894, 1.0614054
    %v2911 = vmul.f32 %v2895, 1.0614054
    %v2912 = vmul.f32 %v2896, 1.0614054
    %v2913 = vadd.f32 %v2897, -1.4531521
    %v2914 = vadd.f32 %v2898, -1.4531521
    %v2915 = vadd.f32 %v2899, -1.4531521
    %v2916 = vadd.f32 %v2900, -1.4531521
    %v2917 = vadd.f32 %v2901, -1.4531521
    %v2918 = vadd.f32 %v2902, -1.4531521
    %v2919 = vadd.f32 %v2903, -1.4531521
    %v2920 = vadd.f32 %v2904, -1.4531521
    %v2921 = vadd.f32 %v2905, -1.4531521
    %v2922 = vadd.f32 %v2906, -1.4531521
    %v2923 = vadd.f32 %v2907, -1.4531521
    %v2924 = vadd.f32 %v2908, -1.4531521
    %v2925 = vadd.f32 %v2909, -1.4531521
    %v2926 = vadd.f32 %v2910, -1.4531521
    %v2927 = vadd.f32 %v2911, -1.4531521
    %v2928 = vadd.f32 %v2912, -1.4531521
    %v2929 = vmul.f32 %v2913, %v2881
    %v2930 = vmul.f32 %v2914, %v2882
    %v2931 = vmul.f32 %v2915, %v2883
    %v2932 = vmul.f32 %v2916, %v2884
    %v2933 = vmul.f32 %v2917, %v2885
    %v2934 = vmul.f32 %v2918, %v2886
    %v2935 = vmul.f32 %v2919, %v2887
    %v2936 = vmul.f32 %v2920, %v2888
    %v2937 = vmul.f32 %v2921, %v2889
    %v2938 = vmul.f32 %v2922, %v2890
    %v2939 = vmul.f32 %v2923, %v2891
    %v2940 = vmul.f32 %v2924, %v2892
    %v2941 = vmul.f32 %v2925, %v2893
    %v2942 = vmul.f32 %v2926, %v2894
    %v2943 = vmul.f32 %v2927, %v2895
    %v2944 = vmul.f32 %v2928, %v2896
    %v2945 = vadd.f32 %v2929, 1.4214138
    %v2946 = vadd.f32 %v2930, 1.4214138
    %v2947 = vadd.f32 %v2931, 1.4214138
    %v2948 = vadd.f32 %v2932, 1.4214138
    %v2949 = vadd.f32 %v2933, 1.4214138
    %v2950 = vadd.f32 %v2934, 1.4214138
    %v2951 = vadd.f32 %v2935, 1.4214138
    %v2952 = vadd.f32 %v2936, 1.4214138
    %v2953 = vadd.f32 %v2937, 1.4214138
    %v2954 = vadd.f32 %v2938, 1.4214138
    %v2955 = vadd.f32 %v2939, 1.4214138
    %v2956 = vadd.f32 %v2940, 1.4214138
    %v2957 = vadd.f32 %v2941, 1.4214138
    %v2958 = vadd.f32 %v2942, 1.4214138
    %v2959 = vadd.f32 %v2943, 1.4214138
    %v2960 = vadd.f32 %v2944, 1.4214138
    %v2961 = vmul.f32 %v2945, %v2881
    %v2962 = vmul.f32 %v2946, %v2882
    %v2963 = vmul.f32 %v2947, %v2883
    %v2964 = vmul.f32 %v2948, %v2884
    %v2965 = vmul.f32 %v2949, %v2885
    %v2966 = vmul.f32 %v2950, %v2886
    %v2967 = vmul.f32 %v2951, %v2887
    %v2968 = vmul.f32 %v2952, %v2888
    %v2969 = vmul.f32 %v2953, %v2889
    %v2970 = vmul.f32 %v2954, %v2890
    %v2971 = vmul.f32 %v2955, %v2891
    %v2972 = vmul.f32 %v2956, %v2892
    %v2973 = vmul.f32 %v2957, %v2893
    %v2974 = vmul.f32 %v2958, %v2894
    %v2975 = vmul.f32 %v2959, %v2895
    %v2976 = vmul.f32 %v2960, %v2896
    %v2977 = vadd.f32 %v2961, -0.28449672
    %v2978 = vadd.f32 %v2962, -0.28449672
    %v2979 = vadd.f32 %v2963, -0.28449672
    %v2980 = vadd.f32 %v2964, -0.28449672
    %v2981 = vadd.f32 %v2965, -0.28449672
    %v2982 = vadd.f32 %v2966, -0.28449672
    %v2983 = vadd.f32 %v2967, -0.28449672
    %v2984 = vadd.f32 %v2968, -0.28449672
    %v2985 = vadd.f32 %v2969, -0.28449672
    %v2986 = vadd.f32 %v2970, -0.28449672
    %v2987 = vadd.f32 %v2971, -0.28449672
    %v2988 = vadd.f32 %v2972, -0.28449672
    %v2989 = vadd.f32 %v2973, -0.28449672
    %v2990 = vadd.f32 %v2974, -0.28449672
    %v2991 = vadd.f32 %v2975, -0.28449672
    %v2992 = vadd.f32 %v2976, -0.28449672
    %v2993 = vmul.f32 %v2977, %v2881
    %v2994 = vmul.f32 %v2978, %v2882
    %v2995 = vmul.f32 %v2979, %v2883
    %v2996 = vmul.f32 %v2980, %v2884
    %v2997 = vmul.f32 %v2981, %v2885
    %v2998 = vmul.f32 %v2982, %v2886
    %v2999 = vmul.f32 %v2983, %v2887
    %v3000 = vmul.f32 %v2984, %v2888
    %v3001 = vmul.f32 %v2985, %v2889
    %v3002 = vmul.f32 %v2986, %v2890
    %v3003 = vmul.f32 %v2987, %v2891
    %v3004 = vmul.f32 %v2988, %v2892
    %v3005 = vmul.f32 %v2989, %v2893
    %v3006 = vmul.f32 %v2990, %v2894
    %v3007 = vmul.f32 %v2991, %v2895
    %v3008 = vmul.f32 %v2992, %v2896
    %v3009 = vadd.f32 %v2993, 0.2548296
    %v3010 = vadd.f32 %v2994, 0.2548296
    %v3011 = vadd.f32 %v2995, 0.2548296
    %v3012 = vadd.f32 %v2996, 0.2548296
    %v3013 = vadd.f32 %v2997, 0.2548296
    %v3014 = vadd.f32 %v2998, 0.2548296
    %v3015 = vadd.f32 %v2999, 0.2548296
    %v3016 = vadd.f32 %v3000, 0.2548296
    %v3017 = vadd.f32 %v3001, 0.2548296
    %v3018 = vadd.f32 %v3002, 0.2548296
    %v3019 = vadd.f32 %v3003, 0.2548296
    %v3020 = vadd.f32 %v3004, 0.2548296
    %v3021 = vadd.f32 %v3005, 0.2548296
    %v3022 = vadd.f32 %v3006, 0.2548296
    %v3023 = vadd.f32 %v3007, 0.2548296
    %v3024 = vadd.f32 %v3008, 0.2548296
    %v3025 = vmul.f32 %v3009, %v2881
    %v3026 = vmul.f32 %v3010, %v2882
    %v3027 = vmul.f32 %v3011, %v2883
    %v3028 = vmul.f32 %v3012, %v2884
    %v3029 = vmul.f32 %v3013, %v2885
    %v3030 = vmul.f32 %v3014, %v2886
    %v3031 = vmul.f32 %v3015, %v2887
    %v3032 = vmul.f32 %v3016, %v2888
    %v3033 = vmul.f32 %v3017, %v2889
    %v3034 = vmul.f32 %v3018, %v2890
    %v3035 = vmul.f32 %v3019, %v2891
    %v3036 = vmul.f32 %v3020, %v2892
    %v3037 = vmul.f32 %v3021, %v2893
    %v3038 = vmul.f32 %v3022, %v2894
    %v3039 = vmul.f32 %v3023, %v2895
    %v3040 = vmul.f32 %v3024, %v2896
    %v3041 = vsub.f32 0.0, %v2833
    %v3042 = vsub.f32 0.0, %v2834
    %v3043 = vsub.f32 0.0, %v2835
    %v3044 = vsub.f32 0.0, %v2836
    %v3045 = vsub.f32 0.0, %v2837
    %v3046 = vsub.f32 0.0, %v2838
    %v3047 = vsub.f32 0.0, %v2839
    %v3048 = vsub.f32 0.0, %v2840
    %v3049 = vsub.f32 0.0, %v2841
    %v3050 = vsub.f32 0.0, %v2842
    %v3051 = vsub.f32 0.0, %v2843
    %v3052 = vsub.f32 0.0, %v2844
    %v3053 = vsub.f32 0.0, %v2845
    %v3054 = vsub.f32 0.0, %v2846
    %v3055 = vsub.f32 0.0, %v2847
    %v3056 = vsub.f32 0.0, %v2848
    %v3057 = vmul.f32 %v3041, %v2833
    %v3058 = vmul.f32 %v3042, %v2834
    %v3059 = vmul.f32 %v3043, %v2835
    %v3060 = vmul.f32 %v3044, %v2836
    %v3061 = vmul.f32 %v3045, %v2837
    %v3062 = vmul.f32 %v3046, %v2838
    %v3063 = vmul.f32 %v3047, %v2839
    %v3064 = vmul.f32 %v3048, %v2840
    %v3065 = vmul.f32 %v3049, %v2841
    %v3066 = vmul.f32 %v3050, %v2842
    %v3067 = vmul.f32 %v3051, %v2843
    %v3068 = vmul.f32 %v3052, %v2844
    %v3069 = vmul.f32 %v3053, %v2845
    %v3070 = vmul.f32 %v3054, %v2846
    %v3071 = vmul.f32 %v3055, %v2847
    %v3072 = vmul.f32 %v3056, %v2848
    %v3073 = vmul.f32 %v3057, 1.442695
    %v3074 = vpow.pop %v3073
    %v3075 = vmul.f32 %v3058, 1.442695
    %v3076 = vpow.pop %v3075
    %v3077 = vmul.f32 %v3059, 1.442695
    %v3078 = vpow.pop %v3077
    %v3079 = vmul.f32 %v3060, 1.442695
    %v3080 = vpow.pop %v3079
    %v3081 = vmul.f32 %v3061, 1.442695
    %v3082 = vpow.pop %v3081
    %v3083 = vmul.f32 %v3062, 1.442695
    %v3084 = vpow.pop %v3083
    %v3085 = vmul.f32 %v3063, 1.442695
    %v3086 = vpow.pop %v3085
    %v3087 = vmul.f32 %v3064, 1.442695
    %v3088 = vpow.pop %v3087
    %v3089 = vmul.f32 %v3065, 1.442695
    %v3090 = vpow.pop %v3089
    %v3091 = vmul.f32 %v3066, 1.442695
    %v3092 = vpow.pop %v3091
    %v3093 = vmul.f32 %v3067, 1.442695
    %v3094 = vpow.pop %v3093
    %v3095 = vmul.f32 %v3068, 1.442695
    %v3096 = vpow.pop %v3095
    %v3097 = vmul.f32 %v3069, 1.442695
    %v3098 = vpow.pop %v3097
    %v3099 = vmul.f32 %v3070, 1.442695
    %v3100 = vpow.pop %v3099
    %v3101 = vmul.f32 %v3071, 1.442695
    %v3102 = vpow.pop %v3101
    %v3103 = vmul.f32 %v3072, 1.442695
    %v3104 = vpow.pop %v3103
    %v3105 = vmul.f32 %v3025, %v3074
    %v3106 = vmul.f32 %v3026, %v3076
    %v3107 = vmul.f32 %v3027, %v3078
    %v3108 = vmul.f32 %v3028, %v3080
    %v3109 = vmul.f32 %v3029, %v3082
    %v3110 = vmul.f32 %v3030, %v3084
    %v3111 = vmul.f32 %v3031, %v3086
    %v3112 = vmul.f32 %v3032, %v3088
    %v3113 = vmul.f32 %v3033, %v3090
    %v3114 = vmul.f32 %v3034, %v3092
    %v3115 = vmul.f32 %v3035, %v3094
    %v3116 = vmul.f32 %v3036, %v3096
    %v3117 = vmul.f32 %v3037, %v3098
    %v3118 = vmul.f32 %v3038, %v3100
    %v3119 = vmul.f32 %v3039, %v3102
    %v3120 = vmul.f32 %v3040, %v3104
    %v3121 = vsub.f32 1.0, %v3105
    %v3122 = vsub.f32 1.0, %v3106
    %v3123 = vsub.f32 1.0, %v3107
    %v3124 = vsub.f32 1.0, %v3108
    %v3125 = vsub.f32 1.0, %v3109
    %v3126 = vsub.f32 1.0, %v3110
    %v3127 = vsub.f32 1.0, %v3111
    %v3128 = vsub.f32 1.0, %v3112
    %v3129 = vsub.f32 1.0, %v3113
    %v3130 = vsub.f32 1.0, %v3114
    %v3131 = vsub.f32 1.0, %v3115
    %v3132 = vsub.f32 1.0, %v3116
    %v3133 = vsub.f32 1.0, %v3117
    %v3134 = vsub.f32 1.0, %v3118
    %v3135 = vsub.f32 1.0, %v3119
    %v3136 = vsub.f32 1.0, %v3120
    %v3137 = vmul.f32 %v2817, %v3121
    %v3138 = vmul.f32 %v2818, %v3122
    %v3139 = vmul.f32 %v2819, %v3123
    %v3140 = vmul.f32 %v2820, %v3124
    %v3141 = vmul.f32 %v2821, %v3125
    %v3142 = vmul.f32 %v2822, %v3126
    %v3143 = vmul.f32 %v2823, %v3127
    %v3144 = vmul.f32 %v2824, %v3128
    %v3145 = vmul.f32 %v2825, %v3129
    %v3146 = vmul.f32 %v2826, %v3130
    %v3147 = vmul.f32 %v2827, %v3131
    %v3148 = vmul.f32 %v2828, %v3132
    %v3149 = vmul.f32 %v2829, %v3133
    %v3150 = vmul.f32 %v2830, %v3134
    %v3151 = vmul.f32 %v2831, %v3135
    %v3152 = vmul.f32 %v2832, %v3136
    %v3153 = vadd.f32 %v3137, 1.0
    %v3154 = vadd.f32 %v3138, 1.0
    %v3155 = vadd.f32 %v3139, 1.0
    %v3156 = vadd.f32 %v3140, 1.0
    %v3157 = vadd.f32 %v3141, 1.0
    %v3158 = vadd.f32 %v3142, 1.0
    %v3159 = vadd.f32 %v3143, 1.0
    %v3160 = vadd.f32 %v3144, 1.0
    %v3161 = vadd.f32 %v3145, 1.0
    %v3162 = vadd.f32 %v3146, 1.0
    %v3163 = vadd.f32 %v3147, 1.0
    %v3164 = vadd.f32 %v3148, 1.0
    %v3165 = vadd.f32 %v3149, 1.0
    %v3166 = vadd.f32 %v3150, 1.0
    %v3167 = vadd.f32 %v3151, 1.0
    %v3168 = vadd.f32 %v3152, 1.0
    %v3169 = vmul.f32 %v2769, %v3153
    %v3170 = vmul.f32 %v2770, %v3154
    %v3171 = vmul.f32 %v2771, %v3155
    %v3172 = vmul.f32 %v2772, %v3156
    %v3173 = vmul.f32 %v2773, %v3157
    %v3174 = vmul.f32 %v2774, %v3158
    %v3175 = vmul.f32 %v2775, %v3159
    %v3176 = vmul.f32 %v2776, %v3160
    %v3177 = vmul.f32 %v2777, %v3161
    %v3178 = vmul.f32 %v2778, %v3162
    %v3179 = vmul.f32 %v2779, %v3163
    %v3180 = vmul.f32 %v2780, %v3164
    %v3181 = vmul.f32 %v2781, %v3165
    %v3182 = vmul.f32 %v2782, %v3166
    %v3183 = vmul.f32 %v2783, %v3167
    %v3184 = vmul.f32 %v2784, %v3168
    %v3185 = vld [vmem:[%s11] sm:$0xf]
    %v3186 = vld [vmem:[%s11 + $0x4] sm:$0xf]
    %v3187 = vld [vmem:[%s11 + $0x8] sm:$0xf]
    %v3188 = vld [vmem:[%s11 + $0xc] sm:$0xf]
    %v3189 = vld [vmem:[%s11 + $0x10] sm:$0xf]
    %v3190 = vld [vmem:[%s11 + $0x14] sm:$0xf]
    %v3191 = vld [vmem:[%s11 + $0x18] sm:$0xf]
    %v3192 = vld [vmem:[%s11 + $0x1c] sm:$0xf]
    %v3193 = vld [vmem:[%s11 + $0x20] sm:$0xf]
    %v3194 = vld [vmem:[%s11 + $0x24] sm:$0xf]
    %v3195 = vld [vmem:[%s11 + $0x28] sm:$0xf]
    %v3196 = vld [vmem:[%s11 + $0x2c] sm:$0xf]
    %v3197 = vld [vmem:[%s11 + $0x30] sm:$0xf]
    %v3198 = vld [vmem:[%s11 + $0x34] sm:$0xf]
    %v3199 = vld [vmem:[%s11 + $0x38] sm:$0xf]
    %v3200 = vld [vmem:[%s11 + $0x3c] sm:$0xf]
    %v3201 = vpack.c.bf16 %v3170, %v3169
    %v3202 = vpack.c.bf16 %v3172, %v3171
    %v3203 = vpack.c.bf16 %v3174, %v3173
    %v3204 = vpack.c.bf16 %v3176, %v3175
    %v3205 = vpack.c.bf16 %v3178, %v3177
    %v3206 = vpack.c.bf16 %v3180, %v3179
    %v3207 = vpack.c.bf16 %v3182, %v3181
    %v3208 = vpack.c.bf16 %v3184, %v3183
    %v3225 = vunpack.c.l.b16 %v3185
    %v3226 = vunpack.c.l.b16 %v3186
    %v3227 = vunpack.c.l.b16 %v3187
    %v3228 = vunpack.c.l.b16 %v3188
    %v3229 = vunpack.c.l.b16 %v3189
    %v3230 = vunpack.c.l.b16 %v3190
    %v3231 = vunpack.c.l.b16 %v3191
    %v3232 = vunpack.c.l.b16 %v3192
    %v3233 = vunpack.c.l.b16 %v3193
    %v3234 = vunpack.c.l.b16 %v3194
    %v3235 = vunpack.c.l.b16 %v3195
    %v3236 = vunpack.c.l.b16 %v3196
    %v3237 = vunpack.c.l.b16 %v3197
    %v3238 = vunpack.c.l.b16 %v3198
    %v3239 = vunpack.c.l.b16 %v3199
    %v3240 = vunpack.c.l.b16 %v3200
    %v3241 = vpack.c.b16 %v3226, %v3225
    %v3242 = vpack.c.b16 %v3228, %v3227
    %v3243 = vpack.c.b16 %v3230, %v3229
    %v3244 = vpack.c.b16 %v3232, %v3231
    %v3245 = vpack.c.b16 %v3234, %v3233
    %v3246 = vpack.c.b16 %v3236, %v3235
    %v3247 = vpack.c.b16 %v3238, %v3237
    %v3248 = vpack.c.b16 %v3240, %v3239
    %3257 = vmatpush.bf16.msra.mxu0 %v3248
    %3258 = vmatpush.bf16.msra.mxu0 %v3247
    %3259 = vmatpush.bf16.msra.mxu0 %v3246
    %3260 = vmatpush.bf16.msra.mxu0 %v3245
    %3261 = vmatpush.bf16.msra.mxu0 %v3244
    %3262 = vmatpush.bf16.msra.mxu0 %v3243
    %3263 = vmatpush.bf16.msra.mxu0 %v3242
    %3264 = vmatpush.bf16.msra.mxu0 %v3241
    %3265 = vmatmul.bf16.gmra.mxu0 %v3201
    %v3266 = vpop.f32.mrf.mxu0
    %v3267 = vadd.f32 0.0, %v3266
    %v3268 = vpop.f32.mrf.mxu0
    %v3269 = vadd.f32 0.0, %v3268
    %3270 = vmatmul.bf16.gmra.mxu0 %v3202
    %v3271 = vpop.f32.mrf.mxu0
    %v3272 = vadd.f32 0.0, %v3271
    %v3273 = vpop.f32.mrf.mxu0
    %v3274 = vadd.f32 0.0, %v3273
    %3275 = vmatmul.bf16.gmra.mxu0 %v3203
    %v3276 = vpop.f32.mrf.mxu0
    %v3277 = vadd.f32 0.0, %v3276
    %v3278 = vpop.f32.mrf.mxu0
    %v3279 = vadd.f32 0.0, %v3278
    %3280 = vmatmul.bf16.gmra.mxu0 %v3204
    %v3281 = vpop.f32.mrf.mxu0
    %v3282 = vadd.f32 0.0, %v3281
    %v3283 = vpop.f32.mrf.mxu0
    %v3284 = vadd.f32 0.0, %v3283
    %3285 = vmatmul.bf16.gmra.mxu0 %v3205
    %v3286 = vpop.f32.mrf.mxu0
    %v3287 = vadd.f32 0.0, %v3286
    %v3288 = vpop.f32.mrf.mxu0
    %v3289 = vadd.f32 0.0, %v3288
    %3290 = vmatmul.bf16.gmra.mxu0 %v3206
    %v3291 = vpop.f32.mrf.mxu0
    %v3292 = vadd.f32 0.0, %v3291
    %v3293 = vpop.f32.mrf.mxu0
    %v3294 = vadd.f32 0.0, %v3293
    %3295 = vmatmul.bf16.gmra.mxu0 %v3207
    %v3296 = vpop.f32.mrf.mxu0
    %v3297 = vadd.f32 0.0, %v3296
    %v3298 = vpop.f32.mrf.mxu0
    %v3299 = vadd.f32 0.0, %v3298
    %3300 = vmatmul.bf16.gmra.mxu0 %v3208
    %v3301 = vpop.f32.mrf.mxu0
    %v3302 = vadd.f32 0.0, %v3301
    %v3303 = vpop.f32.mrf.mxu0
    %v3304 = vadd.f32 0.0, %v3303
    %3305 = vdwg.mxu0
    %v3306 = vadd.f32 %v2269, %v3267
    %v3307 = vadd.f32 %v2270, %v3269
    %v3308 = vadd.f32 %v2271, %v3272
    %v3309 = vadd.f32 %v2272, %v3274
    %v3310 = vadd.f32 %v2273, %v3277
    %v3311 = vadd.f32 %v2274, %v3279
    %v3312 = vadd.f32 %v2275, %v3282
    %v3313 = vadd.f32 %v2276, %v3284
    %v3314 = vadd.f32 %v2277, %v3287
    %v3315 = vadd.f32 %v2278, %v3289
    %v3316 = vadd.f32 %v2279, %v3292
    %v3317 = vadd.f32 %v2280, %v3294
    %v3318 = vadd.f32 %v2281, %v3297
    %v3319 = vadd.f32 %v2282, %v3299
    %v3320 = vadd.f32 %v2283, %v3302
    %v3321 = vadd.f32 %v2284, %v3304
    %v3322 = vperm.slane %v750, 0
    %v3323 = vadd.f32 %v3306, %v3322
    %v3324 = vadd.f32 %v3307, %v3322
    %v3325 = vadd.f32 %v3308, %v3322
    %v3326 = vadd.f32 %v3309, %v3322
    %v3327 = vadd.f32 %v3310, %v3322
    %v3328 = vadd.f32 %v3311, %v3322
    %v3329 = vadd.f32 %v3312, %v3322
    %v3330 = vadd.f32 %v3313, %v3322
    %v3331 = vadd.f32 %v3314, %v3322
    %v3332 = vadd.f32 %v3315, %v3322
    %v3333 = vadd.f32 %v3316, %v3322
    %v3334 = vadd.f32 %v3317, %v3322
    %v3335 = vadd.f32 %v3318, %v3322
    %v3336 = vadd.f32 %v3319, %v3322
    %v3337 = vadd.f32 %v3320, %v3322
    %v3338 = vadd.f32 %v3321, %v3322
    %v3339 = vld [vmem:[#allocation5 + $0x9] sm:$0x1]
    %v3340 = vld [vmem:[#allocation5 + $0xa] sm:$0x1]
    %v3341 = vld [vmem:[#allocation5 + $0xb] sm:$0x1]
    %v3342 = vld [vmem:[#allocation5 + $0xc] sm:$0x1]
    %v3343 = vld [vmem:[#allocation5 + $0xd] sm:$0x1]
    %v3344 = vld [vmem:[#allocation5 + $0xe] sm:$0x1]
    %v3345 = vld [vmem:[#allocation7 + $0x1] sm:$0x1]
    %v3346 = vsel %vm351, %v3323, 0.0
    %3347 = vadd.xlane.f32.xlu0 %v3346
    %v3348 = vpop.xlane.xlu0 %3347
    %v3349 = vsel %vm351, %v3324, 0.0
    %3350 = vadd.xlane.f32.xlu0 %v3349
    %v3351 = vpop.xlane.xlu0 %3350
    %v3352 = vsel %vm351, %v3325, 0.0
    %3353 = vadd.xlane.f32.xlu0 %v3352
    %v3354 = vpop.xlane.xlu0 %3353
    %v3355 = vsel %vm351, %v3326, 0.0
    %3356 = vadd.xlane.f32.xlu0 %v3355
    %v3357 = vpop.xlane.xlu0 %3356
    %v3358 = vsel %vm351, %v3327, 0.0
    %3359 = vadd.xlane.f32.xlu0 %v3358
    %v3360 = vpop.xlane.xlu0 %3359
    %v3361 = vsel %vm351, %v3328, 0.0
    %3362 = vadd.xlane.f32.xlu0 %v3361
    %v3363 = vpop.xlane.xlu0 %3362
    %v3364 = vsel %vm351, %v3329, 0.0
    %3365 = vadd.xlane.f32.xlu0 %v3364
    %v3366 = vpop.xlane.xlu0 %3365
    %v3367 = vsel %vm351, %v3330, 0.0
    %3368 = vadd.xlane.f32.xlu0 %v3367
    %v3369 = vpop.xlane.xlu0 %3368
    %v3370 = vsel %vm351, %v3331, 0.0
    %3371 = vadd.xlane.f32.xlu0 %v3370
    %v3372 = vpop.xlane.xlu0 %3371
    %v3373 = vsel %vm351, %v3332, 0.0
    %3374 = vadd.xlane.f32.xlu0 %v3373
    %v3375 = vpop.xlane.xlu0 %3374
    %v3376 = vsel %vm351, %v3333, 0.0
    %3377 = vadd.xlane.f32.xlu0 %v3376
    %v3378 = vpop.xlane.xlu0 %3377
    %v3379 = vsel %vm351, %v3334, 0.0
    %3380 = vadd.xlane.f32.xlu0 %v3379
    %v3381 = vpop.xlane.xlu0 %3380
    %v3382 = vsel %vm351, %v3335, 0.0
    %3383 = vadd.xlane.f32.xlu0 %v3382
    %v3384 = vpop.xlane.xlu0 %3383
    %v3385 = vsel %vm351, %v3336, 0.0
    %3386 = vadd.xlane.f32.xlu0 %v3385
    %v3387 = vpop.xlane.xlu0 %3386
    %v3388 = vsel %vm351, %v3337, 0.0
    %3389 = vadd.xlane.f32.xlu0 %v3388
    %v3390 = vpop.xlane.xlu0 %3389
    %v3391 = vsel %vm351, %v3338, 0.0
    %3392 = vadd.xlane.f32.xlu0 %v3391
    %v3393 = vpop.xlane.xlu0 %3392
    %v3394 = vmul.f32 %v3348, %v406
    %v3395 = vmul.f32 %v3351, %v406
    %v3396 = vmul.f32 %v3354, %v406
    %v3397 = vmul.f32 %v3357, %v406
    %v3398 = vmul.f32 %v3360, %v406
    %v3399 = vmul.f32 %v3363, %v406
    %v3400 = vmul.f32 %v3366, %v406
    %v3401 = vmul.f32 %v3369, %v406
    %v3402 = vmul.f32 %v3372, %v406
    %v3403 = vmul.f32 %v3375, %v406
    %v3404 = vmul.f32 %v3378, %v406
    %v3405 = vmul.f32 %v3381, %v406
    %v3406 = vmul.f32 %v3384, %v406
    %v3407 = vmul.f32 %v3387, %v406
    %v3408 = vmul.f32 %v3390, %v406
    %v3409 = vmul.f32 %v3393, %v406
    %v3410 = vsub.f32 %v3323, %v3394
    %v3411 = vsub.f32 %v3324, %v3395
    %v3412 = vsub.f32 %v3325, %v3396
    %v3413 = vsub.f32 %v3326, %v3397
    %v3414 = vsub.f32 %v3327, %v3398
    %v3415 = vsub.f32 %v3328, %v3399
    %v3416 = vsub.f32 %v3329, %v3400
    %v3417 = vsub.f32 %v3330, %v3401
    %v3418 = vsub.f32 %v3331, %v3402
    %v3419 = vsub.f32 %v3332, %v3403
    %v3420 = vsub.f32 %v3333, %v3404
    %v3421 = vsub.f32 %v3334, %v3405
    %v3422 = vsub.f32 %v3335, %v3406
    %v3423 = vsub.f32 %v3336, %v3407
    %v3424 = vsub.f32 %v3337, %v3408
    %v3425 = vsub.f32 %v3338, %v3409
    %v3426 = vmul.f32 %v3410, %v3410
    %v3427 = vmul.f32 %v3411, %v3411
    %v3428 = vmul.f32 %v3412, %v3412
    %v3429 = vmul.f32 %v3413, %v3413
    %v3430 = vmul.f32 %v3414, %v3414
    %v3431 = vmul.f32 %v3415, %v3415
    %v3432 = vmul.f32 %v3416, %v3416
    %v3433 = vmul.f32 %v3417, %v3417
    %v3434 = vmul.f32 %v3418, %v3418
    %v3435 = vmul.f32 %v3419, %v3419
    %v3436 = vmul.f32 %v3420, %v3420
    %v3437 = vmul.f32 %v3421, %v3421
    %v3438 = vmul.f32 %v3422, %v3422
    %v3439 = vmul.f32 %v3423, %v3423
    %v3440 = vmul.f32 %v3424, %v3424
    %v3441 = vmul.f32 %v3425, %v3425
    %v3442 = vsel %vm351, %v3426, 0.0
    %3443 = vadd.xlane.f32.xlu0 %v3442
    %v3444 = vpop.xlane.xlu0 %3443
    %v3445 = vsel %vm351, %v3427, 0.0
    %3446 = vadd.xlane.f32.xlu0 %v3445
    %v3447 = vpop.xlane.xlu0 %3446
    %v3448 = vsel %vm351, %v3428, 0.0
    %3449 = vadd.xlane.f32.xlu0 %v3448
    %v3450 = vpop.xlane.xlu0 %3449
    %v3451 = vsel %vm351, %v3429, 0.0
    %3452 = vadd.xlane.f32.xlu0 %v3451
    %v3453 = vpop.xlane.xlu0 %3452
    %v3454 = vsel %vm351, %v3430, 0.0
    %3455 = vadd.xlane.f32.xlu0 %v3454
    %v3456 = vpop.xlane.xlu0 %3455
    %v3457 = vsel %vm351, %v3431, 0.0
    %3458 = vadd.xlane.f32.xlu0 %v3457
    %v3459 = vpop.xlane.xlu0 %3458
    %v3460 = vsel %vm351, %v3432, 0.0
    %3461 = vadd.xlane.f32.xlu0 %v3460
    %v3462 = vpop.xlane.xlu0 %3461
    %v3463 = vsel %vm351, %v3433, 0.0
    %3464 = vadd.xlane.f32.xlu0 %v3463
    %v3465 = vpop.xlane.xlu0 %3464
    %v3466 = vsel %vm351, %v3434, 0.0
    %3467 = vadd.xlane.f32.xlu0 %v3466
    %v3468 = vpop.xlane.xlu0 %3467
    %v3469 = vsel %vm351, %v3435, 0.0
    %3470 = vadd.xlane.f32.xlu0 %v3469
    %v3471 = vpop.xlane.xlu0 %3470
    %v3472 = vsel %vm351, %v3436, 0.0
    %3473 = vadd.xlane.f32.xlu0 %v3472
    %v3474 = vpop.xlane.xlu0 %3473
    %v3475 = vsel %vm351, %v3437, 0.0
    %3476 = vadd.xlane.f32.xlu0 %v3475
    %v3477 = vpop.xlane.xlu0 %3476
    %v3478 = vsel %vm351, %v3438, 0.0
    %3479 = vadd.xlane.f32.xlu0 %v3478
    %v3480 = vpop.xlane.xlu0 %3479
    %v3481 = vsel %vm351, %v3439, 0.0
    %3482 = vadd.xlane.f32.xlu0 %v3481
    %v3483 = vpop.xlane.xlu0 %3482
    %v3484 = vsel %vm351, %v3440, 0.0
    %3485 = vadd.xlane.f32.xlu0 %v3484
    %v3486 = vpop.xlane.xlu0 %3485
    %v3487 = vsel %vm351, %v3441, 0.0
    %3488 = vadd.xlane.f32.xlu0 %v3487
    %v3489 = vpop.xlane.xlu0 %3488
    %v3490 = vmul.f32 %v3444, %v406
    %v3491 = vmul.f32 %v3447, %v406
    %v3492 = vmul.f32 %v3450, %v406
    %v3493 = vmul.f32 %v3453, %v406
    %v3494 = vmul.f32 %v3456, %v406
    %v3495 = vmul.f32 %v3459, %v406
    %v3496 = vmul.f32 %v3462, %v406
    %v3497 = vmul.f32 %v3465, %v406
    %v3498 = vmul.f32 %v3468, %v406
    %v3499 = vmul.f32 %v3471, %v406
    %v3500 = vmul.f32 %v3474, %v406
    %v3501 = vmul.f32 %v3477, %v406
    %v3502 = vmul.f32 %v3480, %v406
    %v3503 = vmul.f32 %v3483, %v406
    %v3504 = vmul.f32 %v3486, %v406
    %v3505 = vmul.f32 %v3489, %v406
    %v3506 = vadd.f32 %v3490, 1e-05
    %v3507 = vadd.f32 %v3491, 1e-05
    %v3508 = vadd.f32 %v3492, 1e-05
    %v3509 = vadd.f32 %v3493, 1e-05
    %v3510 = vadd.f32 %v3494, 1e-05
    %v3511 = vadd.f32 %v3495, 1e-05
    %v3512 = vadd.f32 %v3496, 1e-05
    %v3513 = vadd.f32 %v3497, 1e-05
    %v3514 = vadd.f32 %v3498, 1e-05
    %v3515 = vadd.f32 %v3499, 1e-05
    %v3516 = vadd.f32 %v3500, 1e-05
    %v3517 = vadd.f32 %v3501, 1e-05
    %v3518 = vadd.f32 %v3502, 1e-05
    %v3519 = vadd.f32 %v3503, 1e-05
    %v3520 = vadd.f32 %v3504, 1e-05
    %v3521 = vadd.f32 %v3505, 1e-05
    %v3522 = vrsqrt.pop %v3506
    %v3523 = vmul.f32 %v3522, %v3506
    %v3524 = vmul.f32 %v3523, %v3522
    %v3525 = vmul.f32 0.5, %v3524
    %v3526 = vsub.f32 1.5, %v3525
    %v3527 = vmul.f32 %v3522, %v3526
    %vm3528 = vweird.f32 %v3506
    %vm3529 = vweird.f32 %v3522
    %vm3530 = vmor %vm3528, %vm3529
    %v3531 = vsel %vm3530, %v3522, %v3527
    %v3532 = vrsqrt.pop %v3507
    %v3533 = vmul.f32 %v3532, %v3507
    %v3534 = vmul.f32 %v3533, %v3532
    %v3535 = vmul.f32 0.5, %v3534
    %v3536 = vsub.f32 1.5, %v3535
    %v3537 = vmul.f32 %v3532, %v3536
    %vm3538 = vweird.f32 %v3507
    %vm3539 = vweird.f32 %v3532
    %vm3540 = vmor %vm3538, %vm3539
    %v3541 = vsel %vm3540, %v3532, %v3537
    %v3542 = vrsqrt.pop %v3508
    %v3543 = vmul.f32 %v3542, %v3508
    %v3544 = vmul.f32 %v3543, %v3542
    %v3545 = vmul.f32 0.5, %v3544
    %v3546 = vsub.f32 1.5, %v3545
    %v3547 = vmul.f32 %v3542, %v3546
    %vm3548 = vweird.f32 %v3508
    %vm3549 = vweird.f32 %v3542
    %vm3550 = vmor %vm3548, %vm3549
    %v3551 = vsel %vm3550, %v3542, %v3547
    %v3552 = vrsqrt.pop %v3509
    %v3553 = vmul.f32 %v3552, %v3509
    %v3554 = vmul.f32 %v3553, %v3552
    %v3555 = vmul.f32 0.5, %v3554
    %v3556 = vsub.f32 1.5, %v3555
    %v3557 = vmul.f32 %v3552, %v3556
    %vm3558 = vweird.f32 %v3509
    %vm3559 = vweird.f32 %v3552
    %vm3560 = vmor %vm3558, %vm3559
    %v3561 = vsel %vm3560, %v3552, %v3557
    %v3562 = vrsqrt.pop %v3510
    %v3563 = vmul.f32 %v3562, %v3510
    %v3564 = vmul.f32 %v3563, %v3562
    %v3565 = vmul.f32 0.5, %v3564
    %v3566 = vsub.f32 1.5, %v3565
    %v3567 = vmul.f32 %v3562, %v3566
    %vm3568 = vweird.f32 %v3510
    %vm3569 = vweird.f32 %v3562
    %vm3570 = vmor %vm3568, %vm3569
    %v3571 = vsel %vm3570, %v3562, %v3567
    %v3572 = vrsqrt.pop %v3511
    %v3573 = vmul.f32 %v3572, %v3511
    %v3574 = vmul.f32 %v3573, %v3572
    %v3575 = vmul.f32 0.5, %v3574
    %v3576 = vsub.f32 1.5, %v3575
    %v3577 = vmul.f32 %v3572, %v3576
    %vm3578 = vweird.f32 %v3511
    %vm3579 = vweird.f32 %v3572
    %vm3580 = vmor %vm3578, %vm3579
    %v3581 = vsel %vm3580, %v3572, %v3577
    %v3582 = vrsqrt.pop %v3512
    %v3583 = vmul.f32 %v3582, %v3512
    %v3584 = vmul.f32 %v3583, %v3582
    %v3585 = vmul.f32 0.5, %v3584
    %v3586 = vsub.f32 1.5, %v3585
    %v3587 = vmul.f32 %v3582, %v3586
    %vm3588 = vweird.f32 %v3512
    %vm3589 = vweird.f32 %v3582
    %vm3590 = vmor %vm3588, %vm3589
    %v3591 = vsel %vm3590, %v3582, %v3587
    %v3592 = vrsqrt.pop %v3513
    %v3593 = vmul.f32 %v3592, %v3513
    %v3594 = vmul.f32 %v3593, %v3592
    %v3595 = vmul.f32 0.5, %v3594
    %v3596 = vsub.f32 1.5, %v3595
    %v3597 = vmul.f32 %v3592, %v3596
    %vm3598 = vweird.f32 %v3513
    %vm3599 = vweird.f32 %v3592
    %vm3600 = vmor %vm3598, %vm3599
    %v3601 = vsel %vm3600, %v3592, %v3597
    %v3602 = vrsqrt.pop %v3514
    %v3603 = vmul.f32 %v3602, %v3514
    %v3604 = vmul.f32 %v3603, %v3602
    %v3605 = vmul.f32 0.5, %v3604
    %v3606 = vsub.f32 1.5, %v3605
    %v3607 = vmul.f32 %v3602, %v3606
    %vm3608 = vweird.f32 %v3514
    %vm3609 = vweird.f32 %v3602
    %vm3610 = vmor %vm3608, %vm3609
    %v3611 = vsel %vm3610, %v3602, %v3607
    %v3612 = vrsqrt.pop %v3515
    %v3613 = vmul.f32 %v3612, %v3515
    %v3614 = vmul.f32 %v3613, %v3612
    %v3615 = vmul.f32 0.5, %v3614
    %v3616 = vsub.f32 1.5, %v3615
    %v3617 = vmul.f32 %v3612, %v3616
    %vm3618 = vweird.f32 %v3515
    %vm3619 = vweird.f32 %v3612
    %vm3620 = vmor %vm3618, %vm3619
    %v3621 = vsel %vm3620, %v3612, %v3617
    %v3622 = vrsqrt.pop %v3516
    %v3623 = vmul.f32 %v3622, %v3516
    %v3624 = vmul.f32 %v3623, %v3622
    %v3625 = vmul.f32 0.5, %v3624
    %v3626 = vsub.f32 1.5, %v3625
    %v3627 = vmul.f32 %v3622, %v3626
    %vm3628 = vweird.f32 %v3516
    %vm3629 = vweird.f32 %v3622
    %vm3630 = vmor %vm3628, %vm3629
    %v3631 = vsel %vm3630, %v3622, %v3627
    %v3632 = vrsqrt.pop %v3517
    %v3633 = vmul.f32 %v3632, %v3517
    %v3634 = vmul.f32 %v3633, %v3632
    %v3635 = vmul.f32 0.5, %v3634
    %v3636 = vsub.f32 1.5, %v3635
    %v3637 = vmul.f32 %v3632, %v3636
    %vm3638 = vweird.f32 %v3517
    %vm3639 = vweird.f32 %v3632
    %vm3640 = vmor %vm3638, %vm3639
    %v3641 = vsel %vm3640, %v3632, %v3637
    %v3642 = vrsqrt.pop %v3518
    %v3643 = vmul.f32 %v3642, %v3518
    %v3644 = vmul.f32 %v3643, %v3642
    %v3645 = vmul.f32 0.5, %v3644
    %v3646 = vsub.f32 1.5, %v3645
    %v3647 = vmul.f32 %v3642, %v3646
    %vm3648 = vweird.f32 %v3518
    %vm3649 = vweird.f32 %v3642
    %vm3650 = vmor %vm3648, %vm3649
    %v3651 = vsel %vm3650, %v3642, %v3647
    %v3652 = vrsqrt.pop %v3519
    %v3653 = vmul.f32 %v3652, %v3519
    %v3654 = vmul.f32 %v3653, %v3652
    %v3655 = vmul.f32 0.5, %v3654
    %v3656 = vsub.f32 1.5, %v3655
    %v3657 = vmul.f32 %v3652, %v3656
    %vm3658 = vweird.f32 %v3519
    %vm3659 = vweird.f32 %v3652
    %vm3660 = vmor %vm3658, %vm3659
    %v3661 = vsel %vm3660, %v3652, %v3657
    %v3662 = vrsqrt.pop %v3520
    %v3663 = vmul.f32 %v3662, %v3520
    %v3664 = vmul.f32 %v3663, %v3662
    %v3665 = vmul.f32 0.5, %v3664
    %v3666 = vsub.f32 1.5, %v3665
    %v3667 = vmul.f32 %v3662, %v3666
    %vm3668 = vweird.f32 %v3520
    %vm3669 = vweird.f32 %v3662
    %vm3670 = vmor %vm3668, %vm3669
    %v3671 = vsel %vm3670, %v3662, %v3667
    %v3672 = vrsqrt.pop %v3521
    %v3673 = vmul.f32 %v3672, %v3521
    %v3674 = vmul.f32 %v3673, %v3672
    %v3675 = vmul.f32 0.5, %v3674
    %v3676 = vsub.f32 1.5, %v3675
    %v3677 = vmul.f32 %v3672, %v3676
    %vm3678 = vweird.f32 %v3521
    %vm3679 = vweird.f32 %v3672
    %vm3680 = vmor %vm3678, %vm3679
    %v3681 = vsel %vm3680, %v3672, %v3677
    %v3682 = vmul.f32 %v3410, %v3531
    %v3683 = vmul.f32 %v3411, %v3541
    %v3684 = vmul.f32 %v3412, %v3551
    %v3685 = vmul.f32 %v3413, %v3561
    %v3686 = vmul.f32 %v3414, %v3571
    %v3687 = vmul.f32 %v3415, %v3581
    %v3688 = vmul.f32 %v3416, %v3591
    %v3689 = vmul.f32 %v3417, %v3601
    %v3690 = vmul.f32 %v3418, %v3611
    %v3691 = vmul.f32 %v3419, %v3621
    %v3692 = vmul.f32 %v3420, %v3631
    %v3693 = vmul.f32 %v3421, %v3641
    %v3694 = vmul.f32 %v3422, %v3651
    %v3695 = vmul.f32 %v3423, %v3661
    %v3696 = vmul.f32 %v3424, %v3671
    %v3697 = vmul.f32 %v3425, %v3681
    %v3698 = vperm.slane %v3339, 0
    %v3699 = vmul.f32 %v3682, %v3698
    %v3700 = vmul.f32 %v3683, %v3698
    %v3701 = vmul.f32 %v3684, %v3698
    %v3702 = vmul.f32 %v3685, %v3698
    %v3703 = vmul.f32 %v3686, %v3698
    %v3704 = vmul.f32 %v3687, %v3698
    %v3705 = vmul.f32 %v3688, %v3698
    %v3706 = vmul.f32 %v3689, %v3698
    %v3707 = vmul.f32 %v3690, %v3698
    %v3708 = vmul.f32 %v3691, %v3698
    %v3709 = vmul.f32 %v3692, %v3698
    %v3710 = vmul.f32 %v3693, %v3698
    %v3711 = vmul.f32 %v3694, %v3698
    %v3712 = vmul.f32 %v3695, %v3698
    %v3713 = vmul.f32 %v3696, %v3698
    %v3714 = vmul.f32 %v3697, %v3698
    %v3715 = vperm.slane %v3340, 0
    %v3716 = vadd.f32 %v3699, %v3715
    %v3717 = vadd.f32 %v3700, %v3715
    %v3718 = vadd.f32 %v3701, %v3715
    %v3719 = vadd.f32 %v3702, %v3715
    %v3720 = vadd.f32 %v3703, %v3715
    %v3721 = vadd.f32 %v3704, %v3715
    %v3722 = vadd.f32 %v3705, %v3715
    %v3723 = vadd.f32 %v3706, %v3715
    %v3724 = vadd.f32 %v3707, %v3715
    %v3725 = vadd.f32 %v3708, %v3715
    %v3726 = vadd.f32 %v3709, %v3715
    %v3727 = vadd.f32 %v3710, %v3715
    %v3728 = vadd.f32 %v3711, %v3715
    %v3729 = vadd.f32 %v3712, %v3715
    %v3730 = vadd.f32 %v3713, %v3715
    %v3731 = vadd.f32 %v3714, %v3715
    %s3732 = scalar_lea.vmem %s6, 16
    %v3733 = vld [vmem:[%s3732] sm:$0xf]
    %v3734 = vld [vmem:[%s3732 + $0x4] sm:$0xf]
    %v3735 = vld [vmem:[%s3732 + $0x8] sm:$0xf]
    %v3736 = vld [vmem:[%s3732 + $0xc] sm:$0xf]
    %v3737 = vpack.c.bf16 %v3717, %v3716
    %v3738 = vpack.c.bf16 %v3719, %v3718
    %v3739 = vpack.c.bf16 %v3721, %v3720
    %v3740 = vpack.c.bf16 %v3723, %v3722
    %v3741 = vpack.c.bf16 %v3725, %v3724
    %v3742 = vpack.c.bf16 %v3727, %v3726
    %v3743 = vpack.c.bf16 %v3729, %v3728
    %v3744 = vpack.c.bf16 %v3731, %v3730
    %v3745 = vld [vmem:[#allocation10 + $0x1] sm:$0x1]
    %v3746 = vperm.slane %v3745, 0
    %v3751 = vunpack.c.l.b16 %v3733
    %v3752 = vunpack.c.l.b16 %v3734
    %v3753 = vunpack.c.l.b16 %v3735
    %v3754 = vunpack.c.l.b16 %v3736
    %v3755 = vpack.c.b16 %v3752, %v3751
    %v3756 = vpack.c.b16 %v3754, %v3753
    %v3760 = vsel %vm351, %v3737, 0
    %v3763 = vsel %vm351, %v3738, 0
    %v3766 = vsel %vm351, %v3739, 0
    %v3769 = vsel %vm351, %v3740, 0
    %v3772 = vsel %vm351, %v3741, 0
    %v3775 = vsel %vm351, %v3742, 0
    %v3778 = vsel %vm351, %v3743, 0
    %v3781 = vsel %vm351, %v3744, 0
    %3783 = vmatpush.bf16.msra.mxu0 0
    %3784 = vmatpush.bf16.msra.mxu0 0
    %3785 = vmatpush.bf16.msra.mxu0 0
    %3786 = vmatpush.bf16.msra.mxu0 0
    %3787 = vmatpush.bf16.msra.mxu0 0
    %3788 = vmatpush.bf16.msra.mxu0 0
    %3789 = vmatpush.bf16.msra.mxu0 %v3756
    %3790 = vmatpush.bf16.msra.mxu0 %v3755
    %3791 = vmatmul.bf16.gmra.mxu0 %v3760
    %v3792 = vpop.f32.mrf.mxu0
    %v3793 = vadd.f32 %v3746, %v3792
    %v3794 = vpop.f32.mrf.mxu0
    %v3795 = vadd.f32 %v3746, %v3794
    %3796 = vmatmul.bf16.gmra.mxu0 %v3763
    %v3797 = vpop.f32.mrf.mxu0
    %v3798 = vadd.f32 %v3746, %v3797
    %v3799 = vpop.f32.mrf.mxu0
    %v3800 = vadd.f32 %v3746, %v3799
    %3801 = vmatmul.bf16.gmra.mxu0 %v3766
    %v3802 = vpop.f32.mrf.mxu0
    %v3803 = vadd.f32 %v3746, %v3802
    %v3804 = vpop.f32.mrf.mxu0
    %v3805 = vadd.f32 %v3746, %v3804
    %3806 = vmatmul.bf16.gmra.mxu0 %v3769
    %v3807 = vpop.f32.mrf.mxu0
    %v3808 = vadd.f32 %v3746, %v3807
    %v3809 = vpop.f32.mrf.mxu0
    %v3810 = vadd.f32 %v3746, %v3809
    %3811 = vmatmul.bf16.gmra.mxu0 %v3772
    %v3812 = vpop.f32.mrf.mxu0
    %v3813 = vadd.f32 %v3746, %v3812
    %v3814 = vpop.f32.mrf.mxu0
    %v3815 = vadd.f32 %v3746, %v3814
    %3816 = vmatmul.bf16.gmra.mxu0 %v3775
    %v3817 = vpop.f32.mrf.mxu0
    %v3818 = vadd.f32 %v3746, %v3817
    %v3819 = vpop.f32.mrf.mxu0
    %v3820 = vadd.f32 %v3746, %v3819
    %3821 = vmatmul.bf16.gmra.mxu0 %v3778
    %v3822 = vpop.f32.mrf.mxu0
    %v3823 = vadd.f32 %v3746, %v3822
    %v3824 = vpop.f32.mrf.mxu0
    %v3825 = vadd.f32 %v3746, %v3824
    %3826 = vmatmul.bf16.gmra.mxu0 %v3781
    %v3827 = vpop.f32.mrf.mxu0
    %v3828 = vadd.f32 %v3746, %v3827
    %v3829 = vpop.f32.mrf.mxu0
    %v3830 = vadd.f32 %v3746, %v3829
    %3831 = vdwg.mxu0
    %v3832 = vpack.c.bf16 %v3795, %v3793
    %v3833 = vpack.c.bf16 %v3800, %v3798
    %v3834 = vpack.c.bf16 %v3805, %v3803
    %v3835 = vpack.c.bf16 %v3810, %v3808
    %v3836 = vpack.c.bf16 %v3815, %v3813
    %v3837 = vpack.c.bf16 %v3820, %v3818
    %v3838 = vpack.c.bf16 %v3825, %v3823
    %v3839 = vpack.c.bf16 %v3830, %v3828
    %3848 = vrot.lane.b32.xlu0 %v3832, 112
    %v3849 = vpop.permute.xlu0 %3848
    %3850 = vrot.lane.b32.xlu0 %v3833, 112
    %v3851 = vpop.permute.xlu0 %3850
    %3852 = vrot.lane.b32.xlu0 %v3834, 112
    %v3853 = vpop.permute.xlu0 %3852
    %3854 = vrot.lane.b32.xlu0 %v3835, 112
    %v3855 = vpop.permute.xlu0 %3854
    %3856 = vrot.lane.b32.xlu0 %v3836, 112
    %v3857 = vpop.permute.xlu0 %3856
    %3858 = vrot.lane.b32.xlu0 %v3837, 112
    %v3859 = vpop.permute.xlu0 %3858
    %3860 = vrot.lane.b32.xlu0 %v3838, 112
    %v3861 = vpop.permute.xlu0 %3860
    %3862 = vrot.lane.b32.xlu0 %v3839, 112
    %v3863 = vpop.permute.xlu0 %3862
    %v3865 = vsel %vm1269, %v3832, 0
    %v3868 = vsel %vm1269, %v3833, 0
    %v3871 = vsel %vm1269, %v3834, 0
    %v3874 = vsel %vm1269, %v3835, 0
    %v3877 = vsel %vm1269, %v3836, 0
    %v3880 = vsel %vm1269, %v3837, 0
    %v3883 = vsel %vm1269, %v3838, 0
    %v3886 = vsel %vm1269, %v3839, 0
    %v3889 = vsel %vm1269, %v3849, 0
    %v3892 = vsel %vm1269, %v3851, 0
    %v3895 = vsel %vm1269, %v3853, 0
    %v3898 = vsel %vm1269, %v3855, 0
    %v3901 = vsel %vm1269, %v3857, 0
    %v3904 = vsel %vm1269, %v3859, 0
    %v3907 = vsel %vm1269, %v3861, 0
    %v3910 = vsel %vm1269, %v3863, 0
    %3912 = vmatpush.bf16.xpose.msra.mxu0 %v3910
    %3913 = vmatpush.bf16.xpose.msra.mxu0 %v3907
    %3914 = vmatpush.bf16.xpose.msra.mxu0 %v3904
    %3915 = vmatpush.bf16.xpose.msra.mxu0 %v3901
    %3916 = vmatpush.bf16.xpose.msra.mxu0 %v3898
    %3917 = vmatpush.bf16.xpose.msra.mxu0 %v3895
    %3918 = vmatpush.bf16.xpose.msra.mxu0 %v3892
    %3919 = vmatpush.bf16.xpose.msra.mxu0 %v3889
    %3920 = vmatmul.bf16.gmra.mxu0 %v3865
    %v3921 = vpop.f32.mrf.mxu0
    %v3922 = vadd.f32 0.0, %v3921
    %v3923 = vpop.f32.mrf.mxu0
    %v3924 = vadd.f32 0.0, %v3923
    %3925 = vmatmul.bf16.gmra.mxu0 %v3868
    %v3926 = vpop.f32.mrf.mxu0
    %v3927 = vadd.f32 0.0, %v3926
    %v3928 = vpop.f32.mrf.mxu0
    %v3929 = vadd.f32 0.0, %v3928
    %3930 = vmatmul.bf16.gmra.mxu0 %v3871
    %v3931 = vpop.f32.mrf.mxu0
    %v3932 = vadd.f32 0.0, %v3931
    %v3933 = vpop.f32.mrf.mxu0
    %v3934 = vadd.f32 0.0, %v3933
    %3935 = vmatmul.bf16.gmra.mxu0 %v3874
    %v3936 = vpop.f32.mrf.mxu0
    %v3937 = vadd.f32 0.0, %v3936
    %v3938 = vpop.f32.mrf.mxu0
    %v3939 = vadd.f32 0.0, %v3938
    %3940 = vmatmul.bf16.gmra.mxu0 %v3877
    %v3941 = vpop.f32.mrf.mxu0
    %v3942 = vadd.f32 0.0, %v3941
    %v3943 = vpop.f32.mrf.mxu0
    %v3944 = vadd.f32 0.0, %v3943
    %3945 = vmatmul.bf16.gmra.mxu0 %v3880
    %v3946 = vpop.f32.mrf.mxu0
    %v3947 = vadd.f32 0.0, %v3946
    %v3948 = vpop.f32.mrf.mxu0
    %v3949 = vadd.f32 0.0, %v3948
    %3950 = vmatmul.bf16.gmra.mxu0 %v3883
    %v3951 = vpop.f32.mrf.mxu0
    %v3952 = vadd.f32 0.0, %v3951
    %v3953 = vpop.f32.mrf.mxu0
    %v3954 = vadd.f32 0.0, %v3953
    %3955 = vmatmul.bf16.gmra.mxu0 %v3886
    %v3956 = vpop.f32.mrf.mxu0
    %v3957 = vadd.f32 0.0, %v3956
    %v3958 = vpop.f32.mrf.mxu0
    %v3959 = vadd.f32 0.0, %v3958
    %3960 = vdwg.mxu0
    %v3961 = vmul.f32 %v3922, 0.25
    %v3962 = vmul.f32 %v3924, 0.25
    %v3963 = vmul.f32 %v3927, 0.25
    %v3964 = vmul.f32 %v3929, 0.25
    %v3965 = vmul.f32 %v3932, 0.25
    %v3966 = vmul.f32 %v3934, 0.25
    %v3967 = vmul.f32 %v3937, 0.25
    %v3968 = vmul.f32 %v3939, 0.25
    %v3969 = vmul.f32 %v3942, 0.25
    %v3970 = vmul.f32 %v3944, 0.25
    %v3971 = vmul.f32 %v3947, 0.25
    %v3972 = vmul.f32 %v3949, 0.25
    %v3973 = vmul.f32 %v3952, 0.25
    %v3974 = vmul.f32 %v3954, 0.25
    %v3975 = vmul.f32 %v3957, 0.25
    %v3976 = vmul.f32 %v3959, 0.25
    %s3977 = scalar_lea.vmem %s9, 128
    %v3978 = vld [vmem:[%s3977] sm:$0xf]
    %v3979 = vld [vmem:[%s3977 + $0x4] sm:$0xf]
    %v3980 = vld [vmem:[%s3977 + $0x8] sm:$0xf]
    %v3981 = vld [vmem:[%s3977 + $0xc] sm:$0xf]
    %v3982 = vld [vmem:[%s3977 + $0x10] sm:$0xf]
    %v3983 = vld [vmem:[%s3977 + $0x14] sm:$0xf]
    %v3984 = vld [vmem:[%s3977 + $0x18] sm:$0xf]
    %v3985 = vld [vmem:[%s3977 + $0x1c] sm:$0xf]
    %v3986 = vld [vmem:[%s3977 + $0x20] sm:$0xf]
    %v3987 = vld [vmem:[%s3977 + $0x24] sm:$0xf]
    %v3988 = vld [vmem:[%s3977 + $0x28] sm:$0xf]
    %v3989 = vld [vmem:[%s3977 + $0x2c] sm:$0xf]
    %v3990 = vld [vmem:[%s3977 + $0x30] sm:$0xf]
    %v3991 = vld [vmem:[%s3977 + $0x34] sm:$0xf]
    %v3992 = vld [vmem:[%s3977 + $0x38] sm:$0xf]
    %v3993 = vld [vmem:[%s3977 + $0x3c] sm:$0xf]
    %v3994 = vunpack.c.l.bf16 %v3978
    %v3995 = vunpack.c.l.bf16 %v3979
    %v3996 = vunpack.c.l.bf16 %v3980
    %v3997 = vunpack.c.l.bf16 %v3981
    %v3998 = vunpack.c.l.bf16 %v3982
    %v3999 = vunpack.c.l.bf16 %v3983
    %v4000 = vunpack.c.l.bf16 %v3984
    %v4001 = vunpack.c.l.bf16 %v3985
    %v4002 = vunpack.c.l.bf16 %v3986
    %v4003 = vunpack.c.l.bf16 %v3987
    %v4004 = vunpack.c.l.bf16 %v3988
    %v4005 = vunpack.c.l.bf16 %v3989
    %v4006 = vunpack.c.l.bf16 %v3990
    %v4007 = vunpack.c.l.bf16 %v3991
    %v4008 = vunpack.c.l.bf16 %v3992
    %v4009 = vunpack.c.l.bf16 %v3993
    %v4010 = vadd.f32 %v3961, %v3994
    %v4011 = vadd.f32 %v3962, %v3995
    %v4012 = vadd.f32 %v3963, %v3996
    %v4013 = vadd.f32 %v3964, %v3997
    %v4014 = vadd.f32 %v3965, %v3998
    %v4015 = vadd.f32 %v3966, %v3999
    %v4016 = vadd.f32 %v3967, %v4000
    %v4017 = vadd.f32 %v3968, %v4001
    %v4018 = vadd.f32 %v3969, %v4002
    %v4019 = vadd.f32 %v3970, %v4003
    %v4020 = vadd.f32 %v3971, %v4004
    %v4021 = vadd.f32 %v3972, %v4005
    %v4022 = vadd.f32 %v3973, %v4006
    %v4023 = vadd.f32 %v3974, %v4007
    %v4024 = vadd.f32 %v3975, %v4008
    %v4025 = vadd.f32 %v3976, %v4009
    %4026 = vmax.xlane.f32.xlu0 %v4010
    %v4027 = vpop.xlane.xlu0 %4026
    %4028 = vmax.xlane.f32.xlu0 %v4011
    %v4029 = vpop.xlane.xlu0 %4028
    %4030 = vmax.xlane.f32.xlu0 %v4012
    %v4031 = vpop.xlane.xlu0 %4030
    %4032 = vmax.xlane.f32.xlu0 %v4013
    %v4033 = vpop.xlane.xlu0 %4032
    %4034 = vmax.xlane.f32.xlu0 %v4014
    %v4035 = vpop.xlane.xlu0 %4034
    %4036 = vmax.xlane.f32.xlu0 %v4015
    %v4037 = vpop.xlane.xlu0 %4036
    %4038 = vmax.xlane.f32.xlu0 %v4016
    %v4039 = vpop.xlane.xlu0 %4038
    %4040 = vmax.xlane.f32.xlu0 %v4017
    %v4041 = vpop.xlane.xlu0 %4040
    %4042 = vmax.xlane.f32.xlu0 %v4018
    %v4043 = vpop.xlane.xlu0 %4042
    %4044 = vmax.xlane.f32.xlu0 %v4019
    %v4045 = vpop.xlane.xlu0 %4044
    %4046 = vmax.xlane.f32.xlu0 %v4020
    %v4047 = vpop.xlane.xlu0 %4046
    %4048 = vmax.xlane.f32.xlu0 %v4021
    %v4049 = vpop.xlane.xlu0 %4048
    %4050 = vmax.xlane.f32.xlu0 %v4022
    %v4051 = vpop.xlane.xlu0 %4050
    %4052 = vmax.xlane.f32.xlu0 %v4023
    %v4053 = vpop.xlane.xlu0 %4052
    %4054 = vmax.xlane.f32.xlu0 %v4024
    %v4055 = vpop.xlane.xlu0 %4054
    %4056 = vmax.xlane.f32.xlu0 %v4025
    %v4057 = vpop.xlane.xlu0 %4056
    %v4058 = vsub.f32 %v4010, %v4027
    %v4059 = vsub.f32 %v4011, %v4029
    %v4060 = vsub.f32 %v4012, %v4031
    %v4061 = vsub.f32 %v4013, %v4033
    %v4062 = vsub.f32 %v4014, %v4035
    %v4063 = vsub.f32 %v4015, %v4037
    %v4064 = vsub.f32 %v4016, %v4039
    %v4065 = vsub.f32 %v4017, %v4041
    %v4066 = vsub.f32 %v4018, %v4043
    %v4067 = vsub.f32 %v4019, %v4045
    %v4068 = vsub.f32 %v4020, %v4047
    %v4069 = vsub.f32 %v4021, %v4049
    %v4070 = vsub.f32 %v4022, %v4051
    %v4071 = vsub.f32 %v4023, %v4053
    %v4072 = vsub.f32 %v4024, %v4055
    %v4073 = vsub.f32 %v4025, %v4057
    %v4074 = vmul.f32 %v4058, 1.442695
    %v4075 = vpow.pop %v4074
    %v4076 = vmul.f32 %v4059, 1.442695
    %v4077 = vpow.pop %v4076
    %v4078 = vmul.f32 %v4060, 1.442695
    %v4079 = vpow.pop %v4078
    %v4080 = vmul.f32 %v4061, 1.442695
    %v4081 = vpow.pop %v4080
    %v4082 = vmul.f32 %v4062, 1.442695
    %v4083 = vpow.pop %v4082
    %v4084 = vmul.f32 %v4063, 1.442695
    %v4085 = vpow.pop %v4084
    %v4086 = vmul.f32 %v4064, 1.442695
    %v4087 = vpow.pop %v4086
    %v4088 = vmul.f32 %v4065, 1.442695
    %v4089 = vpow.pop %v4088
    %v4090 = vmul.f32 %v4066, 1.442695
    %v4091 = vpow.pop %v4090
    %v4092 = vmul.f32 %v4067, 1.442695
    %v4093 = vpow.pop %v4092
    %v4094 = vmul.f32 %v4068, 1.442695
    %v4095 = vpow.pop %v4094
    %v4096 = vmul.f32 %v4069, 1.442695
    %v4097 = vpow.pop %v4096
    %v4098 = vmul.f32 %v4070, 1.442695
    %v4099 = vpow.pop %v4098
    %v4100 = vmul.f32 %v4071, 1.442695
    %v4101 = vpow.pop %v4100
    %v4102 = vmul.f32 %v4072, 1.442695
    %v4103 = vpow.pop %v4102
    %v4104 = vmul.f32 %v4073, 1.442695
    %v4105 = vpow.pop %v4104
    %4106 = vadd.xlane.f32.xlu0 %v4075
    %v4107 = vpop.xlane.xlu0 %4106
    %4108 = vadd.xlane.f32.xlu0 %v4077
    %v4109 = vpop.xlane.xlu0 %4108
    %4110 = vadd.xlane.f32.xlu0 %v4079
    %v4111 = vpop.xlane.xlu0 %4110
    %4112 = vadd.xlane.f32.xlu0 %v4081
    %v4113 = vpop.xlane.xlu0 %4112
    %4114 = vadd.xlane.f32.xlu0 %v4083
    %v4115 = vpop.xlane.xlu0 %4114
    %4116 = vadd.xlane.f32.xlu0 %v4085
    %v4117 = vpop.xlane.xlu0 %4116
    %4118 = vadd.xlane.f32.xlu0 %v4087
    %v4119 = vpop.xlane.xlu0 %4118
    %4120 = vadd.xlane.f32.xlu0 %v4089
    %v4121 = vpop.xlane.xlu0 %4120
    %4122 = vadd.xlane.f32.xlu0 %v4091
    %v4123 = vpop.xlane.xlu0 %4122
    %4124 = vadd.xlane.f32.xlu0 %v4093
    %v4125 = vpop.xlane.xlu0 %4124
    %4126 = vadd.xlane.f32.xlu0 %v4095
    %v4127 = vpop.xlane.xlu0 %4126
    %4128 = vadd.xlane.f32.xlu0 %v4097
    %v4129 = vpop.xlane.xlu0 %4128
    %4130 = vadd.xlane.f32.xlu0 %v4099
    %v4131 = vpop.xlane.xlu0 %4130
    %4132 = vadd.xlane.f32.xlu0 %v4101
    %v4133 = vpop.xlane.xlu0 %4132
    %4134 = vadd.xlane.f32.xlu0 %v4103
    %v4135 = vpop.xlane.xlu0 %4134
    %4136 = vadd.xlane.f32.xlu0 %v4105
    %v4137 = vpop.xlane.xlu0 %4136
    %v4138 = vrcp.pop %v4107
    %v4139 = vrcp.pop %v4109
    %v4140 = vrcp.pop %v4111
    %v4141 = vrcp.pop %v4113
    %v4142 = vrcp.pop %v4115
    %v4143 = vrcp.pop %v4117
    %v4144 = vrcp.pop %v4119
    %v4145 = vrcp.pop %v4121
    %v4146 = vrcp.pop %v4123
    %v4147 = vrcp.pop %v4125
    %v4148 = vrcp.pop %v4127
    %v4149 = vrcp.pop %v4129
    %v4150 = vrcp.pop %v4131
    %v4151 = vrcp.pop %v4133
    %v4152 = vrcp.pop %v4135
    %v4153 = vrcp.pop %v4137
    %v4154 = vmul.f32 %v4075, %v4138
    %v4155 = vmul.f32 %v4077, %v4139
    %v4156 = vmul.f32 %v4079, %v4140
    %v4157 = vmul.f32 %v4081, %v4141
    %v4158 = vmul.f32 %v4083, %v4142
    %v4159 = vmul.f32 %v4085, %v4143
    %v4160 = vmul.f32 %v4087, %v4144
    %v4161 = vmul.f32 %v4089, %v4145
    %v4162 = vmul.f32 %v4091, %v4146
    %v4163 = vmul.f32 %v4093, %v4147
    %v4164 = vmul.f32 %v4095, %v4148
    %v4165 = vmul.f32 %v4097, %v4149
    %v4166 = vmul.f32 %v4099, %v4150
    %v4167 = vmul.f32 %v4101, %v4151
    %v4168 = vmul.f32 %v4103, %v4152
    %v4169 = vmul.f32 %v4105, %v4153
    %v4170 = vpack.c.bf16 %v4155, %v4154
    %v4171 = vpack.c.bf16 %v4157, %v4156
    %v4172 = vpack.c.bf16 %v4159, %v4158
    %v4173 = vpack.c.bf16 %v4161, %v4160
    %v4174 = vpack.c.bf16 %v4163, %v4162
    %v4175 = vpack.c.bf16 %v4165, %v4164
    %v4176 = vpack.c.bf16 %v4167, %v4166
    %v4177 = vpack.c.bf16 %v4169, %v4168
    %4178 = vrot.lane.b32.xlu0 %v3832, 96
    %v4179 = vpop.permute.xlu0 %4178
    %4180 = vrot.lane.b32.xlu0 %v3833, 96
    %v4181 = vpop.permute.xlu0 %4180
    %4182 = vrot.lane.b32.xlu0 %v3834, 96
    %v4183 = vpop.permute.xlu0 %4182
    %4184 = vrot.lane.b32.xlu0 %v3835, 96
    %v4185 = vpop.permute.xlu0 %4184
    %4186 = vrot.lane.b32.xlu0 %v3836, 96
    %v4187 = vpop.permute.xlu0 %4186
    %4188 = vrot.lane.b32.xlu0 %v3837, 96
    %v4189 = vpop.permute.xlu0 %4188
    %4190 = vrot.lane.b32.xlu0 %v3838, 96
    %v4191 = vpop.permute.xlu0 %4190
    %4192 = vrot.lane.b32.xlu0 %v3839, 96
    %v4193 = vpop.permute.xlu0 %4192
    %4202 = vmatpush.bf16.msra.mxu0 %v4193
    %4203 = vmatpush.bf16.msra.mxu0 %v4191
    %4204 = vmatpush.bf16.msra.mxu0 %v4189
    %4205 = vmatpush.bf16.msra.mxu0 %v4187
    %4206 = vmatpush.bf16.msra.mxu0 %v4185
    %4207 = vmatpush.bf16.msra.mxu0 %v4183
    %4208 = vmatpush.bf16.msra.mxu0 %v4181
    %4209 = vmatpush.bf16.msra.mxu0 %v4179
    %4210 = vmatmul.bf16.gmra.mxu0 %v4170
    %v4211 = vpop.f32.mrf.mxu0
    %v4212 = vadd.f32 0.0, %v4211
    %v4213 = vpop.f32.mrf.mxu0
    %v4214 = vadd.f32 0.0, %v4213
    %4215 = vmatmul.bf16.gmra.mxu0 %v4171
    %v4216 = vpop.f32.mrf.mxu0
    %v4217 = vadd.f32 0.0, %v4216
    %v4218 = vpop.f32.mrf.mxu0
    %v4219 = vadd.f32 0.0, %v4218
    %4220 = vmatmul.bf16.gmra.mxu0 %v4172
    %v4221 = vpop.f32.mrf.mxu0
    %v4222 = vadd.f32 0.0, %v4221
    %v4223 = vpop.f32.mrf.mxu0
    %v4224 = vadd.f32 0.0, %v4223
    %4225 = vmatmul.bf16.gmra.mxu0 %v4173
    %v4226 = vpop.f32.mrf.mxu0
    %v4227 = vadd.f32 0.0, %v4226
    %v4228 = vpop.f32.mrf.mxu0
    %v4229 = vadd.f32 0.0, %v4228
    %4230 = vmatmul.bf16.gmra.mxu0 %v4174
    %v4231 = vpop.f32.mrf.mxu0
    %v4232 = vadd.f32 0.0, %v4231
    %v4233 = vpop.f32.mrf.mxu0
    %v4234 = vadd.f32 0.0, %v4233
    %4235 = vmatmul.bf16.gmra.mxu0 %v4175
    %v4236 = vpop.f32.mrf.mxu0
    %v4237 = vadd.f32 0.0, %v4236
    %v4238 = vpop.f32.mrf.mxu0
    %v4239 = vadd.f32 0.0, %v4238
    %4240 = vmatmul.bf16.gmra.mxu0 %v4176
    %v4241 = vpop.f32.mrf.mxu0
    %v4242 = vadd.f32 0.0, %v4241
    %v4243 = vpop.f32.mrf.mxu0
    %v4244 = vadd.f32 0.0, %v4243
    %4245 = vmatmul.bf16.gmra.mxu0 %v4177
    %v4246 = vpop.f32.mrf.mxu0
    %v4247 = vadd.f32 0.0, %v4246
    %v4248 = vpop.f32.mrf.mxu0
    %v4249 = vadd.f32 0.0, %v4248
    %4250 = vdwg.mxu0
    %4251 = vrot.lane.b32.xlu0 %v3832, 80
    %v4252 = vpop.permute.xlu0 %4251
    %4253 = vrot.lane.b32.xlu0 %v3833, 80
    %v4254 = vpop.permute.xlu0 %4253
    %4255 = vrot.lane.b32.xlu0 %v3834, 80
    %v4256 = vpop.permute.xlu0 %4255
    %4257 = vrot.lane.b32.xlu0 %v3835, 80
    %v4258 = vpop.permute.xlu0 %4257
    %4259 = vrot.lane.b32.xlu0 %v3836, 80
    %v4260 = vpop.permute.xlu0 %4259
    %4261 = vrot.lane.b32.xlu0 %v3837, 80
    %v4262 = vpop.permute.xlu0 %4261
    %4263 = vrot.lane.b32.xlu0 %v3838, 80
    %v4264 = vpop.permute.xlu0 %4263
    %4265 = vrot.lane.b32.xlu0 %v3839, 80
    %v4266 = vpop.permute.xlu0 %4265
    %4267 = vrot.lane.b32.xlu0 %v3832, 64
    %v4268 = vpop.permute.xlu0 %4267
    %4269 = vrot.lane.b32.xlu0 %v3833, 64
    %v4270 = vpop.permute.xlu0 %4269
    %4271 = vrot.lane.b32.xlu0 %v3834, 64
    %v4272 = vpop.permute.xlu0 %4271
    %4273 = vrot.lane.b32.xlu0 %v3835, 64
    %v4274 = vpop.permute.xlu0 %4273
    %4275 = vrot.lane.b32.xlu0 %v3836, 64
    %v4276 = vpop.permute.xlu0 %4275
    %4277 = vrot.lane.b32.xlu0 %v3837, 64
    %v4278 = vpop.permute.xlu0 %4277
    %4279 = vrot.lane.b32.xlu0 %v3838, 64
    %v4280 = vpop.permute.xlu0 %4279
    %4281 = vrot.lane.b32.xlu0 %v3839, 64
    %v4282 = vpop.permute.xlu0 %4281
    %v4284 = vsel %vm1269, %v4252, 0
    %v4287 = vsel %vm1269, %v4254, 0
    %v4290 = vsel %vm1269, %v4256, 0
    %v4293 = vsel %vm1269, %v4258, 0
    %v4296 = vsel %vm1269, %v4260, 0
    %v4299 = vsel %vm1269, %v4262, 0
    %v4302 = vsel %vm1269, %v4264, 0
    %v4305 = vsel %vm1269, %v4266, 0
    %v4308 = vsel %vm1269, %v4268, 0
    %v4311 = vsel %vm1269, %v4270, 0
    %v4314 = vsel %vm1269, %v4272, 0
    %v4317 = vsel %vm1269, %v4274, 0
    %v4320 = vsel %vm1269, %v4276, 0
    %v4323 = vsel %vm1269, %v4278, 0
    %v4326 = vsel %vm1269, %v4280, 0
    %v4329 = vsel %vm1269, %v4282, 0
    %4331 = vmatpush.bf16.xpose.msra.mxu0 %v4329
    %4332 = vmatpush.bf16.xpose.msra.mxu0 %v4326
    %4333 = vmatpush.bf16.xpose.msra.mxu0 %v4323
    %4334 = vmatpush.bf16.xpose.msra.mxu0 %v4320
    %4335 = vmatpush.bf16.xpose.msra.mxu0 %v4317
    %4336 = vmatpush.bf16.xpose.msra.mxu0 %v4314
    %4337 = vmatpush.bf16.xpose.msra.mxu0 %v4311
    %4338 = vmatpush.bf16.xpose.msra.mxu0 %v4308
    %4339 = vmatmul.bf16.gmra.mxu0 %v4284
    %v4340 = vpop.f32.mrf.mxu0
    %v4341 = vadd.f32 0.0, %v4340
    %v4342 = vpop.f32.mrf.mxu0
    %v4343 = vadd.f32 0.0, %v4342
    %4344 = vmatmul.bf16.gmra.mxu0 %v4287
    %v4345 = vpop.f32.mrf.mxu0
    %v4346 = vadd.f32 0.0, %v4345
    %v4347 = vpop.f32.mrf.mxu0
    %v4348 = vadd.f32 0.0, %v4347
    %4349 = vmatmul.bf16.gmra.mxu0 %v4290
    %v4350 = vpop.f32.mrf.mxu0
    %v4351 = vadd.f32 0.0, %v4350
    %v4352 = vpop.f32.mrf.mxu0
    %v4353 = vadd.f32 0.0, %v4352
    %4354 = vmatmul.bf16.gmra.mxu0 %v4293
    %v4355 = vpop.f32.mrf.mxu0
    %v4356 = vadd.f32 0.0, %v4355
    %v4357 = vpop.f32.mrf.mxu0
    %v4358 = vadd.f32 0.0, %v4357
    %4359 = vmatmul.bf16.gmra.mxu0 %v4296
    %v4360 = vpop.f32.mrf.mxu0
    %v4361 = vadd.f32 0.0, %v4360
    %v4362 = vpop.f32.mrf.mxu0
    %v4363 = vadd.f32 0.0, %v4362
    %4364 = vmatmul.bf16.gmra.mxu0 %v4299
    %v4365 = vpop.f32.mrf.mxu0
    %v4366 = vadd.f32 0.0, %v4365
    %v4367 = vpop.f32.mrf.mxu0
    %v4368 = vadd.f32 0.0, %v4367
    %4369 = vmatmul.bf16.gmra.mxu0 %v4302
    %v4370 = vpop.f32.mrf.mxu0
    %v4371 = vadd.f32 0.0, %v4370
    %v4372 = vpop.f32.mrf.mxu0
    %v4373 = vadd.f32 0.0, %v4372
    %4374 = vmatmul.bf16.gmra.mxu0 %v4305
    %v4375 = vpop.f32.mrf.mxu0
    %v4376 = vadd.f32 0.0, %v4375
    %v4377 = vpop.f32.mrf.mxu0
    %v4378 = vadd.f32 0.0, %v4377
    %4379 = vdwg.mxu0
    %v4380 = vmul.f32 %v4341, 0.25
    %v4381 = vmul.f32 %v4343, 0.25
    %v4382 = vmul.f32 %v4346, 0.25
    %v4383 = vmul.f32 %v4348, 0.25
    %v4384 = vmul.f32 %v4351, 0.25
    %v4385 = vmul.f32 %v4353, 0.25
    %v4386 = vmul.f32 %v4356, 0.25
    %v4387 = vmul.f32 %v4358, 0.25
    %v4388 = vmul.f32 %v4361, 0.25
    %v4389 = vmul.f32 %v4363, 0.25
    %v4390 = vmul.f32 %v4366, 0.25
    %v4391 = vmul.f32 %v4368, 0.25
    %v4392 = vmul.f32 %v4371, 0.25
    %v4393 = vmul.f32 %v4373, 0.25
    %v4394 = vmul.f32 %v4376, 0.25
    %v4395 = vmul.f32 %v4378, 0.25
    %s4396 = scalar_lea.vmem %s9, 192
    %v4397 = vld [vmem:[%s4396] sm:$0xf]
    %v4398 = vld [vmem:[%s4396 + $0x4] sm:$0xf]
    %v4399 = vld [vmem:[%s4396 + $0x8] sm:$0xf]
    %v4400 = vld [vmem:[%s4396 + $0xc] sm:$0xf]
    %v4401 = vld [vmem:[%s4396 + $0x10] sm:$0xf]
    %v4402 = vld [vmem:[%s4396 + $0x14] sm:$0xf]
    %v4403 = vld [vmem:[%s4396 + $0x18] sm:$0xf]
    %v4404 = vld [vmem:[%s4396 + $0x1c] sm:$0xf]
    %v4405 = vld [vmem:[%s4396 + $0x20] sm:$0xf]
    %v4406 = vld [vmem:[%s4396 + $0x24] sm:$0xf]
    %v4407 = vld [vmem:[%s4396 + $0x28] sm:$0xf]
    %v4408 = vld [vmem:[%s4396 + $0x2c] sm:$0xf]
    %v4409 = vld [vmem:[%s4396 + $0x30] sm:$0xf]
    %v4410 = vld [vmem:[%s4396 + $0x34] sm:$0xf]
    %v4411 = vld [vmem:[%s4396 + $0x38] sm:$0xf]
    %v4412 = vld [vmem:[%s4396 + $0x3c] sm:$0xf]
    %v4413 = vunpack.c.l.bf16 %v4397
    %v4414 = vunpack.c.l.bf16 %v4398
    %v4415 = vunpack.c.l.bf16 %v4399
    %v4416 = vunpack.c.l.bf16 %v4400
    %v4417 = vunpack.c.l.bf16 %v4401
    %v4418 = vunpack.c.l.bf16 %v4402
    %v4419 = vunpack.c.l.bf16 %v4403
    %v4420 = vunpack.c.l.bf16 %v4404
    %v4421 = vunpack.c.l.bf16 %v4405
    %v4422 = vunpack.c.l.bf16 %v4406
    %v4423 = vunpack.c.l.bf16 %v4407
    %v4424 = vunpack.c.l.bf16 %v4408
    %v4425 = vunpack.c.l.bf16 %v4409
    %v4426 = vunpack.c.l.bf16 %v4410
    %v4427 = vunpack.c.l.bf16 %v4411
    %v4428 = vunpack.c.l.bf16 %v4412
    %v4429 = vadd.f32 %v4380, %v4413
    %v4430 = vadd.f32 %v4381, %v4414
    %v4431 = vadd.f32 %v4382, %v4415
    %v4432 = vadd.f32 %v4383, %v4416
    %v4433 = vadd.f32 %v4384, %v4417
    %v4434 = vadd.f32 %v4385, %v4418
    %v4435 = vadd.f32 %v4386, %v4419
    %v4436 = vadd.f32 %v4387, %v4420
    %v4437 = vadd.f32 %v4388, %v4421
    %v4438 = vadd.f32 %v4389, %v4422
    %v4439 = vadd.f32 %v4390, %v4423
    %v4440 = vadd.f32 %v4391, %v4424
    %v4441 = vadd.f32 %v4392, %v4425
    %v4442 = vadd.f32 %v4393, %v4426
    %v4443 = vadd.f32 %v4394, %v4427
    %v4444 = vadd.f32 %v4395, %v4428
    %4445 = vmax.xlane.f32.xlu0 %v4429
    %v4446 = vpop.xlane.xlu0 %4445
    %4447 = vmax.xlane.f32.xlu0 %v4430
    %v4448 = vpop.xlane.xlu0 %4447
    %4449 = vmax.xlane.f32.xlu0 %v4431
    %v4450 = vpop.xlane.xlu0 %4449
    %4451 = vmax.xlane.f32.xlu0 %v4432
    %v4452 = vpop.xlane.xlu0 %4451
    %4453 = vmax.xlane.f32.xlu0 %v4433
    %v4454 = vpop.xlane.xlu0 %4453
    %4455 = vmax.xlane.f32.xlu0 %v4434
    %v4456 = vpop.xlane.xlu0 %4455
    %4457 = vmax.xlane.f32.xlu0 %v4435
    %v4458 = vpop.xlane.xlu0 %4457
    %4459 = vmax.xlane.f32.xlu0 %v4436
    %v4460 = vpop.xlane.xlu0 %4459
    %4461 = vmax.xlane.f32.xlu0 %v4437
    %v4462 = vpop.xlane.xlu0 %4461
    %4463 = vmax.xlane.f32.xlu0 %v4438
    %v4464 = vpop.xlane.xlu0 %4463
    %4465 = vmax.xlane.f32.xlu0 %v4439
    %v4466 = vpop.xlane.xlu0 %4465
    %4467 = vmax.xlane.f32.xlu0 %v4440
    %v4468 = vpop.xlane.xlu0 %4467
    %4469 = vmax.xlane.f32.xlu0 %v4441
    %v4470 = vpop.xlane.xlu0 %4469
    %4471 = vmax.xlane.f32.xlu0 %v4442
    %v4472 = vpop.xlane.xlu0 %4471
    %4473 = vmax.xlane.f32.xlu0 %v4443
    %v4474 = vpop.xlane.xlu0 %4473
    %4475 = vmax.xlane.f32.xlu0 %v4444
    %v4476 = vpop.xlane.xlu0 %4475
    %v4477 = vsub.f32 %v4429, %v4446
    %v4478 = vsub.f32 %v4430, %v4448
    %v4479 = vsub.f32 %v4431, %v4450
    %v4480 = vsub.f32 %v4432, %v4452
    %v4481 = vsub.f32 %v4433, %v4454
    %v4482 = vsub.f32 %v4434, %v4456
    %v4483 = vsub.f32 %v4435, %v4458
    %v4484 = vsub.f32 %v4436, %v4460
    %v4485 = vsub.f32 %v4437, %v4462
    %v4486 = vsub.f32 %v4438, %v4464
    %v4487 = vsub.f32 %v4439, %v4466
    %v4488 = vsub.f32 %v4440, %v4468
    %v4489 = vsub.f32 %v4441, %v4470
    %v4490 = vsub.f32 %v4442, %v4472
    %v4491 = vsub.f32 %v4443, %v4474
    %v4492 = vsub.f32 %v4444, %v4476
    %v4493 = vmul.f32 %v4477, 1.442695
    %v4494 = vpow.pop %v4493
    %v4495 = vmul.f32 %v4478, 1.442695
    %v4496 = vpow.pop %v4495
    %v4497 = vmul.f32 %v4479, 1.442695
    %v4498 = vpow.pop %v4497
    %v4499 = vmul.f32 %v4480, 1.442695
    %v4500 = vpow.pop %v4499
    %v4501 = vmul.f32 %v4481, 1.442695
    %v4502 = vpow.pop %v4501
    %v4503 = vmul.f32 %v4482, 1.442695
    %v4504 = vpow.pop %v4503
    %v4505 = vmul.f32 %v4483, 1.442695
    %v4506 = vpow.pop %v4505
    %v4507 = vmul.f32 %v4484, 1.442695
    %v4508 = vpow.pop %v4507
    %v4509 = vmul.f32 %v4485, 1.442695
    %v4510 = vpow.pop %v4509
    %v4511 = vmul.f32 %v4486, 1.442695
    %v4512 = vpow.pop %v4511
    %v4513 = vmul.f32 %v4487, 1.442695
    %v4514 = vpow.pop %v4513
    %v4515 = vmul.f32 %v4488, 1.442695
    %v4516 = vpow.pop %v4515
    %v4517 = vmul.f32 %v4489, 1.442695
    %v4518 = vpow.pop %v4517
    %v4519 = vmul.f32 %v4490, 1.442695
    %v4520 = vpow.pop %v4519
    %v4521 = vmul.f32 %v4491, 1.442695
    %v4522 = vpow.pop %v4521
    %v4523 = vmul.f32 %v4492, 1.442695
    %v4524 = vpow.pop %v4523
    %4525 = vadd.xlane.f32.xlu0 %v4494
    %v4526 = vpop.xlane.xlu0 %4525
    %4527 = vadd.xlane.f32.xlu0 %v4496
    %v4528 = vpop.xlane.xlu0 %4527
    %4529 = vadd.xlane.f32.xlu0 %v4498
    %v4530 = vpop.xlane.xlu0 %4529
    %4531 = vadd.xlane.f32.xlu0 %v4500
    %v4532 = vpop.xlane.xlu0 %4531
    %4533 = vadd.xlane.f32.xlu0 %v4502
    %v4534 = vpop.xlane.xlu0 %4533
    %4535 = vadd.xlane.f32.xlu0 %v4504
    %v4536 = vpop.xlane.xlu0 %4535
    %4537 = vadd.xlane.f32.xlu0 %v4506
    %v4538 = vpop.xlane.xlu0 %4537
    %4539 = vadd.xlane.f32.xlu0 %v4508
    %v4540 = vpop.xlane.xlu0 %4539
    %4541 = vadd.xlane.f32.xlu0 %v4510
    %v4542 = vpop.xlane.xlu0 %4541
    %4543 = vadd.xlane.f32.xlu0 %v4512
    %v4544 = vpop.xlane.xlu0 %4543
    %4545 = vadd.xlane.f32.xlu0 %v4514
    %v4546 = vpop.xlane.xlu0 %4545
    %4547 = vadd.xlane.f32.xlu0 %v4516
    %v4548 = vpop.xlane.xlu0 %4547
    %4549 = vadd.xlane.f32.xlu0 %v4518
    %v4550 = vpop.xlane.xlu0 %4549
    %4551 = vadd.xlane.f32.xlu0 %v4520
    %v4552 = vpop.xlane.xlu0 %4551
    %4553 = vadd.xlane.f32.xlu0 %v4522
    %v4554 = vpop.xlane.xlu0 %4553
    %4555 = vadd.xlane.f32.xlu0 %v4524
    %v4556 = vpop.xlane.xlu0 %4555
    %v4557 = vrcp.pop %v4526
    %v4558 = vrcp.pop %v4528
    %v4559 = vrcp.pop %v4530
    %v4560 = vrcp.pop %v4532
    %v4561 = vrcp.pop %v4534
    %v4562 = vrcp.pop %v4536
    %v4563 = vrcp.pop %v4538
    %v4564 = vrcp.pop %v4540
    %v4565 = vrcp.pop %v4542
    %v4566 = vrcp.pop %v4544
    %v4567 = vrcp.pop %v4546
    %v4568 = vrcp.pop %v4548
    %v4569 = vrcp.pop %v4550
    %v4570 = vrcp.pop %v4552
    %v4571 = vrcp.pop %v4554
    %v4572 = vrcp.pop %v4556
    %v4573 = vmul.f32 %v4494, %v4557
    %v4574 = vmul.f32 %v4496, %v4558
    %v4575 = vmul.f32 %v4498, %v4559
    %v4576 = vmul.f32 %v4500, %v4560
    %v4577 = vmul.f32 %v4502, %v4561
    %v4578 = vmul.f32 %v4504, %v4562
    %v4579 = vmul.f32 %v4506, %v4563
    %v4580 = vmul.f32 %v4508, %v4564
    %v4581 = vmul.f32 %v4510, %v4565
    %v4582 = vmul.f32 %v4512, %v4566
    %v4583 = vmul.f32 %v4514, %v4567
    %v4584 = vmul.f32 %v4516, %v4568
    %v4585 = vmul.f32 %v4518, %v4569
    %v4586 = vmul.f32 %v4520, %v4570
    %v4587 = vmul.f32 %v4522, %v4571
    %v4588 = vmul.f32 %v4524, %v4572
    %v4589 = vpack.c.bf16 %v4574, %v4573
    %v4590 = vpack.c.bf16 %v4576, %v4575
    %v4591 = vpack.c.bf16 %v4578, %v4577
    %v4592 = vpack.c.bf16 %v4580, %v4579
    %v4593 = vpack.c.bf16 %v4582, %v4581
    %v4594 = vpack.c.bf16 %v4584, %v4583
    %v4595 = vpack.c.bf16 %v4586, %v4585
    %v4596 = vpack.c.bf16 %v4588, %v4587
    %4597 = vrot.lane.b32.xlu0 %v3832, 48
    %v4598 = vpop.permute.xlu0 %4597
    %4599 = vrot.lane.b32.xlu0 %v3833, 48
    %v4600 = vpop.permute.xlu0 %4599
    %4601 = vrot.lane.b32.xlu0 %v3834, 48
    %v4602 = vpop.permute.xlu0 %4601
    %4603 = vrot.lane.b32.xlu0 %v3835, 48
    %v4604 = vpop.permute.xlu0 %4603
    %4605 = vrot.lane.b32.xlu0 %v3836, 48
    %v4606 = vpop.permute.xlu0 %4605
    %4607 = vrot.lane.b32.xlu0 %v3837, 48
    %v4608 = vpop.permute.xlu0 %4607
    %4609 = vrot.lane.b32.xlu0 %v3838, 48
    %v4610 = vpop.permute.xlu0 %4609
    %4611 = vrot.lane.b32.xlu0 %v3839, 48
    %v4612 = vpop.permute.xlu0 %4611
    %4621 = vmatpush.bf16.msra.mxu0 %v4612
    %4622 = vmatpush.bf16.msra.mxu0 %v4610
    %4623 = vmatpush.bf16.msra.mxu0 %v4608
    %4624 = vmatpush.bf16.msra.mxu0 %v4606
    %4625 = vmatpush.bf16.msra.mxu0 %v4604
    %4626 = vmatpush.bf16.msra.mxu0 %v4602
    %4627 = vmatpush.bf16.msra.mxu0 %v4600
    %4628 = vmatpush.bf16.msra.mxu0 %v4598
    %4629 = vmatmul.bf16.gmra.mxu0 %v4589
    %v4630 = vpop.f32.mrf.mxu0
    %v4631 = vadd.f32 0.0, %v4630
    %v4632 = vpop.f32.mrf.mxu0
    %v4633 = vadd.f32 0.0, %v4632
    %4634 = vmatmul.bf16.gmra.mxu0 %v4590
    %v4635 = vpop.f32.mrf.mxu0
    %v4636 = vadd.f32 0.0, %v4635
    %v4637 = vpop.f32.mrf.mxu0
    %v4638 = vadd.f32 0.0, %v4637
    %4639 = vmatmul.bf16.gmra.mxu0 %v4591
    %v4640 = vpop.f32.mrf.mxu0
    %v4641 = vadd.f32 0.0, %v4640
    %v4642 = vpop.f32.mrf.mxu0
    %v4643 = vadd.f32 0.0, %v4642
    %4644 = vmatmul.bf16.gmra.mxu0 %v4592
    %v4645 = vpop.f32.mrf.mxu0
    %v4646 = vadd.f32 0.0, %v4645
    %v4647 = vpop.f32.mrf.mxu0
    %v4648 = vadd.f32 0.0, %v4647
    %4649 = vmatmul.bf16.gmra.mxu0 %v4593
    %v4650 = vpop.f32.mrf.mxu0
    %v4651 = vadd.f32 0.0, %v4650
    %v4652 = vpop.f32.mrf.mxu0
    %v4653 = vadd.f32 0.0, %v4652
    %4654 = vmatmul.bf16.gmra.mxu0 %v4594
    %v4655 = vpop.f32.mrf.mxu0
    %v4656 = vadd.f32 0.0, %v4655
    %v4657 = vpop.f32.mrf.mxu0
    %v4658 = vadd.f32 0.0, %v4657
    %4659 = vmatmul.bf16.gmra.mxu0 %v4595
    %v4660 = vpop.f32.mrf.mxu0
    %v4661 = vadd.f32 0.0, %v4660
    %v4662 = vpop.f32.mrf.mxu0
    %v4663 = vadd.f32 0.0, %v4662
    %4664 = vmatmul.bf16.gmra.mxu0 %v4596
    %v4665 = vpop.f32.mrf.mxu0
    %v4666 = vadd.f32 0.0, %v4665
    %v4667 = vpop.f32.mrf.mxu0
    %v4668 = vadd.f32 0.0, %v4667
    %4669 = vdwg.mxu0
    %4686 = vrot.lane.b32.xlu0 %v4631, 16
    %v4687 = vpop.permute.xlu0 %4686
    %4688 = vrot.lane.b32.xlu0 %v4633, 16
    %v4689 = vpop.permute.xlu0 %4688
    %4690 = vrot.lane.b32.xlu0 %v4636, 16
    %v4691 = vpop.permute.xlu0 %4690
    %4692 = vrot.lane.b32.xlu0 %v4638, 16
    %v4693 = vpop.permute.xlu0 %4692
    %4694 = vrot.lane.b32.xlu0 %v4641, 16
    %v4695 = vpop.permute.xlu0 %4694
    %4696 = vrot.lane.b32.xlu0 %v4643, 16
    %v4697 = vpop.permute.xlu0 %4696
    %4698 = vrot.lane.b32.xlu0 %v4646, 16
    %v4699 = vpop.permute.xlu0 %4698
    %4700 = vrot.lane.b32.xlu0 %v4648, 16
    %v4701 = vpop.permute.xlu0 %4700
    %4702 = vrot.lane.b32.xlu0 %v4651, 16
    %v4703 = vpop.permute.xlu0 %4702
    %4704 = vrot.lane.b32.xlu0 %v4653, 16
    %v4705 = vpop.permute.xlu0 %4704
    %4706 = vrot.lane.b32.xlu0 %v4656, 16
    %v4707 = vpop.permute.xlu0 %4706
    %4708 = vrot.lane.b32.xlu0 %v4658, 16
    %v4709 = vpop.permute.xlu0 %4708
    %4710 = vrot.lane.b32.xlu0 %v4661, 16
    %v4711 = vpop.permute.xlu0 %4710
    %4712 = vrot.lane.b32.xlu0 %v4663, 16
    %v4713 = vpop.permute.xlu0 %4712
    %4714 = vrot.lane.b32.xlu0 %v4666, 16
    %v4715 = vpop.permute.xlu0 %4714
    %4716 = vrot.lane.b32.xlu0 %v4668, 16
    %v4717 = vpop.permute.xlu0 %4716
    %v4734 = vsel %vm1269, %v4212, %v4687
    %v4735 = vsel %vm1269, %v4214, %v4689
    %v4736 = vsel %vm1269, %v4217, %v4691
    %v4737 = vsel %vm1269, %v4219, %v4693
    %v4738 = vsel %vm1269, %v4222, %v4695
    %v4739 = vsel %vm1269, %v4224, %v4697
    %v4740 = vsel %vm1269, %v4227, %v4699
    %v4741 = vsel %vm1269, %v4229, %v4701
    %v4742 = vsel %vm1269, %v4232, %v4703
    %v4743 = vsel %vm1269, %v4234, %v4705
    %v4744 = vsel %vm1269, %v4237, %v4707
    %v4745 = vsel %vm1269, %v4239, %v4709
    %v4746 = vsel %vm1269, %v4242, %v4711
    %v4747 = vsel %vm1269, %v4244, %v4713
    %v4748 = vsel %vm1269, %v4247, %v4715
    %v4749 = vsel %vm1269, %v4249, %v4717
    %s4750 = scalar_lea.vmem [#allocation11], 16
    %v4751 = vld [vmem:[%s4750] sm:$0xf]
    %v4752 = vld [vmem:[%s4750 + $0x4] sm:$0xf]
    %v4753 = vld [vmem:[%s4750 + $0x8] sm:$0xf]
    %v4754 = vld [vmem:[%s4750 + $0xc] sm:$0xf]
    %v4755 = vpack.c.bf16 %v4735, %v4734
    %v4756 = vpack.c.bf16 %v4737, %v4736
    %v4757 = vpack.c.bf16 %v4739, %v4738
    %v4758 = vpack.c.bf16 %v4741, %v4740
    %v4759 = vpack.c.bf16 %v4743, %v4742
    %v4760 = vpack.c.bf16 %v4745, %v4744
    %v4761 = vpack.c.bf16 %v4747, %v4746
    %v4762 = vpack.c.bf16 %v4749, %v4748
    %v4767 = vunpack.c.l.b16 %v4751
    %v4768 = vunpack.c.l.b16 %v4752
    %v4769 = vunpack.c.l.b16 %v4753
    %v4770 = vunpack.c.l.b16 %v4754
    %v4771 = vpack.c.b16 %v4768, %v4767
    %v4772 = vpack.c.b16 %v4770, %v4769
    %v4776 = vsel %vm351, %v4755, 0
    %v4779 = vsel %vm351, %v4756, 0
    %v4782 = vsel %vm351, %v4757, 0
    %v4785 = vsel %vm351, %v4758, 0
    %v4788 = vsel %vm351, %v4759, 0
    %v4791 = vsel %vm351, %v4760, 0
    %v4794 = vsel %vm351, %v4761, 0
    %v4797 = vsel %vm351, %v4762, 0
    %4799 = vmatpush.bf16.msra.mxu0 0
    %4800 = vmatpush.bf16.msra.mxu0 0
    %4801 = vmatpush.bf16.msra.mxu0 0
    %4802 = vmatpush.bf16.msra.mxu0 0
    %4803 = vmatpush.bf16.msra.mxu0 0
    %4804 = vmatpush.bf16.msra.mxu0 0
    %4805 = vmatpush.bf16.msra.mxu0 %v4772
    %4806 = vmatpush.bf16.msra.mxu0 %v4771
    %4807 = vmatmul.bf16.gmra.mxu0 %v4776
    %v4808 = vpop.f32.mrf.mxu0
    %v4809 = vadd.f32 0.0, %v4808
    %v4810 = vpop.f32.mrf.mxu0
    %v4811 = vadd.f32 0.0, %v4810
    %4812 = vmatmul.bf16.gmra.mxu0 %v4779
    %v4813 = vpop.f32.mrf.mxu0
    %v4814 = vadd.f32 0.0, %v4813
    %v4815 = vpop.f32.mrf.mxu0
    %v4816 = vadd.f32 0.0, %v4815
    %4817 = vmatmul.bf16.gmra.mxu0 %v4782
    %v4818 = vpop.f32.mrf.mxu0
    %v4819 = vadd.f32 0.0, %v4818
    %v4820 = vpop.f32.mrf.mxu0
    %v4821 = vadd.f32 0.0, %v4820
    %4822 = vmatmul.bf16.gmra.mxu0 %v4785
    %v4823 = vpop.f32.mrf.mxu0
    %v4824 = vadd.f32 0.0, %v4823
    %v4825 = vpop.f32.mrf.mxu0
    %v4826 = vadd.f32 0.0, %v4825
    %4827 = vmatmul.bf16.gmra.mxu0 %v4788
    %v4828 = vpop.f32.mrf.mxu0
    %v4829 = vadd.f32 0.0, %v4828
    %v4830 = vpop.f32.mrf.mxu0
    %v4831 = vadd.f32 0.0, %v4830
    %4832 = vmatmul.bf16.gmra.mxu0 %v4791
    %v4833 = vpop.f32.mrf.mxu0
    %v4834 = vadd.f32 0.0, %v4833
    %v4835 = vpop.f32.mrf.mxu0
    %v4836 = vadd.f32 0.0, %v4835
    %4837 = vmatmul.bf16.gmra.mxu0 %v4794
    %v4838 = vpop.f32.mrf.mxu0
    %v4839 = vadd.f32 0.0, %v4838
    %v4840 = vpop.f32.mrf.mxu0
    %v4841 = vadd.f32 0.0, %v4840
    %4842 = vmatmul.bf16.gmra.mxu0 %v4797
    %v4843 = vpop.f32.mrf.mxu0
    %v4844 = vadd.f32 0.0, %v4843
    %v4845 = vpop.f32.mrf.mxu0
    %v4846 = vadd.f32 0.0, %v4845
    %4847 = vdwg.mxu0
    %v4848 = vadd.f32 %v3323, %v4809
    %v4849 = vadd.f32 %v3324, %v4811
    %v4850 = vadd.f32 %v3325, %v4814
    %v4851 = vadd.f32 %v3326, %v4816
    %v4852 = vadd.f32 %v3327, %v4819
    %v4853 = vadd.f32 %v3328, %v4821
    %v4854 = vadd.f32 %v3329, %v4824
    %v4855 = vadd.f32 %v3330, %v4826
    %v4856 = vadd.f32 %v3331, %v4829
    %v4857 = vadd.f32 %v3332, %v4831
    %v4858 = vadd.f32 %v3333, %v4834
    %v4859 = vadd.f32 %v3334, %v4836
    %v4860 = vadd.f32 %v3335, %v4839
    %v4861 = vadd.f32 %v3336, %v4841
    %v4862 = vadd.f32 %v3337, %v4844
    %v4863 = vadd.f32 %v3338, %v4846
    %v4864 = vperm.slane %v3341, 0
    %v4865 = vadd.f32 %v4848, %v4864
    %v4866 = vadd.f32 %v4849, %v4864
    %v4867 = vadd.f32 %v4850, %v4864
    %v4868 = vadd.f32 %v4851, %v4864
    %v4869 = vadd.f32 %v4852, %v4864
    %v4870 = vadd.f32 %v4853, %v4864
    %v4871 = vadd.f32 %v4854, %v4864
    %v4872 = vadd.f32 %v4855, %v4864
    %v4873 = vadd.f32 %v4856, %v4864
    %v4874 = vadd.f32 %v4857, %v4864
    %v4875 = vadd.f32 %v4858, %v4864
    %v4876 = vadd.f32 %v4859, %v4864
    %v4877 = vadd.f32 %v4860, %v4864
    %v4878 = vadd.f32 %v4861, %v4864
    %v4879 = vadd.f32 %v4862, %v4864
    %v4880 = vadd.f32 %v4863, %v4864
    %v4881 = vsel %vm351, %v4865, 0.0
    %4882 = vadd.xlane.f32.xlu0 %v4881
    %v4883 = vpop.xlane.xlu0 %4882
    %v4884 = vsel %vm351, %v4866, 0.0
    %4885 = vadd.xlane.f32.xlu0 %v4884
    %v4886 = vpop.xlane.xlu0 %4885
    %v4887 = vsel %vm351, %v4867, 0.0
    %4888 = vadd.xlane.f32.xlu0 %v4887
    %v4889 = vpop.xlane.xlu0 %4888
    %v4890 = vsel %vm351, %v4868, 0.0
    %4891 = vadd.xlane.f32.xlu0 %v4890
    %v4892 = vpop.xlane.xlu0 %4891
    %v4893 = vsel %vm351, %v4869, 0.0
    %4894 = vadd.xlane.f32.xlu0 %v4893
    %v4895 = vpop.xlane.xlu0 %4894
    %v4896 = vsel %vm351, %v4870, 0.0
    %4897 = vadd.xlane.f32.xlu0 %v4896
    %v4898 = vpop.xlane.xlu0 %4897
    %v4899 = vsel %vm351, %v4871, 0.0
    %4900 = vadd.xlane.f32.xlu0 %v4899
    %v4901 = vpop.xlane.xlu0 %4900
    %v4902 = vsel %vm351, %v4872, 0.0
    %4903 = vadd.xlane.f32.xlu0 %v4902
    %v4904 = vpop.xlane.xlu0 %4903
    %v4905 = vsel %vm351, %v4873, 0.0
    %4906 = vadd.xlane.f32.xlu0 %v4905
    %v4907 = vpop.xlane.xlu0 %4906
    %v4908 = vsel %vm351, %v4874, 0.0
    %4909 = vadd.xlane.f32.xlu0 %v4908
    %v4910 = vpop.xlane.xlu0 %4909
    %v4911 = vsel %vm351, %v4875, 0.0
    %4912 = vadd.xlane.f32.xlu0 %v4911
    %v4913 = vpop.xlane.xlu0 %4912
    %v4914 = vsel %vm351, %v4876, 0.0
    %4915 = vadd.xlane.f32.xlu0 %v4914
    %v4916 = vpop.xlane.xlu0 %4915
    %v4917 = vsel %vm351, %v4877, 0.0
    %4918 = vadd.xlane.f32.xlu0 %v4917
    %v4919 = vpop.xlane.xlu0 %4918
    %v4920 = vsel %vm351, %v4878, 0.0
    %4921 = vadd.xlane.f32.xlu0 %v4920
    %v4922 = vpop.xlane.xlu0 %4921
    %v4923 = vsel %vm351, %v4879, 0.0
    %4924 = vadd.xlane.f32.xlu0 %v4923
    %v4925 = vpop.xlane.xlu0 %4924
    %v4926 = vsel %vm351, %v4880, 0.0
    %4927 = vadd.xlane.f32.xlu0 %v4926
    %v4928 = vpop.xlane.xlu0 %4927
    %v4929 = vmul.f32 %v4883, %v406
    %v4930 = vmul.f32 %v4886, %v406
    %v4931 = vmul.f32 %v4889, %v406
    %v4932 = vmul.f32 %v4892, %v406
    %v4933 = vmul.f32 %v4895, %v406
    %v4934 = vmul.f32 %v4898, %v406
    %v4935 = vmul.f32 %v4901, %v406
    %v4936 = vmul.f32 %v4904, %v406
    %v4937 = vmul.f32 %v4907, %v406
    %v4938 = vmul.f32 %v4910, %v406
    %v4939 = vmul.f32 %v4913, %v406
    %v4940 = vmul.f32 %v4916, %v406
    %v4941 = vmul.f32 %v4919, %v406
    %v4942 = vmul.f32 %v4922, %v406
    %v4943 = vmul.f32 %v4925, %v406
    %v4944 = vmul.f32 %v4928, %v406
    %v4945 = vsub.f32 %v4865, %v4929
    %v4946 = vsub.f32 %v4866, %v4930
    %v4947 = vsub.f32 %v4867, %v4931
    %v4948 = vsub.f32 %v4868, %v4932
    %v4949 = vsub.f32 %v4869, %v4933
    %v4950 = vsub.f32 %v4870, %v4934
    %v4951 = vsub.f32 %v4871, %v4935
    %v4952 = vsub.f32 %v4872, %v4936
    %v4953 = vsub.f32 %v4873, %v4937
    %v4954 = vsub.f32 %v4874, %v4938
    %v4955 = vsub.f32 %v4875, %v4939
    %v4956 = vsub.f32 %v4876, %v4940
    %v4957 = vsub.f32 %v4877, %v4941
    %v4958 = vsub.f32 %v4878, %v4942
    %v4959 = vsub.f32 %v4879, %v4943
    %v4960 = vsub.f32 %v4880, %v4944
    %v4961 = vmul.f32 %v4945, %v4945
    %v4962 = vmul.f32 %v4946, %v4946
    %v4963 = vmul.f32 %v4947, %v4947
    %v4964 = vmul.f32 %v4948, %v4948
    %v4965 = vmul.f32 %v4949, %v4949
    %v4966 = vmul.f32 %v4950, %v4950
    %v4967 = vmul.f32 %v4951, %v4951
    %v4968 = vmul.f32 %v4952, %v4952
    %v4969 = vmul.f32 %v4953, %v4953
    %v4970 = vmul.f32 %v4954, %v4954
    %v4971 = vmul.f32 %v4955, %v4955
    %v4972 = vmul.f32 %v4956, %v4956
    %v4973 = vmul.f32 %v4957, %v4957
    %v4974 = vmul.f32 %v4958, %v4958
    %v4975 = vmul.f32 %v4959, %v4959
    %v4976 = vmul.f32 %v4960, %v4960
    %v4977 = vsel %vm351, %v4961, 0.0
    %4978 = vadd.xlane.f32.xlu0 %v4977
    %v4979 = vpop.xlane.xlu0 %4978
    %v4980 = vsel %vm351, %v4962, 0.0
    %4981 = vadd.xlane.f32.xlu0 %v4980
    %v4982 = vpop.xlane.xlu0 %4981
    %v4983 = vsel %vm351, %v4963, 0.0
    %4984 = vadd.xlane.f32.xlu0 %v4983
    %v4985 = vpop.xlane.xlu0 %4984
    %v4986 = vsel %vm351, %v4964, 0.0
    %4987 = vadd.xlane.f32.xlu0 %v4986
    %v4988 = vpop.xlane.xlu0 %4987
    %v4989 = vsel %vm351, %v4965, 0.0
    %4990 = vadd.xlane.f32.xlu0 %v4989
    %v4991 = vpop.xlane.xlu0 %4990
    %v4992 = vsel %vm351, %v4966, 0.0
    %4993 = vadd.xlane.f32.xlu0 %v4992
    %v4994 = vpop.xlane.xlu0 %4993
    %v4995 = vsel %vm351, %v4967, 0.0
    %4996 = vadd.xlane.f32.xlu0 %v4995
    %v4997 = vpop.xlane.xlu0 %4996
    %v4998 = vsel %vm351, %v4968, 0.0
    %4999 = vadd.xlane.f32.xlu0 %v4998
    %v5000 = vpop.xlane.xlu0 %4999
    %v5001 = vsel %vm351, %v4969, 0.0
    %5002 = vadd.xlane.f32.xlu0 %v5001
    %v5003 = vpop.xlane.xlu0 %5002
    %v5004 = vsel %vm351, %v4970, 0.0
    %5005 = vadd.xlane.f32.xlu0 %v5004
    %v5006 = vpop.xlane.xlu0 %5005
    %v5007 = vsel %vm351, %v4971, 0.0
    %5008 = vadd.xlane.f32.xlu0 %v5007
    %v5009 = vpop.xlane.xlu0 %5008
    %v5010 = vsel %vm351, %v4972, 0.0
    %5011 = vadd.xlane.f32.xlu0 %v5010
    %v5012 = vpop.xlane.xlu0 %5011
    %v5013 = vsel %vm351, %v4973, 0.0
    %5014 = vadd.xlane.f32.xlu0 %v5013
    %v5015 = vpop.xlane.xlu0 %5014
    %v5016 = vsel %vm351, %v4974, 0.0
    %5017 = vadd.xlane.f32.xlu0 %v5016
    %v5018 = vpop.xlane.xlu0 %5017
    %v5019 = vsel %vm351, %v4975, 0.0
    %5020 = vadd.xlane.f32.xlu0 %v5019
    %v5021 = vpop.xlane.xlu0 %5020
    %v5022 = vsel %vm351, %v4976, 0.0
    %5023 = vadd.xlane.f32.xlu0 %v5022
    %v5024 = vpop.xlane.xlu0 %5023
    %v5025 = vmul.f32 %v4979, %v406
    %v5026 = vmul.f32 %v4982, %v406
    %v5027 = vmul.f32 %v4985, %v406
    %v5028 = vmul.f32 %v4988, %v406
    %v5029 = vmul.f32 %v4991, %v406
    %v5030 = vmul.f32 %v4994, %v406
    %v5031 = vmul.f32 %v4997, %v406
    %v5032 = vmul.f32 %v5000, %v406
    %v5033 = vmul.f32 %v5003, %v406
    %v5034 = vmul.f32 %v5006, %v406
    %v5035 = vmul.f32 %v5009, %v406
    %v5036 = vmul.f32 %v5012, %v406
    %v5037 = vmul.f32 %v5015, %v406
    %v5038 = vmul.f32 %v5018, %v406
    %v5039 = vmul.f32 %v5021, %v406
    %v5040 = vmul.f32 %v5024, %v406
    %v5041 = vadd.f32 %v5025, 1e-05
    %v5042 = vadd.f32 %v5026, 1e-05
    %v5043 = vadd.f32 %v5027, 1e-05
    %v5044 = vadd.f32 %v5028, 1e-05
    %v5045 = vadd.f32 %v5029, 1e-05
    %v5046 = vadd.f32 %v5030, 1e-05
    %v5047 = vadd.f32 %v5031, 1e-05
    %v5048 = vadd.f32 %v5032, 1e-05
    %v5049 = vadd.f32 %v5033, 1e-05
    %v5050 = vadd.f32 %v5034, 1e-05
    %v5051 = vadd.f32 %v5035, 1e-05
    %v5052 = vadd.f32 %v5036, 1e-05
    %v5053 = vadd.f32 %v5037, 1e-05
    %v5054 = vadd.f32 %v5038, 1e-05
    %v5055 = vadd.f32 %v5039, 1e-05
    %v5056 = vadd.f32 %v5040, 1e-05
    %v5057 = vrsqrt.pop %v5041
    %v5058 = vmul.f32 %v5057, %v5041
    %v5059 = vmul.f32 %v5058, %v5057
    %v5060 = vmul.f32 0.5, %v5059
    %v5061 = vsub.f32 1.5, %v5060
    %v5062 = vmul.f32 %v5057, %v5061
    %vm5063 = vweird.f32 %v5041
    %vm5064 = vweird.f32 %v5057
    %vm5065 = vmor %vm5063, %vm5064
    %v5066 = vsel %vm5065, %v5057, %v5062
    %v5067 = vrsqrt.pop %v5042
    %v5068 = vmul.f32 %v5067, %v5042
    %v5069 = vmul.f32 %v5068, %v5067
    %v5070 = vmul.f32 0.5, %v5069
    %v5071 = vsub.f32 1.5, %v5070
    %v5072 = vmul.f32 %v5067, %v5071
    %vm5073 = vweird.f32 %v5042
    %vm5074 = vweird.f32 %v5067
    %vm5075 = vmor %vm5073, %vm5074
    %v5076 = vsel %vm5075, %v5067, %v5072
    %v5077 = vrsqrt.pop %v5043
    %v5078 = vmul.f32 %v5077, %v5043
    %v5079 = vmul.f32 %v5078, %v5077
    %v5080 = vmul.f32 0.5, %v5079
    %v5081 = vsub.f32 1.5, %v5080
    %v5082 = vmul.f32 %v5077, %v5081
    %vm5083 = vweird.f32 %v5043
    %vm5084 = vweird.f32 %v5077
    %vm5085 = vmor %vm5083, %vm5084
    %v5086 = vsel %vm5085, %v5077, %v5082
    %v5087 = vrsqrt.pop %v5044
    %v5088 = vmul.f32 %v5087, %v5044
    %v5089 = vmul.f32 %v5088, %v5087
    %v5090 = vmul.f32 0.5, %v5089
    %v5091 = vsub.f32 1.5, %v5090
    %v5092 = vmul.f32 %v5087, %v5091
    %vm5093 = vweird.f32 %v5044
    %vm5094 = vweird.f32 %v5087
    %vm5095 = vmor %vm5093, %vm5094
    %v5096 = vsel %vm5095, %v5087, %v5092
    %v5097 = vrsqrt.pop %v5045
    %v5098 = vmul.f32 %v5097, %v5045
    %v5099 = vmul.f32 %v5098, %v5097
    %v5100 = vmul.f32 0.5, %v5099
    %v5101 = vsub.f32 1.5, %v5100
    %v5102 = vmul.f32 %v5097, %v5101
    %vm5103 = vweird.f32 %v5045
    %vm5104 = vweird.f32 %v5097
    %vm5105 = vmor %vm5103, %vm5104
    %v5106 = vsel %vm5105, %v5097, %v5102
    %v5107 = vrsqrt.pop %v5046
    %v5108 = vmul.f32 %v5107, %v5046
    %v5109 = vmul.f32 %v5108, %v5107
    %v5110 = vmul.f32 0.5, %v5109
    %v5111 = vsub.f32 1.5, %v5110
    %v5112 = vmul.f32 %v5107, %v5111
    %vm5113 = vweird.f32 %v5046
    %vm5114 = vweird.f32 %v5107
    %vm5115 = vmor %vm5113, %vm5114
    %v5116 = vsel %vm5115, %v5107, %v5112
    %v5117 = vrsqrt.pop %v5047
    %v5118 = vmul.f32 %v5117, %v5047
    %v5119 = vmul.f32 %v5118, %v5117
    %v5120 = vmul.f32 0.5, %v5119
    %v5121 = vsub.f32 1.5, %v5120
    %v5122 = vmul.f32 %v5117, %v5121
    %vm5123 = vweird.f32 %v5047
    %vm5124 = vweird.f32 %v5117
    %vm5125 = vmor %vm5123, %vm5124
    %v5126 = vsel %vm5125, %v5117, %v5122
    %v5127 = vrsqrt.pop %v5048
    %v5128 = vmul.f32 %v5127, %v5048
    %v5129 = vmul.f32 %v5128, %v5127
    %v5130 = vmul.f32 0.5, %v5129
    %v5131 = vsub.f32 1.5, %v5130
    %v5132 = vmul.f32 %v5127, %v5131
    %vm5133 = vweird.f32 %v5048
    %vm5134 = vweird.f32 %v5127
    %vm5135 = vmor %vm5133, %vm5134
    %v5136 = vsel %vm5135, %v5127, %v5132
    %v5137 = vrsqrt.pop %v5049
    %v5138 = vmul.f32 %v5137, %v5049
    %v5139 = vmul.f32 %v5138, %v5137
    %v5140 = vmul.f32 0.5, %v5139
    %v5141 = vsub.f32 1.5, %v5140
    %v5142 = vmul.f32 %v5137, %v5141
    %vm5143 = vweird.f32 %v5049
    %vm5144 = vweird.f32 %v5137
    %vm5145 = vmor %vm5143, %vm5144
    %v5146 = vsel %vm5145, %v5137, %v5142
    %v5147 = vrsqrt.pop %v5050
    %v5148 = vmul.f32 %v5147, %v5050
    %v5149 = vmul.f32 %v5148, %v5147
    %v5150 = vmul.f32 0.5, %v5149
    %v5151 = vsub.f32 1.5, %v5150
    %v5152 = vmul.f32 %v5147, %v5151
    %vm5153 = vweird.f32 %v5050
    %vm5154 = vweird.f32 %v5147
    %vm5155 = vmor %vm5153, %vm5154
    %v5156 = vsel %vm5155, %v5147, %v5152
    %v5157 = vrsqrt.pop %v5051
    %v5158 = vmul.f32 %v5157, %v5051
    %v5159 = vmul.f32 %v5158, %v5157
    %v5160 = vmul.f32 0.5, %v5159
    %v5161 = vsub.f32 1.5, %v5160
    %v5162 = vmul.f32 %v5157, %v5161
    %vm5163 = vweird.f32 %v5051
    %vm5164 = vweird.f32 %v5157
    %vm5165 = vmor %vm5163, %vm5164
    %v5166 = vsel %vm5165, %v5157, %v5162
    %v5167 = vrsqrt.pop %v5052
    %v5168 = vmul.f32 %v5167, %v5052
    %v5169 = vmul.f32 %v5168, %v5167
    %v5170 = vmul.f32 0.5, %v5169
    %v5171 = vsub.f32 1.5, %v5170
    %v5172 = vmul.f32 %v5167, %v5171
    %vm5173 = vweird.f32 %v5052
    %vm5174 = vweird.f32 %v5167
    %vm5175 = vmor %vm5173, %vm5174
    %v5176 = vsel %vm5175, %v5167, %v5172
    %v5177 = vrsqrt.pop %v5053
    %v5178 = vmul.f32 %v5177, %v5053
    %v5179 = vmul.f32 %v5178, %v5177
    %v5180 = vmul.f32 0.5, %v5179
    %v5181 = vsub.f32 1.5, %v5180
    %v5182 = vmul.f32 %v5177, %v5181
    %vm5183 = vweird.f32 %v5053
    %vm5184 = vweird.f32 %v5177
    %vm5185 = vmor %vm5183, %vm5184
    %v5186 = vsel %vm5185, %v5177, %v5182
    %v5187 = vrsqrt.pop %v5054
    %v5188 = vmul.f32 %v5187, %v5054
    %v5189 = vmul.f32 %v5188, %v5187
    %v5190 = vmul.f32 0.5, %v5189
    %v5191 = vsub.f32 1.5, %v5190
    %v5192 = vmul.f32 %v5187, %v5191
    %vm5193 = vweird.f32 %v5054
    %vm5194 = vweird.f32 %v5187
    %vm5195 = vmor %vm5193, %vm5194
    %v5196 = vsel %vm5195, %v5187, %v5192
    %v5197 = vrsqrt.pop %v5055
    %v5198 = vmul.f32 %v5197, %v5055
    %v5199 = vmul.f32 %v5198, %v5197
    %v5200 = vmul.f32 0.5, %v5199
    %v5201 = vsub.f32 1.5, %v5200
    %v5202 = vmul.f32 %v5197, %v5201
    %vm5203 = vweird.f32 %v5055
    %vm5204 = vweird.f32 %v5197
    %vm5205 = vmor %vm5203, %vm5204
    %v5206 = vsel %vm5205, %v5197, %v5202
    %v5207 = vrsqrt.pop %v5056
    %v5208 = vmul.f32 %v5207, %v5056
    %v5209 = vmul.f32 %v5208, %v5207
    %v5210 = vmul.f32 0.5, %v5209
    %v5211 = vsub.f32 1.5, %v5210
    %v5212 = vmul.f32 %v5207, %v5211
    %vm5213 = vweird.f32 %v5056
    %vm5214 = vweird.f32 %v5207
    %vm5215 = vmor %vm5213, %vm5214
    %v5216 = vsel %vm5215, %v5207, %v5212
    %v5217 = vmul.f32 %v4945, %v5066
    %v5218 = vmul.f32 %v4946, %v5076
    %v5219 = vmul.f32 %v4947, %v5086
    %v5220 = vmul.f32 %v4948, %v5096
    %v5221 = vmul.f32 %v4949, %v5106
    %v5222 = vmul.f32 %v4950, %v5116
    %v5223 = vmul.f32 %v4951, %v5126
    %v5224 = vmul.f32 %v4952, %v5136
    %v5225 = vmul.f32 %v4953, %v5146
    %v5226 = vmul.f32 %v4954, %v5156
    %v5227 = vmul.f32 %v4955, %v5166
    %v5228 = vmul.f32 %v4956, %v5176
    %v5229 = vmul.f32 %v4957, %v5186
    %v5230 = vmul.f32 %v4958, %v5196
    %v5231 = vmul.f32 %v4959, %v5206
    %v5232 = vmul.f32 %v4960, %v5216
    %v5233 = vperm.slane %v3342, 0
    %v5234 = vmul.f32 %v5217, %v5233
    %v5235 = vmul.f32 %v5218, %v5233
    %v5236 = vmul.f32 %v5219, %v5233
    %v5237 = vmul.f32 %v5220, %v5233
    %v5238 = vmul.f32 %v5221, %v5233
    %v5239 = vmul.f32 %v5222, %v5233
    %v5240 = vmul.f32 %v5223, %v5233
    %v5241 = vmul.f32 %v5224, %v5233
    %v5242 = vmul.f32 %v5225, %v5233
    %v5243 = vmul.f32 %v5226, %v5233
    %v5244 = vmul.f32 %v5227, %v5233
    %v5245 = vmul.f32 %v5228, %v5233
    %v5246 = vmul.f32 %v5229, %v5233
    %v5247 = vmul.f32 %v5230, %v5233
    %v5248 = vmul.f32 %v5231, %v5233
    %v5249 = vmul.f32 %v5232, %v5233
    %v5250 = vperm.slane %v3343, 0
    %v5251 = vadd.f32 %v5234, %v5250
    %v5252 = vadd.f32 %v5235, %v5250
    %v5253 = vadd.f32 %v5236, %v5250
    %v5254 = vadd.f32 %v5237, %v5250
    %v5255 = vadd.f32 %v5238, %v5250
    %v5256 = vadd.f32 %v5239, %v5250
    %v5257 = vadd.f32 %v5240, %v5250
    %v5258 = vadd.f32 %v5241, %v5250
    %v5259 = vadd.f32 %v5242, %v5250
    %v5260 = vadd.f32 %v5243, %v5250
    %v5261 = vadd.f32 %v5244, %v5250
    %v5262 = vadd.f32 %v5245, %v5250
    %v5263 = vadd.f32 %v5246, %v5250
    %v5264 = vadd.f32 %v5247, %v5250
    %v5265 = vadd.f32 %v5248, %v5250
    %v5266 = vadd.f32 %v5249, %v5250
    %s5267 = scalar_lea.vmem [#allocation13], 16
    %v5268 = vld [vmem:[%s5267] sm:$0xf]
    %v5269 = vld [vmem:[%s5267 + $0x4] sm:$0xf]
    %v5270 = vld [vmem:[%s5267 + $0x8] sm:$0xf]
    %v5271 = vld [vmem:[%s5267 + $0xc] sm:$0xf]
    %v5272 = vpack.c.bf16 %v5252, %v5251
    %v5273 = vpack.c.bf16 %v5254, %v5253
    %v5274 = vpack.c.bf16 %v5256, %v5255
    %v5275 = vpack.c.bf16 %v5258, %v5257
    %v5276 = vpack.c.bf16 %v5260, %v5259
    %v5277 = vpack.c.bf16 %v5262, %v5261
    %v5278 = vpack.c.bf16 %v5264, %v5263
    %v5279 = vpack.c.bf16 %v5266, %v5265
    %v5280 = vperm.slane %v3345, 0
    %v5285 = vunpack.c.l.b16 %v5268
    %v5286 = vunpack.c.l.b16 %v5269
    %v5287 = vunpack.c.l.b16 %v5270
    %v5288 = vunpack.c.l.b16 %v5271
    %v5289 = vpack.c.b16 %v5286, %v5285
    %v5290 = vpack.c.b16 %v5288, %v5287
    %v5294 = vsel %vm351, %v5272, 0
    %v5297 = vsel %vm351, %v5273, 0
    %v5300 = vsel %vm351, %v5274, 0
    %v5303 = vsel %vm351, %v5275, 0
    %v5306 = vsel %vm351, %v5276, 0
    %v5309 = vsel %vm351, %v5277, 0
    %v5312 = vsel %vm351, %v5278, 0
    %v5315 = vsel %vm351, %v5279, 0
    %5317 = vmatpush.bf16.msra.mxu0 0
    %5318 = vmatpush.bf16.msra.mxu0 0
    %5319 = vmatpush.bf16.msra.mxu0 0
    %5320 = vmatpush.bf16.msra.mxu0 0
    %5321 = vmatpush.bf16.msra.mxu0 0
    %5322 = vmatpush.bf16.msra.mxu0 0
    %5323 = vmatpush.bf16.msra.mxu0 %v5290
    %5324 = vmatpush.bf16.msra.mxu0 %v5289
    %5325 = vmatmul.bf16.gmra.mxu0 %v5294
    %v5326 = vpop.f32.mrf.mxu0
    %v5327 = vadd.f32 %v5280, %v5326
    %v5328 = vpop.f32.mrf.mxu0
    %v5329 = vadd.f32 %v5280, %v5328
    %5330 = vmatmul.bf16.gmra.mxu0 %v5297
    %v5331 = vpop.f32.mrf.mxu0
    %v5332 = vadd.f32 %v5280, %v5331
    %v5333 = vpop.f32.mrf.mxu0
    %v5334 = vadd.f32 %v5280, %v5333
    %5335 = vmatmul.bf16.gmra.mxu0 %v5300
    %v5336 = vpop.f32.mrf.mxu0
    %v5337 = vadd.f32 %v5280, %v5336
    %v5338 = vpop.f32.mrf.mxu0
    %v5339 = vadd.f32 %v5280, %v5338
    %5340 = vmatmul.bf16.gmra.mxu0 %v5303
    %v5341 = vpop.f32.mrf.mxu0
    %v5342 = vadd.f32 %v5280, %v5341
    %v5343 = vpop.f32.mrf.mxu0
    %v5344 = vadd.f32 %v5280, %v5343
    %5345 = vmatmul.bf16.gmra.mxu0 %v5306
    %v5346 = vpop.f32.mrf.mxu0
    %v5347 = vadd.f32 %v5280, %v5346
    %v5348 = vpop.f32.mrf.mxu0
    %v5349 = vadd.f32 %v5280, %v5348
    %5350 = vmatmul.bf16.gmra.mxu0 %v5309
    %v5351 = vpop.f32.mrf.mxu0
    %v5352 = vadd.f32 %v5280, %v5351
    %v5353 = vpop.f32.mrf.mxu0
    %v5354 = vadd.f32 %v5280, %v5353
    %5355 = vmatmul.bf16.gmra.mxu0 %v5312
    %v5356 = vpop.f32.mrf.mxu0
    %v5357 = vadd.f32 %v5280, %v5356
    %v5358 = vpop.f32.mrf.mxu0
    %v5359 = vadd.f32 %v5280, %v5358
    %5360 = vmatmul.bf16.gmra.mxu0 %v5315
    %v5361 = vpop.f32.mrf.mxu0
    %v5362 = vadd.f32 %v5280, %v5361
    %v5363 = vpop.f32.mrf.mxu0
    %v5364 = vadd.f32 %v5280, %v5363
    %5365 = vdwg.mxu0
    %v5366 = vmul.f32 %v5327, 0.5
    %v5367 = vmul.f32 %v5329, 0.5
    %v5368 = vmul.f32 %v5332, 0.5
    %v5369 = vmul.f32 %v5334, 0.5
    %v5370 = vmul.f32 %v5337, 0.5
    %v5371 = vmul.f32 %v5339, 0.5
    %v5372 = vmul.f32 %v5342, 0.5
    %v5373 = vmul.f32 %v5344, 0.5
    %v5374 = vmul.f32 %v5347, 0.5
    %v5375 = vmul.f32 %v5349, 0.5
    %v5376 = vmul.f32 %v5352, 0.5
    %v5377 = vmul.f32 %v5354, 0.5
    %v5378 = vmul.f32 %v5357, 0.5
    %v5379 = vmul.f32 %v5359, 0.5
    %v5380 = vmul.f32 %v5362, 0.5
    %v5381 = vmul.f32 %v5364, 0.5
    %v5382 = vmul.f32 %v5327, 0.70710677
    %v5383 = vmul.f32 %v5329, 0.70710677
    %v5384 = vmul.f32 %v5332, 0.70710677
    %v5385 = vmul.f32 %v5334, 0.70710677
    %v5386 = vmul.f32 %v5337, 0.70710677
    %v5387 = vmul.f32 %v5339, 0.70710677
    %v5388 = vmul.f32 %v5342, 0.70710677
    %v5389 = vmul.f32 %v5344, 0.70710677
    %v5390 = vmul.f32 %v5347, 0.70710677
    %v5391 = vmul.f32 %v5349, 0.70710677
    %v5392 = vmul.f32 %v5352, 0.70710677
    %v5393 = vmul.f32 %v5354, 0.70710677
    %v5394 = vmul.f32 %v5357, 0.70710677
    %v5395 = vmul.f32 %v5359, 0.70710677
    %v5396 = vmul.f32 %v5362, 0.70710677
    %v5397 = vmul.f32 %v5364, 0.70710677
    %vm5398 = vcmp.ge.f32.partialorder %v5382, 0.0
    %vm5399 = vcmp.ge.f32.partialorder %v5383, 0.0
    %vm5400 = vcmp.ge.f32.partialorder %v5384, 0.0
    %vm5401 = vcmp.ge.f32.partialorder %v5385, 0.0
    %vm5402 = vcmp.ge.f32.partialorder %v5386, 0.0
    %vm5403 = vcmp.ge.f32.partialorder %v5387, 0.0
    %vm5404 = vcmp.ge.f32.partialorder %v5388, 0.0
    %vm5405 = vcmp.ge.f32.partialorder %v5389, 0.0
    %vm5406 = vcmp.ge.f32.partialorder %v5390, 0.0
    %vm5407 = vcmp.ge.f32.partialorder %v5391, 0.0
    %vm5408 = vcmp.ge.f32.partialorder %v5392, 0.0
    %vm5409 = vcmp.ge.f32.partialorder %v5393, 0.0
    %vm5410 = vcmp.ge.f32.partialorder %v5394, 0.0
    %vm5411 = vcmp.ge.f32.partialorder %v5395, 0.0
    %vm5412 = vcmp.ge.f32.partialorder %v5396, 0.0
    %vm5413 = vcmp.ge.f32.partialorder %v5397, 0.0
    %v5414 = vsel %vm5398, 1.0, -1.0
    %v5415 = vsel %vm5399, 1.0, -1.0
    %v5416 = vsel %vm5400, 1.0, -1.0
    %v5417 = vsel %vm5401, 1.0, -1.0
    %v5418 = vsel %vm5402, 1.0, -1.0
    %v5419 = vsel %vm5403, 1.0, -1.0
    %v5420 = vsel %vm5404, 1.0, -1.0
    %v5421 = vsel %vm5405, 1.0, -1.0
    %v5422 = vsel %vm5406, 1.0, -1.0
    %v5423 = vsel %vm5407, 1.0, -1.0
    %v5424 = vsel %vm5408, 1.0, -1.0
    %v5425 = vsel %vm5409, 1.0, -1.0
    %v5426 = vsel %vm5410, 1.0, -1.0
    %v5427 = vsel %vm5411, 1.0, -1.0
    %v5428 = vsel %vm5412, 1.0, -1.0
    %v5429 = vsel %vm5413, 1.0, -1.0
    %v5430 = vand.u32 2147483647, %v5382
    %v5431 = vand.u32 2147483647, %v5383
    %v5432 = vand.u32 2147483647, %v5384
    %v5433 = vand.u32 2147483647, %v5385
    %v5434 = vand.u32 2147483647, %v5386
    %v5435 = vand.u32 2147483647, %v5387
    %v5436 = vand.u32 2147483647, %v5388
    %v5437 = vand.u32 2147483647, %v5389
    %v5438 = vand.u32 2147483647, %v5390
    %v5439 = vand.u32 2147483647, %v5391
    %v5440 = vand.u32 2147483647, %v5392
    %v5441 = vand.u32 2147483647, %v5393
    %v5442 = vand.u32 2147483647, %v5394
    %v5443 = vand.u32 2147483647, %v5395
    %v5444 = vand.u32 2147483647, %v5396
    %v5445 = vand.u32 2147483647, %v5397
    %v5446 = vmul.f32 %v5430, 0.3275911
    %v5447 = vmul.f32 %v5431, 0.3275911
    %v5448 = vmul.f32 %v5432, 0.3275911
    %v5449 = vmul.f32 %v5433, 0.3275911
    %v5450 = vmul.f32 %v5434, 0.3275911
    %v5451 = vmul.f32 %v5435, 0.3275911
    %v5452 = vmul.f32 %v5436, 0.3275911
    %v5453 = vmul.f32 %v5437, 0.3275911
    %v5454 = vmul.f32 %v5438, 0.3275911
    %v5455 = vmul.f32 %v5439, 0.3275911
    %v5456 = vmul.f32 %v5440, 0.3275911
    %v5457 = vmul.f32 %v5441, 0.3275911
    %v5458 = vmul.f32 %v5442, 0.3275911
    %v5459 = vmul.f32 %v5443, 0.3275911
    %v5460 = vmul.f32 %v5444, 0.3275911
    %v5461 = vmul.f32 %v5445, 0.3275911
    %v5462 = vadd.f32 %v5446, 1.0
    %v5463 = vadd.f32 %v5447, 1.0
    %v5464 = vadd.f32 %v5448, 1.0
    %v5465 = vadd.f32 %v5449, 1.0
    %v5466 = vadd.f32 %v5450, 1.0
    %v5467 = vadd.f32 %v5451, 1.0
    %v5468 = vadd.f32 %v5452, 1.0
    %v5469 = vadd.f32 %v5453, 1.0
    %v5470 = vadd.f32 %v5454, 1.0
    %v5471 = vadd.f32 %v5455, 1.0
    %v5472 = vadd.f32 %v5456, 1.0
    %v5473 = vadd.f32 %v5457, 1.0
    %v5474 = vadd.f32 %v5458, 1.0
    %v5475 = vadd.f32 %v5459, 1.0
    %v5476 = vadd.f32 %v5460, 1.0
    %v5477 = vadd.f32 %v5461, 1.0
    %v5478 = vrcp.pop %v5462
    %v5479 = vrcp.pop %v5463
    %v5480 = vrcp.pop %v5464
    %v5481 = vrcp.pop %v5465
    %v5482 = vrcp.pop %v5466
    %v5483 = vrcp.pop %v5467
    %v5484 = vrcp.pop %v5468
    %v5485 = vrcp.pop %v5469
    %v5486 = vrcp.pop %v5470
    %v5487 = vrcp.pop %v5471
    %v5488 = vrcp.pop %v5472
    %v5489 = vrcp.pop %v5473
    %v5490 = vrcp.pop %v5474
    %v5491 = vrcp.pop %v5475
    %v5492 = vrcp.pop %v5476
    %v5493 = vrcp.pop %v5477
    %v5494 = vmul.f32 %v5478, 1.0614054
    %v5495 = vmul.f32 %v5479, 1.0614054
    %v5496 = vmul.f32 %v5480, 1.0614054
    %v5497 = vmul.f32 %v5481, 1.0614054
    %v5498 = vmul.f32 %v5482, 1.0614054
    %v5499 = vmul.f32 %v5483, 1.0614054
    %v5500 = vmul.f32 %v5484, 1.0614054
    %v5501 = vmul.f32 %v5485, 1.0614054
    %v5502 = vmul.f32 %v5486, 1.0614054
    %v5503 = vmul.f32 %v5487, 1.0614054
    %v5504 = vmul.f32 %v5488, 1.0614054
    %v5505 = vmul.f32 %v5489, 1.0614054
    %v5506 = vmul.f32 %v5490, 1.0614054
    %v5507 = vmul.f32 %v5491, 1.0614054
    %v5508 = vmul.f32 %v5492, 1.0614054
    %v5509 = vmul.f32 %v5493, 1.0614054
    %v5510 = vadd.f32 %v5494, -1.4531521
    %v5511 = vadd.f32 %v5495, -1.4531521
    %v5512 = vadd.f32 %v5496, -1.4531521
    %v5513 = vadd.f32 %v5497, -1.4531521
    %v5514 = vadd.f32 %v5498, -1.4531521
    %v5515 = vadd.f32 %v5499, -1.4531521
    %v5516 = vadd.f32 %v5500, -1.4531521
    %v5517 = vadd.f32 %v5501, -1.4531521
    %v5518 = vadd.f32 %v5502, -1.4531521
    %v5519 = vadd.f32 %v5503, -1.4531521
    %v5520 = vadd.f32 %v5504, -1.4531521
    %v5521 = vadd.f32 %v5505, -1.4531521
    %v5522 = vadd.f32 %v5506, -1.4531521
    %v5523 = vadd.f32 %v5507, -1.4531521
    %v5524 = vadd.f32 %v5508, -1.4531521
    %v5525 = vadd.f32 %v5509, -1.4531521
    %v5526 = vmul.f32 %v5510, %v5478
    %v5527 = vmul.f32 %v5511, %v5479
    %v5528 = vmul.f32 %v5512, %v5480
    %v5529 = vmul.f32 %v5513, %v5481
    %v5530 = vmul.f32 %v5514, %v5482
    %v5531 = vmul.f32 %v5515, %v5483
    %v5532 = vmul.f32 %v5516, %v5484
    %v5533 = vmul.f32 %v5517, %v5485
    %v5534 = vmul.f32 %v5518, %v5486
    %v5535 = vmul.f32 %v5519, %v5487
    %v5536 = vmul.f32 %v5520, %v5488
    %v5537 = vmul.f32 %v5521, %v5489
    %v5538 = vmul.f32 %v5522, %v5490
    %v5539 = vmul.f32 %v5523, %v5491
    %v5540 = vmul.f32 %v5524, %v5492
    %v5541 = vmul.f32 %v5525, %v5493
    %v5542 = vadd.f32 %v5526, 1.4214138
    %v5543 = vadd.f32 %v5527, 1.4214138
    %v5544 = vadd.f32 %v5528, 1.4214138
    %v5545 = vadd.f32 %v5529, 1.4214138
    %v5546 = vadd.f32 %v5530, 1.4214138
    %v5547 = vadd.f32 %v5531, 1.4214138
    %v5548 = vadd.f32 %v5532, 1.4214138
    %v5549 = vadd.f32 %v5533, 1.4214138
    %v5550 = vadd.f32 %v5534, 1.4214138
    %v5551 = vadd.f32 %v5535, 1.4214138
    %v5552 = vadd.f32 %v5536, 1.4214138
    %v5553 = vadd.f32 %v5537, 1.4214138
    %v5554 = vadd.f32 %v5538, 1.4214138
    %v5555 = vadd.f32 %v5539, 1.4214138
    %v5556 = vadd.f32 %v5540, 1.4214138
    %v5557 = vadd.f32 %v5541, 1.4214138
    %v5558 = vmul.f32 %v5542, %v5478
    %v5559 = vmul.f32 %v5543, %v5479
    %v5560 = vmul.f32 %v5544, %v5480
    %v5561 = vmul.f32 %v5545, %v5481
    %v5562 = vmul.f32 %v5546, %v5482
    %v5563 = vmul.f32 %v5547, %v5483
    %v5564 = vmul.f32 %v5548, %v5484
    %v5565 = vmul.f32 %v5549, %v5485
    %v5566 = vmul.f32 %v5550, %v5486
    %v5567 = vmul.f32 %v5551, %v5487
    %v5568 = vmul.f32 %v5552, %v5488
    %v5569 = vmul.f32 %v5553, %v5489
    %v5570 = vmul.f32 %v5554, %v5490
    %v5571 = vmul.f32 %v5555, %v5491
    %v5572 = vmul.f32 %v5556, %v5492
    %v5573 = vmul.f32 %v5557, %v5493
    %v5574 = vadd.f32 %v5558, -0.28449672
    %v5575 = vadd.f32 %v5559, -0.28449672
    %v5576 = vadd.f32 %v5560, -0.28449672
    %v5577 = vadd.f32 %v5561, -0.28449672
    %v5578 = vadd.f32 %v5562, -0.28449672
    %v5579 = vadd.f32 %v5563, -0.28449672
    %v5580 = vadd.f32 %v5564, -0.28449672
    %v5581 = vadd.f32 %v5565, -0.28449672
    %v5582 = vadd.f32 %v5566, -0.28449672
    %v5583 = vadd.f32 %v5567, -0.28449672
    %v5584 = vadd.f32 %v5568, -0.28449672
    %v5585 = vadd.f32 %v5569, -0.28449672
    %v5586 = vadd.f32 %v5570, -0.28449672
    %v5587 = vadd.f32 %v5571, -0.28449672
    %v5588 = vadd.f32 %v5572, -0.28449672
    %v5589 = vadd.f32 %v5573, -0.28449672
    %v5590 = vmul.f32 %v5574, %v5478
    %v5591 = vmul.f32 %v5575, %v5479
    %v5592 = vmul.f32 %v5576, %v5480
    %v5593 = vmul.f32 %v5577, %v5481
    %v5594 = vmul.f32 %v5578, %v5482
    %v5595 = vmul.f32 %v5579, %v5483
    %v5596 = vmul.f32 %v5580, %v5484
    %v5597 = vmul.f32 %v5581, %v5485
    %v5598 = vmul.f32 %v5582, %v5486
    %v5599 = vmul.f32 %v5583, %v5487
    %v5600 = vmul.f32 %v5584, %v5488
    %v5601 = vmul.f32 %v5585, %v5489
    %v5602 = vmul.f32 %v5586, %v5490
    %v5603 = vmul.f32 %v5587, %v5491
    %v5604 = vmul.f32 %v5588, %v5492
    %v5605 = vmul.f32 %v5589, %v5493
    %v5606 = vadd.f32 %v5590, 0.2548296
    %v5607 = vadd.f32 %v5591, 0.2548296
    %v5608 = vadd.f32 %v5592, 0.2548296
    %v5609 = vadd.f32 %v5593, 0.2548296
    %v5610 = vadd.f32 %v5594, 0.2548296
    %v5611 = vadd.f32 %v5595, 0.2548296
    %v5612 = vadd.f32 %v5596, 0.2548296
    %v5613 = vadd.f32 %v5597, 0.2548296
    %v5614 = vadd.f32 %v5598, 0.2548296
    %v5615 = vadd.f32 %v5599, 0.2548296
    %v5616 = vadd.f32 %v5600, 0.2548296
    %v5617 = vadd.f32 %v5601, 0.2548296
    %v5618 = vadd.f32 %v5602, 0.2548296
    %v5619 = vadd.f32 %v5603, 0.2548296
    %v5620 = vadd.f32 %v5604, 0.2548296
    %v5621 = vadd.f32 %v5605, 0.2548296
    %v5622 = vmul.f32 %v5606, %v5478
    %v5623 = vmul.f32 %v5607, %v5479
    %v5624 = vmul.f32 %v5608, %v5480
    %v5625 = vmul.f32 %v5609, %v5481
    %v5626 = vmul.f32 %v5610, %v5482
    %v5627 = vmul.f32 %v5611, %v5483
    %v5628 = vmul.f32 %v5612, %v5484
    %v5629 = vmul.f32 %v5613, %v5485
    %v5630 = vmul.f32 %v5614, %v5486
    %v5631 = vmul.f32 %v5615, %v5487
    %v5632 = vmul.f32 %v5616, %v5488
    %v5633 = vmul.f32 %v5617, %v5489
    %v5634 = vmul.f32 %v5618, %v5490
    %v5635 = vmul.f32 %v5619, %v5491
    %v5636 = vmul.f32 %v5620, %v5492
    %v5637 = vmul.f32 %v5621, %v5493
    %v5638 = vsub.f32 0.0, %v5430
    %v5639 = vsub.f32 0.0, %v5431
    %v5640 = vsub.f32 0.0, %v5432
    %v5641 = vsub.f32 0.0, %v5433
    %v5642 = vsub.f32 0.0, %v5434
    %v5643 = vsub.f32 0.0, %v5435
    %v5644 = vsub.f32 0.0, %v5436
    %v5645 = vsub.f32 0.0, %v5437
    %v5646 = vsub.f32 0.0, %v5438
    %v5647 = vsub.f32 0.0, %v5439
    %v5648 = vsub.f32 0.0, %v5440
    %v5649 = vsub.f32 0.0, %v5441
    %v5650 = vsub.f32 0.0, %v5442
    %v5651 = vsub.f32 0.0, %v5443
    %v5652 = vsub.f32 0.0, %v5444
    %v5653 = vsub.f32 0.0, %v5445
    %v5654 = vmul.f32 %v5638, %v5430
    %v5655 = vmul.f32 %v5639, %v5431
    %v5656 = vmul.f32 %v5640, %v5432
    %v5657 = vmul.f32 %v5641, %v5433
    %v5658 = vmul.f32 %v5642, %v5434
    %v5659 = vmul.f32 %v5643, %v5435
    %v5660 = vmul.f32 %v5644, %v5436
    %v5661 = vmul.f32 %v5645, %v5437
    %v5662 = vmul.f32 %v5646, %v5438
    %v5663 = vmul.f32 %v5647, %v5439
    %v5664 = vmul.f32 %v5648, %v5440
    %v5665 = vmul.f32 %v5649, %v5441
    %v5666 = vmul.f32 %v5650, %v5442
    %v5667 = vmul.f32 %v5651, %v5443
    %v5668 = vmul.f32 %v5652, %v5444
    %v5669 = vmul.f32 %v5653, %v5445
    %v5670 = vmul.f32 %v5654, 1.442695
    %v5671 = vpow.pop %v5670
    %v5672 = vmul.f32 %v5655, 1.442695
    %v5673 = vpow.pop %v5672
    %v5674 = vmul.f32 %v5656, 1.442695
    %v5675 = vpow.pop %v5674
    %v5676 = vmul.f32 %v5657, 1.442695
    %v5677 = vpow.pop %v5676
    %v5678 = vmul.f32 %v5658, 1.442695
    %v5679 = vpow.pop %v5678
    %v5680 = vmul.f32 %v5659, 1.442695
    %v5681 = vpow.pop %v5680
    %v5682 = vmul.f32 %v5660, 1.442695
    %v5683 = vpow.pop %v5682
    %v5684 = vmul.f32 %v5661, 1.442695
    %v5685 = vpow.pop %v5684
    %v5686 = vmul.f32 %v5662, 1.442695
    %v5687 = vpow.pop %v5686
    %v5688 = vmul.f32 %v5663, 1.442695
    %v5689 = vpow.pop %v5688
    %v5690 = vmul.f32 %v5664, 1.442695
    %v5691 = vpow.pop %v5690
    %v5692 = vmul.f32 %v5665, 1.442695
    %v5693 = vpow.pop %v5692
    %v5694 = vmul.f32 %v5666, 1.442695
    %v5695 = vpow.pop %v5694
    %v5696 = vmul.f32 %v5667, 1.442695
    %v5697 = vpow.pop %v5696
    %v5698 = vmul.f32 %v5668, 1.442695
    %v5699 = vpow.pop %v5698
    %v5700 = vmul.f32 %v5669, 1.442695
    %v5701 = vpow.pop %v5700
    %v5702 = vmul.f32 %v5622, %v5671
    %v5703 = vmul.f32 %v5623, %v5673
    %v5704 = vmul.f32 %v5624, %v5675
    %v5705 = vmul.f32 %v5625, %v5677
    %v5706 = vmul.f32 %v5626, %v5679
    %v5707 = vmul.f32 %v5627, %v5681
    %v5708 = vmul.f32 %v5628, %v5683
    %v5709 = vmul.f32 %v5629, %v5685
    %v5710 = vmul.f32 %v5630, %v5687
    %v5711 = vmul.f32 %v5631, %v5689
    %v5712 = vmul.f32 %v5632, %v5691
    %v5713 = vmul.f32 %v5633, %v5693
    %v5714 = vmul.f32 %v5634, %v5695
    %v5715 = vmul.f32 %v5635, %v5697
    %v5716 = vmul.f32 %v5636, %v5699
    %v5717 = vmul.f32 %v5637, %v5701
    %v5718 = vsub.f32 1.0, %v5702
    %v5719 = vsub.f32 1.0, %v5703
    %v5720 = vsub.f32 1.0, %v5704
    %v5721 = vsub.f32 1.0, %v5705
    %v5722 = vsub.f32 1.0, %v5706
    %v5723 = vsub.f32 1.0, %v5707
    %v5724 = vsub.f32 1.0, %v5708
    %v5725 = vsub.f32 1.0, %v5709
    %v5726 = vsub.f32 1.0, %v5710
    %v5727 = vsub.f32 1.0, %v5711
    %v5728 = vsub.f32 1.0, %v5712
    %v5729 = vsub.f32 1.0, %v5713
    %v5730 = vsub.f32 1.0, %v5714
    %v5731 = vsub.f32 1.0, %v5715
    %v5732 = vsub.f32 1.0, %v5716
    %v5733 = vsub.f32 1.0, %v5717
    %v5734 = vmul.f32 %v5414, %v5718
    %v5735 = vmul.f32 %v5415, %v5719
    %v5736 = vmul.f32 %v5416, %v5720
    %v5737 = vmul.f32 %v5417, %v5721
    %v5738 = vmul.f32 %v5418, %v5722
    %v5739 = vmul.f32 %v5419, %v5723
    %v5740 = vmul.f32 %v5420, %v5724
    %v5741 = vmul.f32 %v5421, %v5725
    %v5742 = vmul.f32 %v5422, %v5726
    %v5743 = vmul.f32 %v5423, %v5727
    %v5744 = vmul.f32 %v5424, %v5728
    %v5745 = vmul.f32 %v5425, %v5729
    %v5746 = vmul.f32 %v5426, %v5730
    %v5747 = vmul.f32 %v5427, %v5731
    %v5748 = vmul.f32 %v5428, %v5732
    %v5749 = vmul.f32 %v5429, %v5733
    %v5750 = vadd.f32 %v5734, 1.0
    %v5751 = vadd.f32 %v5735, 1.0
    %v5752 = vadd.f32 %v5736, 1.0
    %v5753 = vadd.f32 %v5737, 1.0
    %v5754 = vadd.f32 %v5738, 1.0
    %v5755 = vadd.f32 %v5739, 1.0
    %v5756 = vadd.f32 %v5740, 1.0
    %v5757 = vadd.f32 %v5741, 1.0
    %v5758 = vadd.f32 %v5742, 1.0
    %v5759 = vadd.f32 %v5743, 1.0
    %v5760 = vadd.f32 %v5744, 1.0
    %v5761 = vadd.f32 %v5745, 1.0
    %v5762 = vadd.f32 %v5746, 1.0
    %v5763 = vadd.f32 %v5747, 1.0
    %v5764 = vadd.f32 %v5748, 1.0
    %v5765 = vadd.f32 %v5749, 1.0
    %v5766 = vmul.f32 %v5366, %v5750
    %v5767 = vmul.f32 %v5367, %v5751
    %v5768 = vmul.f32 %v5368, %v5752
    %v5769 = vmul.f32 %v5369, %v5753
    %v5770 = vmul.f32 %v5370, %v5754
    %v5771 = vmul.f32 %v5371, %v5755
    %v5772 = vmul.f32 %v5372, %v5756
    %v5773 = vmul.f32 %v5373, %v5757
    %v5774 = vmul.f32 %v5374, %v5758
    %v5775 = vmul.f32 %v5375, %v5759
    %v5776 = vmul.f32 %v5376, %v5760
    %v5777 = vmul.f32 %v5377, %v5761
    %v5778 = vmul.f32 %v5378, %v5762
    %v5779 = vmul.f32 %v5379, %v5763
    %v5780 = vmul.f32 %v5380, %v5764
    %v5781 = vmul.f32 %v5381, %v5765
    %s5782 = scalar_lea.vmem %s11, 64
    %v5783 = vld [vmem:[%s5782] sm:$0xf]
    %v5784 = vld [vmem:[%s5782 + $0x4] sm:$0xf]
    %v5785 = vld [vmem:[%s5782 + $0x8] sm:$0xf]
    %v5786 = vld [vmem:[%s5782 + $0xc] sm:$0xf]
    %v5787 = vld [vmem:[%s5782 + $0x10] sm:$0xf]
    %v5788 = vld [vmem:[%s5782 + $0x14] sm:$0xf]
    %v5789 = vld [vmem:[%s5782 + $0x18] sm:$0xf]
    %v5790 = vld [vmem:[%s5782 + $0x1c] sm:$0xf]
    %v5791 = vld [vmem:[%s5782 + $0x20] sm:$0xf]
    %v5792 = vld [vmem:[%s5782 + $0x24] sm:$0xf]
    %v5793 = vld [vmem:[%s5782 + $0x28] sm:$0xf]
    %v5794 = vld [vmem:[%s5782 + $0x2c] sm:$0xf]
    %v5795 = vld [vmem:[%s5782 + $0x30] sm:$0xf]
    %v5796 = vld [vmem:[%s5782 + $0x34] sm:$0xf]
    %v5797 = vld [vmem:[%s5782 + $0x38] sm:$0xf]
    %v5798 = vld [vmem:[%s5782 + $0x3c] sm:$0xf]
    %v5799 = vpack.c.bf16 %v5767, %v5766
    %v5800 = vpack.c.bf16 %v5769, %v5768
    %v5801 = vpack.c.bf16 %v5771, %v5770
    %v5802 = vpack.c.bf16 %v5773, %v5772
    %v5803 = vpack.c.bf16 %v5775, %v5774
    %v5804 = vpack.c.bf16 %v5777, %v5776
    %v5805 = vpack.c.bf16 %v5779, %v5778
    %v5806 = vpack.c.bf16 %v5781, %v5780
    %v5823 = vunpack.c.l.b16 %v5783
    %v5824 = vunpack.c.l.b16 %v5784
    %v5825 = vunpack.c.l.b16 %v5785
    %v5826 = vunpack.c.l.b16 %v5786
    %v5827 = vunpack.c.l.b16 %v5787
    %v5828 = vunpack.c.l.b16 %v5788
    %v5829 = vunpack.c.l.b16 %v5789
    %v5830 = vunpack.c.l.b16 %v5790
    %v5831 = vunpack.c.l.b16 %v5791
    %v5832 = vunpack.c.l.b16 %v5792
    %v5833 = vunpack.c.l.b16 %v5793
    %v5834 = vunpack.c.l.b16 %v5794
    %v5835 = vunpack.c.l.b16 %v5795
    %v5836 = vunpack.c.l.b16 %v5796
    %v5837 = vunpack.c.l.b16 %v5797
    %v5838 = vunpack.c.l.b16 %v5798
    %v5839 = vpack.c.b16 %v5824, %v5823
    %v5840 = vpack.c.b16 %v5826, %v5825
    %v5841 = vpack.c.b16 %v5828, %v5827
    %v5842 = vpack.c.b16 %v5830, %v5829
    %v5843 = vpack.c.b16 %v5832, %v5831
    %v5844 = vpack.c.b16 %v5834, %v5833
    %v5845 = vpack.c.b16 %v5836, %v5835
    %v5846 = vpack.c.b16 %v5838, %v5837
    %5855 = vmatpush.bf16.msra.mxu0 %v5846
    %5856 = vmatpush.bf16.msra.mxu0 %v5845
    %5857 = vmatpush.bf16.msra.mxu0 %v5844
    %5858 = vmatpush.bf16.msra.mxu0 %v5843
    %5859 = vmatpush.bf16.msra.mxu0 %v5842
    %5860 = vmatpush.bf16.msra.mxu0 %v5841
    %5861 = vmatpush.bf16.msra.mxu0 %v5840
    %5862 = vmatpush.bf16.msra.mxu0 %v5839
    %5863 = vmatmul.bf16.gmra.mxu0 %v5799
    %v5864 = vpop.f32.mrf.mxu0
    %v5865 = vadd.f32 0.0, %v5864
    %v5866 = vpop.f32.mrf.mxu0
    %v5867 = vadd.f32 0.0, %v5866
    %5868 = vmatmul.bf16.gmra.mxu0 %v5800
    %v5869 = vpop.f32.mrf.mxu0
    %v5870 = vadd.f32 0.0, %v5869
    %v5871 = vpop.f32.mrf.mxu0
    %v5872 = vadd.f32 0.0, %v5871
    %5873 = vmatmul.bf16.gmra.mxu0 %v5801
    %v5874 = vpop.f32.mrf.mxu0
    %v5875 = vadd.f32 0.0, %v5874
    %v5876 = vpop.f32.mrf.mxu0
    %v5877 = vadd.f32 0.0, %v5876
    %5878 = vmatmul.bf16.gmra.mxu0 %v5802
    %v5879 = vpop.f32.mrf.mxu0
    %v5880 = vadd.f32 0.0, %v5879
    %v5881 = vpop.f32.mrf.mxu0
    %v5882 = vadd.f32 0.0, %v5881
    %5883 = vmatmul.bf16.gmra.mxu0 %v5803
    %v5884 = vpop.f32.mrf.mxu0
    %v5885 = vadd.f32 0.0, %v5884
    %v5886 = vpop.f32.mrf.mxu0
    %v5887 = vadd.f32 0.0, %v5886
    %5888 = vmatmul.bf16.gmra.mxu0 %v5804
    %v5889 = vpop.f32.mrf.mxu0
    %v5890 = vadd.f32 0.0, %v5889
    %v5891 = vpop.f32.mrf.mxu0
    %v5892 = vadd.f32 0.0, %v5891
    %5893 = vmatmul.bf16.gmra.mxu0 %v5805
    %v5894 = vpop.f32.mrf.mxu0
    %v5895 = vadd.f32 0.0, %v5894
    %v5896 = vpop.f32.mrf.mxu0
    %v5897 = vadd.f32 0.0, %v5896
    %5898 = vmatmul.bf16.gmra.mxu0 %v5806
    %v5899 = vpop.f32.mrf.mxu0
    %v5900 = vadd.f32 0.0, %v5899
    %v5901 = vpop.f32.mrf.mxu0
    %v5902 = vadd.f32 0.0, %v5901
    %5903 = vdwg.mxu0
    %v5904 = vadd.f32 %v4865, %v5865
    %v5905 = vadd.f32 %v4866, %v5867
    %v5906 = vadd.f32 %v4867, %v5870
    %v5907 = vadd.f32 %v4868, %v5872
    %v5908 = vadd.f32 %v4869, %v5875
    %v5909 = vadd.f32 %v4870, %v5877
    %v5910 = vadd.f32 %v4871, %v5880
    %v5911 = vadd.f32 %v4872, %v5882
    %v5912 = vadd.f32 %v4873, %v5885
    %v5913 = vadd.f32 %v4874, %v5887
    %v5914 = vadd.f32 %v4875, %v5890
    %v5915 = vadd.f32 %v4876, %v5892
    %v5916 = vadd.f32 %v4877, %v5895
    %v5917 = vadd.f32 %v4878, %v5897
    %v5918 = vadd.f32 %v4879, %v5900
    %v5919 = vadd.f32 %v4880, %v5902
    %v5920 = vperm.slane %v3344, 0
    %v5921 = vadd.f32 %v5904, %v5920
    %v5922 = vadd.f32 %v5905, %v5920
    %v5923 = vadd.f32 %v5906, %v5920
    %v5924 = vadd.f32 %v5907, %v5920
    %v5925 = vadd.f32 %v5908, %v5920
    %v5926 = vadd.f32 %v5909, %v5920
    %v5927 = vadd.f32 %v5910, %v5920
    %v5928 = vadd.f32 %v5911, %v5920
    %v5929 = vadd.f32 %v5912, %v5920
    %v5930 = vadd.f32 %v5913, %v5920
    %v5931 = vadd.f32 %v5914, %v5920
    %v5932 = vadd.f32 %v5915, %v5920
    %v5933 = vadd.f32 %v5916, %v5920
    %v5934 = vadd.f32 %v5917, %v5920
    %v5935 = vadd.f32 %v5918, %v5920
    %v5936 = vadd.f32 %v5919, %v5920
    %v5937 = vld [vmem:[%s12] sm:$0xff]
    %v5938 = vld [vmem:[%s12 + $0x8] sm:$0xff]
    %v5939 = vld [vmem:[%s12 + $0x10] sm:$0xff]
    %v5940 = vld [vmem:[%s12 + $0x18] sm:$0xff]
    %5941 = vmatpush.msra.mxu0 %v5936
    %5942 = vmatpush.msra.mxu0 %v5935
    %5943 = vmatpush.msra.mxu0 %v5934
    %5944 = vmatpush.msra.mxu0 %v5933
    %5945 = vmatpush.msra.mxu0 %v5932
    %5946 = vmatpush.msra.mxu0 %v5931
    %5947 = vmatpush.msra.mxu0 %v5930
    %5948 = vmatpush.msra.mxu0 %v5929
    %5949 = vmatpush.msra.mxu0 %v5928
    %5950 = vmatpush.msra.mxu0 %v5927
    %5951 = vmatpush.msra.mxu0 %v5926
    %5952 = vmatpush.msra.mxu0 %v5925
    %5953 = vmatpush.msra.mxu0 %v5924
    %5954 = vmatpush.msra.mxu0 %v5923
    %5955 = vmatpush.msra.mxu0 %v5922
    %5956 = vmatpush.msra.mxu0 %v5921
    %5957 = vmatmul.f32.gmra.mxu0 %v5937
    %v5958 = vpop.f32.mrf.mxu0
    %v5959 = vadd.f32 0.0, %v5958
    %5960 = vmatmul.f32.gmra.mxu0 %v5938
    %v5961 = vpop.f32.mrf.mxu0
    %v5962 = vadd.f32 0.0, %v5961
    %5963 = vmatmul.f32.gmra.mxu0 %v5939
    %v5964 = vpop.f32.mrf.mxu0
    %v5965 = vadd.f32 0.0, %v5964
    %5966 = vmatmul.f32.gmra.mxu0 %v5940
    %v5967 = vpop.f32.mrf.mxu0
    %v5968 = vadd.f32 0.0, %v5967
    %5969 = vdwg.mxu0
    %s5970 = scalar_lea.vmem %s12, 32
    %v5971 = vld [vmem:[%s5970] sm:$0xff]
    %v5972 = vld [vmem:[%s5970 + $0x8] sm:$0xff]
    %v5973 = vld [vmem:[%s5970 + $0x10] sm:$0xff]
    %v5974 = vld [vmem:[%s5970 + $0x18] sm:$0xff]
    %5975 = vmatpush.msra.mxu0 %v5936
    %5976 = vmatpush.msra.mxu0 %v5935
    %5977 = vmatpush.msra.mxu0 %v5934
    %5978 = vmatpush.msra.mxu0 %v5933
    %5979 = vmatpush.msra.mxu0 %v5932
    %5980 = vmatpush.msra.mxu0 %v5931
    %5981 = vmatpush.msra.mxu0 %v5930
    %5982 = vmatpush.msra.mxu0 %v5929
    %5983 = vmatpush.msra.mxu0 %v5928
    %5984 = vmatpush.msra.mxu0 %v5927
    %5985 = vmatpush.msra.mxu0 %v5926
    %5986 = vmatpush.msra.mxu0 %v5925
    %5987 = vmatpush.msra.mxu0 %v5924
    %5988 = vmatpush.msra.mxu0 %v5923
    %5989 = vmatpush.msra.mxu0 %v5922
    %5990 = vmatpush.msra.mxu0 %v5921
    %5991 = vmatmul.f32.gmra.mxu0 %v5971
    %v5992 = vpop.f32.mrf.mxu0
    %v5993 = vadd.f32 0.0, %v5992
    %5994 = vmatmul.f32.gmra.mxu0 %v5972
    %v5995 = vpop.f32.mrf.mxu0
    %v5996 = vadd.f32 0.0, %v5995
    %5997 = vmatmul.f32.gmra.mxu0 %v5973
    %v5998 = vpop.f32.mrf.mxu0
    %v5999 = vadd.f32 0.0, %v5998
    %6000 = vmatmul.f32.gmra.mxu0 %v5974
    %v6001 = vpop.f32.mrf.mxu0
    %v6002 = vadd.f32 0.0, %v6001
    %6003 = vdwg.mxu0
    %s6004 = scalar_lea.vmem %s12, 64
    %v6005 = vld [vmem:[%s6004] sm:$0xff]
    %v6006 = vld [vmem:[%s6004 + $0x8] sm:$0xff]
    %v6007 = vld [vmem:[%s6004 + $0x10] sm:$0xff]
    %v6008 = vld [vmem:[%s6004 + $0x18] sm:$0xff]
    %6009 = vmatpush.msra.mxu0 %v5936
    %6010 = vmatpush.msra.mxu0 %v5935
    %6011 = vmatpush.msra.mxu0 %v5934
    %6012 = vmatpush.msra.mxu0 %v5933
    %6013 = vmatpush.msra.mxu0 %v5932
    %6014 = vmatpush.msra.mxu0 %v5931
    %6015 = vmatpush.msra.mxu0 %v5930
    %6016 = vmatpush.msra.mxu0 %v5929
    %6017 = vmatpush.msra.mxu0 %v5928
    %6018 = vmatpush.msra.mxu0 %v5927
    %6019 = vmatpush.msra.mxu0 %v5926
    %6020 = vmatpush.msra.mxu0 %v5925
    %6021 = vmatpush.msra.mxu0 %v5924
    %6022 = vmatpush.msra.mxu0 %v5923
    %6023 = vmatpush.msra.mxu0 %v5922
    %6024 = vmatpush.msra.mxu0 %v5921
    %6025 = vmatmul.f32.gmra.mxu0 %v6005
    %v6026 = vpop.f32.mrf.mxu0
    %v6027 = vadd.f32 0.0, %v6026
    %6028 = vmatmul.f32.gmra.mxu0 %v6006
    %v6029 = vpop.f32.mrf.mxu0
    %v6030 = vadd.f32 0.0, %v6029
    %6031 = vmatmul.f32.gmra.mxu0 %v6007
    %v6032 = vpop.f32.mrf.mxu0
    %v6033 = vadd.f32 0.0, %v6032
    %6034 = vmatmul.f32.gmra.mxu0 %v6008
    %v6035 = vpop.f32.mrf.mxu0
    %v6036 = vadd.f32 0.0, %v6035
    %6037 = vdwg.mxu0
    %s6038 = scalar_lea.vmem %s12, 96
    %v6039 = vld [vmem:[%s6038] sm:$0xff]
    %v6040 = vld [vmem:[%s6038 + $0x8] sm:$0xff]
    %v6041 = vld [vmem:[%s6038 + $0x10] sm:$0xff]
    %v6042 = vld [vmem:[%s6038 + $0x18] sm:$0xff]
    %6043 = vmatpush.msra.mxu0 %v5936
    %6044 = vmatpush.msra.mxu0 %v5935
    %6045 = vmatpush.msra.mxu0 %v5934
    %6046 = vmatpush.msra.mxu0 %v5933
    %6047 = vmatpush.msra.mxu0 %v5932
    %6048 = vmatpush.msra.mxu0 %v5931
    %6049 = vmatpush.msra.mxu0 %v5930
    %6050 = vmatpush.msra.mxu0 %v5929
    %6051 = vmatpush.msra.mxu0 %v5928
    %6052 = vmatpush.msra.mxu0 %v5927
    %6053 = vmatpush.msra.mxu0 %v5926
    %6054 = vmatpush.msra.mxu0 %v5925
    %6055 = vmatpush.msra.mxu0 %v5924
    %6056 = vmatpush.msra.mxu0 %v5923
    %6057 = vmatpush.msra.mxu0 %v5922
    %6058 = vmatpush.msra.mxu0 %v5921
    %6059 = vmatmul.f32.gmra.mxu0 %v6039
    %v6060 = vpop.f32.mrf.mxu0
    %v6061 = vadd.f32 0.0, %v6060
    %6062 = vmatmul.f32.gmra.mxu0 %v6040
    %v6063 = vpop.f32.mrf.mxu0
    %v6064 = vadd.f32 0.0, %v6063
    %6065 = vmatmul.f32.gmra.mxu0 %v6041
    %v6066 = vpop.f32.mrf.mxu0
    %v6067 = vadd.f32 0.0, %v6066
    %6068 = vmatmul.f32.gmra.mxu0 %v6042
    %v6069 = vpop.f32.mrf.mxu0
    %v6070 = vadd.f32 0.0, %v6069
    %6071 = vdwg.mxu0
    %v6072 = vsel %vm351, %v5959, 0.0
    %6073 = vadd.xlane.f32.xlu0 %v6072
    %v6074 = vpop.xlane.xlu0 %6073
    %v6075 = vsel %vm351, %v5962, 0.0
    %6076 = vadd.xlane.f32.xlu0 %v6075
    %v6077 = vpop.xlane.xlu0 %6076
    %v6078 = vsel %vm351, %v5965, 0.0
    %6079 = vadd.xlane.f32.xlu0 %v6078
    %v6080 = vpop.xlane.xlu0 %6079
    %v6081 = vsel %vm351, %v5968, 0.0
    %6082 = vadd.xlane.f32.xlu0 %v6081
    %v6083 = vpop.xlane.xlu0 %6082
    %v6084 = vadd.f32 %v6074, 0.0
    %v6085 = vadd.f32 %v6077, 0.0
    %v6086 = vadd.f32 %v6080, 0.0
    %v6087 = vadd.f32 %v6083, 0.0
    %v6088 = vsel %vm351, %v5993, 0.0
    %6089 = vadd.xlane.f32.xlu0 %v6088
    %v6090 = vpop.xlane.xlu0 %6089
    %v6091 = vsel %vm351, %v5996, 0.0
    %6092 = vadd.xlane.f32.xlu0 %v6091
    %v6093 = vpop.xlane.xlu0 %6092
    %v6094 = vsel %vm351, %v5999, 0.0
    %6095 = vadd.xlane.f32.xlu0 %v6094
    %v6096 = vpop.xlane.xlu0 %6095
    %v6097 = vsel %vm351, %v6002, 0.0
    %6098 = vadd.xlane.f32.xlu0 %v6097
    %v6099 = vpop.xlane.xlu0 %6098
    %v6100 = vadd.f32 %v6084, %v6090
    %v6101 = vadd.f32 %v6085, %v6093
    %v6102 = vadd.f32 %v6086, %v6096
    %v6103 = vadd.f32 %v6087, %v6099
    %v6104 = vsel %vm351, %v6027, 0.0
    %6105 = vadd.xlane.f32.xlu0 %v6104
    %v6106 = vpop.xlane.xlu0 %6105
    %v6107 = vsel %vm351, %v6030, 0.0
    %6108 = vadd.xlane.f32.xlu0 %v6107
    %v6109 = vpop.xlane.xlu0 %6108
    %v6110 = vsel %vm351, %v6033, 0.0
    %6111 = vadd.xlane.f32.xlu0 %v6110
    %v6112 = vpop.xlane.xlu0 %6111
    %v6113 = vsel %vm351, %v6036, 0.0
    %6114 = vadd.xlane.f32.xlu0 %v6113
    %v6115 = vpop.xlane.xlu0 %6114
    %v6116 = vadd.f32 %v6100, %v6106
    %v6117 = vadd.f32 %v6101, %v6109
    %v6118 = vadd.f32 %v6102, %v6112
    %v6119 = vadd.f32 %v6103, %v6115
    %v6120 = vsel %vm351, %v6061, 0.0
    %6121 = vadd.xlane.f32.xlu0 %v6120
    %v6122 = vpop.xlane.xlu0 %6121
    %v6123 = vsel %vm351, %v6064, 0.0
    %6124 = vadd.xlane.f32.xlu0 %v6123
    %v6125 = vpop.xlane.xlu0 %6124
    %v6126 = vsel %vm351, %v6067, 0.0
    %6127 = vadd.xlane.f32.xlu0 %v6126
    %v6128 = vpop.xlane.xlu0 %6127
    %v6129 = vsel %vm351, %v6070, 0.0
    %6130 = vadd.xlane.f32.xlu0 %v6129
    %v6131 = vpop.xlane.xlu0 %6130
    %v6132 = vadd.f32 %v6116, %v6122
    %v6133 = vadd.f32 %v6117, %v6125
    %v6134 = vadd.f32 %v6118, %v6128
    %v6135 = vadd.f32 %v6119, %v6131
    %v6136 = vmul.f32 %v6132, 0.0078125
    %v6137 = vmul.f32 %v6133, 0.0078125
    %v6138 = vmul.f32 %v6134, 0.0078125
    %v6139 = vmul.f32 %v6135, 0.0078125
    %v6140 = vsub.f32 %v5959, %v6136
    %v6141 = vsub.f32 %v5962, %v6137
    %v6142 = vsub.f32 %v5965, %v6138
    %v6143 = vsub.f32 %v5968, %v6139
    %v6144 = vmul.f32 %v6140, %v6140
    %v6145 = vmul.f32 %v6141, %v6141
    %v6146 = vmul.f32 %v6142, %v6142
    %v6147 = vmul.f32 %v6143, %v6143
    %v6148 = vsel %vm351, %v6144, 0.0
    %6149 = vadd.xlane.f32.xlu0 %v6148
    %v6150 = vpop.xlane.xlu0 %6149
    %v6151 = vsel %vm351, %v6145, 0.0
    %6152 = vadd.xlane.f32.xlu0 %v6151
    %v6153 = vpop.xlane.xlu0 %6152
    %v6154 = vsel %vm351, %v6146, 0.0
    %6155 = vadd.xlane.f32.xlu0 %v6154
    %v6156 = vpop.xlane.xlu0 %6155
    %v6157 = vsel %vm351, %v6147, 0.0
    %6158 = vadd.xlane.f32.xlu0 %v6157
    %v6159 = vpop.xlane.xlu0 %6158
    %v6160 = vadd.f32 %v6150, 0.0
    %v6161 = vadd.f32 %v6153, 0.0
    %v6162 = vadd.f32 %v6156, 0.0
    %v6163 = vadd.f32 %v6159, 0.0
    %v6164 = vsub.f32 %v5993, %v6136
    %v6165 = vsub.f32 %v5996, %v6137
    %v6166 = vsub.f32 %v5999, %v6138
    %v6167 = vsub.f32 %v6002, %v6139
    %v6168 = vmul.f32 %v6164, %v6164
    %v6169 = vmul.f32 %v6165, %v6165
    %v6170 = vmul.f32 %v6166, %v6166
    %v6171 = vmul.f32 %v6167, %v6167
    %v6172 = vsel %vm351, %v6168, 0.0
    %6173 = vadd.xlane.f32.xlu0 %v6172
    %v6174 = vpop.xlane.xlu0 %6173
    %v6175 = vsel %vm351, %v6169, 0.0
    %6176 = vadd.xlane.f32.xlu0 %v6175
    %v6177 = vpop.xlane.xlu0 %6176
    %v6178 = vsel %vm351, %v6170, 0.0
    %6179 = vadd.xlane.f32.xlu0 %v6178
    %v6180 = vpop.xlane.xlu0 %6179
    %v6181 = vsel %vm351, %v6171, 0.0
    %6182 = vadd.xlane.f32.xlu0 %v6181
    %v6183 = vpop.xlane.xlu0 %6182
    %v6184 = vadd.f32 %v6160, %v6174
    %v6185 = vadd.f32 %v6161, %v6177
    %v6186 = vadd.f32 %v6162, %v6180
    %v6187 = vadd.f32 %v6163, %v6183
    %v6188 = vsub.f32 %v6027, %v6136
    %v6189 = vsub.f32 %v6030, %v6137
    %v6190 = vsub.f32 %v6033, %v6138
    %v6191 = vsub.f32 %v6036, %v6139
    %v6192 = vmul.f32 %v6188, %v6188
    %v6193 = vmul.f32 %v6189, %v6189
    %v6194 = vmul.f32 %v6190, %v6190
    %v6195 = vmul.f32 %v6191, %v6191
    %v6196 = vsel %vm351, %v6192, 0.0
    %6197 = vadd.xlane.f32.xlu0 %v6196
    %v6198 = vpop.xlane.xlu0 %6197
    %v6199 = vsel %vm351, %v6193, 0.0
    %6200 = vadd.xlane.f32.xlu0 %v6199
    %v6201 = vpop.xlane.xlu0 %6200
    %v6202 = vsel %vm351, %v6194, 0.0
    %6203 = vadd.xlane.f32.xlu0 %v6202
    %v6204 = vpop.xlane.xlu0 %6203
    %v6205 = vsel %vm351, %v6195, 0.0
    %6206 = vadd.xlane.f32.xlu0 %v6205
    %v6207 = vpop.xlane.xlu0 %6206
    %v6208 = vadd.f32 %v6184, %v6198
    %v6209 = vadd.f32 %v6185, %v6201
    %v6210 = vadd.f32 %v6186, %v6204
    %v6211 = vadd.f32 %v6187, %v6207
    %v6212 = vsub.f32 %v6061, %v6136
    %v6213 = vsub.f32 %v6064, %v6137
    %v6214 = vsub.f32 %v6067, %v6138
    %v6215 = vsub.f32 %v6070, %v6139
    %v6216 = vmul.f32 %v6212, %v6212
    %v6217 = vmul.f32 %v6213, %v6213
    %v6218 = vmul.f32 %v6214, %v6214
    %v6219 = vmul.f32 %v6215, %v6215
    %v6220 = vsel %vm351, %v6216, 0.0
    %6221 = vadd.xlane.f32.xlu0 %v6220
    %v6222 = vpop.xlane.xlu0 %6221
    %v6223 = vsel %vm351, %v6217, 0.0
    %6224 = vadd.xlane.f32.xlu0 %v6223
    %v6225 = vpop.xlane.xlu0 %6224
    %v6226 = vsel %vm351, %v6218, 0.0
    %6227 = vadd.xlane.f32.xlu0 %v6226
    %v6228 = vpop.xlane.xlu0 %6227
    %v6229 = vsel %vm351, %v6219, 0.0
    %6230 = vadd.xlane.f32.xlu0 %v6229
    %v6231 = vpop.xlane.xlu0 %6230
    %v6232 = vadd.f32 %v6208, %v6222
    %v6233 = vadd.f32 %v6209, %v6225
    %v6234 = vadd.f32 %v6210, %v6228
    %v6235 = vadd.f32 %v6211, %v6231
    %v6236 = vmul.f32 %v6232, 0.0078125
    %v6237 = vmul.f32 %v6233, 0.0078125
    %v6238 = vmul.f32 %v6234, 0.0078125
    %v6239 = vmul.f32 %v6235, 0.0078125
    %v6240 = vadd.f32 %v6236, 1e-05
    %v6241 = vadd.f32 %v6237, 1e-05
    %v6242 = vadd.f32 %v6238, 1e-05
    %v6243 = vadd.f32 %v6239, 1e-05
    %v6244 = vrsqrt.pop %v6240
    %v6245 = vmul.f32 %v6244, %v6240
    %v6246 = vmul.f32 %v6245, %v6244
    %v6247 = vmul.f32 0.5, %v6246
    %v6248 = vsub.f32 1.5, %v6247
    %v6249 = vmul.f32 %v6244, %v6248
    %vm6250 = vweird.f32 %v6240
    %vm6251 = vweird.f32 %v6244
    %vm6252 = vmor %vm6250, %vm6251
    %v6253 = vsel %vm6252, %v6244, %v6249
    %v6254 = vrsqrt.pop %v6241
    %v6255 = vmul.f32 %v6254, %v6241
    %v6256 = vmul.f32 %v6255, %v6254
    %v6257 = vmul.f32 0.5, %v6256
    %v6258 = vsub.f32 1.5, %v6257
    %v6259 = vmul.f32 %v6254, %v6258
    %vm6260 = vweird.f32 %v6241
    %vm6261 = vweird.f32 %v6254
    %vm6262 = vmor %vm6260, %vm6261
    %v6263 = vsel %vm6262, %v6254, %v6259
    %v6264 = vrsqrt.pop %v6242
    %v6265 = vmul.f32 %v6264, %v6242
    %v6266 = vmul.f32 %v6265, %v6264
    %v6267 = vmul.f32 0.5, %v6266
    %v6268 = vsub.f32 1.5, %v6267
    %v6269 = vmul.f32 %v6264, %v6268
    %vm6270 = vweird.f32 %v6242
    %vm6271 = vweird.f32 %v6264
    %vm6272 = vmor %vm6270, %vm6271
    %v6273 = vsel %vm6272, %v6264, %v6269
    %v6274 = vrsqrt.pop %v6243
    %v6275 = vmul.f32 %v6274, %v6243
    %v6276 = vmul.f32 %v6275, %v6274
    %v6277 = vmul.f32 0.5, %v6276
    %v6278 = vsub.f32 1.5, %v6277
    %v6279 = vmul.f32 %v6274, %v6278
    %vm6280 = vweird.f32 %v6243
    %vm6281 = vweird.f32 %v6274
    %vm6282 = vmor %vm6280, %vm6281
    %v6283 = vsel %vm6282, %v6274, %v6279
    %v6284 = vmul.f32 %v6140, %v6253
    %v6285 = vmul.f32 %v6141, %v6263
    %v6286 = vmul.f32 %v6142, %v6273
    %v6287 = vmul.f32 %v6143, %v6283
    %v6288 = vld [vmem:[#allocation5 + $0xf] sm:$0x1]
    %v6289 = vperm.slane %v6288, 0
    %v6290 = vmul.f32 %v6284, %v6289
    %v6291 = vmul.f32 %v6285, %v6289
    %v6292 = vmul.f32 %v6286, %v6289
    %v6293 = vmul.f32 %v6287, %v6289
    %v6294 = vld [vmem:[#allocation5 + $0x13] sm:$0x1]
    %v6295 = vperm.slane %v6294, 0
    %v6296 = vadd.f32 %v6290, %v6295
    %v6297 = vadd.f32 %v6291, %v6295
    %v6298 = vadd.f32 %v6292, %v6295
    %v6299 = vadd.f32 %v6293, %v6295
    %v6300 = vld [vmem:[#allocation14] sm:$0xf]
    %v6301 = vld [vmem:[#allocation14 + $0x4] sm:$0xf]
    %v6302 = vld [vmem:[#allocation14 + $0x8] sm:$0xf]
    %v6303 = vld [vmem:[#allocation14 + $0xc] sm:$0xf]
    %v6304 = vpack.c.bf16 %v6297, %v6296
    %v6305 = vpack.c.bf16 %v6299, %v6298
    %v6306 = vmul.f32 %v6164, %v6253
    %v6307 = vmul.f32 %v6165, %v6263
    %v6308 = vmul.f32 %v6166, %v6273
    %v6309 = vmul.f32 %v6167, %v6283
    %v6310 = vld [vmem:[#allocation5 + $0x10] sm:$0x1]
    %v6311 = vperm.slane %v6310, 0
    %v6312 = vmul.f32 %v6306, %v6311
    %v6313 = vmul.f32 %v6307, %v6311
    %v6314 = vmul.f32 %v6308, %v6311
    %v6315 = vmul.f32 %v6309, %v6311
    %v6316 = vld [vmem:[#allocation5 + $0x14] sm:$0x1]
    %v6317 = vperm.slane %v6316, 0
    %v6318 = vadd.f32 %v6312, %v6317
    %v6319 = vadd.f32 %v6313, %v6317
    %v6320 = vadd.f32 %v6314, %v6317
    %v6321 = vadd.f32 %v6315, %v6317
    %s6322 = scalar_lea.vmem [#allocation14], 16
    %v6323 = vld [vmem:[%s6322] sm:$0xf]
    %v6324 = vld [vmem:[%s6322 + $0x4] sm:$0xf]
    %v6325 = vld [vmem:[%s6322 + $0x8] sm:$0xf]
    %v6326 = vld [vmem:[%s6322 + $0xc] sm:$0xf]
    %v6327 = vpack.c.bf16 %v6319, %v6318
    %v6328 = vpack.c.bf16 %v6321, %v6320
    %v6333 = vunpack.c.l.b16 %v6323
    %v6334 = vunpack.c.l.b16 %v6324
    %v6335 = vunpack.c.l.b16 %v6325
    %v6336 = vunpack.c.l.b16 %v6326
    %v6337 = vpack.c.b16 %v6334, %v6333
    %v6338 = vpack.c.b16 %v6336, %v6335
    %v6342 = vsel %vm351, %v6327, 0
    %v6345 = vsel %vm351, %v6328, 0
    %6347 = vmatpush.bf16.msra.mxu0 0
    %6348 = vmatpush.bf16.msra.mxu0 0
    %6349 = vmatpush.bf16.msra.mxu0 0
    %6350 = vmatpush.bf16.msra.mxu0 0
    %6351 = vmatpush.bf16.msra.mxu0 0
    %6352 = vmatpush.bf16.msra.mxu0 0
    %6353 = vmatpush.bf16.msra.mxu0 %v6338
    %6354 = vmatpush.bf16.msra.mxu0 %v6337
    %6355 = vmatmul.bf16.gmra.mxu0 %v6342
    %v6356 = vpop.f32.mrf.mxu0
    %v6357 = vadd.f32 0.0, %v6356
    %v6358 = vpop.f32.mrf.mxu0
    %v6359 = vadd.f32 0.0, %v6358
    %6360 = vmatmul.bf16.gmra.mxu0 %v6345
    %v6361 = vpop.f32.mrf.mxu0
    %v6362 = vadd.f32 0.0, %v6361
    %v6363 = vpop.f32.mrf.mxu0
    %v6364 = vadd.f32 0.0, %v6363
    %6365 = vdwg.mxu0
    %v6370 = vunpack.c.l.b16 %v6300
    %v6371 = vunpack.c.l.b16 %v6301
    %v6372 = vunpack.c.l.b16 %v6302
    %v6373 = vunpack.c.l.b16 %v6303
    %v6374 = vpack.c.b16 %v6371, %v6370
    %v6375 = vpack.c.b16 %v6373, %v6372
    %v6379 = vsel %vm351, %v6304, 0
    %v6382 = vsel %vm351, %v6305, 0
    %6384 = vmatpush.bf16.msra.mxu0 0
    %6385 = vmatpush.bf16.msra.mxu0 0
    %6386 = vmatpush.bf16.msra.mxu0 0
    %6387 = vmatpush.bf16.msra.mxu0 0
    %6388 = vmatpush.bf16.msra.mxu0 0
    %6389 = vmatpush.bf16.msra.mxu0 0
    %6390 = vmatpush.bf16.msra.mxu0 %v6375
    %6391 = vmatpush.bf16.msra.mxu0 %v6374
    %6392 = vmatmul.bf16.gmra.mxu0 %v6379
    %v6393 = vpop.f32.mrf.mxu0
    %v6394 = vadd.f32 %v6357, %v6393
    %v6395 = vpop.f32.mrf.mxu0
    %v6396 = vadd.f32 %v6359, %v6395
    %6397 = vmatmul.bf16.gmra.mxu0 %v6382
    %v6398 = vpop.f32.mrf.mxu0
    %v6399 = vadd.f32 %v6362, %v6398
    %v6400 = vpop.f32.mrf.mxu0
    %v6401 = vadd.f32 %v6364, %v6400
    %6402 = vdwg.mxu0
    %v6403 = vmul.f32 %v6188, %v6253
    %v6404 = vmul.f32 %v6189, %v6263
    %v6405 = vmul.f32 %v6190, %v6273
    %v6406 = vmul.f32 %v6191, %v6283
    %v6407 = vld [vmem:[#allocation5 + $0x11] sm:$0x1]
    %v6408 = vperm.slane %v6407, 0
    %v6409 = vmul.f32 %v6403, %v6408
    %v6410 = vmul.f32 %v6404, %v6408
    %v6411 = vmul.f32 %v6405, %v6408
    %v6412 = vmul.f32 %v6406, %v6408
    %v6413 = vld [vmem:[#allocation5 + $0x15] sm:$0x1]
    %v6414 = vperm.slane %v6413, 0
    %v6415 = vadd.f32 %v6409, %v6414
    %v6416 = vadd.f32 %v6410, %v6414
    %v6417 = vadd.f32 %v6411, %v6414
    %v6418 = vadd.f32 %v6412, %v6414
    %s6419 = scalar_lea.vmem [#allocation14], 32
    %v6420 = vld [vmem:[%s6419] sm:$0xf]
    %v6421 = vld [vmem:[%s6419 + $0x4] sm:$0xf]
    %v6422 = vld [vmem:[%s6419 + $0x8] sm:$0xf]
    %v6423 = vld [vmem:[%s6419 + $0xc] sm:$0xf]
    %v6424 = vpack.c.bf16 %v6416, %v6415
    %v6425 = vpack.c.bf16 %v6418, %v6417
    %v6430 = vunpack.c.l.b16 %v6420
    %v6431 = vunpack.c.l.b16 %v6421
    %v6432 = vunpack.c.l.b16 %v6422
    %v6433 = vunpack.c.l.b16 %v6423
    %v6434 = vpack.c.b16 %v6431, %v6430
    %v6435 = vpack.c.b16 %v6433, %v6432
    %v6439 = vsel %vm351, %v6424, 0
    %v6442 = vsel %vm351, %v6425, 0
    %6444 = vmatpush.bf16.msra.mxu0 0
    %6445 = vmatpush.bf16.msra.mxu0 0
    %6446 = vmatpush.bf16.msra.mxu0 0
    %6447 = vmatpush.bf16.msra.mxu0 0
    %6448 = vmatpush.bf16.msra.mxu0 0
    %6449 = vmatpush.bf16.msra.mxu0 0
    %6450 = vmatpush.bf16.msra.mxu0 %v6435
    %6451 = vmatpush.bf16.msra.mxu0 %v6434
    %6452 = vmatmul.bf16.gmra.mxu0 %v6439
    %v6453 = vpop.f32.mrf.mxu0
    %v6454 = vadd.f32 0.0, %v6453
    %v6455 = vpop.f32.mrf.mxu0
    %v6456 = vadd.f32 0.0, %v6455
    %6457 = vmatmul.bf16.gmra.mxu0 %v6442
    %v6458 = vpop.f32.mrf.mxu0
    %v6459 = vadd.f32 0.0, %v6458
    %v6460 = vpop.f32.mrf.mxu0
    %v6461 = vadd.f32 0.0, %v6460
    %6462 = vdwg.mxu0
    %v6463 = vadd.f32 %v6394, %v6454
    %v6464 = vadd.f32 %v6396, %v6456
    %v6465 = vadd.f32 %v6399, %v6459
    %v6466 = vadd.f32 %v6401, %v6461
    %v6467 = vmul.f32 %v6212, %v6253
    %v6468 = vmul.f32 %v6213, %v6263
    %v6469 = vmul.f32 %v6214, %v6273
    %v6470 = vmul.f32 %v6215, %v6283
    %v6471 = vld [vmem:[#allocation5 + $0x12] sm:$0x1]
    %v6472 = vperm.slane %v6471, 0
    %v6473 = vmul.f32 %v6467, %v6472
    %v6474 = vmul.f32 %v6468, %v6472
    %v6475 = vmul.f32 %v6469, %v6472
    %v6476 = vmul.f32 %v6470, %v6472
    %v6477 = vld [vmem:[#allocation5 + $0x16] sm:$0x1]
    %v6478 = vperm.slane %v6477, 0
    %v6479 = vadd.f32 %v6473, %v6478
    %v6480 = vadd.f32 %v6474, %v6478
    %v6481 = vadd.f32 %v6475, %v6478
    %v6482 = vadd.f32 %v6476, %v6478
    %s6483 = scalar_lea.vmem [#allocation14], 48
    %v6484 = vld [vmem:[%s6483] sm:$0xf]
    %v6485 = vld [vmem:[%s6483 + $0x4] sm:$0xf]
    %v6486 = vld [vmem:[%s6483 + $0x8] sm:$0xf]
    %v6487 = vld [vmem:[%s6483 + $0xc] sm:$0xf]
    %v6488 = vpack.c.bf16 %v6480, %v6479
    %v6489 = vpack.c.bf16 %v6482, %v6481
    %v6494 = vunpack.c.l.b16 %v6484
    %v6495 = vunpack.c.l.b16 %v6485
    %v6496 = vunpack.c.l.b16 %v6486
    %v6497 = vunpack.c.l.b16 %v6487
    %v6498 = vpack.c.b16 %v6495, %v6494
    %v6499 = vpack.c.b16 %v6497, %v6496
    %v6503 = vsel %vm351, %v6488, 0
    %v6506 = vsel %vm351, %v6489, 0
    %6508 = vmatpush.bf16.msra.mxu0 0
    %6509 = vmatpush.bf16.msra.mxu0 0
    %6510 = vmatpush.bf16.msra.mxu0 0
    %6511 = vmatpush.bf16.msra.mxu0 0
    %6512 = vmatpush.bf16.msra.mxu0 0
    %6513 = vmatpush.bf16.msra.mxu0 0
    %6514 = vmatpush.bf16.msra.mxu0 %v6499
    %6515 = vmatpush.bf16.msra.mxu0 %v6498
    %6516 = vmatmul.bf16.gmra.mxu0 %v6503
    %v6517 = vpop.f32.mrf.mxu0
    %v6518 = vadd.f32 0.0, %v6517
    %v6519 = vpop.f32.mrf.mxu0
    %v6520 = vadd.f32 0.0, %v6519
    %6521 = vmatmul.bf16.gmra.mxu0 %v6506
    %v6522 = vpop.f32.mrf.mxu0
    %v6523 = vadd.f32 0.0, %v6522
    %v6524 = vpop.f32.mrf.mxu0
    %v6525 = vadd.f32 0.0, %v6524
    %6526 = vdwg.mxu0
    %v6527 = vadd.f32 %v6463, %v6518
    %v6528 = vadd.f32 %v6464, %v6520
    %v6529 = vadd.f32 %v6465, %v6523
    %v6530 = vadd.f32 %v6466, %v6525
    %v6531 = vld [vmem:[%s3] sm:$0x1]
    %v6532 = vld [vmem:[%s3 + $0x1] sm:$0x1]
    %v6533 = vld [vmem:[%s3 + $0x2] sm:$0x1]
    %v6534 = vld [vmem:[%s3 + $0x3] sm:$0x1]
    %v6535 = vld [vmem:[%s3 + $0x4] sm:$0x1]
    %v6536 = vld [vmem:[%s3 + $0x5] sm:$0x1]
    %v6537 = vld [vmem:[#allocation8] ss:$2 sm:$0x3]
    %vm6538 = vcmask 523264
    %v6539 = vsel %vm6538, %v6527, 0.0
    %6540 = vadd.xlane.f32.xlu0 %v6539
    %v6541 = vpop.xlane.xlu0 %6540
    %v6542 = vsel %vm6538, %v6528, 0.0
    %6543 = vadd.xlane.f32.xlu0 %v6542
    %v6544 = vpop.xlane.xlu0 %6543
    %v6545 = vsel %vm6538, %v6529, 0.0
    %6546 = vadd.xlane.f32.xlu0 %v6545
    %v6547 = vpop.xlane.xlu0 %6546
    %v6548 = vsel %vm6538, %v6530, 0.0
    %6549 = vadd.xlane.f32.xlu0 %v6548
    %v6550 = vpop.xlane.xlu0 %6549
    %v6551 = vrcp.pop 64.0
    %v6552 = vmul.f32 64.0, %v6551
    %v6553 = vsub.f32 1.0, %v6552
    %v6554 = vmul.f32 %v6551, %v6553
    %v6555 = vadd.f32 %v6551, %v6554
    %vm6556 = vweird.f32 %v6551
    %v6557 = vsel %vm6556, %v6551, %v6555
    %v6558 = vmul.f32 %v6541, %v6557
    %v6559 = vmul.f32 %v6544, %v6557
    %v6560 = vmul.f32 %v6547, %v6557
    %v6561 = vmul.f32 %v6550, %v6557
    %v6562 = vsub.f32 %v6527, %v6558
    %v6563 = vsub.f32 %v6528, %v6559
    %v6564 = vsub.f32 %v6529, %v6560
    %v6565 = vsub.f32 %v6530, %v6561
    %v6566 = vmul.f32 %v6562, %v6562
    %v6567 = vmul.f32 %v6563, %v6563
    %v6568 = vmul.f32 %v6564, %v6564
    %v6569 = vmul.f32 %v6565, %v6565
    %v6570 = vsel %vm6538, %v6566, 0.0
    %6571 = vadd.xlane.f32.xlu0 %v6570
    %v6572 = vpop.xlane.xlu0 %6571
    %v6573 = vsel %vm6538, %v6567, 0.0
    %6574 = vadd.xlane.f32.xlu0 %v6573
    %v6575 = vpop.xlane.xlu0 %6574
    %v6576 = vsel %vm6538, %v6568, 0.0
    %6577 = vadd.xlane.f32.xlu0 %v6576
    %v6578 = vpop.xlane.xlu0 %6577
    %v6579 = vsel %vm6538, %v6569, 0.0
    %6580 = vadd.xlane.f32.xlu0 %v6579
    %v6581 = vpop.xlane.xlu0 %6580
    %v6582 = vmul.f32 %v6572, %v6557
    %v6583 = vmul.f32 %v6575, %v6557
    %v6584 = vmul.f32 %v6578, %v6557
    %v6585 = vmul.f32 %v6581, %v6557
    %v6586 = vadd.f32 %v6582, 1e-05
    %v6587 = vadd.f32 %v6583, 1e-05
    %v6588 = vadd.f32 %v6584, 1e-05
    %v6589 = vadd.f32 %v6585, 1e-05
    %v6590 = vrsqrt.pop %v6586
    %v6591 = vmul.f32 %v6590, %v6586
    %v6592 = vmul.f32 %v6591, %v6590
    %v6593 = vmul.f32 0.5, %v6592
    %v6594 = vsub.f32 1.5, %v6593
    %v6595 = vmul.f32 %v6590, %v6594
    %vm6596 = vweird.f32 %v6586
    %vm6597 = vweird.f32 %v6590
    %vm6598 = vmor %vm6596, %vm6597
    %v6599 = vsel %vm6598, %v6590, %v6595
    %v6600 = vrsqrt.pop %v6587
    %v6601 = vmul.f32 %v6600, %v6587
    %v6602 = vmul.f32 %v6601, %v6600
    %v6603 = vmul.f32 0.5, %v6602
    %v6604 = vsub.f32 1.5, %v6603
    %v6605 = vmul.f32 %v6600, %v6604
    %vm6606 = vweird.f32 %v6587
    %vm6607 = vweird.f32 %v6600
    %vm6608 = vmor %vm6606, %vm6607
    %v6609 = vsel %vm6608, %v6600, %v6605
    %v6610 = vrsqrt.pop %v6588
    %v6611 = vmul.f32 %v6610, %v6588
    %v6612 = vmul.f32 %v6611, %v6610
    %v6613 = vmul.f32 0.5, %v6612
    %v6614 = vsub.f32 1.5, %v6613
    %v6615 = vmul.f32 %v6610, %v6614
    %vm6616 = vweird.f32 %v6588
    %vm6617 = vweird.f32 %v6610
    %vm6618 = vmor %vm6616, %vm6617
    %v6619 = vsel %vm6618, %v6610, %v6615
    %v6620 = vrsqrt.pop %v6589
    %v6621 = vmul.f32 %v6620, %v6589
    %v6622 = vmul.f32 %v6621, %v6620
    %v6623 = vmul.f32 0.5, %v6622
    %v6624 = vsub.f32 1.5, %v6623
    %v6625 = vmul.f32 %v6620, %v6624
    %vm6626 = vweird.f32 %v6589
    %vm6627 = vweird.f32 %v6620
    %vm6628 = vmor %vm6626, %vm6627
    %v6629 = vsel %vm6628, %v6620, %v6625
    %v6630 = vmul.f32 %v6562, %v6599
    %v6631 = vmul.f32 %v6563, %v6609
    %v6632 = vmul.f32 %v6564, %v6619
    %v6633 = vmul.f32 %v6565, %v6629
    %v6634 = vperm.slane %v6531, 0
    %v6635 = vmul.f32 %v6630, %v6634
    %v6636 = vmul.f32 %v6631, %v6634
    %v6637 = vmul.f32 %v6632, %v6634
    %v6638 = vmul.f32 %v6633, %v6634
    %v6639 = vperm.slane %v6532, 0
    %v6640 = vadd.f32 %v6635, %v6639
    %v6641 = vadd.f32 %v6636, %v6639
    %v6642 = vadd.f32 %v6637, %v6639
    %v6643 = vadd.f32 %v6638, %v6639
    %v6644 = vld [vmem:[%s14] sm:$0xff]
    %v6645 = vld [vmem:[%s14 + $0x8] sm:$0xff]
    %v6646 = vld [vmem:[%s14 + $0x10] sm:$0xff]
    %v6647 = vld [vmem:[%s14 + $0x18] sm:$0xff]
    %v6648 = vld [vmem:[%s14 + $0x20] sm:$0xff]
    %v6649 = vld [vmem:[%s14 + $0x28] sm:$0xff]
    %v6650 = vld [vmem:[%s14 + $0x30] sm:$0xff]
    %v6651 = vld [vmem:[%s14 + $0x38] sm:$0xff]
    %v6652 = vpack.c.bf16 %v6641, %v6640
    %v6653 = vpack.c.bf16 %v6643, %v6642
    %v6654 = vld [vmem:[%s15] ss:$2 sm:$0x3]
    %v6656 = vperm.slane %v6654, 0
    %v6657 = vperm.slane %v6654, 1
    %v6668 = vunpack.c.l.b16 %v6644
    %v6669 = vunpack.c.h.b16 %v6644
    %v6670 = vunpack.c.l.b16 %v6645
    %v6671 = vunpack.c.h.b16 %v6645
    %v6672 = vunpack.c.l.b16 %v6646
    %v6673 = vunpack.c.h.b16 %v6646
    %v6674 = vunpack.c.l.b16 %v6647
    %v6675 = vunpack.c.h.b16 %v6647
    %v6676 = vunpack.c.l.b16 %v6648
    %v6677 = vunpack.c.h.b16 %v6648
    %v6678 = vunpack.c.l.b16 %v6649
    %v6679 = vunpack.c.h.b16 %v6649
    %v6680 = vunpack.c.l.b16 %v6650
    %v6681 = vunpack.c.h.b16 %v6650
    %v6682 = vunpack.c.l.b16 %v6651
    %v6683 = vunpack.c.h.b16 %v6651
    %v6684 = vpack.c.b16 %v6670, %v6668
    %v6685 = vpack.c.b16 %v6671, %v6669
    %v6686 = vpack.c.b16 %v6674, %v6672
    %v6687 = vpack.c.b16 %v6675, %v6673
    %v6688 = vpack.c.b16 %v6678, %v6676
    %v6689 = vpack.c.b16 %v6679, %v6677
    %v6690 = vpack.c.b16 %v6682, %v6680
    %v6691 = vpack.c.b16 %v6683, %v6681
    %v6701 = vsel %vm6538, %v6652, 0
    %v6704 = vsel %vm6538, %v6653, 0
    %6706 = vmatpush.bf16.msra.mxu0 0
    %6707 = vmatpush.bf16.msra.mxu0 0
    %6708 = vmatpush.bf16.msra.mxu0 0
    %6709 = vmatpush.bf16.msra.mxu0 0
    %6710 = vmatpush.bf16.msra.mxu0 %v6690
    %6711 = vmatpush.bf16.msra.mxu0 %v6688
    %6712 = vmatpush.bf16.msra.mxu0 %v6686
    %6713 = vmatpush.bf16.msra.mxu0 %v6684
    %6714 = vmatmul.bf16.gmra.mxu0 %v6701
    %v6715 = vpop.f32.mrf.mxu0
    %v6716 = vadd.f32 %v6656, %v6715
    %v6717 = vpop.f32.mrf.mxu0
    %v6718 = vadd.f32 %v6656, %v6717
    %6719 = vmatmul.bf16.gmra.mxu0 %v6704
    %v6720 = vpop.f32.mrf.mxu0
    %v6721 = vadd.f32 %v6656, %v6720
    %v6722 = vpop.f32.mrf.mxu0
    %v6723 = vadd.f32 %v6656, %v6722
    %6724 = vdwg.mxu0
    %6725 = vmatpush.bf16.msra.mxu0 0
    %6726 = vmatpush.bf16.msra.mxu0 0
    %6727 = vmatpush.bf16.msra.mxu0 0
    %6728 = vmatpush.bf16.msra.mxu0 0
    %6729 = vmatpush.bf16.msra.mxu0 %v6691
    %6730 = vmatpush.bf16.msra.mxu0 %v6689
    %6731 = vmatpush.bf16.msra.mxu0 %v6687
    %6732 = vmatpush.bf16.msra.mxu0 %v6685
    %6733 = vmatmul.bf16.gmra.mxu0 %v6701
    %v6734 = vpop.f32.mrf.mxu0
    %v6735 = vadd.f32 %v6657, %v6734
    %v6736 = vpop.f32.mrf.mxu0
    %v6737 = vadd.f32 %v6657, %v6736
    %6738 = vmatmul.bf16.gmra.mxu0 %v6704
    %v6739 = vpop.f32.mrf.mxu0
    %v6740 = vadd.f32 %v6657, %v6739
    %v6741 = vpop.f32.mrf.mxu0
    %v6742 = vadd.f32 %v6657, %v6741
    %6743 = vdwg.mxu0
    %v6744 = vpack.c.bf16 %v6718, %v6716
    %v6745 = vpack.c.bf16 %v6723, %v6721
    %6748 = vrot.lane.b32.xlu0 %v6744, 112
    %v6749 = vpop.permute.xlu0 %6748
    %6750 = vrot.lane.b32.xlu0 %v6745, 112
    %v6751 = vpop.permute.xlu0 %6750
    %v6753 = vsel %vm1269, %v6744, 0
    %v6756 = vsel %vm1269, %v6745, 0
    %v6759 = vsel %vm1269, %v6749, 0
    %v6762 = vsel %vm1269, %v6751, 0
    %6764 = vmatpush.bf16.xpose.msra.mxu0 0
    %6765 = vmatpush.bf16.xpose.msra.mxu0 0
    %6766 = vmatpush.bf16.xpose.msra.mxu0 0
    %6767 = vmatpush.bf16.xpose.msra.mxu0 0
    %6768 = vmatpush.bf16.xpose.msra.mxu0 0
    %6769 = vmatpush.bf16.xpose.msra.mxu0 0
    %6770 = vmatpush.bf16.xpose.msra.mxu0 %v6762
    %6771 = vmatpush.bf16.xpose.msra.mxu0 %v6759
    %6772 = vmatmul.bf16.gmra.mxu0 %v6753
    %v6773 = vpop.f32.mrf.mxu0
    %v6774 = vadd.f32 0.0, %v6773
    %v6775 = vpop.f32.mrf.mxu0
    %v6776 = vadd.f32 0.0, %v6775
    %6777 = vmatmul.bf16.gmra.mxu0 %v6756
    %v6778 = vpop.f32.mrf.mxu0
    %v6779 = vadd.f32 0.0, %v6778
    %v6780 = vpop.f32.mrf.mxu0
    %v6781 = vadd.f32 0.0, %v6780
    %6782 = vdwg.mxu0
    %v6783 = vmul.f32 %v6774, 0.25
    %v6784 = vmul.f32 %v6776, 0.25
    %v6785 = vmul.f32 %v6779, 0.25
    %v6786 = vmul.f32 %v6781, 0.25
    %v6787 = vld [vmem:[%s17] sm:$0xf]
    %v6788 = vld [vmem:[%s17 + $0x4] sm:$0xf]
    %v6789 = vld [vmem:[%s17 + $0x8] sm:$0xf]
    %v6790 = vld [vmem:[%s17 + $0xc] sm:$0xf]
    %v6791 = vunpack.c.l.bf16 %v6787
    %v6792 = vunpack.c.l.bf16 %v6788
    %v6793 = vunpack.c.l.bf16 %v6789
    %v6794 = vunpack.c.l.bf16 %v6790
    %v6795 = vadd.f32 %v6783, %v6791
    %v6796 = vadd.f32 %v6784, %v6792
    %v6797 = vadd.f32 %v6785, %v6793
    %v6798 = vadd.f32 %v6786, %v6794
    %v6799 = vsel %vm351, %v6795, -inf
    %6800 = vmax.xlane.f32.xlu0 %v6799
    %v6801 = vpop.xlane.xlu0 %6800
    %v6802 = vsel %vm351, %v6796, -inf
    %6803 = vmax.xlane.f32.xlu0 %v6802
    %v6804 = vpop.xlane.xlu0 %6803
    %v6805 = vsel %vm351, %v6797, -inf
    %6806 = vmax.xlane.f32.xlu0 %v6805
    %v6807 = vpop.xlane.xlu0 %6806
    %v6808 = vsel %vm351, %v6798, -inf
    %6809 = vmax.xlane.f32.xlu0 %v6808
    %v6810 = vpop.xlane.xlu0 %6809
    %v6811 = vsub.f32 %v6795, %v6801
    %v6812 = vsub.f32 %v6796, %v6804
    %v6813 = vsub.f32 %v6797, %v6807
    %v6814 = vsub.f32 %v6798, %v6810
    %v6815 = vmul.f32 %v6811, 1.442695
    %v6816 = vpow.pop %v6815
    %v6817 = vmul.f32 %v6812, 1.442695
    %v6818 = vpow.pop %v6817
    %v6819 = vmul.f32 %v6813, 1.442695
    %v6820 = vpow.pop %v6819
    %v6821 = vmul.f32 %v6814, 1.442695
    %v6822 = vpow.pop %v6821
    %v6823 = vsel %vm351, %v6816, 0.0
    %6824 = vadd.xlane.f32.xlu0 %v6823
    %v6825 = vpop.xlane.xlu0 %6824
    %v6826 = vsel %vm351, %v6818, 0.0
    %6827 = vadd.xlane.f32.xlu0 %v6826
    %v6828 = vpop.xlane.xlu0 %6827
    %v6829 = vsel %vm351, %v6820, 0.0
    %6830 = vadd.xlane.f32.xlu0 %v6829
    %v6831 = vpop.xlane.xlu0 %6830
    %v6832 = vsel %vm351, %v6822, 0.0
    %6833 = vadd.xlane.f32.xlu0 %v6832
    %v6834 = vpop.xlane.xlu0 %6833
    %v6835 = vrcp.pop %v6825
    %v6836 = vrcp.pop %v6828
    %v6837 = vrcp.pop %v6831
    %v6838 = vrcp.pop %v6834
    %v6839 = vmul.f32 %v6816, %v6835
    %v6840 = vmul.f32 %v6818, %v6836
    %v6841 = vmul.f32 %v6820, %v6837
    %v6842 = vmul.f32 %v6822, %v6838
    %v6843 = vpack.c.bf16 %v6840, %v6839
    %v6844 = vpack.c.bf16 %v6842, %v6841
    %6845 = vrot.lane.b32.xlu0 %v6744, 96
    %v6846 = vpop.permute.xlu0 %6845
    %6847 = vrot.lane.b32.xlu0 %v6745, 96
    %v6848 = vpop.permute.xlu0 %6847
    %v6852 = vsel %vm351, %v6843, 0
    %v6855 = vsel %vm351, %v6844, 0
    %6857 = vmatpush.bf16.msra.mxu0 0
    %6858 = vmatpush.bf16.msra.mxu0 0
    %6859 = vmatpush.bf16.msra.mxu0 0
    %6860 = vmatpush.bf16.msra.mxu0 0
    %6861 = vmatpush.bf16.msra.mxu0 0
    %6862 = vmatpush.bf16.msra.mxu0 0
    %6863 = vmatpush.bf16.msra.mxu0 %v6848
    %6864 = vmatpush.bf16.msra.mxu0 %v6846
    %6865 = vmatmul.bf16.gmra.mxu0 %v6852
    %v6866 = vpop.f32.mrf.mxu0
    %v6867 = vadd.f32 0.0, %v6866
    %v6868 = vpop.f32.mrf.mxu0
    %v6869 = vadd.f32 0.0, %v6868
    %6870 = vmatmul.bf16.gmra.mxu0 %v6855
    %v6871 = vpop.f32.mrf.mxu0
    %v6872 = vadd.f32 0.0, %v6871
    %v6873 = vpop.f32.mrf.mxu0
    %v6874 = vadd.f32 0.0, %v6873
    %6875 = vdwg.mxu0
    %6876 = vrot.lane.b32.xlu0 %v6744, 80
    %v6877 = vpop.permute.xlu0 %6876
    %6878 = vrot.lane.b32.xlu0 %v6745, 80
    %v6879 = vpop.permute.xlu0 %6878
    %6880 = vrot.lane.b32.xlu0 %v6744, 64
    %v6881 = vpop.permute.xlu0 %6880
    %6882 = vrot.lane.b32.xlu0 %v6745, 64
    %v6883 = vpop.permute.xlu0 %6882
    %v6885 = vsel %vm1269, %v6877, 0
    %v6888 = vsel %vm1269, %v6879, 0
    %v6891 = vsel %vm1269, %v6881, 0
    %v6894 = vsel %vm1269, %v6883, 0
    %6896 = vmatpush.bf16.xpose.msra.mxu0 0
    %6897 = vmatpush.bf16.xpose.msra.mxu0 0
    %6898 = vmatpush.bf16.xpose.msra.mxu0 0
    %6899 = vmatpush.bf16.xpose.msra.mxu0 0
    %6900 = vmatpush.bf16.xpose.msra.mxu0 0
    %6901 = vmatpush.bf16.xpose.msra.mxu0 0
    %6902 = vmatpush.bf16.xpose.msra.mxu0 %v6894
    %6903 = vmatpush.bf16.xpose.msra.mxu0 %v6891
    %6904 = vmatmul.bf16.gmra.mxu0 %v6885
    %v6905 = vpop.f32.mrf.mxu0
    %v6906 = vadd.f32 0.0, %v6905
    %v6907 = vpop.f32.mrf.mxu0
    %v6908 = vadd.f32 0.0, %v6907
    %6909 = vmatmul.bf16.gmra.mxu0 %v6888
    %v6910 = vpop.f32.mrf.mxu0
    %v6911 = vadd.f32 0.0, %v6910
    %v6912 = vpop.f32.mrf.mxu0
    %v6913 = vadd.f32 0.0, %v6912
    %6914 = vdwg.mxu0
    %v6915 = vmul.f32 %v6906, 0.25
    %v6916 = vmul.f32 %v6908, 0.25
    %v6917 = vmul.f32 %v6911, 0.25
    %v6918 = vmul.f32 %v6913, 0.25
    %s6919 = scalar_lea.vmem %s17, 16
    %v6920 = vld [vmem:[%s6919] sm:$0xf]
    %v6921 = vld [vmem:[%s6919 + $0x4] sm:$0xf]
    %v6922 = vld [vmem:[%s6919 + $0x8] sm:$0xf]
    %v6923 = vld [vmem:[%s6919 + $0xc] sm:$0xf]
    %v6924 = vunpack.c.l.bf16 %v6920
    %v6925 = vunpack.c.l.bf16 %v6921
    %v6926 = vunpack.c.l.bf16 %v6922
    %v6927 = vunpack.c.l.bf16 %v6923
    %v6928 = vadd.f32 %v6915, %v6924
    %v6929 = vadd.f32 %v6916, %v6925
    %v6930 = vadd.f32 %v6917, %v6926
    %v6931 = vadd.f32 %v6918, %v6927
    %v6932 = vsel %vm351, %v6928, -inf
    %6933 = vmax.xlane.f32.xlu0 %v6932
    %v6934 = vpop.xlane.xlu0 %6933
    %v6935 = vsel %vm351, %v6929, -inf
    %6936 = vmax.xlane.f32.xlu0 %v6935
    %v6937 = vpop.xlane.xlu0 %6936
    %v6938 = vsel %vm351, %v6930, -inf
    %6939 = vmax.xlane.f32.xlu0 %v6938
    %v6940 = vpop.xlane.xlu0 %6939
    %v6941 = vsel %vm351, %v6931, -inf
    %6942 = vmax.xlane.f32.xlu0 %v6941
    %v6943 = vpop.xlane.xlu0 %6942
    %v6944 = vsub.f32 %v6928, %v6934
    %v6945 = vsub.f32 %v6929, %v6937
    %v6946 = vsub.f32 %v6930, %v6940
    %v6947 = vsub.f32 %v6931, %v6943
    %v6948 = vmul.f32 %v6944, 1.442695
    %v6949 = vpow.pop %v6948
    %v6950 = vmul.f32 %v6945, 1.442695
    %v6951 = vpow.pop %v6950
    %v6952 = vmul.f32 %v6946, 1.442695
    %v6953 = vpow.pop %v6952
    %v6954 = vmul.f32 %v6947, 1.442695
    %v6955 = vpow.pop %v6954
    %v6956 = vsel %vm351, %v6949, 0.0
    %6957 = vadd.xlane.f32.xlu0 %v6956
    %v6958 = vpop.xlane.xlu0 %6957
    %v6959 = vsel %vm351, %v6951, 0.0
    %6960 = vadd.xlane.f32.xlu0 %v6959
    %v6961 = vpop.xlane.xlu0 %6960
    %v6962 = vsel %vm351, %v6953, 0.0
    %6963 = vadd.xlane.f32.xlu0 %v6962
    %v6964 = vpop.xlane.xlu0 %6963
    %v6965 = vsel %vm351, %v6955, 0.0
    %6966 = vadd.xlane.f32.xlu0 %v6965
    %v6967 = vpop.xlane.xlu0 %6966
    %v6968 = vrcp.pop %v6958
    %v6969 = vrcp.pop %v6961
    %v6970 = vrcp.pop %v6964
    %v6971 = vrcp.pop %v6967
    %v6972 = vmul.f32 %v6949, %v6968
    %v6973 = vmul.f32 %v6951, %v6969
    %v6974 = vmul.f32 %v6953, %v6970
    %v6975 = vmul.f32 %v6955, %v6971
    %v6976 = vpack.c.bf16 %v6973, %v6972
    %v6977 = vpack.c.bf16 %v6975, %v6974
    %6978 = vrot.lane.b32.xlu0 %v6744, 48
    %v6979 = vpop.permute.xlu0 %6978
    %6980 = vrot.lane.b32.xlu0 %v6745, 48
    %v6981 = vpop.permute.xlu0 %6980
    %v6985 = vsel %vm351, %v6976, 0
    %v6988 = vsel %vm351, %v6977, 0
    %6990 = vmatpush.bf16.msra.mxu0 0
    %6991 = vmatpush.bf16.msra.mxu0 0
    %6992 = vmatpush.bf16.msra.mxu0 0
    %6993 = vmatpush.bf16.msra.mxu0 0
    %6994 = vmatpush.bf16.msra.mxu0 0
    %6995 = vmatpush.bf16.msra.mxu0 0
    %6996 = vmatpush.bf16.msra.mxu0 %v6981
    %6997 = vmatpush.bf16.msra.mxu0 %v6979
    %6998 = vmatmul.bf16.gmra.mxu0 %v6985
    %v6999 = vpop.f32.mrf.mxu0
    %v7000 = vadd.f32 0.0, %v6999
    %v7001 = vpop.f32.mrf.mxu0
    %v7002 = vadd.f32 0.0, %v7001
    %7003 = vmatmul.bf16.gmra.mxu0 %v6988
    %v7004 = vpop.f32.mrf.mxu0
    %v7005 = vadd.f32 0.0, %v7004
    %v7006 = vpop.f32.mrf.mxu0
    %v7007 = vadd.f32 0.0, %v7006
    %7008 = vdwg.mxu0
    %7009 = vrot.lane.b32.xlu0 %v6744, 32
    %v7010 = vpop.permute.xlu0 %7009
    %7011 = vrot.lane.b32.xlu0 %v6745, 32
    %v7012 = vpop.permute.xlu0 %7011
    %7013 = vrot.lane.b32.xlu0 %v6744, 16
    %v7014 = vpop.permute.xlu0 %7013
    %7015 = vrot.lane.b32.xlu0 %v6745, 16
    %v7016 = vpop.permute.xlu0 %7015
    %v7018 = vsel %vm1269, %v7010, 0
    %v7021 = vsel %vm1269, %v7012, 0
    %v7024 = vsel %vm1269, %v7014, 0
    %v7027 = vsel %vm1269, %v7016, 0
    %7029 = vmatpush.bf16.xpose.msra.mxu0 0
    %7030 = vmatpush.bf16.xpose.msra.mxu0 0
    %7031 = vmatpush.bf16.xpose.msra.mxu0 0
    %7032 = vmatpush.bf16.xpose.msra.mxu0 0
    %7033 = vmatpush.bf16.xpose.msra.mxu0 0
    %7034 = vmatpush.bf16.xpose.msra.mxu0 0
    %7035 = vmatpush.bf16.xpose.msra.mxu0 %v7027
    %7036 = vmatpush.bf16.xpose.msra.mxu0 %v7024
    %7037 = vmatmul.bf16.gmra.mxu0 %v7018
    %v7038 = vpop.f32.mrf.mxu0
    %v7039 = vadd.f32 0.0, %v7038
    %v7040 = vpop.f32.mrf.mxu0
    %v7041 = vadd.f32 0.0, %v7040
    %7042 = vmatmul.bf16.gmra.mxu0 %v7021
    %v7043 = vpop.f32.mrf.mxu0
    %v7044 = vadd.f32 0.0, %v7043
    %v7045 = vpop.f32.mrf.mxu0
    %v7046 = vadd.f32 0.0, %v7045
    %7047 = vdwg.mxu0
    %v7048 = vmul.f32 %v7039, 0.25
    %v7049 = vmul.f32 %v7041, 0.25
    %v7050 = vmul.f32 %v7044, 0.25
    %v7051 = vmul.f32 %v7046, 0.25
    %s7052 = scalar_lea.vmem %s17, 32
    %v7053 = vld [vmem:[%s7052] sm:$0xf]
    %v7054 = vld [vmem:[%s7052 + $0x4] sm:$0xf]
    %v7055 = vld [vmem:[%s7052 + $0x8] sm:$0xf]
    %v7056 = vld [vmem:[%s7052 + $0xc] sm:$0xf]
    %v7057 = vunpack.c.l.bf16 %v7053
    %v7058 = vunpack.c.l.bf16 %v7054
    %v7059 = vunpack.c.l.bf16 %v7055
    %v7060 = vunpack.c.l.bf16 %v7056
    %v7061 = vadd.f32 %v7048, %v7057
    %v7062 = vadd.f32 %v7049, %v7058
    %v7063 = vadd.f32 %v7050, %v7059
    %v7064 = vadd.f32 %v7051, %v7060
    %v7065 = vsel %vm351, %v7061, -inf
    %7066 = vmax.xlane.f32.xlu0 %v7065
    %v7067 = vpop.xlane.xlu0 %7066
    %v7068 = vsel %vm351, %v7062, -inf
    %7069 = vmax.xlane.f32.xlu0 %v7068
    %v7070 = vpop.xlane.xlu0 %7069
    %v7071 = vsel %vm351, %v7063, -inf
    %7072 = vmax.xlane.f32.xlu0 %v7071
    %v7073 = vpop.xlane.xlu0 %7072
    %v7074 = vsel %vm351, %v7064, -inf
    %7075 = vmax.xlane.f32.xlu0 %v7074
    %v7076 = vpop.xlane.xlu0 %7075
    %v7077 = vsub.f32 %v7061, %v7067
    %v7078 = vsub.f32 %v7062, %v7070
    %v7079 = vsub.f32 %v7063, %v7073
    %v7080 = vsub.f32 %v7064, %v7076
    %v7081 = vmul.f32 %v7077, 1.442695
    %v7082 = vpow.pop %v7081
    %v7083 = vmul.f32 %v7078, 1.442695
    %v7084 = vpow.pop %v7083
    %v7085 = vmul.f32 %v7079, 1.442695
    %v7086 = vpow.pop %v7085
    %v7087 = vmul.f32 %v7080, 1.442695
    %v7088 = vpow.pop %v7087
    %v7089 = vsel %vm351, %v7082, 0.0
    %7090 = vadd.xlane.f32.xlu0 %v7089
    %v7091 = vpop.xlane.xlu0 %7090
    %v7092 = vsel %vm351, %v7084, 0.0
    %7093 = vadd.xlane.f32.xlu0 %v7092
    %v7094 = vpop.xlane.xlu0 %7093
    %v7095 = vsel %vm351, %v7086, 0.0
    %7096 = vadd.xlane.f32.xlu0 %v7095
    %v7097 = vpop.xlane.xlu0 %7096
    %v7098 = vsel %vm351, %v7088, 0.0
    %7099 = vadd.xlane.f32.xlu0 %v7098
    %v7100 = vpop.xlane.xlu0 %7099
    %v7101 = vrcp.pop %v7091
    %v7102 = vrcp.pop %v7094
    %v7103 = vrcp.pop %v7097
    %v7104 = vrcp.pop %v7100
    %v7105 = vmul.f32 %v7082, %v7101
    %v7106 = vmul.f32 %v7084, %v7102
    %v7107 = vmul.f32 %v7086, %v7103
    %v7108 = vmul.f32 %v7088, %v7104
    %v7109 = vpack.c.bf16 %v7106, %v7105
    %v7110 = vpack.c.bf16 %v7108, %v7107
    %v7111 = vpack.c.bf16 %v6737, %v6735
    %v7112 = vpack.c.bf16 %v6742, %v6740
    %v7114 = vsel %vm351, %v7109, 0
    %v7117 = vsel %vm351, %v7110, 0
    %7119 = vmatpush.bf16.msra.mxu0 0
    %7120 = vmatpush.bf16.msra.mxu0 0
    %7121 = vmatpush.bf16.msra.mxu0 0
    %7122 = vmatpush.bf16.msra.mxu0 0
    %7123 = vmatpush.bf16.msra.mxu0 0
    %7124 = vmatpush.bf16.msra.mxu0 0
    %7125 = vmatpush.bf16.msra.mxu0 %v7112
    %7126 = vmatpush.bf16.msra.mxu0 %v7111
    %7127 = vmatmul.bf16.gmra.mxu0 %v7114
    %v7128 = vpop.f32.mrf.mxu0
    %v7129 = vadd.f32 0.0, %v7128
    %v7130 = vpop.f32.mrf.mxu0
    %v7131 = vadd.f32 0.0, %v7130
    %7132 = vmatmul.bf16.gmra.mxu0 %v7117
    %v7133 = vpop.f32.mrf.mxu0
    %v7134 = vadd.f32 0.0, %v7133
    %v7135 = vpop.f32.mrf.mxu0
    %v7136 = vadd.f32 0.0, %v7135
    %7137 = vdwg.mxu0
    %7140 = vrot.lane.b32.xlu0 %v7111, 112
    %v7141 = vpop.permute.xlu0 %7140
    %7142 = vrot.lane.b32.xlu0 %v7112, 112
    %v7143 = vpop.permute.xlu0 %7142
    %7144 = vrot.lane.b32.xlu0 %v7111, 96
    %v7145 = vpop.permute.xlu0 %7144
    %7146 = vrot.lane.b32.xlu0 %v7112, 96
    %v7147 = vpop.permute.xlu0 %7146
    %v7149 = vsel %vm1269, %v7141, 0
    %v7152 = vsel %vm1269, %v7143, 0
    %v7155 = vsel %vm1269, %v7145, 0
    %v7158 = vsel %vm1269, %v7147, 0
    %7160 = vmatpush.bf16.xpose.msra.mxu0 0
    %7161 = vmatpush.bf16.xpose.msra.mxu0 0
    %7162 = vmatpush.bf16.xpose.msra.mxu0 0
    %7163 = vmatpush.bf16.xpose.msra.mxu0 0
    %7164 = vmatpush.bf16.xpose.msra.mxu0 0
    %7165 = vmatpush.bf16.xpose.msra.mxu0 0
    %7166 = vmatpush.bf16.xpose.msra.mxu0 %v7158
    %7167 = vmatpush.bf16.xpose.msra.mxu0 %v7155
    %7168 = vmatmul.bf16.gmra.mxu0 %v7149
    %v7169 = vpop.f32.mrf.mxu0
    %v7170 = vadd.f32 0.0, %v7169
    %v7171 = vpop.f32.mrf.mxu0
    %v7172 = vadd.f32 0.0, %v7171
    %7173 = vmatmul.bf16.gmra.mxu0 %v7152
    %v7174 = vpop.f32.mrf.mxu0
    %v7175 = vadd.f32 0.0, %v7174
    %v7176 = vpop.f32.mrf.mxu0
    %v7177 = vadd.f32 0.0, %v7176
    %7178 = vdwg.mxu0
    %v7179 = vmul.f32 %v7170, 0.25
    %v7180 = vmul.f32 %v7172, 0.25
    %v7181 = vmul.f32 %v7175, 0.25
    %v7182 = vmul.f32 %v7177, 0.25
    %s7183 = scalar_lea.vmem %s17, 48
    %v7184 = vld [vmem:[%s7183] sm:$0xf]
    %v7185 = vld [vmem:[%s7183 + $0x4] sm:$0xf]
    %v7186 = vld [vmem:[%s7183 + $0x8] sm:$0xf]
    %v7187 = vld [vmem:[%s7183 + $0xc] sm:$0xf]
    %v7188 = vunpack.c.l.bf16 %v7184
    %v7189 = vunpack.c.l.bf16 %v7185
    %v7190 = vunpack.c.l.bf16 %v7186
    %v7191 = vunpack.c.l.bf16 %v7187
    %v7192 = vadd.f32 %v7179, %v7188
    %v7193 = vadd.f32 %v7180, %v7189
    %v7194 = vadd.f32 %v7181, %v7190
    %v7195 = vadd.f32 %v7182, %v7191
    %v7196 = vsel %vm351, %v7192, -inf
    %7197 = vmax.xlane.f32.xlu0 %v7196
    %v7198 = vpop.xlane.xlu0 %7197
    %v7199 = vsel %vm351, %v7193, -inf
    %7200 = vmax.xlane.f32.xlu0 %v7199
    %v7201 = vpop.xlane.xlu0 %7200
    %v7202 = vsel %vm351, %v7194, -inf
    %7203 = vmax.xlane.f32.xlu0 %v7202
    %v7204 = vpop.xlane.xlu0 %7203
    %v7205 = vsel %vm351, %v7195, -inf
    %7206 = vmax.xlane.f32.xlu0 %v7205
    %v7207 = vpop.xlane.xlu0 %7206
    %v7208 = vsub.f32 %v7192, %v7198
    %v7209 = vsub.f32 %v7193, %v7201
    %v7210 = vsub.f32 %v7194, %v7204
    %v7211 = vsub.f32 %v7195, %v7207
    %v7212 = vmul.f32 %v7208, 1.442695
    %v7213 = vpow.pop %v7212
    %v7214 = vmul.f32 %v7209, 1.442695
    %v7215 = vpow.pop %v7214
    %v7216 = vmul.f32 %v7210, 1.442695
    %v7217 = vpow.pop %v7216
    %v7218 = vmul.f32 %v7211, 1.442695
    %v7219 = vpow.pop %v7218
    %v7220 = vsel %vm351, %v7213, 0.0
    %7221 = vadd.xlane.f32.xlu0 %v7220
    %v7222 = vpop.xlane.xlu0 %7221
    %v7223 = vsel %vm351, %v7215, 0.0
    %7224 = vadd.xlane.f32.xlu0 %v7223
    %v7225 = vpop.xlane.xlu0 %7224
    %v7226 = vsel %vm351, %v7217, 0.0
    %7227 = vadd.xlane.f32.xlu0 %v7226
    %v7228 = vpop.xlane.xlu0 %7227
    %v7229 = vsel %vm351, %v7219, 0.0
    %7230 = vadd.xlane.f32.xlu0 %v7229
    %v7231 = vpop.xlane.xlu0 %7230
    %v7232 = vrcp.pop %v7222
    %v7233 = vrcp.pop %v7225
    %v7234 = vrcp.pop %v7228
    %v7235 = vrcp.pop %v7231
    %v7236 = vmul.f32 %v7213, %v7232
    %v7237 = vmul.f32 %v7215, %v7233
    %v7238 = vmul.f32 %v7217, %v7234
    %v7239 = vmul.f32 %v7219, %v7235
    %v7240 = vpack.c.bf16 %v7237, %v7236
    %v7241 = vpack.c.bf16 %v7239, %v7238
    %7242 = vrot.lane.b32.xlu0 %v7111, 80
    %v7243 = vpop.permute.xlu0 %7242
    %7244 = vrot.lane.b32.xlu0 %v7112, 80
    %v7245 = vpop.permute.xlu0 %7244
    %v7249 = vsel %vm351, %v7240, 0
    %v7252 = vsel %vm351, %v7241, 0
    %7254 = vmatpush.bf16.msra.mxu0 0
    %7255 = vmatpush.bf16.msra.mxu0 0
    %7256 = vmatpush.bf16.msra.mxu0 0
    %7257 = vmatpush.bf16.msra.mxu0 0
    %7258 = vmatpush.bf16.msra.mxu0 0
    %7259 = vmatpush.bf16.msra.mxu0 0
    %7260 = vmatpush.bf16.msra.mxu0 %v7245
    %7261 = vmatpush.bf16.msra.mxu0 %v7243
    %7262 = vmatmul.bf16.gmra.mxu0 %v7249
    %v7263 = vpop.f32.mrf.mxu0
    %v7264 = vadd.f32 0.0, %v7263
    %v7265 = vpop.f32.mrf.mxu0
    %v7266 = vadd.f32 0.0, %v7265
    %7267 = vmatmul.bf16.gmra.mxu0 %v7252
    %v7268 = vpop.f32.mrf.mxu0
    %v7269 = vadd.f32 0.0, %v7268
    %v7270 = vpop.f32.mrf.mxu0
    %v7271 = vadd.f32 0.0, %v7270
    %7272 = vdwg.mxu0
    %7277 = vrot.lane.b32.xlu0 %v7000, 16
    %v7278 = vpop.permute.xlu0 %7277
    %7279 = vrot.lane.b32.xlu0 %v7002, 16
    %v7280 = vpop.permute.xlu0 %7279
    %7281 = vrot.lane.b32.xlu0 %v7005, 16
    %v7282 = vpop.permute.xlu0 %7281
    %7283 = vrot.lane.b32.xlu0 %v7007, 16
    %v7284 = vpop.permute.xlu0 %7283
    %7293 = vrot.lane.b32.xlu0 %v7129, 32
    %v7294 = vpop.permute.xlu0 %7293
    %7295 = vrot.lane.b32.xlu0 %v7131, 32
    %v7296 = vpop.permute.xlu0 %7295
    %7297 = vrot.lane.b32.xlu0 %v7134, 32
    %v7298 = vpop.permute.xlu0 %7297
    %7299 = vrot.lane.b32.xlu0 %v7136, 32
    %v7300 = vpop.permute.xlu0 %7299
    %7309 = vrot.lane.b32.xlu0 %v7264, 48
    %v7310 = vpop.permute.xlu0 %7309
    %7311 = vrot.lane.b32.xlu0 %v7266, 48
    %v7312 = vpop.permute.xlu0 %7311
    %7313 = vrot.lane.b32.xlu0 %v7269, 48
    %v7314 = vpop.permute.xlu0 %7313
    %7315 = vrot.lane.b32.xlu0 %v7271, 48
    %v7316 = vpop.permute.xlu0 %7315
    %v7321 = vsel %vm1269, %v6867, %v7278
    %v7322 = vsel %vm1269, %v6869, %v7280
    %v7323 = vsel %vm1269, %v6872, %v7282
    %v7324 = vsel %vm1269, %v6874, %v7284
    %v7325 = vsel %vm351, %v7321, %v7294
    %v7326 = vsel %vm351, %v7322, %v7296
    %v7327 = vsel %vm351, %v7323, %v7298
    %v7328 = vsel %vm351, %v7324, %v7300
    %vm7329 = vcmask 392192
    %v7330 = vsel %vm7329, %v7325, %v7310
    %v7331 = vsel %vm7329, %v7326, %v7312
    %v7332 = vsel %vm7329, %v7327, %v7314
    %v7333 = vsel %vm7329, %v7328, %v7316
    %v7334 = vld [vmem:[#allocation16] sm:$0xf]
    %v7335 = vld [vmem:[#allocation16 + $0x4] sm:$0xf]
    %v7336 = vld [vmem:[#allocation16 + $0x8] sm:$0xf]
    %v7337 = vld [vmem:[#allocation16 + $0xc] sm:$0xf]
    %v7338 = vld [vmem:[#allocation16 + $0x10] sm:$0xf]
    %v7339 = vld [vmem:[#allocation16 + $0x14] sm:$0xf]
    %v7340 = vld [vmem:[#allocation16 + $0x18] sm:$0xf]
    %v7341 = vld [vmem:[#allocation16 + $0x1c] sm:$0xf]
    %v7342 = vpack.c.bf16 %v7331, %v7330
    %v7343 = vpack.c.bf16 %v7333, %v7332
    %v7352 = vunpack.c.l.b16 %v7334
    %v7353 = vunpack.c.l.b16 %v7335
    %v7354 = vunpack.c.l.b16 %v7336
    %v7355 = vunpack.c.l.b16 %v7337
    %v7356 = vunpack.c.l.b16 %v7338
    %v7357 = vunpack.c.l.b16 %v7339
    %v7358 = vunpack.c.l.b16 %v7340
    %v7359 = vunpack.c.l.b16 %v7341
    %v7360 = vpack.c.b16 %v7353, %v7352
    %v7361 = vpack.c.b16 %v7355, %v7354
    %v7362 = vpack.c.b16 %v7357, %v7356
    %v7363 = vpack.c.b16 %v7359, %v7358
    %v7369 = vsel %vm6538, %v7342, 0
    %v7372 = vsel %vm6538, %v7343, 0
    %7374 = vmatpush.bf16.msra.mxu0 0
    %7375 = vmatpush.bf16.msra.mxu0 0
    %7376 = vmatpush.bf16.msra.mxu0 0
    %7377 = vmatpush.bf16.msra.mxu0 0
    %7378 = vmatpush.bf16.msra.mxu0 %v7363
    %7379 = vmatpush.bf16.msra.mxu0 %v7362
    %7380 = vmatpush.bf16.msra.mxu0 %v7361
    %7381 = vmatpush.bf16.msra.mxu0 %v7360
    %7382 = vmatmul.bf16.gmra.mxu0 %v7369
    %v7383 = vpop.f32.mrf.mxu0
    %v7384 = vadd.f32 0.0, %v7383
    %v7385 = vpop.f32.mrf.mxu0
    %v7386 = vadd.f32 0.0, %v7385
    %7387 = vmatmul.bf16.gmra.mxu0 %v7372
    %v7388 = vpop.f32.mrf.mxu0
    %v7389 = vadd.f32 0.0, %v7388
    %v7390 = vpop.f32.mrf.mxu0
    %v7391 = vadd.f32 0.0, %v7390
    %7392 = vdwg.mxu0
    %v7393 = vadd.f32 %v6527, %v7384
    %v7394 = vadd.f32 %v6528, %v7386
    %v7395 = vadd.f32 %v6529, %v7389
    %v7396 = vadd.f32 %v6530, %v7391
    %v7397 = vperm.slane %v6533, 0
    %v7398 = vadd.f32 %v7393, %v7397
    %v7399 = vadd.f32 %v7394, %v7397
    %v7400 = vadd.f32 %v7395, %v7397
    %v7401 = vadd.f32 %v7396, %v7397
    %v7402 = vsel %vm6538, %v7398, 0.0
    %7403 = vadd.xlane.f32.xlu0 %v7402
    %v7404 = vpop.xlane.xlu0 %7403
    %v7405 = vsel %vm6538, %v7399, 0.0
    %7406 = vadd.xlane.f32.xlu0 %v7405
    %v7407 = vpop.xlane.xlu0 %7406
    %v7408 = vsel %vm6538, %v7400, 0.0
    %7409 = vadd.xlane.f32.xlu0 %v7408
    %v7410 = vpop.xlane.xlu0 %7409
    %v7411 = vsel %vm6538, %v7401, 0.0
    %7412 = vadd.xlane.f32.xlu0 %v7411
    %v7413 = vpop.xlane.xlu0 %7412
    %v7414 = vmul.f32 %v7404, %v6557
    %v7415 = vmul.f32 %v7407, %v6557
    %v7416 = vmul.f32 %v7410, %v6557
    %v7417 = vmul.f32 %v7413, %v6557
    %v7418 = vsub.f32 %v7398, %v7414
    %v7419 = vsub.f32 %v7399, %v7415
    %v7420 = vsub.f32 %v7400, %v7416
    %v7421 = vsub.f32 %v7401, %v7417
    %v7422 = vmul.f32 %v7418, %v7418
    %v7423 = vmul.f32 %v7419, %v7419
    %v7424 = vmul.f32 %v7420, %v7420
    %v7425 = vmul.f32 %v7421, %v7421
    %v7426 = vsel %vm6538, %v7422, 0.0
    %7427 = vadd.xlane.f32.xlu0 %v7426
    %v7428 = vpop.xlane.xlu0 %7427
    %v7429 = vsel %vm6538, %v7423, 0.0
    %7430 = vadd.xlane.f32.xlu0 %v7429
    %v7431 = vpop.xlane.xlu0 %7430
    %v7432 = vsel %vm6538, %v7424, 0.0
    %7433 = vadd.xlane.f32.xlu0 %v7432
    %v7434 = vpop.xlane.xlu0 %7433
    %v7435 = vsel %vm6538, %v7425, 0.0
    %7436 = vadd.xlane.f32.xlu0 %v7435
    %v7437 = vpop.xlane.xlu0 %7436
    %v7438 = vmul.f32 %v7428, %v6557
    %v7439 = vmul.f32 %v7431, %v6557
    %v7440 = vmul.f32 %v7434, %v6557
    %v7441 = vmul.f32 %v7437, %v6557
    %v7442 = vadd.f32 %v7438, 1e-05
    %v7443 = vadd.f32 %v7439, 1e-05
    %v7444 = vadd.f32 %v7440, 1e-05
    %v7445 = vadd.f32 %v7441, 1e-05
    %v7446 = vrsqrt.pop %v7442
    %v7447 = vmul.f32 %v7446, %v7442
    %v7448 = vmul.f32 %v7447, %v7446
    %v7449 = vmul.f32 0.5, %v7448
    %v7450 = vsub.f32 1.5, %v7449
    %v7451 = vmul.f32 %v7446, %v7450
    %vm7452 = vweird.f32 %v7442
    %vm7453 = vweird.f32 %v7446
    %vm7454 = vmor %vm7452, %vm7453
    %v7455 = vsel %vm7454, %v7446, %v7451
    %v7456 = vrsqrt.pop %v7443
    %v7457 = vmul.f32 %v7456, %v7443
    %v7458 = vmul.f32 %v7457, %v7456
    %v7459 = vmul.f32 0.5, %v7458
    %v7460 = vsub.f32 1.5, %v7459
    %v7461 = vmul.f32 %v7456, %v7460
    %vm7462 = vweird.f32 %v7443
    %vm7463 = vweird.f32 %v7456
    %vm7464 = vmor %vm7462, %vm7463
    %v7465 = vsel %vm7464, %v7456, %v7461
    %v7466 = vrsqrt.pop %v7444
    %v7467 = vmul.f32 %v7466, %v7444
    %v7468 = vmul.f32 %v7467, %v7466
    %v7469 = vmul.f32 0.5, %v7468
    %v7470 = vsub.f32 1.5, %v7469
    %v7471 = vmul.f32 %v7466, %v7470
    %vm7472 = vweird.f32 %v7444
    %vm7473 = vweird.f32 %v7466
    %vm7474 = vmor %vm7472, %vm7473
    %v7475 = vsel %vm7474, %v7466, %v7471
    %v7476 = vrsqrt.pop %v7445
    %v7477 = vmul.f32 %v7476, %v7445
    %v7478 = vmul.f32 %v7477, %v7476
    %v7479 = vmul.f32 0.5, %v7478
    %v7480 = vsub.f32 1.5, %v7479
    %v7481 = vmul.f32 %v7476, %v7480
    %vm7482 = vweird.f32 %v7445
    %vm7483 = vweird.f32 %v7476
    %vm7484 = vmor %vm7482, %vm7483
    %v7485 = vsel %vm7484, %v7476, %v7481
    %v7486 = vmul.f32 %v7418, %v7455
    %v7487 = vmul.f32 %v7419, %v7465
    %v7488 = vmul.f32 %v7420, %v7475
    %v7489 = vmul.f32 %v7421, %v7485
    %v7490 = vperm.slane %v6534, 0
    %v7491 = vmul.f32 %v7486, %v7490
    %v7492 = vmul.f32 %v7487, %v7490
    %v7493 = vmul.f32 %v7488, %v7490
    %v7494 = vmul.f32 %v7489, %v7490
    %v7495 = vperm.slane %v6535, 0
    %v7496 = vadd.f32 %v7491, %v7495
    %v7497 = vadd.f32 %v7492, %v7495
    %v7498 = vadd.f32 %v7493, %v7495
    %v7499 = vadd.f32 %v7494, %v7495
    %v7500 = vld [vmem:[#allocation17] sm:$0xff]
    %v7501 = vld [vmem:[#allocation17 + $0x8] sm:$0xff]
    %v7502 = vld [vmem:[#allocation17 + $0x10] sm:$0xff]
    %v7503 = vld [vmem:[#allocation17 + $0x18] sm:$0xff]
    %v7504 = vld [vmem:[#allocation17 + $0x20] sm:$0xff]
    %v7505 = vld [vmem:[#allocation17 + $0x28] sm:$0xff]
    %v7506 = vld [vmem:[#allocation17 + $0x30] sm:$0xff]
    %v7507 = vld [vmem:[#allocation17 + $0x38] sm:$0xff]
    %v7508 = vpack.c.bf16 %v7497, %v7496
    %v7509 = vpack.c.bf16 %v7499, %v7498
    %v7511 = vperm.slane %v6537, 0
    %v7512 = vperm.slane %v6537, 1
    %v7523 = vunpack.c.l.b16 %v7500
    %v7524 = vunpack.c.h.b16 %v7500
    %v7525 = vunpack.c.l.b16 %v7501
    %v7526 = vunpack.c.h.b16 %v7501
    %v7527 = vunpack.c.l.b16 %v7502
    %v7528 = vunpack.c.h.b16 %v7502
    %v7529 = vunpack.c.l.b16 %v7503
    %v7530 = vunpack.c.h.b16 %v7503
    %v7531 = vunpack.c.l.b16 %v7504
    %v7532 = vunpack.c.h.b16 %v7504
    %v7533 = vunpack.c.l.b16 %v7505
    %v7534 = vunpack.c.h.b16 %v7505
    %v7535 = vunpack.c.l.b16 %v7506
    %v7536 = vunpack.c.h.b16 %v7506
    %v7537 = vunpack.c.l.b16 %v7507
    %v7538 = vunpack.c.h.b16 %v7507
    %v7539 = vpack.c.b16 %v7525, %v7523
    %v7540 = vpack.c.b16 %v7526, %v7524
    %v7541 = vpack.c.b16 %v7529, %v7527
    %v7542 = vpack.c.b16 %v7530, %v7528
    %v7543 = vpack.c.b16 %v7533, %v7531
    %v7544 = vpack.c.b16 %v7534, %v7532
    %v7545 = vpack.c.b16 %v7537, %v7535
    %v7546 = vpack.c.b16 %v7538, %v7536
    %v7556 = vsel %vm6538, %v7508, 0
    %v7559 = vsel %vm6538, %v7509, 0
    %7561 = vmatpush.bf16.msra.mxu0 0
    %7562 = vmatpush.bf16.msra.mxu0 0
    %7563 = vmatpush.bf16.msra.mxu0 0
    %7564 = vmatpush.bf16.msra.mxu0 0
    %7565 = vmatpush.bf16.msra.mxu0 %v7545
    %7566 = vmatpush.bf16.msra.mxu0 %v7543
    %7567 = vmatpush.bf16.msra.mxu0 %v7541
    %7568 = vmatpush.bf16.msra.mxu0 %v7539
    %7569 = vmatmul.bf16.gmra.mxu0 %v7556
    %v7570 = vpop.f32.mrf.mxu0
    %v7571 = vadd.f32 %v7511, %v7570
    %v7572 = vpop.f32.mrf.mxu0
    %v7573 = vadd.f32 %v7511, %v7572
    %7574 = vmatmul.bf16.gmra.mxu0 %v7559
    %v7575 = vpop.f32.mrf.mxu0
    %v7576 = vadd.f32 %v7511, %v7575
    %v7577 = vpop.f32.mrf.mxu0
    %v7578 = vadd.f32 %v7511, %v7577
    %7579 = vdwg.mxu0
    %7580 = vmatpush.bf16.msra.mxu0 0
    %7581 = vmatpush.bf16.msra.mxu0 0
    %7582 = vmatpush.bf16.msra.mxu0 0
    %7583 = vmatpush.bf16.msra.mxu0 0
    %7584 = vmatpush.bf16.msra.mxu0 %v7546
    %7585 = vmatpush.bf16.msra.mxu0 %v7544
    %7586 = vmatpush.bf16.msra.mxu0 %v7542
    %7587 = vmatpush.bf16.msra.mxu0 %v7540
    %7588 = vmatmul.bf16.gmra.mxu0 %v7556
    %v7589 = vpop.f32.mrf.mxu0
    %v7590 = vadd.f32 %v7512, %v7589
    %v7591 = vpop.f32.mrf.mxu0
    %v7592 = vadd.f32 %v7512, %v7591
    %7593 = vmatmul.bf16.gmra.mxu0 %v7559
    %v7594 = vpop.f32.mrf.mxu0
    %v7595 = vadd.f32 %v7512, %v7594
    %v7596 = vpop.f32.mrf.mxu0
    %v7597 = vadd.f32 %v7512, %v7596
    %7598 = vdwg.mxu0
    %v7599 = vmul.f32 %v7571, 0.5
    %v7600 = vmul.f32 %v7590, 0.5
    %v7601 = vmul.f32 %v7573, 0.5
    %v7602 = vmul.f32 %v7592, 0.5
    %v7603 = vmul.f32 %v7576, 0.5
    %v7604 = vmul.f32 %v7595, 0.5
    %v7605 = vmul.f32 %v7578, 0.5
    %v7606 = vmul.f32 %v7597, 0.5
    %v7607 = vmul.f32 %v7571, 0.70710677
    %v7608 = vmul.f32 %v7590, 0.70710677
    %v7609 = vmul.f32 %v7573, 0.70710677
    %v7610 = vmul.f32 %v7592, 0.70710677
    %v7611 = vmul.f32 %v7576, 0.70710677
    %v7612 = vmul.f32 %v7595, 0.70710677
    %v7613 = vmul.f32 %v7578, 0.70710677
    %v7614 = vmul.f32 %v7597, 0.70710677
    %vm7615 = vcmp.ge.f32.partialorder %v7607, 0.0
    %vm7616 = vcmp.ge.f32.partialorder %v7608, 0.0
    %vm7617 = vcmp.ge.f32.partialorder %v7609, 0.0
    %vm7618 = vcmp.ge.f32.partialorder %v7610, 0.0
    %vm7619 = vcmp.ge.f32.partialorder %v7611, 0.0
    %vm7620 = vcmp.ge.f32.partialorder %v7612, 0.0
    %vm7621 = vcmp.ge.f32.partialorder %v7613, 0.0
    %vm7622 = vcmp.ge.f32.partialorder %v7614, 0.0
    %v7623 = vsel %vm7615, 1.0, -1.0
    %v7624 = vsel %vm7616, 1.0, -1.0
    %v7625 = vsel %vm7617, 1.0, -1.0
    %v7626 = vsel %vm7618, 1.0, -1.0
    %v7627 = vsel %vm7619, 1.0, -1.0
    %v7628 = vsel %vm7620, 1.0, -1.0
    %v7629 = vsel %vm7621, 1.0, -1.0
    %v7630 = vsel %vm7622, 1.0, -1.0
    %v7631 = vand.u32 2147483647, %v7607
    %v7632 = vand.u32 2147483647, %v7608
    %v7633 = vand.u32 2147483647, %v7609
    %v7634 = vand.u32 2147483647, %v7610
    %v7635 = vand.u32 2147483647, %v7611
    %v7636 = vand.u32 2147483647, %v7612
    %v7637 = vand.u32 2147483647, %v7613
    %v7638 = vand.u32 2147483647, %v7614
    %v7639 = vmul.f32 %v7631, 0.3275911
    %v7640 = vmul.f32 %v7632, 0.3275911
    %v7641 = vmul.f32 %v7633, 0.3275911
    %v7642 = vmul.f32 %v7634, 0.3275911
    %v7643 = vmul.f32 %v7635, 0.3275911
    %v7644 = vmul.f32 %v7636, 0.3275911
    %v7645 = vmul.f32 %v7637, 0.3275911
    %v7646 = vmul.f32 %v7638, 0.3275911
    %v7647 = vadd.f32 %v7639, 1.0
    %v7648 = vadd.f32 %v7640, 1.0
    %v7649 = vadd.f32 %v7641, 1.0
    %v7650 = vadd.f32 %v7642, 1.0
    %v7651 = vadd.f32 %v7643, 1.0
    %v7652 = vadd.f32 %v7644, 1.0
    %v7653 = vadd.f32 %v7645, 1.0
    %v7654 = vadd.f32 %v7646, 1.0
    %v7655 = vrcp.pop %v7647
    %v7656 = vrcp.pop %v7648
    %v7657 = vrcp.pop %v7649
    %v7658 = vrcp.pop %v7650
    %v7659 = vrcp.pop %v7651
    %v7660 = vrcp.pop %v7652
    %v7661 = vrcp.pop %v7653
    %v7662 = vrcp.pop %v7654
    %v7663 = vmul.f32 %v7655, 1.0614054
    %v7664 = vmul.f32 %v7656, 1.0614054
    %v7665 = vmul.f32 %v7657, 1.0614054
    %v7666 = vmul.f32 %v7658, 1.0614054
    %v7667 = vmul.f32 %v7659, 1.0614054
    %v7668 = vmul.f32 %v7660, 1.0614054
    %v7669 = vmul.f32 %v7661, 1.0614054
    %v7670 = vmul.f32 %v7662, 1.0614054
    %v7671 = vadd.f32 %v7663, -1.4531521
    %v7672 = vadd.f32 %v7664, -1.4531521
    %v7673 = vadd.f32 %v7665, -1.4531521
    %v7674 = vadd.f32 %v7666, -1.4531521
    %v7675 = vadd.f32 %v7667, -1.4531521
    %v7676 = vadd.f32 %v7668, -1.4531521
    %v7677 = vadd.f32 %v7669, -1.4531521
    %v7678 = vadd.f32 %v7670, -1.4531521
    %v7679 = vmul.f32 %v7671, %v7655
    %v7680 = vmul.f32 %v7672, %v7656
    %v7681 = vmul.f32 %v7673, %v7657
    %v7682 = vmul.f32 %v7674, %v7658
    %v7683 = vmul.f32 %v7675, %v7659
    %v7684 = vmul.f32 %v7676, %v7660
    %v7685 = vmul.f32 %v7677, %v7661
    %v7686 = vmul.f32 %v7678, %v7662
    %v7687 = vadd.f32 %v7679, 1.4214138
    %v7688 = vadd.f32 %v7680, 1.4214138
    %v7689 = vadd.f32 %v7681, 1.4214138
    %v7690 = vadd.f32 %v7682, 1.4214138
    %v7691 = vadd.f32 %v7683, 1.4214138
    %v7692 = vadd.f32 %v7684, 1.4214138
    %v7693 = vadd.f32 %v7685, 1.4214138
    %v7694 = vadd.f32 %v7686, 1.4214138
    %v7695 = vmul.f32 %v7687, %v7655
    %v7696 = vmul.f32 %v7688, %v7656
    %v7697 = vmul.f32 %v7689, %v7657
    %v7698 = vmul.f32 %v7690, %v7658
    %v7699 = vmul.f32 %v7691, %v7659
    %v7700 = vmul.f32 %v7692, %v7660
    %v7701 = vmul.f32 %v7693, %v7661
    %v7702 = vmul.f32 %v7694, %v7662
    %v7703 = vadd.f32 %v7695, -0.28449672
    %v7704 = vadd.f32 %v7696, -0.28449672
    %v7705 = vadd.f32 %v7697, -0.28449672
    %v7706 = vadd.f32 %v7698, -0.28449672
    %v7707 = vadd.f32 %v7699, -0.28449672
    %v7708 = vadd.f32 %v7700, -0.28449672
    %v7709 = vadd.f32 %v7701, -0.28449672
    %v7710 = vadd.f32 %v7702, -0.28449672
    %v7711 = vmul.f32 %v7703, %v7655
    %v7712 = vmul.f32 %v7704, %v7656
    %v7713 = vmul.f32 %v7705, %v7657
    %v7714 = vmul.f32 %v7706, %v7658
    %v7715 = vmul.f32 %v7707, %v7659
    %v7716 = vmul.f32 %v7708, %v7660
    %v7717 = vmul.f32 %v7709, %v7661
    %v7718 = vmul.f32 %v7710, %v7662
    %v7719 = vadd.f32 %v7711, 0.2548296
    %v7720 = vadd.f32 %v7712, 0.2548296
    %v7721 = vadd.f32 %v7713, 0.2548296
    %v7722 = vadd.f32 %v7714, 0.2548296
    %v7723 = vadd.f32 %v7715, 0.2548296
    %v7724 = vadd.f32 %v7716, 0.2548296
    %v7725 = vadd.f32 %v7717, 0.2548296
    %v7726 = vadd.f32 %v7718, 0.2548296
    %v7727 = vmul.f32 %v7719, %v7655
    %v7728 = vmul.f32 %v7720, %v7656
    %v7729 = vmul.f32 %v7721, %v7657
    %v7730 = vmul.f32 %v7722, %v7658
    %v7731 = vmul.f32 %v7723, %v7659
    %v7732 = vmul.f32 %v7724, %v7660
    %v7733 = vmul.f32 %v7725, %v7661
    %v7734 = vmul.f32 %v7726, %v7662
    %v7735 = vsub.f32 0.0, %v7631
    %v7736 = vsub.f32 0.0, %v7632
    %v7737 = vsub.f32 0.0, %v7633
    %v7738 = vsub.f32 0.0, %v7634
    %v7739 = vsub.f32 0.0, %v7635
    %v7740 = vsub.f32 0.0, %v7636
    %v7741 = vsub.f32 0.0, %v7637
    %v7742 = vsub.f32 0.0, %v7638
    %v7743 = vmul.f32 %v7735, %v7631
    %v7744 = vmul.f32 %v7736, %v7632
    %v7745 = vmul.f32 %v7737, %v7633
    %v7746 = vmul.f32 %v7738, %v7634
    %v7747 = vmul.f32 %v7739, %v7635
    %v7748 = vmul.f32 %v7740, %v7636
    %v7749 = vmul.f32 %v7741, %v7637
    %v7750 = vmul.f32 %v7742, %v7638
    %v7751 = vmul.f32 %v7743, 1.442695
    %v7752 = vpow.pop %v7751
    %v7753 = vmul.f32 %v7744, 1.442695
    %v7754 = vpow.pop %v7753
    %v7755 = vmul.f32 %v7745, 1.442695
    %v7756 = vpow.pop %v7755
    %v7757 = vmul.f32 %v7746, 1.442695
    %v7758 = vpow.pop %v7757
    %v7759 = vmul.f32 %v7747, 1.442695
    %v7760 = vpow.pop %v7759
    %v7761 = vmul.f32 %v7748, 1.442695
    %v7762 = vpow.pop %v7761
    %v7763 = vmul.f32 %v7749, 1.442695
    %v7764 = vpow.pop %v7763
    %v7765 = vmul.f32 %v7750, 1.442695
    %v7766 = vpow.pop %v7765
    %v7767 = vmul.f32 %v7727, %v7752
    %v7768 = vmul.f32 %v7728, %v7754
    %v7769 = vmul.f32 %v7729, %v7756
    %v7770 = vmul.f32 %v7730, %v7758
    %v7771 = vmul.f32 %v7731, %v7760
    %v7772 = vmul.f32 %v7732, %v7762
    %v7773 = vmul.f32 %v7733, %v7764
    %v7774 = vmul.f32 %v7734, %v7766
    %v7775 = vsub.f32 1.0, %v7767
    %v7776 = vsub.f32 1.0, %v7768
    %v7777 = vsub.f32 1.0, %v7769
    %v7778 = vsub.f32 1.0, %v7770
    %v7779 = vsub.f32 1.0, %v7771
    %v7780 = vsub.f32 1.0, %v7772
    %v7781 = vsub.f32 1.0, %v7773
    %v7782 = vsub.f32 1.0, %v7774
    %v7783 = vmul.f32 %v7623, %v7775
    %v7784 = vmul.f32 %v7624, %v7776
    %v7785 = vmul.f32 %v7625, %v7777
    %v7786 = vmul.f32 %v7626, %v7778
    %v7787 = vmul.f32 %v7627, %v7779
    %v7788 = vmul.f32 %v7628, %v7780
    %v7789 = vmul.f32 %v7629, %v7781
    %v7790 = vmul.f32 %v7630, %v7782
    %v7791 = vadd.f32 %v7783, 1.0
    %v7792 = vadd.f32 %v7784, 1.0
    %v7793 = vadd.f32 %v7785, 1.0
    %v7794 = vadd.f32 %v7786, 1.0
    %v7795 = vadd.f32 %v7787, 1.0
    %v7796 = vadd.f32 %v7788, 1.0
    %v7797 = vadd.f32 %v7789, 1.0
    %v7798 = vadd.f32 %v7790, 1.0
    %v7799 = vmul.f32 %v7599, %v7791
    %v7800 = vmul.f32 %v7600, %v7792
    %v7801 = vmul.f32 %v7601, %v7793
    %v7802 = vmul.f32 %v7602, %v7794
    %v7803 = vmul.f32 %v7603, %v7795
    %v7804 = vmul.f32 %v7604, %v7796
    %v7805 = vmul.f32 %v7605, %v7797
    %v7806 = vmul.f32 %v7606, %v7798
    %v7807 = vld [vmem:[%s19] sm:$0xf]
    %v7808 = vld [vmem:[%s19 + $0x4] sm:$0xf]
    %v7809 = vld [vmem:[%s19 + $0x8] sm:$0xf]
    %v7810 = vld [vmem:[%s19 + $0xc] sm:$0xf]
    %v7811 = vld [vmem:[%s19 + $0x10] sm:$0xf]
    %v7812 = vld [vmem:[%s19 + $0x14] sm:$0xf]
    %v7813 = vld [vmem:[%s19 + $0x18] sm:$0xf]
    %v7814 = vld [vmem:[%s19 + $0x1c] sm:$0xf]
    %v7815 = vld [vmem:[%s19 + $0x20] sm:$0xf]
    %v7816 = vld [vmem:[%s19 + $0x24] sm:$0xf]
    %v7817 = vld [vmem:[%s19 + $0x28] sm:$0xf]
    %v7818 = vld [vmem:[%s19 + $0x2c] sm:$0xf]
    %v7819 = vld [vmem:[%s19 + $0x30] sm:$0xf]
    %v7820 = vld [vmem:[%s19 + $0x34] sm:$0xf]
    %v7821 = vld [vmem:[%s19 + $0x38] sm:$0xf]
    %v7822 = vld [vmem:[%s19 + $0x3c] sm:$0xf]
    %v7823 = vld [vmem:[%s19 + $0x40] sm:$0xf]
    %v7824 = vld [vmem:[%s19 + $0x44] sm:$0xf]
    %v7825 = vld [vmem:[%s19 + $0x48] sm:$0xf]
    %v7826 = vld [vmem:[%s19 + $0x4c] sm:$0xf]
    %v7827 = vld [vmem:[%s19 + $0x50] sm:$0xf]
    %v7828 = vld [vmem:[%s19 + $0x54] sm:$0xf]
    %v7829 = vld [vmem:[%s19 + $0x58] sm:$0xf]
    %v7830 = vld [vmem:[%s19 + $0x5c] sm:$0xf]
    %v7831 = vld [vmem:[%s19 + $0x60] sm:$0xf]
    %v7832 = vld [vmem:[%s19 + $0x64] sm:$0xf]
    %v7833 = vld [vmem:[%s19 + $0x68] sm:$0xf]
    %v7834 = vld [vmem:[%s19 + $0x6c] sm:$0xf]
    %v7835 = vld [vmem:[%s19 + $0x70] sm:$0xf]
    %v7836 = vld [vmem:[%s19 + $0x74] sm:$0xf]
    %v7837 = vld [vmem:[%s19 + $0x78] sm:$0xf]
    %v7838 = vld [vmem:[%s19 + $0x7c] sm:$0xf]
    %v7839 = vpack.c.bf16 %v7801, %v7799
    %v7840 = vpack.c.bf16 %v7802, %v7800
    %v7841 = vpack.c.bf16 %v7805, %v7803
    %v7842 = vpack.c.bf16 %v7806, %v7804
    %v7875 = vunpack.c.l.b16 %v7807
    %v7876 = vunpack.c.l.b16 %v7808
    %v7877 = vunpack.c.l.b16 %v7809
    %v7878 = vunpack.c.l.b16 %v7810
    %v7879 = vunpack.c.l.b16 %v7811
    %v7880 = vunpack.c.l.b16 %v7812
    %v7881 = vunpack.c.l.b16 %v7813
    %v7882 = vunpack.c.l.b16 %v7814
    %v7883 = vunpack.c.l.b16 %v7815
    %v7884 = vunpack.c.l.b16 %v7816
    %v7885 = vunpack.c.l.b16 %v7817
    %v7886 = vunpack.c.l.b16 %v7818
    %v7887 = vunpack.c.l.b16 %v7819
    %v7888 = vunpack.c.l.b16 %v7820
    %v7889 = vunpack.c.l.b16 %v7821
    %v7890 = vunpack.c.l.b16 %v7822
    %v7891 = vunpack.c.l.b16 %v7823
    %v7892 = vunpack.c.l.b16 %v7824
    %v7893 = vunpack.c.l.b16 %v7825
    %v7894 = vunpack.c.l.b16 %v7826
    %v7895 = vunpack.c.l.b16 %v7827
    %v7896 = vunpack.c.l.b16 %v7828
    %v7897 = vunpack.c.l.b16 %v7829
    %v7898 = vunpack.c.l.b16 %v7830
    %v7899 = vunpack.c.l.b16 %v7831
    %v7900 = vunpack.c.l.b16 %v7832
    %v7901 = vunpack.c.l.b16 %v7833
    %v7902 = vunpack.c.l.b16 %v7834
    %v7903 = vunpack.c.l.b16 %v7835
    %v7904 = vunpack.c.l.b16 %v7836
    %v7905 = vunpack.c.l.b16 %v7837
    %v7906 = vunpack.c.l.b16 %v7838
    %v7907 = vpack.c.b16 %v7876, %v7875
    %v7908 = vpack.c.b16 %v7878, %v7877
    %v7909 = vpack.c.b16 %v7880, %v7879
    %v7910 = vpack.c.b16 %v7882, %v7881
    %v7911 = vpack.c.b16 %v7884, %v7883
    %v7912 = vpack.c.b16 %v7886, %v7885
    %v7913 = vpack.c.b16 %v7888, %v7887
    %v7914 = vpack.c.b16 %v7890, %v7889
    %v7915 = vpack.c.b16 %v7892, %v7891
    %v7916 = vpack.c.b16 %v7894, %v7893
    %v7917 = vpack.c.b16 %v7896, %v7895
    %v7918 = vpack.c.b16 %v7898, %v7897
    %v7919 = vpack.c.b16 %v7900, %v7899
    %v7920 = vpack.c.b16 %v7902, %v7901
    %v7921 = vpack.c.b16 %v7904, %v7903
    %v7922 = vpack.c.b16 %v7906, %v7905
    %7939 = vmatpush.bf16.msra.mxu0 %v7914
    %7940 = vmatpush.bf16.msra.mxu0 %v7913
    %7941 = vmatpush.bf16.msra.mxu0 %v7912
    %7942 = vmatpush.bf16.msra.mxu0 %v7911
    %7943 = vmatpush.bf16.msra.mxu0 %v7910
    %7944 = vmatpush.bf16.msra.mxu0 %v7909
    %7945 = vmatpush.bf16.msra.mxu0 %v7908
    %7946 = vmatpush.bf16.msra.mxu0 %v7907
    %7947 = vmatmul.bf16.gmra.mxu0 %v7839
    %v7948 = vpop.f32.mrf.mxu0
    %v7949 = vadd.f32 0.0, %v7948
    %v7950 = vpop.f32.mrf.mxu0
    %v7951 = vadd.f32 0.0, %v7950
    %7952 = vmatmul.bf16.gmra.mxu0 %v7841
    %v7953 = vpop.f32.mrf.mxu0
    %v7954 = vadd.f32 0.0, %v7953
    %v7955 = vpop.f32.mrf.mxu0
    %v7956 = vadd.f32 0.0, %v7955
    %7957 = vdwg.mxu0
    %7958 = vmatpush.bf16.msra.mxu0 %v7922
    %7959 = vmatpush.bf16.msra.mxu0 %v7921
    %7960 = vmatpush.bf16.msra.mxu0 %v7920
    %7961 = vmatpush.bf16.msra.mxu0 %v7919
    %7962 = vmatpush.bf16.msra.mxu0 %v7918
    %7963 = vmatpush.bf16.msra.mxu0 %v7917
    %7964 = vmatpush.bf16.msra.mxu0 %v7916
    %7965 = vmatpush.bf16.msra.mxu0 %v7915
    %7966 = vmatmul.bf16.gmra.mxu0 %v7840
    %v7967 = vpop.f32.mrf.mxu0
    %v7968 = vadd.f32 %v7949, %v7967
    %v7969 = vpop.f32.mrf.mxu0
    %v7970 = vadd.f32 %v7951, %v7969
    %7971 = vmatmul.bf16.gmra.mxu0 %v7842
    %v7972 = vpop.f32.mrf.mxu0
    %v7973 = vadd.f32 %v7954, %v7972
    %v7974 = vpop.f32.mrf.mxu0
    %v7975 = vadd.f32 %v7956, %v7974
    %7976 = vdwg.mxu0
    %v7977 = vadd.f32 %v7398, %v7968
    %v7978 = vadd.f32 %v7399, %v7970
    %v7979 = vadd.f32 %v7400, %v7973
    %v7980 = vadd.f32 %v7401, %v7975
    %v7981 = vperm.slane %v6536, 0
    %v7982 = vadd.f32 %v7977, %v7981
    %v7983 = vadd.f32 %v7978, %v7981
    %v7984 = vadd.f32 %v7979, %v7981
    %v7985 = vadd.f32 %v7980, %v7981
    %v7986 = vld [vmem:[%s3 + $0x6] sm:$0x1]
    %v7987 = vld [vmem:[%s3 + $0x7] sm:$0x1]
    %v7988 = vld [vmem:[%s3 + $0x8] sm:$0x1]
    %v7989 = vld [vmem:[%s3 + $0x9] sm:$0x1]
    %v7990 = vld [vmem:[%s3 + $0xa] sm:$0x1]
    %v7991 = vld [vmem:[%s3 + $0xb] sm:$0x1]
    %s7992 = scalar_lea.vmem [#allocation8], 1
    %v7993 = vld [vmem:[%s7992] ss:$2 sm:$0x3]
    %v7994 = vsel %vm6538, %v7982, 0.0
    %7995 = vadd.xlane.f32.xlu0 %v7994
    %v7996 = vpop.xlane.xlu0 %7995
    %v7997 = vsel %vm6538, %v7983, 0.0
    %7998 = vadd.xlane.f32.xlu0 %v7997
    %v7999 = vpop.xlane.xlu0 %7998
    %v8000 = vsel %vm6538, %v7984, 0.0
    %8001 = vadd.xlane.f32.xlu0 %v8000
    %v8002 = vpop.xlane.xlu0 %8001
    %v8003 = vsel %vm6538, %v7985, 0.0
    %8004 = vadd.xlane.f32.xlu0 %v8003
    %v8005 = vpop.xlane.xlu0 %8004
    %v8006 = vmul.f32 %v7996, %v6557
    %v8007 = vmul.f32 %v7999, %v6557
    %v8008 = vmul.f32 %v8002, %v6557
    %v8009 = vmul.f32 %v8005, %v6557
    %v8010 = vsub.f32 %v7982, %v8006
    %v8011 = vsub.f32 %v7983, %v8007
    %v8012 = vsub.f32 %v7984, %v8008
    %v8013 = vsub.f32 %v7985, %v8009
    %v8014 = vmul.f32 %v8010, %v8010
    %v8015 = vmul.f32 %v8011, %v8011
    %v8016 = vmul.f32 %v8012, %v8012
    %v8017 = vmul.f32 %v8013, %v8013
    %v8018 = vsel %vm6538, %v8014, 0.0
    %8019 = vadd.xlane.f32.xlu0 %v8018
    %v8020 = vpop.xlane.xlu0 %8019
    %v8021 = vsel %vm6538, %v8015, 0.0
    %8022 = vadd.xlane.f32.xlu0 %v8021
    %v8023 = vpop.xlane.xlu0 %8022
    %v8024 = vsel %vm6538, %v8016, 0.0
    %8025 = vadd.xlane.f32.xlu0 %v8024
    %v8026 = vpop.xlane.xlu0 %8025
    %v8027 = vsel %vm6538, %v8017, 0.0
    %8028 = vadd.xlane.f32.xlu0 %v8027
    %v8029 = vpop.xlane.xlu0 %8028
    %v8030 = vmul.f32 %v8020, %v6557
    %v8031 = vmul.f32 %v8023, %v6557
    %v8032 = vmul.f32 %v8026, %v6557
    %v8033 = vmul.f32 %v8029, %v6557
    %v8034 = vadd.f32 %v8030, 1e-05
    %v8035 = vadd.f32 %v8031, 1e-05
    %v8036 = vadd.f32 %v8032, 1e-05
    %v8037 = vadd.f32 %v8033, 1e-05
    %v8038 = vrsqrt.pop %v8034
    %v8039 = vmul.f32 %v8038, %v8034
    %v8040 = vmul.f32 %v8039, %v8038
    %v8041 = vmul.f32 0.5, %v8040
    %v8042 = vsub.f32 1.5, %v8041
    %v8043 = vmul.f32 %v8038, %v8042
    %vm8044 = vweird.f32 %v8034
    %vm8045 = vweird.f32 %v8038
    %vm8046 = vmor %vm8044, %vm8045
    %v8047 = vsel %vm8046, %v8038, %v8043
    %v8048 = vrsqrt.pop %v8035
    %v8049 = vmul.f32 %v8048, %v8035
    %v8050 = vmul.f32 %v8049, %v8048
    %v8051 = vmul.f32 0.5, %v8050
    %v8052 = vsub.f32 1.5, %v8051
    %v8053 = vmul.f32 %v8048, %v8052
    %vm8054 = vweird.f32 %v8035
    %vm8055 = vweird.f32 %v8048
    %vm8056 = vmor %vm8054, %vm8055
    %v8057 = vsel %vm8056, %v8048, %v8053
    %v8058 = vrsqrt.pop %v8036
    %v8059 = vmul.f32 %v8058, %v8036
    %v8060 = vmul.f32 %v8059, %v8058
    %v8061 = vmul.f32 0.5, %v8060
    %v8062 = vsub.f32 1.5, %v8061
    %v8063 = vmul.f32 %v8058, %v8062
    %vm8064 = vweird.f32 %v8036
    %vm8065 = vweird.f32 %v8058
    %vm8066 = vmor %vm8064, %vm8065
    %v8067 = vsel %vm8066, %v8058, %v8063
    %v8068 = vrsqrt.pop %v8037
    %v8069 = vmul.f32 %v8068, %v8037
    %v8070 = vmul.f32 %v8069, %v8068
    %v8071 = vmul.f32 0.5, %v8070
    %v8072 = vsub.f32 1.5, %v8071
    %v8073 = vmul.f32 %v8068, %v8072
    %vm8074 = vweird.f32 %v8037
    %vm8075 = vweird.f32 %v8068
    %vm8076 = vmor %vm8074, %vm8075
    %v8077 = vsel %vm8076, %v8068, %v8073
    %v8078 = vmul.f32 %v8010, %v8047
    %v8079 = vmul.f32 %v8011, %v8057
    %v8080 = vmul.f32 %v8012, %v8067
    %v8081 = vmul.f32 %v8013, %v8077
    %v8082 = vperm.slane %v7986, 0
    %v8083 = vmul.f32 %v8078, %v8082
    %v8084 = vmul.f32 %v8079, %v8082
    %v8085 = vmul.f32 %v8080, %v8082
    %v8086 = vmul.f32 %v8081, %v8082
    %v8087 = vperm.slane %v7987, 0
    %v8088 = vadd.f32 %v8083, %v8087
    %v8089 = vadd.f32 %v8084, %v8087
    %v8090 = vadd.f32 %v8085, %v8087
    %v8091 = vadd.f32 %v8086, %v8087
    %s8092 = scalar_lea.vmem %s14, 64
    %v8093 = vld [vmem:[%s8092] sm:$0xff]
    %v8094 = vld [vmem:[%s8092 + $0x8] sm:$0xff]
    %v8095 = vld [vmem:[%s8092 + $0x10] sm:$0xff]
    %v8096 = vld [vmem:[%s8092 + $0x18] sm:$0xff]
    %v8097 = vld [vmem:[%s8092 + $0x20] sm:$0xff]
    %v8098 = vld [vmem:[%s8092 + $0x28] sm:$0xff]
    %v8099 = vld [vmem:[%s8092 + $0x30] sm:$0xff]
    %v8100 = vld [vmem:[%s8092 + $0x38] sm:$0xff]
    %v8101 = vpack.c.bf16 %v8089, %v8088
    %v8102 = vpack.c.bf16 %v8091, %v8090
    %s8103 = scalar_lea.vmem %s15, 1
    %v8104 = vld [vmem:[%s8103] ss:$2 sm:$0x3]
    %v8106 = vperm.slane %v8104, 0
    %v8107 = vperm.slane %v8104, 1
    %v8118 = vunpack.c.l.b16 %v8093
    %v8119 = vunpack.c.h.b16 %v8093
    %v8120 = vunpack.c.l.b16 %v8094
    %v8121 = vunpack.c.h.b16 %v8094
    %v8122 = vunpack.c.l.b16 %v8095
    %v8123 = vunpack.c.h.b16 %v8095
    %v8124 = vunpack.c.l.b16 %v8096
    %v8125 = vunpack.c.h.b16 %v8096
    %v8126 = vunpack.c.l.b16 %v8097
    %v8127 = vunpack.c.h.b16 %v8097
    %v8128 = vunpack.c.l.b16 %v8098
    %v8129 = vunpack.c.h.b16 %v8098
    %v8130 = vunpack.c.l.b16 %v8099
    %v8131 = vunpack.c.h.b16 %v8099
    %v8132 = vunpack.c.l.b16 %v8100
    %v8133 = vunpack.c.h.b16 %v8100
    %v8134 = vpack.c.b16 %v8120, %v8118
    %v8135 = vpack.c.b16 %v8121, %v8119
    %v8136 = vpack.c.b16 %v8124, %v8122
    %v8137 = vpack.c.b16 %v8125, %v8123
    %v8138 = vpack.c.b16 %v8128, %v8126
    %v8139 = vpack.c.b16 %v8129, %v8127
    %v8140 = vpack.c.b16 %v8132, %v8130
    %v8141 = vpack.c.b16 %v8133, %v8131
    %v8151 = vsel %vm6538, %v8101, 0
    %v8154 = vsel %vm6538, %v8102, 0
    %8156 = vmatpush.bf16.msra.mxu0 0
    %8157 = vmatpush.bf16.msra.mxu0 0
    %8158 = vmatpush.bf16.msra.mxu0 0
    %8159 = vmatpush.bf16.msra.mxu0 0
    %8160 = vmatpush.bf16.msra.mxu0 %v8140
    %8161 = vmatpush.bf16.msra.mxu0 %v8138
    %8162 = vmatpush.bf16.msra.mxu0 %v8136
    %8163 = vmatpush.bf16.msra.mxu0 %v8134
    %8164 = vmatmul.bf16.gmra.mxu0 %v8151
    %v8165 = vpop.f32.mrf.mxu0
    %v8166 = vadd.f32 %v8106, %v8165
    %v8167 = vpop.f32.mrf.mxu0
    %v8168 = vadd.f32 %v8106, %v8167
    %8169 = vmatmul.bf16.gmra.mxu0 %v8154
    %v8170 = vpop.f32.mrf.mxu0
    %v8171 = vadd.f32 %v8106, %v8170
    %v8172 = vpop.f32.mrf.mxu0
    %v8173 = vadd.f32 %v8106, %v8172
    %8174 = vdwg.mxu0
    %8175 = vmatpush.bf16.msra.mxu0 0
    %8176 = vmatpush.bf16.msra.mxu0 0
    %8177 = vmatpush.bf16.msra.mxu0 0
    %8178 = vmatpush.bf16.msra.mxu0 0
    %8179 = vmatpush.bf16.msra.mxu0 %v8141
    %8180 = vmatpush.bf16.msra.mxu0 %v8139
    %8181 = vmatpush.bf16.msra.mxu0 %v8137
    %8182 = vmatpush.bf16.msra.mxu0 %v8135
    %8183 = vmatmul.bf16.gmra.mxu0 %v8151
    %v8184 = vpop.f32.mrf.mxu0
    %v8185 = vadd.f32 %v8107, %v8184
    %v8186 = vpop.f32.mrf.mxu0
    %v8187 = vadd.f32 %v8107, %v8186
    %8188 = vmatmul.bf16.gmra.mxu0 %v8154
    %v8189 = vpop.f32.mrf.mxu0
    %v8190 = vadd.f32 %v8107, %v8189
    %v8191 = vpop.f32.mrf.mxu0
    %v8192 = vadd.f32 %v8107, %v8191
    %8193 = vdwg.mxu0
    %v8194 = vpack.c.bf16 %v8168, %v8166
    %v8195 = vpack.c.bf16 %v8173, %v8171
    %8198 = vrot.lane.b32.xlu0 %v8194, 112
    %v8199 = vpop.permute.xlu0 %8198
    %8200 = vrot.lane.b32.xlu0 %v8195, 112
    %v8201 = vpop.permute.xlu0 %8200
    %v8203 = vsel %vm1269, %v8194, 0
    %v8206 = vsel %vm1269, %v8195, 0
    %v8209 = vsel %vm1269, %v8199, 0
    %v8212 = vsel %vm1269, %v8201, 0
    %8214 = vmatpush.bf16.xpose.msra.mxu0 0
    %8215 = vmatpush.bf16.xpose.msra.mxu0 0
    %8216 = vmatpush.bf16.xpose.msra.mxu0 0
    %8217 = vmatpush.bf16.xpose.msra.mxu0 0
    %8218 = vmatpush.bf16.xpose.msra.mxu0 0
    %8219 = vmatpush.bf16.xpose.msra.mxu0 0
    %8220 = vmatpush.bf16.xpose.msra.mxu0 %v8212
    %8221 = vmatpush.bf16.xpose.msra.mxu0 %v8209
    %8222 = vmatmul.bf16.gmra.mxu0 %v8203
    %v8223 = vpop.f32.mrf.mxu0
    %v8224 = vadd.f32 0.0, %v8223
    %v8225 = vpop.f32.mrf.mxu0
    %v8226 = vadd.f32 0.0, %v8225
    %8227 = vmatmul.bf16.gmra.mxu0 %v8206
    %v8228 = vpop.f32.mrf.mxu0
    %v8229 = vadd.f32 0.0, %v8228
    %v8230 = vpop.f32.mrf.mxu0
    %v8231 = vadd.f32 0.0, %v8230
    %8232 = vdwg.mxu0
    %v8233 = vmul.f32 %v8224, 0.25
    %v8234 = vmul.f32 %v8226, 0.25
    %v8235 = vmul.f32 %v8229, 0.25
    %v8236 = vmul.f32 %v8231, 0.25
    %s8237 = scalar_lea.vmem %s17, 64
    %v8238 = vld [vmem:[%s8237] sm:$0xf]
    %v8239 = vld [vmem:[%s8237 + $0x4] sm:$0xf]
    %v8240 = vld [vmem:[%s8237 + $0x8] sm:$0xf]
    %v8241 = vld [vmem:[%s8237 + $0xc] sm:$0xf]
    %v8242 = vunpack.c.l.bf16 %v8238
    %v8243 = vunpack.c.l.bf16 %v8239
    %v8244 = vunpack.c.l.bf16 %v8240
    %v8245 = vunpack.c.l.bf16 %v8241
    %v8246 = vadd.f32 %v8233, %v8242
    %v8247 = vadd.f32 %v8234, %v8243
    %v8248 = vadd.f32 %v8235, %v8244
    %v8249 = vadd.f32 %v8236, %v8245
    %v8250 = vsel %vm351, %v8246, -inf
    %8251 = vmax.xlane.f32.xlu0 %v8250
    %v8252 = vpop.xlane.xlu0 %8251
    %v8253 = vsel %vm351, %v8247, -inf
    %8254 = vmax.xlane.f32.xlu0 %v8253
    %v8255 = vpop.xlane.xlu0 %8254
    %v8256 = vsel %vm351, %v8248, -inf
    %8257 = vmax.xlane.f32.xlu0 %v8256
    %v8258 = vpop.xlane.xlu0 %8257
    %v8259 = vsel %vm351, %v8249, -inf
    %8260 = vmax.xlane.f32.xlu0 %v8259
    %v8261 = vpop.xlane.xlu0 %8260
    %v8262 = vsub.f32 %v8246, %v8252
    %v8263 = vsub.f32 %v8247, %v8255
    %v8264 = vsub.f32 %v8248, %v8258
    %v8265 = vsub.f32 %v8249, %v8261
    %v8266 = vmul.f32 %v8262, 1.442695
    %v8267 = vpow.pop %v8266
    %v8268 = vmul.f32 %v8263, 1.442695
    %v8269 = vpow.pop %v8268
    %v8270 = vmul.f32 %v8264, 1.442695
    %v8271 = vpow.pop %v8270
    %v8272 = vmul.f32 %v8265, 1.442695
    %v8273 = vpow.pop %v8272
    %v8274 = vsel %vm351, %v8267, 0.0
    %8275 = vadd.xlane.f32.xlu0 %v8274
    %v8276 = vpop.xlane.xlu0 %8275
    %v8277 = vsel %vm351, %v8269, 0.0
    %8278 = vadd.xlane.f32.xlu0 %v8277
    %v8279 = vpop.xlane.xlu0 %8278
    %v8280 = vsel %vm351, %v8271, 0.0
    %8281 = vadd.xlane.f32.xlu0 %v8280
    %v8282 = vpop.xlane.xlu0 %8281
    %v8283 = vsel %vm351, %v8273, 0.0
    %8284 = vadd.xlane.f32.xlu0 %v8283
    %v8285 = vpop.xlane.xlu0 %8284
    %v8286 = vrcp.pop %v8276
    %v8287 = vrcp.pop %v8279
    %v8288 = vrcp.pop %v8282
    %v8289 = vrcp.pop %v8285
    %v8290 = vmul.f32 %v8267, %v8286
    %v8291 = vmul.f32 %v8269, %v8287
    %v8292 = vmul.f32 %v8271, %v8288
    %v8293 = vmul.f32 %v8273, %v8289
    %v8294 = vpack.c.bf16 %v8291, %v8290
    %v8295 = vpack.c.bf16 %v8293, %v8292
    %8296 = vrot.lane.b32.xlu0 %v8194, 96
    %v8297 = vpop.permute.xlu0 %8296
    %8298 = vrot.lane.b32.xlu0 %v8195, 96
    %v8299 = vpop.permute.xlu0 %8298
    %v8303 = vsel %vm351, %v8294, 0
    %v8306 = vsel %vm351, %v8295, 0
    %8308 = vmatpush.bf16.msra.mxu0 0
    %8309 = vmatpush.bf16.msra.mxu0 0
    %8310 = vmatpush.bf16.msra.mxu0 0
    %8311 = vmatpush.bf16.msra.mxu0 0
    %8312 = vmatpush.bf16.msra.mxu0 0
    %8313 = vmatpush.bf16.msra.mxu0 0
    %8314 = vmatpush.bf16.msra.mxu0 %v8299
    %8315 = vmatpush.bf16.msra.mxu0 %v8297
    %8316 = vmatmul.bf16.gmra.mxu0 %v8303
    %v8317 = vpop.f32.mrf.mxu0
    %v8318 = vadd.f32 0.0, %v8317
    %v8319 = vpop.f32.mrf.mxu0
    %v8320 = vadd.f32 0.0, %v8319
    %8321 = vmatmul.bf16.gmra.mxu0 %v8306
    %v8322 = vpop.f32.mrf.mxu0
    %v8323 = vadd.f32 0.0, %v8322
    %v8324 = vpop.f32.mrf.mxu0
    %v8325 = vadd.f32 0.0, %v8324
    %8326 = vdwg.mxu0
    %8327 = vrot.lane.b32.xlu0 %v8194, 80
    %v8328 = vpop.permute.xlu0 %8327
    %8329 = vrot.lane.b32.xlu0 %v8195, 80
    %v8330 = vpop.permute.xlu0 %8329
    %8331 = vrot.lane.b32.xlu0 %v8194, 64
    %v8332 = vpop.permute.xlu0 %8331
    %8333 = vrot.lane.b32.xlu0 %v8195, 64
    %v8334 = vpop.permute.xlu0 %8333
    %v8336 = vsel %vm1269, %v8328, 0
    %v8339 = vsel %vm1269, %v8330, 0
    %v8342 = vsel %vm1269, %v8332, 0
    %v8345 = vsel %vm1269, %v8334, 0
    %8347 = vmatpush.bf16.xpose.msra.mxu0 0
    %8348 = vmatpush.bf16.xpose.msra.mxu0 0
    %8349 = vmatpush.bf16.xpose.msra.mxu0 0
    %8350 = vmatpush.bf16.xpose.msra.mxu0 0
    %8351 = vmatpush.bf16.xpose.msra.mxu0 0
    %8352 = vmatpush.bf16.xpose.msra.mxu0 0
    %8353 = vmatpush.bf16.xpose.msra.mxu0 %v8345
    %8354 = vmatpush.bf16.xpose.msra.mxu0 %v8342
    %8355 = vmatmul.bf16.gmra.mxu0 %v8336
    %v8356 = vpop.f32.mrf.mxu0
    %v8357 = vadd.f32 0.0, %v8356
    %v8358 = vpop.f32.mrf.mxu0
    %v8359 = vadd.f32 0.0, %v8358
    %8360 = vmatmul.bf16.gmra.mxu0 %v8339
    %v8361 = vpop.f32.mrf.mxu0
    %v8362 = vadd.f32 0.0, %v8361
    %v8363 = vpop.f32.mrf.mxu0
    %v8364 = vadd.f32 0.0, %v8363
    %8365 = vdwg.mxu0
    %v8366 = vmul.f32 %v8357, 0.25
    %v8367 = vmul.f32 %v8359, 0.25
    %v8368 = vmul.f32 %v8362, 0.25
    %v8369 = vmul.f32 %v8364, 0.25
    %s8370 = scalar_lea.vmem %s17, 80
    %v8371 = vld [vmem:[%s8370] sm:$0xf]
    %v8372 = vld [vmem:[%s8370 + $0x4] sm:$0xf]
    %v8373 = vld [vmem:[%s8370 + $0x8] sm:$0xf]
    %v8374 = vld [vmem:[%s8370 + $0xc] sm:$0xf]
    %v8375 = vunpack.c.l.bf16 %v8371
    %v8376 = vunpack.c.l.bf16 %v8372
    %v8377 = vunpack.c.l.bf16 %v8373
    %v8378 = vunpack.c.l.bf16 %v8374
    %v8379 = vadd.f32 %v8366, %v8375
    %v8380 = vadd.f32 %v8367, %v8376
    %v8381 = vadd.f32 %v8368, %v8377
    %v8382 = vadd.f32 %v8369, %v8378
    %v8383 = vsel %vm351, %v8379, -inf
    %8384 = vmax.xlane.f32.xlu0 %v8383
    %v8385 = vpop.xlane.xlu0 %8384
    %v8386 = vsel %vm351, %v8380, -inf
    %8387 = vmax.xlane.f32.xlu0 %v8386
    %v8388 = vpop.xlane.xlu0 %8387
    %v8389 = vsel %vm351, %v8381, -inf
    %8390 = vmax.xlane.f32.xlu0 %v8389
    %v8391 = vpop.xlane.xlu0 %8390
    %v8392 = vsel %vm351, %v8382, -inf
    %8393 = vmax.xlane.f32.xlu0 %v8392
    %v8394 = vpop.xlane.xlu0 %8393
    %v8395 = vsub.f32 %v8379, %v8385
    %v8396 = vsub.f32 %v8380, %v8388
    %v8397 = vsub.f32 %v8381, %v8391
    %v8398 = vsub.f32 %v8382, %v8394
    %v8399 = vmul.f32 %v8395, 1.442695
    %v8400 = vpow.pop %v8399
    %v8401 = vmul.f32 %v8396, 1.442695
    %v8402 = vpow.pop %v8401
    %v8403 = vmul.f32 %v8397, 1.442695
    %v8404 = vpow.pop %v8403
    %v8405 = vmul.f32 %v8398, 1.442695
    %v8406 = vpow.pop %v8405
    %v8407 = vsel %vm351, %v8400, 0.0
    %8408 = vadd.xlane.f32.xlu0 %v8407
    %v8409 = vpop.xlane.xlu0 %8408
    %v8410 = vsel %vm351, %v8402, 0.0
    %8411 = vadd.xlane.f32.xlu0 %v8410
    %v8412 = vpop.xlane.xlu0 %8411
    %v8413 = vsel %vm351, %v8404, 0.0
    %8414 = vadd.xlane.f32.xlu0 %v8413
    %v8415 = vpop.xlane.xlu0 %8414
    %v8416 = vsel %vm351, %v8406, 0.0
    %8417 = vadd.xlane.f32.xlu0 %v8416
    %v8418 = vpop.xlane.xlu0 %8417
    %v8419 = vrcp.pop %v8409
    %v8420 = vrcp.pop %v8412
    %v8421 = vrcp.pop %v8415
    %v8422 = vrcp.pop %v8418
    %v8423 = vmul.f32 %v8400, %v8419
    %v8424 = vmul.f32 %v8402, %v8420
    %v8425 = vmul.f32 %v8404, %v8421
    %v8426 = vmul.f32 %v8406, %v8422
    %v8427 = vpack.c.bf16 %v8424, %v8423
    %v8428 = vpack.c.bf16 %v8426, %v8425
    %8429 = vrot.lane.b32.xlu0 %v8194, 48
    %v8430 = vpop.permute.xlu0 %8429
    %8431 = vrot.lane.b32.xlu0 %v8195, 48
    %v8432 = vpop.permute.xlu0 %8431
    %v8436 = vsel %vm351, %v8427, 0
    %v8439 = vsel %vm351, %v8428, 0
    %8441 = vmatpush.bf16.msra.mxu0 0
    %8442 = vmatpush.bf16.msra.mxu0 0
    %8443 = vmatpush.bf16.msra.mxu0 0
    %8444 = vmatpush.bf16.msra.mxu0 0
    %8445 = vmatpush.bf16.msra.mxu0 0
    %8446 = vmatpush.bf16.msra.mxu0 0
    %8447 = vmatpush.bf16.msra.mxu0 %v8432
    %8448 = vmatpush.bf16.msra.mxu0 %v8430
    %8449 = vmatmul.bf16.gmra.mxu0 %v8436
    %v8450 = vpop.f32.mrf.mxu0
    %v8451 = vadd.f32 0.0, %v8450
    %v8452 = vpop.f32.mrf.mxu0
    %v8453 = vadd.f32 0.0, %v8452
    %8454 = vmatmul.bf16.gmra.mxu0 %v8439
    %v8455 = vpop.f32.mrf.mxu0
    %v8456 = vadd.f32 0.0, %v8455
    %v8457 = vpop.f32.mrf.mxu0
    %v8458 = vadd.f32 0.0, %v8457
    %8459 = vdwg.mxu0
    %8460 = vrot.lane.b32.xlu0 %v8194, 32
    %v8461 = vpop.permute.xlu0 %8460
    %8462 = vrot.lane.b32.xlu0 %v8195, 32
    %v8463 = vpop.permute.xlu0 %8462
    %8464 = vrot.lane.b32.xlu0 %v8194, 16
    %v8465 = vpop.permute.xlu0 %8464
    %8466 = vrot.lane.b32.xlu0 %v8195, 16
    %v8467 = vpop.permute.xlu0 %8466
    %v8469 = vsel %vm1269, %v8461, 0
    %v8472 = vsel %vm1269, %v8463, 0
    %v8475 = vsel %vm1269, %v8465, 0
    %v8478 = vsel %vm1269, %v8467, 0
    %8480 = vmatpush.bf16.xpose.msra.mxu0 0
    %8481 = vmatpush.bf16.xpose.msra.mxu0 0
    %8482 = vmatpush.bf16.xpose.msra.mxu0 0
    %8483 = vmatpush.bf16.xpose.msra.mxu0 0
    %8484 = vmatpush.bf16.xpose.msra.mxu0 0
    %8485 = vmatpush.bf16.xpose.msra.mxu0 0
    %8486 = vmatpush.bf16.xpose.msra.mxu0 %v8478
    %8487 = vmatpush.bf16.xpose.msra.mxu0 %v8475
    %8488 = vmatmul.bf16.gmra.mxu0 %v8469
    %v8489 = vpop.f32.mrf.mxu0
    %v8490 = vadd.f32 0.0, %v8489
    %v8491 = vpop.f32.mrf.mxu0
    %v8492 = vadd.f32 0.0, %v8491
    %8493 = vmatmul.bf16.gmra.mxu0 %v8472
    %v8494 = vpop.f32.mrf.mxu0
    %v8495 = vadd.f32 0.0, %v8494
    %v8496 = vpop.f32.mrf.mxu0
    %v8497 = vadd.f32 0.0, %v8496
    %8498 = vdwg.mxu0
    %v8499 = vmul.f32 %v8490, 0.25
    %v8500 = vmul.f32 %v8492, 0.25
    %v8501 = vmul.f32 %v8495, 0.25
    %v8502 = vmul.f32 %v8497, 0.25
    %s8503 = scalar_lea.vmem %s17, 96
    %v8504 = vld [vmem:[%s8503] sm:$0xf]
    %v8505 = vld [vmem:[%s8503 + $0x4] sm:$0xf]
    %v8506 = vld [vmem:[%s8503 + $0x8] sm:$0xf]
    %v8507 = vld [vmem:[%s8503 + $0xc] sm:$0xf]
    %v8508 = vunpack.c.l.bf16 %v8504
    %v8509 = vunpack.c.l.bf16 %v8505
    %v8510 = vunpack.c.l.bf16 %v8506
    %v8511 = vunpack.c.l.bf16 %v8507
    %v8512 = vadd.f32 %v8499, %v8508
    %v8513 = vadd.f32 %v8500, %v8509
    %v8514 = vadd.f32 %v8501, %v8510
    %v8515 = vadd.f32 %v8502, %v8511
    %v8516 = vsel %vm351, %v8512, -inf
    %8517 = vmax.xlane.f32.xlu0 %v8516
    %v8518 = vpop.xlane.xlu0 %8517
    %v8519 = vsel %vm351, %v8513, -inf
    %8520 = vmax.xlane.f32.xlu0 %v8519
    %v8521 = vpop.xlane.xlu0 %8520
    %v8522 = vsel %vm351, %v8514, -inf
    %8523 = vmax.xlane.f32.xlu0 %v8522
    %v8524 = vpop.xlane.xlu0 %8523
    %v8525 = vsel %vm351, %v8515, -inf
    %8526 = vmax.xlane.f32.xlu0 %v8525
    %v8527 = vpop.xlane.xlu0 %8526
    %v8528 = vsub.f32 %v8512, %v8518
    %v8529 = vsub.f32 %v8513, %v8521
    %v8530 = vsub.f32 %v8514, %v8524
    %v8531 = vsub.f32 %v8515, %v8527
    %v8532 = vmul.f32 %v8528, 1.442695
    %v8533 = vpow.pop %v8532
    %v8534 = vmul.f32 %v8529, 1.442695
    %v8535 = vpow.pop %v8534
    %v8536 = vmul.f32 %v8530, 1.442695
    %v8537 = vpow.pop %v8536
    %v8538 = vmul.f32 %v8531, 1.442695
    %v8539 = vpow.pop %v8538
    %v8540 = vsel %vm351, %v8533, 0.0
    %8541 = vadd.xlane.f32.xlu0 %v8540
    %v8542 = vpop.xlane.xlu0 %8541
    %v8543 = vsel %vm351, %v8535, 0.0
    %8544 = vadd.xlane.f32.xlu0 %v8543
    %v8545 = vpop.xlane.xlu0 %8544
    %v8546 = vsel %vm351, %v8537, 0.0
    %8547 = vadd.xlane.f32.xlu0 %v8546
    %v8548 = vpop.xlane.xlu0 %8547
    %v8549 = vsel %vm351, %v8539, 0.0
    %8550 = vadd.xlane.f32.xlu0 %v8549
    %v8551 = vpop.xlane.xlu0 %8550
    %v8552 = vrcp.pop %v8542
    %v8553 = vrcp.pop %v8545
    %v8554 = vrcp.pop %v8548
    %v8555 = vrcp.pop %v8551
    %v8556 = vmul.f32 %v8533, %v8552
    %v8557 = vmul.f32 %v8535, %v8553
    %v8558 = vmul.f32 %v8537, %v8554
    %v8559 = vmul.f32 %v8539, %v8555
    %v8560 = vpack.c.bf16 %v8557, %v8556
    %v8561 = vpack.c.bf16 %v8559, %v8558
    %v8562 = vpack.c.bf16 %v8187, %v8185
    %v8563 = vpack.c.bf16 %v8192, %v8190
    %v8565 = vsel %vm351, %v8560, 0
    %v8568 = vsel %vm351, %v8561, 0
    %8570 = vmatpush.bf16.msra.mxu0 0
    %8571 = vmatpush.bf16.msra.mxu0 0
    %8572 = vmatpush.bf16.msra.mxu0 0
    %8573 = vmatpush.bf16.msra.mxu0 0
    %8574 = vmatpush.bf16.msra.mxu0 0
    %8575 = vmatpush.bf16.msra.mxu0 0
    %8576 = vmatpush.bf16.msra.mxu0 %v8563
    %8577 = vmatpush.bf16.msra.mxu0 %v8562
    %8578 = vmatmul.bf16.gmra.mxu0 %v8565
    %v8579 = vpop.f32.mrf.mxu0
    %v8580 = vadd.f32 0.0, %v8579
    %v8581 = vpop.f32.mrf.mxu0
    %v8582 = vadd.f32 0.0, %v8581
    %8583 = vmatmul.bf16.gmra.mxu0 %v8568
    %v8584 = vpop.f32.mrf.mxu0
    %v8585 = vadd.f32 0.0, %v8584
    %v8586 = vpop.f32.mrf.mxu0
    %v8587 = vadd.f32 0.0, %v8586
    %8588 = vdwg.mxu0
    %8591 = vrot.lane.b32.xlu0 %v8562, 112
    %v8592 = vpop.permute.xlu0 %8591
    %8593 = vrot.lane.b32.xlu0 %v8563, 112
    %v8594 = vpop.permute.xlu0 %8593
    %8595 = vrot.lane.b32.xlu0 %v8562, 96
    %v8596 = vpop.permute.xlu0 %8595
    %8597 = vrot.lane.b32.xlu0 %v8563, 96
    %v8598 = vpop.permute.xlu0 %8597
    %v8600 = vsel %vm1269, %v8592, 0
    %v8603 = vsel %vm1269, %v8594, 0
    %v8606 = vsel %vm1269, %v8596, 0
    %v8609 = vsel %vm1269, %v8598, 0
    %8611 = vmatpush.bf16.xpose.msra.mxu0 0
    %8612 = vmatpush.bf16.xpose.msra.mxu0 0
    %8613 = vmatpush.bf16.xpose.msra.mxu0 0
    %8614 = vmatpush.bf16.xpose.msra.mxu0 0
    %8615 = vmatpush.bf16.xpose.msra.mxu0 0
    %8616 = vmatpush.bf16.xpose.msra.mxu0 0
    %8617 = vmatpush.bf16.xpose.msra.mxu0 %v8609
    %8618 = vmatpush.bf16.xpose.msra.mxu0 %v8606
    %8619 = vmatmul.bf16.gmra.mxu0 %v8600
    %v8620 = vpop.f32.mrf.mxu0
    %v8621 = vadd.f32 0.0, %v8620
    %v8622 = vpop.f32.mrf.mxu0
    %v8623 = vadd.f32 0.0, %v8622
    %8624 = vmatmul.bf16.gmra.mxu0 %v8603
    %v8625 = vpop.f32.mrf.mxu0
    %v8626 = vadd.f32 0.0, %v8625
    %v8627 = vpop.f32.mrf.mxu0
    %v8628 = vadd.f32 0.0, %v8627
    %8629 = vdwg.mxu0
    %v8630 = vmul.f32 %v8621, 0.25
    %v8631 = vmul.f32 %v8623, 0.25
    %v8632 = vmul.f32 %v8626, 0.25
    %v8633 = vmul.f32 %v8628, 0.25
    %s8634 = scalar_lea.vmem %s17, 112
    %v8635 = vld [vmem:[%s8634] sm:$0xf]
    %v8636 = vld [vmem:[%s8634 + $0x4] sm:$0xf]
    %v8637 = vld [vmem:[%s8634 + $0x8] sm:$0xf]
    %v8638 = vld [vmem:[%s8634 + $0xc] sm:$0xf]
    %v8639 = vunpack.c.l.bf16 %v8635
    %v8640 = vunpack.c.l.bf16 %v8636
    %v8641 = vunpack.c.l.bf16 %v8637
    %v8642 = vunpack.c.l.bf16 %v8638
    %v8643 = vadd.f32 %v8630, %v8639
    %v8644 = vadd.f32 %v8631, %v8640
    %v8645 = vadd.f32 %v8632, %v8641
    %v8646 = vadd.f32 %v8633, %v8642
    %v8647 = vsel %vm351, %v8643, -inf
    %8648 = vmax.xlane.f32.xlu0 %v8647
    %v8649 = vpop.xlane.xlu0 %8648
    %v8650 = vsel %vm351, %v8644, -inf
    %8651 = vmax.xlane.f32.xlu0 %v8650
    %v8652 = vpop.xlane.xlu0 %8651
    %v8653 = vsel %vm351, %v8645, -inf
    %8654 = vmax.xlane.f32.xlu0 %v8653
    %v8655 = vpop.xlane.xlu0 %8654
    %v8656 = vsel %vm351, %v8646, -inf
    %8657 = vmax.xlane.f32.xlu0 %v8656
    %v8658 = vpop.xlane.xlu0 %8657
    %v8659 = vsub.f32 %v8643, %v8649
    %v8660 = vsub.f32 %v8644, %v8652
    %v8661 = vsub.f32 %v8645, %v8655
    %v8662 = vsub.f32 %v8646, %v8658
    %v8663 = vmul.f32 %v8659, 1.442695
    %v8664 = vpow.pop %v8663
    %v8665 = vmul.f32 %v8660, 1.442695
    %v8666 = vpow.pop %v8665
    %v8667 = vmul.f32 %v8661, 1.442695
    %v8668 = vpow.pop %v8667
    %v8669 = vmul.f32 %v8662, 1.442695
    %v8670 = vpow.pop %v8669
    %v8671 = vsel %vm351, %v8664, 0.0
    %8672 = vadd.xlane.f32.xlu0 %v8671
    %v8673 = vpop.xlane.xlu0 %8672
    %v8674 = vsel %vm351, %v8666, 0.0
    %8675 = vadd.xlane.f32.xlu0 %v8674
    %v8676 = vpop.xlane.xlu0 %8675
    %v8677 = vsel %vm351, %v8668, 0.0
    %8678 = vadd.xlane.f32.xlu0 %v8677
    %v8679 = vpop.xlane.xlu0 %8678
    %v8680 = vsel %vm351, %v8670, 0.0
    %8681 = vadd.xlane.f32.xlu0 %v8680
    %v8682 = vpop.xlane.xlu0 %8681
    %v8683 = vrcp.pop %v8673
    %v8684 = vrcp.pop %v8676
    %v8685 = vrcp.pop %v8679
    %v8686 = vrcp.pop %v8682
    %v8687 = vmul.f32 %v8664, %v8683
    %v8688 = vmul.f32 %v8666, %v8684
    %v8689 = vmul.f32 %v8668, %v8685
    %v8690 = vmul.f32 %v8670, %v8686
    %v8691 = vpack.c.bf16 %v8688, %v8687
    %v8692 = vpack.c.bf16 %v8690, %v8689
    %8693 = vrot.lane.b32.xlu0 %v8562, 80
    %v8694 = vpop.permute.xlu0 %8693
    %8695 = vrot.lane.b32.xlu0 %v8563, 80
    %v8696 = vpop.permute.xlu0 %8695
    %v8700 = vsel %vm351, %v8691, 0
    %v8703 = vsel %vm351, %v8692, 0
    %8705 = vmatpush.bf16.msra.mxu0 0
    %8706 = vmatpush.bf16.msra.mxu0 0
    %8707 = vmatpush.bf16.msra.mxu0 0
    %8708 = vmatpush.bf16.msra.mxu0 0
    %8709 = vmatpush.bf16.msra.mxu0 0
    %8710 = vmatpush.bf16.msra.mxu0 0
    %8711 = vmatpush.bf16.msra.mxu0 %v8696
    %8712 = vmatpush.bf16.msra.mxu0 %v8694
    %8713 = vmatmul.bf16.gmra.mxu0 %v8700
    %v8714 = vpop.f32.mrf.mxu0
    %v8715 = vadd.f32 0.0, %v8714
    %v8716 = vpop.f32.mrf.mxu0
    %v8717 = vadd.f32 0.0, %v8716
    %8718 = vmatmul.bf16.gmra.mxu0 %v8703
    %v8719 = vpop.f32.mrf.mxu0
    %v8720 = vadd.f32 0.0, %v8719
    %v8721 = vpop.f32.mrf.mxu0
    %v8722 = vadd.f32 0.0, %v8721
    %8723 = vdwg.mxu0
    %8728 = vrot.lane.b32.xlu0 %v8451, 16
    %v8729 = vpop.permute.xlu0 %8728
    %8730 = vrot.lane.b32.xlu0 %v8453, 16
    %v8731 = vpop.permute.xlu0 %8730
    %8732 = vrot.lane.b32.xlu0 %v8456, 16
    %v8733 = vpop.permute.xlu0 %8732
    %8734 = vrot.lane.b32.xlu0 %v8458, 16
    %v8735 = vpop.permute.xlu0 %8734
    %8744 = vrot.lane.b32.xlu0 %v8580, 32
    %v8745 = vpop.permute.xlu0 %8744
    %8746 = vrot.lane.b32.xlu0 %v8582, 32
    %v8747 = vpop.permute.xlu0 %8746
    %8748 = vrot.lane.b32.xlu0 %v8585, 32
    %v8749 = vpop.permute.xlu0 %8748
    %8750 = vrot.lane.b32.xlu0 %v8587, 32
    %v8751 = vpop.permute.xlu0 %8750
    %8760 = vrot.lane.b32.xlu0 %v8715, 48
    %v8761 = vpop.permute.xlu0 %8760
    %8762 = vrot.lane.b32.xlu0 %v8717, 48
    %v8763 = vpop.permute.xlu0 %8762
    %8764 = vrot.lane.b32.xlu0 %v8720, 48
    %v8765 = vpop.permute.xlu0 %8764
    %8766 = vrot.lane.b32.xlu0 %v8722, 48
    %v8767 = vpop.permute.xlu0 %8766
    %v8772 = vsel %vm1269, %v8318, %v8729
    %v8773 = vsel %vm1269, %v8320, %v8731
    %v8774 = vsel %vm1269, %v8323, %v8733
    %v8775 = vsel %vm1269, %v8325, %v8735
    %v8776 = vsel %vm351, %v8772, %v8745
    %v8777 = vsel %vm351, %v8773, %v8747
    %v8778 = vsel %vm351, %v8774, %v8749
    %v8779 = vsel %vm351, %v8775, %v8751
    %v8780 = vsel %vm7329, %v8776, %v8761
    %v8781 = vsel %vm7329, %v8777, %v8763
    %v8782 = vsel %vm7329, %v8778, %v8765
    %v8783 = vsel %vm7329, %v8779, %v8767
    %s8784 = scalar_lea.vmem [#allocation16], 32
    %v8785 = vld [vmem:[%s8784] sm:$0xf]
    %v8786 = vld [vmem:[%s8784 + $0x4] sm:$0xf]
    %v8787 = vld [vmem:[%s8784 + $0x8] sm:$0xf]
    %v8788 = vld [vmem:[%s8784 + $0xc] sm:$0xf]
    %v8789 = vld [vmem:[%s8784 + $0x10] sm:$0xf]
    %v8790 = vld [vmem:[%s8784 + $0x14] sm:$0xf]
    %v8791 = vld [vmem:[%s8784 + $0x18] sm:$0xf]
    %v8792 = vld [vmem:[%s8784 + $0x1c] sm:$0xf]
    %v8793 = vpack.c.bf16 %v8781, %v8780
    %v8794 = vpack.c.bf16 %v8783, %v8782
    %v8803 = vunpack.c.l.b16 %v8785
    %v8804 = vunpack.c.l.b16 %v8786
    %v8805 = vunpack.c.l.b16 %v8787
    %v8806 = vunpack.c.l.b16 %v8788
    %v8807 = vunpack.c.l.b16 %v8789
    %v8808 = vunpack.c.l.b16 %v8790
    %v8809 = vunpack.c.l.b16 %v8791
    %v8810 = vunpack.c.l.b16 %v8792
    %v8811 = vpack.c.b16 %v8804, %v8803
    %v8812 = vpack.c.b16 %v8806, %v8805
    %v8813 = vpack.c.b16 %v8808, %v8807
    %v8814 = vpack.c.b16 %v8810, %v8809
    %v8820 = vsel %vm6538, %v8793, 0
    %v8823 = vsel %vm6538, %v8794, 0
    %8825 = vmatpush.bf16.msra.mxu0 0
    %8826 = vmatpush.bf16.msra.mxu0 0
    %8827 = vmatpush.bf16.msra.mxu0 0
    %8828 = vmatpush.bf16.msra.mxu0 0
    %8829 = vmatpush.bf16.msra.mxu0 %v8814
    %8830 = vmatpush.bf16.msra.mxu0 %v8813
    %8831 = vmatpush.bf16.msra.mxu0 %v8812
    %8832 = vmatpush.bf16.msra.mxu0 %v8811
    %8833 = vmatmul.bf16.gmra.mxu0 %v8820
    %v8834 = vpop.f32.mrf.mxu0
    %v8835 = vadd.f32 0.0, %v8834
    %v8836 = vpop.f32.mrf.mxu0
    %v8837 = vadd.f32 0.0, %v8836
    %8838 = vmatmul.bf16.gmra.mxu0 %v8823
    %v8839 = vpop.f32.mrf.mxu0
    %v8840 = vadd.f32 0.0, %v8839
    %v8841 = vpop.f32.mrf.mxu0
    %v8842 = vadd.f32 0.0, %v8841
    %8843 = vdwg.mxu0
    %v8844 = vadd.f32 %v7982, %v8835
    %v8845 = vadd.f32 %v7983, %v8837
    %v8846 = vadd.f32 %v7984, %v8840
    %v8847 = vadd.f32 %v7985, %v8842
    %v8848 = vperm.slane %v7988, 0
    %v8849 = vadd.f32 %v8844, %v8848
    %v8850 = vadd.f32 %v8845, %v8848
    %v8851 = vadd.f32 %v8846, %v8848
    %v8852 = vadd.f32 %v8847, %v8848
    %v8853 = vsel %vm6538, %v8849, 0.0
    %8854 = vadd.xlane.f32.xlu0 %v8853
    %v8855 = vpop.xlane.xlu0 %8854
    %v8856 = vsel %vm6538, %v8850, 0.0
    %8857 = vadd.xlane.f32.xlu0 %v8856
    %v8858 = vpop.xlane.xlu0 %8857
    %v8859 = vsel %vm6538, %v8851, 0.0
    %8860 = vadd.xlane.f32.xlu0 %v8859
    %v8861 = vpop.xlane.xlu0 %8860
    %v8862 = vsel %vm6538, %v8852, 0.0
    %8863 = vadd.xlane.f32.xlu0 %v8862
    %v8864 = vpop.xlane.xlu0 %8863
    %v8865 = vmul.f32 %v8855, %v6557
    %v8866 = vmul.f32 %v8858, %v6557
    %v8867 = vmul.f32 %v8861, %v6557
    %v8868 = vmul.f32 %v8864, %v6557
    %v8869 = vsub.f32 %v8849, %v8865
    %v8870 = vsub.f32 %v8850, %v8866
    %v8871 = vsub.f32 %v8851, %v8867
    %v8872 = vsub.f32 %v8852, %v8868
    %v8873 = vmul.f32 %v8869, %v8869
    %v8874 = vmul.f32 %v8870, %v8870
    %v8875 = vmul.f32 %v8871, %v8871
    %v8876 = vmul.f32 %v8872, %v8872
    %v8877 = vsel %vm6538, %v8873, 0.0
    %8878 = vadd.xlane.f32.xlu0 %v8877
    %v8879 = vpop.xlane.xlu0 %8878
    %v8880 = vsel %vm6538, %v8874, 0.0
    %8881 = vadd.xlane.f32.xlu0 %v8880
    %v8882 = vpop.xlane.xlu0 %8881
    %v8883 = vsel %vm6538, %v8875, 0.0
    %8884 = vadd.xlane.f32.xlu0 %v8883
    %v8885 = vpop.xlane.xlu0 %8884
    %v8886 = vsel %vm6538, %v8876, 0.0
    %8887 = vadd.xlane.f32.xlu0 %v8886
    %v8888 = vpop.xlane.xlu0 %8887
    %v8889 = vmul.f32 %v8879, %v6557
    %v8890 = vmul.f32 %v8882, %v6557
    %v8891 = vmul.f32 %v8885, %v6557
    %v8892 = vmul.f32 %v8888, %v6557
    %v8893 = vadd.f32 %v8889, 1e-05
    %v8894 = vadd.f32 %v8890, 1e-05
    %v8895 = vadd.f32 %v8891, 1e-05
    %v8896 = vadd.f32 %v8892, 1e-05
    %v8897 = vrsqrt.pop %v8893
    %v8898 = vmul.f32 %v8897, %v8893
    %v8899 = vmul.f32 %v8898, %v8897
    %v8900 = vmul.f32 0.5, %v8899
    %v8901 = vsub.f32 1.5, %v8900
    %v8902 = vmul.f32 %v8897, %v8901
    %vm8903 = vweird.f32 %v8893
    %vm8904 = vweird.f32 %v8897
    %vm8905 = vmor %vm8903, %vm8904
    %v8906 = vsel %vm8905, %v8897, %v8902
    %v8907 = vrsqrt.pop %v8894
    %v8908 = vmul.f32 %v8907, %v8894
    %v8909 = vmul.f32 %v8908, %v8907
    %v8910 = vmul.f32 0.5, %v8909
    %v8911 = vsub.f32 1.5, %v8910
    %v8912 = vmul.f32 %v8907, %v8911
    %vm8913 = vweird.f32 %v8894
    %vm8914 = vweird.f32 %v8907
    %vm8915 = vmor %vm8913, %vm8914
    %v8916 = vsel %vm8915, %v8907, %v8912
    %v8917 = vrsqrt.pop %v8895
    %v8918 = vmul.f32 %v8917, %v8895
    %v8919 = vmul.f32 %v8918, %v8917
    %v8920 = vmul.f32 0.5, %v8919
    %v8921 = vsub.f32 1.5, %v8920
    %v8922 = vmul.f32 %v8917, %v8921
    %vm8923 = vweird.f32 %v8895
    %vm8924 = vweird.f32 %v8917
    %vm8925 = vmor %vm8923, %vm8924
    %v8926 = vsel %vm8925, %v8917, %v8922
    %v8927 = vrsqrt.pop %v8896
    %v8928 = vmul.f32 %v8927, %v8896
    %v8929 = vmul.f32 %v8928, %v8927
    %v8930 = vmul.f32 0.5, %v8929
    %v8931 = vsub.f32 1.5, %v8930
    %v8932 = vmul.f32 %v8927, %v8931
    %vm8933 = vweird.f32 %v8896
    %vm8934 = vweird.f32 %v8927
    %vm8935 = vmor %vm8933, %vm8934
    %v8936 = vsel %vm8935, %v8927, %v8932
    %v8937 = vmul.f32 %v8869, %v8906
    %v8938 = vmul.f32 %v8870, %v8916
    %v8939 = vmul.f32 %v8871, %v8926
    %v8940 = vmul.f32 %v8872, %v8936
    %v8941 = vperm.slane %v7989, 0
    %v8942 = vmul.f32 %v8937, %v8941
    %v8943 = vmul.f32 %v8938, %v8941
    %v8944 = vmul.f32 %v8939, %v8941
    %v8945 = vmul.f32 %v8940, %v8941
    %v8946 = vperm.slane %v7990, 0
    %v8947 = vadd.f32 %v8942, %v8946
    %v8948 = vadd.f32 %v8943, %v8946
    %v8949 = vadd.f32 %v8944, %v8946
    %v8950 = vadd.f32 %v8945, %v8946
    %s8951 = scalar_lea.vmem [#allocation17], 64
    %v8952 = vld [vmem:[%s8951] sm:$0xff]
    %v8953 = vld [vmem:[%s8951 + $0x8] sm:$0xff]
    %v8954 = vld [vmem:[%s8951 + $0x10] sm:$0xff]
    %v8955 = vld [vmem:[%s8951 + $0x18] sm:$0xff]
    %v8956 = vld [vmem:[%s8951 + $0x20] sm:$0xff]
    %v8957 = vld [vmem:[%s8951 + $0x28] sm:$0xff]
    %v8958 = vld [vmem:[%s8951 + $0x30] sm:$0xff]
    %v8959 = vld [vmem:[%s8951 + $0x38] sm:$0xff]
    %v8960 = vpack.c.bf16 %v8948, %v8947
    %v8961 = vpack.c.bf16 %v8950, %v8949
    %v8963 = vperm.slane %v7993, 0
    %v8964 = vperm.slane %v7993, 1
    %v8975 = vunpack.c.l.b16 %v8952
    %v8976 = vunpack.c.h.b16 %v8952
    %v8977 = vunpack.c.l.b16 %v8953
    %v8978 = vunpack.c.h.b16 %v8953
    %v8979 = vunpack.c.l.b16 %v8954
    %v8980 = vunpack.c.h.b16 %v8954
    %v8981 = vunpack.c.l.b16 %v8955
    %v8982 = vunpack.c.h.b16 %v8955
    %v8983 = vunpack.c.l.b16 %v8956
    %v8984 = vunpack.c.h.b16 %v8956
    %v8985 = vunpack.c.l.b16 %v8957
    %v8986 = vunpack.c.h.b16 %v8957
    %v8987 = vunpack.c.l.b16 %v8958
    %v8988 = vunpack.c.h.b16 %v8958
    %v8989 = vunpack.c.l.b16 %v8959
    %v8990 = vunpack.c.h.b16 %v8959
    %v8991 = vpack.c.b16 %v8977, %v8975
    %v8992 = vpack.c.b16 %v8978, %v8976
    %v8993 = vpack.c.b16 %v8981, %v8979
    %v8994 = vpack.c.b16 %v8982, %v8980
    %v8995 = vpack.c.b16 %v8985, %v8983
    %v8996 = vpack.c.b16 %v8986, %v8984
    %v8997 = vpack.c.b16 %v8989, %v8987
    %v8998 = vpack.c.b16 %v8990, %v8988
    %v9008 = vsel %vm6538, %v8960, 0
    %v9011 = vsel %vm6538, %v8961, 0
    %9013 = vmatpush.bf16.msra.mxu0 0
    %9014 = vmatpush.bf16.msra.mxu0 0
    %9015 = vmatpush.bf16.msra.mxu0 0
    %9016 = vmatpush.bf16.msra.mxu0 0
    %9017 = vmatpush.bf16.msra.mxu0 %v8997
    %9018 = vmatpush.bf16.msra.mxu0 %v8995
    %9019 = vmatpush.bf16.msra.mxu0 %v8993
    %9020 = vmatpush.bf16.msra.mxu0 %v8991
    %9021 = vmatmul.bf16.gmra.mxu0 %v9008
    %v9022 = vpop.f32.mrf.mxu0
    %v9023 = vadd.f32 %v8963, %v9022
    %v9024 = vpop.f32.mrf.mxu0
    %v9025 = vadd.f32 %v8963, %v9024
    %9026 = vmatmul.bf16.gmra.mxu0 %v9011
    %v9027 = vpop.f32.mrf.mxu0
    %v9028 = vadd.f32 %v8963, %v9027
    %v9029 = vpop.f32.mrf.mxu0
    %v9030 = vadd.f32 %v8963, %v9029
    %9031 = vdwg.mxu0
    %9032 = vmatpush.bf16.msra.mxu0 0
    %9033 = vmatpush.bf16.msra.mxu0 0
    %9034 = vmatpush.bf16.msra.mxu0 0
    %9035 = vmatpush.bf16.msra.mxu0 0
    %9036 = vmatpush.bf16.msra.mxu0 %v8998
    %9037 = vmatpush.bf16.msra.mxu0 %v8996
    %9038 = vmatpush.bf16.msra.mxu0 %v8994
    %9039 = vmatpush.bf16.msra.mxu0 %v8992
    %9040 = vmatmul.bf16.gmra.mxu0 %v9008
    %v9041 = vpop.f32.mrf.mxu0
    %v9042 = vadd.f32 %v8964, %v9041
    %v9043 = vpop.f32.mrf.mxu0
    %v9044 = vadd.f32 %v8964, %v9043
    %9045 = vmatmul.bf16.gmra.mxu0 %v9011
    %v9046 = vpop.f32.mrf.mxu0
    %v9047 = vadd.f32 %v8964, %v9046
    %v9048 = vpop.f32.mrf.mxu0
    %v9049 = vadd.f32 %v8964, %v9048
    %9050 = vdwg.mxu0
    %v9051 = vmul.f32 %v9023, 0.5
    %v9052 = vmul.f32 %v9042, 0.5
    %v9053 = vmul.f32 %v9025, 0.5
    %v9054 = vmul.f32 %v9044, 0.5
    %v9055 = vmul.f32 %v9028, 0.5
    %v9056 = vmul.f32 %v9047, 0.5
    %v9057 = vmul.f32 %v9030, 0.5
    %v9058 = vmul.f32 %v9049, 0.5
    %v9059 = vmul.f32 %v9023, 0.70710677
    %v9060 = vmul.f32 %v9042, 0.70710677
    %v9061 = vmul.f32 %v9025, 0.70710677
    %v9062 = vmul.f32 %v9044, 0.70710677
    %v9063 = vmul.f32 %v9028, 0.70710677
    %v9064 = vmul.f32 %v9047, 0.70710677
    %v9065 = vmul.f32 %v9030, 0.70710677
    %v9066 = vmul.f32 %v9049, 0.70710677
    %vm9067 = vcmp.ge.f32.partialorder %v9059, 0.0
    %vm9068 = vcmp.ge.f32.partialorder %v9060, 0.0
    %vm9069 = vcmp.ge.f32.partialorder %v9061, 0.0
    %vm9070 = vcmp.ge.f32.partialorder %v9062, 0.0
    %vm9071 = vcmp.ge.f32.partialorder %v9063, 0.0
    %vm9072 = vcmp.ge.f32.partialorder %v9064, 0.0
    %vm9073 = vcmp.ge.f32.partialorder %v9065, 0.0
    %vm9074 = vcmp.ge.f32.partialorder %v9066, 0.0
    %v9075 = vsel %vm9067, 1.0, -1.0
    %v9076 = vsel %vm9068, 1.0, -1.0
    %v9077 = vsel %vm9069, 1.0, -1.0
    %v9078 = vsel %vm9070, 1.0, -1.0
    %v9079 = vsel %vm9071, 1.0, -1.0
    %v9080 = vsel %vm9072, 1.0, -1.0
    %v9081 = vsel %vm9073, 1.0, -1.0
    %v9082 = vsel %vm9074, 1.0, -1.0
    %v9083 = vand.u32 2147483647, %v9059
    %v9084 = vand.u32 2147483647, %v9060
    %v9085 = vand.u32 2147483647, %v9061
    %v9086 = vand.u32 2147483647, %v9062
    %v9087 = vand.u32 2147483647, %v9063
    %v9088 = vand.u32 2147483647, %v9064
    %v9089 = vand.u32 2147483647, %v9065
    %v9090 = vand.u32 2147483647, %v9066
    %v9091 = vmul.f32 %v9083, 0.3275911
    %v9092 = vmul.f32 %v9084, 0.3275911
    %v9093 = vmul.f32 %v9085, 0.3275911
    %v9094 = vmul.f32 %v9086, 0.3275911
    %v9095 = vmul.f32 %v9087, 0.3275911
    %v9096 = vmul.f32 %v9088, 0.3275911
    %v9097 = vmul.f32 %v9089, 0.3275911
    %v9098 = vmul.f32 %v9090, 0.3275911
    %v9099 = vadd.f32 %v9091, 1.0
    %v9100 = vadd.f32 %v9092, 1.0
    %v9101 = vadd.f32 %v9093, 1.0
    %v9102 = vadd.f32 %v9094, 1.0
    %v9103 = vadd.f32 %v9095, 1.0
    %v9104 = vadd.f32 %v9096, 1.0
    %v9105 = vadd.f32 %v9097, 1.0
    %v9106 = vadd.f32 %v9098, 1.0
    %v9107 = vrcp.pop %v9099
    %v9108 = vrcp.pop %v9100
    %v9109 = vrcp.pop %v9101
    %v9110 = vrcp.pop %v9102
    %v9111 = vrcp.pop %v9103
    %v9112 = vrcp.pop %v9104
    %v9113 = vrcp.pop %v9105
    %v9114 = vrcp.pop %v9106
    %v9115 = vmul.f32 %v9107, 1.0614054
    %v9116 = vmul.f32 %v9108, 1.0614054
    %v9117 = vmul.f32 %v9109, 1.0614054
    %v9118 = vmul.f32 %v9110, 1.0614054
    %v9119 = vmul.f32 %v9111, 1.0614054
    %v9120 = vmul.f32 %v9112, 1.0614054
    %v9121 = vmul.f32 %v9113, 1.0614054
    %v9122 = vmul.f32 %v9114, 1.0614054
    %v9123 = vadd.f32 %v9115, -1.4531521
    %v9124 = vadd.f32 %v9116, -1.4531521
    %v9125 = vadd.f32 %v9117, -1.4531521
    %v9126 = vadd.f32 %v9118, -1.4531521
    %v9127 = vadd.f32 %v9119, -1.4531521
    %v9128 = vadd.f32 %v9120, -1.4531521
    %v9129 = vadd.f32 %v9121, -1.4531521
    %v9130 = vadd.f32 %v9122, -1.4531521
    %v9131 = vmul.f32 %v9123, %v9107
    %v9132 = vmul.f32 %v9124, %v9108
    %v9133 = vmul.f32 %v9125, %v9109
    %v9134 = vmul.f32 %v9126, %v9110
    %v9135 = vmul.f32 %v9127, %v9111
    %v9136 = vmul.f32 %v9128, %v9112
    %v9137 = vmul.f32 %v9129, %v9113
    %v9138 = vmul.f32 %v9130, %v9114
    %v9139 = vadd.f32 %v9131, 1.4214138
    %v9140 = vadd.f32 %v9132, 1.4214138
    %v9141 = vadd.f32 %v9133, 1.4214138
    %v9142 = vadd.f32 %v9134, 1.4214138
    %v9143 = vadd.f32 %v9135, 1.4214138
    %v9144 = vadd.f32 %v9136, 1.4214138
    %v9145 = vadd.f32 %v9137, 1.4214138
    %v9146 = vadd.f32 %v9138, 1.4214138
    %v9147 = vmul.f32 %v9139, %v9107
    %v9148 = vmul.f32 %v9140, %v9108
    %v9149 = vmul.f32 %v9141, %v9109
    %v9150 = vmul.f32 %v9142, %v9110
    %v9151 = vmul.f32 %v9143, %v9111
    %v9152 = vmul.f32 %v9144, %v9112
    %v9153 = vmul.f32 %v9145, %v9113
    %v9154 = vmul.f32 %v9146, %v9114
    %v9155 = vadd.f32 %v9147, -0.28449672
    %v9156 = vadd.f32 %v9148, -0.28449672
    %v9157 = vadd.f32 %v9149, -0.28449672
    %v9158 = vadd.f32 %v9150, -0.28449672
    %v9159 = vadd.f32 %v9151, -0.28449672
    %v9160 = vadd.f32 %v9152, -0.28449672
    %v9161 = vadd.f32 %v9153, -0.28449672
    %v9162 = vadd.f32 %v9154, -0.28449672
    %v9163 = vmul.f32 %v9155, %v9107
    %v9164 = vmul.f32 %v9156, %v9108
    %v9165 = vmul.f32 %v9157, %v9109
    %v9166 = vmul.f32 %v9158, %v9110
    %v9167 = vmul.f32 %v9159, %v9111
    %v9168 = vmul.f32 %v9160, %v9112
    %v9169 = vmul.f32 %v9161, %v9113
    %v9170 = vmul.f32 %v9162, %v9114
    %v9171 = vadd.f32 %v9163, 0.2548296
    %v9172 = vadd.f32 %v9164, 0.2548296
    %v9173 = vadd.f32 %v9165, 0.2548296
    %v9174 = vadd.f32 %v9166, 0.2548296
    %v9175 = vadd.f32 %v9167, 0.2548296
    %v9176 = vadd.f32 %v9168, 0.2548296
    %v9177 = vadd.f32 %v9169, 0.2548296
    %v9178 = vadd.f32 %v9170, 0.2548296
    %v9179 = vmul.f32 %v9171, %v9107
    %v9180 = vmul.f32 %v9172, %v9108
    %v9181 = vmul.f32 %v9173, %v9109
    %v9182 = vmul.f32 %v9174, %v9110
    %v9183 = vmul.f32 %v9175, %v9111
    %v9184 = vmul.f32 %v9176, %v9112
    %v9185 = vmul.f32 %v9177, %v9113
    %v9186 = vmul.f32 %v9178, %v9114
    %v9187 = vsub.f32 0.0, %v9083
    %v9188 = vsub.f32 0.0, %v9084
    %v9189 = vsub.f32 0.0, %v9085
    %v9190 = vsub.f32 0.0, %v9086
    %v9191 = vsub.f32 0.0, %v9087
    %v9192 = vsub.f32 0.0, %v9088
    %v9193 = vsub.f32 0.0, %v9089
    %v9194 = vsub.f32 0.0, %v9090
    %v9195 = vmul.f32 %v9187, %v9083
    %v9196 = vmul.f32 %v9188, %v9084
    %v9197 = vmul.f32 %v9189, %v9085
    %v9198 = vmul.f32 %v9190, %v9086
    %v9199 = vmul.f32 %v9191, %v9087
    %v9200 = vmul.f32 %v9192, %v9088
    %v9201 = vmul.f32 %v9193, %v9089
    %v9202 = vmul.f32 %v9194, %v9090
    %v9203 = vmul.f32 %v9195, 1.442695
    %v9204 = vpow.pop %v9203
    %v9205 = vmul.f32 %v9196, 1.442695
    %v9206 = vpow.pop %v9205
    %v9207 = vmul.f32 %v9197, 1.442695
    %v9208 = vpow.pop %v9207
    %v9209 = vmul.f32 %v9198, 1.442695
    %v9210 = vpow.pop %v9209
    %v9211 = vmul.f32 %v9199, 1.442695
    %v9212 = vpow.pop %v9211
    %v9213 = vmul.f32 %v9200, 1.442695
    %v9214 = vpow.pop %v9213
    %v9215 = vmul.f32 %v9201, 1.442695
    %v9216 = vpow.pop %v9215
    %v9217 = vmul.f32 %v9202, 1.442695
    %v9218 = vpow.pop %v9217
    %v9219 = vmul.f32 %v9179, %v9204
    %v9220 = vmul.f32 %v9180, %v9206
    %v9221 = vmul.f32 %v9181, %v9208
    %v9222 = vmul.f32 %v9182, %v9210
    %v9223 = vmul.f32 %v9183, %v9212
    %v9224 = vmul.f32 %v9184, %v9214
    %v9225 = vmul.f32 %v9185, %v9216
    %v9226 = vmul.f32 %v9186, %v9218
    %v9227 = vsub.f32 1.0, %v9219
    %v9228 = vsub.f32 1.0, %v9220
    %v9229 = vsub.f32 1.0, %v9221
    %v9230 = vsub.f32 1.0, %v9222
    %v9231 = vsub.f32 1.0, %v9223
    %v9232 = vsub.f32 1.0, %v9224
    %v9233 = vsub.f32 1.0, %v9225
    %v9234 = vsub.f32 1.0, %v9226
    %v9235 = vmul.f32 %v9075, %v9227
    %v9236 = vmul.f32 %v9076, %v9228
    %v9237 = vmul.f32 %v9077, %v9229
    %v9238 = vmul.f32 %v9078, %v9230
    %v9239 = vmul.f32 %v9079, %v9231
    %v9240 = vmul.f32 %v9080, %v9232
    %v9241 = vmul.f32 %v9081, %v9233
    %v9242 = vmul.f32 %v9082, %v9234
    %v9243 = vadd.f32 %v9235, 1.0
    %v9244 = vadd.f32 %v9236, 1.0
    %v9245 = vadd.f32 %v9237, 1.0
    %v9246 = vadd.f32 %v9238, 1.0
    %v9247 = vadd.f32 %v9239, 1.0
    %v9248 = vadd.f32 %v9240, 1.0
    %v9249 = vadd.f32 %v9241, 1.0
    %v9250 = vadd.f32 %v9242, 1.0
    %v9251 = vmul.f32 %v9051, %v9243
    %v9252 = vmul.f32 %v9052, %v9244
    %v9253 = vmul.f32 %v9053, %v9245
    %v9254 = vmul.f32 %v9054, %v9246
    %v9255 = vmul.f32 %v9055, %v9247
    %v9256 = vmul.f32 %v9056, %v9248
    %v9257 = vmul.f32 %v9057, %v9249
    %v9258 = vmul.f32 %v9058, %v9250
    %s9259 = scalar_lea.vmem %s19, 128
    %v9260 = vld [vmem:[%s9259] sm:$0xf]
    %v9261 = vld [vmem:[%s9259 + $0x4] sm:$0xf]
    %v9262 = vld [vmem:[%s9259 + $0x8] sm:$0xf]
    %v9263 = vld [vmem:[%s9259 + $0xc] sm:$0xf]
    %v9264 = vld [vmem:[%s9259 + $0x10] sm:$0xf]
    %v9265 = vld [vmem:[%s9259 + $0x14] sm:$0xf]
    %v9266 = vld [vmem:[%s9259 + $0x18] sm:$0xf]
    %v9267 = vld [vmem:[%s9259 + $0x1c] sm:$0xf]
    %v9268 = vld [vmem:[%s9259 + $0x20] sm:$0xf]
    %v9269 = vld [vmem:[%s9259 + $0x24] sm:$0xf]
    %v9270 = vld [vmem:[%s9259 + $0x28] sm:$0xf]
    %v9271 = vld [vmem:[%s9259 + $0x2c] sm:$0xf]
    %v9272 = vld [vmem:[%s9259 + $0x30] sm:$0xf]
    %v9273 = vld [vmem:[%s9259 + $0x34] sm:$0xf]
    %v9274 = vld [vmem:[%s9259 + $0x38] sm:$0xf]
    %v9275 = vld [vmem:[%s9259 + $0x3c] sm:$0xf]
    %v9276 = vld [vmem:[%s9259 + $0x40] sm:$0xf]
    %v9277 = vld [vmem:[%s9259 + $0x44] sm:$0xf]
    %v9278 = vld [vmem:[%s9259 + $0x48] sm:$0xf]
    %v9279 = vld [vmem:[%s9259 + $0x4c] sm:$0xf]
    %v9280 = vld [vmem:[%s9259 + $0x50] sm:$0xf]
    %v9281 = vld [vmem:[%s9259 + $0x54] sm:$0xf]
    %v9282 = vld [vmem:[%s9259 + $0x58] sm:$0xf]
    %v9283 = vld [vmem:[%s9259 + $0x5c] sm:$0xf]
    %v9284 = vld [vmem:[%s9259 + $0x60] sm:$0xf]
    %v9285 = vld [vmem:[%s9259 + $0x64] sm:$0xf]
    %v9286 = vld [vmem:[%s9259 + $0x68] sm:$0xf]
    %v9287 = vld [vmem:[%s9259 + $0x6c] sm:$0xf]
    %v9288 = vld [vmem:[%s9259 + $0x70] sm:$0xf]
    %v9289 = vld [vmem:[%s9259 + $0x74] sm:$0xf]
    %v9290 = vld [vmem:[%s9259 + $0x78] sm:$0xf]
    %v9291 = vld [vmem:[%s9259 + $0x7c] sm:$0xf]
    %v9292 = vpack.c.bf16 %v9253, %v9251
    %v9293 = vpack.c.bf16 %v9254, %v9252
    %v9294 = vpack.c.bf16 %v9257, %v9255
    %v9295 = vpack.c.bf16 %v9258, %v9256
    %v9328 = vunpack.c.l.b16 %v9260
    %v9329 = vunpack.c.l.b16 %v9261
    %v9330 = vunpack.c.l.b16 %v9262
    %v9331 = vunpack.c.l.b16 %v9263
    %v9332 = vunpack.c.l.b16 %v9264
    %v9333 = vunpack.c.l.b16 %v9265
    %v9334 = vunpack.c.l.b16 %v9266
    %v9335 = vunpack.c.l.b16 %v9267
    %v9336 = vunpack.c.l.b16 %v9268
    %v9337 = vunpack.c.l.b16 %v9269
    %v9338 = vunpack.c.l.b16 %v9270
    %v9339 = vunpack.c.l.b16 %v9271
    %v9340 = vunpack.c.l.b16 %v9272
    %v9341 = vunpack.c.l.b16 %v9273
    %v9342 = vunpack.c.l.b16 %v9274
    %v9343 = vunpack.c.l.b16 %v9275
    %v9344 = vunpack.c.l.b16 %v9276
    %v9345 = vunpack.c.l.b16 %v9277
    %v9346 = vunpack.c.l.b16 %v9278
    %v9347 = vunpack.c.l.b16 %v9279
    %v9348 = vunpack.c.l.b16 %v9280
    %v9349 = vunpack.c.l.b16 %v9281
    %v9350 = vunpack.c.l.b16 %v9282
    %v9351 = vunpack.c.l.b16 %v9283
    %v9352 = vunpack.c.l.b16 %v9284
    %v9353 = vunpack.c.l.b16 %v9285
    %v9354 = vunpack.c.l.b16 %v9286
    %v9355 = vunpack.c.l.b16 %v9287
    %v9356 = vunpack.c.l.b16 %v9288
    %v9357 = vunpack.c.l.b16 %v9289
    %v9358 = vunpack.c.l.b16 %v9290
    %v9359 = vunpack.c.l.b16 %v9291
    %v9360 = vpack.c.b16 %v9329, %v9328
    %v9361 = vpack.c.b16 %v9331, %v9330
    %v9362 = vpack.c.b16 %v9333, %v9332
    %v9363 = vpack.c.b16 %v9335, %v9334
    %v9364 = vpack.c.b16 %v9337, %v9336
    %v9365 = vpack.c.b16 %v9339, %v9338
    %v9366 = vpack.c.b16 %v9341, %v9340
    %v9367 = vpack.c.b16 %v9343, %v9342
    %v9368 = vpack.c.b16 %v9345, %v9344
    %v9369 = vpack.c.b16 %v9347, %v9346
    %v9370 = vpack.c.b16 %v9349, %v9348
    %v9371 = vpack.c.b16 %v9351, %v9350
    %v9372 = vpack.c.b16 %v9353, %v9352
    %v9373 = vpack.c.b16 %v9355, %v9354
    %v9374 = vpack.c.b16 %v9357, %v9356
    %v9375 = vpack.c.b16 %v9359, %v9358
    %9392 = vmatpush.bf16.msra.mxu0 %v9367
    %9393 = vmatpush.bf16.msra.mxu0 %v9366
    %9394 = vmatpush.bf16.msra.mxu0 %v9365
    %9395 = vmatpush.bf16.msra.mxu0 %v9364
    %9396 = vmatpush.bf16.msra.mxu0 %v9363
    %9397 = vmatpush.bf16.msra.mxu0 %v9362
    %9398 = vmatpush.bf16.msra.mxu0 %v9361
    %9399 = vmatpush.bf16.msra.mxu0 %v9360
    %9400 = vmatmul.bf16.gmra.mxu0 %v9292
    %v9401 = vpop.f32.mrf.mxu0
    %v9402 = vadd.f32 0.0, %v9401
    %v9403 = vpop.f32.mrf.mxu0
    %v9404 = vadd.f32 0.0, %v9403
    %9405 = vmatmul.bf16.gmra.mxu0 %v9294
    %v9406 = vpop.f32.mrf.mxu0
    %v9407 = vadd.f32 0.0, %v9406
    %v9408 = vpop.f32.mrf.mxu0
    %v9409 = vadd.f32 0.0, %v9408
    %9410 = vdwg.mxu0
    %9411 = vmatpush.bf16.msra.mxu0 %v9375
    %9412 = vmatpush.bf16.msra.mxu0 %v9374
    %9413 = vmatpush.bf16.msra.mxu0 %v9373
    %9414 = vmatpush.bf16.msra.mxu0 %v9372
    %9415 = vmatpush.bf16.msra.mxu0 %v9371
    %9416 = vmatpush.bf16.msra.mxu0 %v9370
    %9417 = vmatpush.bf16.msra.mxu0 %v9369
    %9418 = vmatpush.bf16.msra.mxu0 %v9368
    %9419 = vmatmul.bf16.gmra.mxu0 %v9293
    %v9420 = vpop.f32.mrf.mxu0
    %v9421 = vadd.f32 %v9402, %v9420
    %v9422 = vpop.f32.mrf.mxu0
    %v9423 = vadd.f32 %v9404, %v9422
    %9424 = vmatmul.bf16.gmra.mxu0 %v9295
    %v9425 = vpop.f32.mrf.mxu0
    %v9426 = vadd.f32 %v9407, %v9425
    %v9427 = vpop.f32.mrf.mxu0
    %v9428 = vadd.f32 %v9409, %v9427
    %9429 = vdwg.mxu0
    %v9430 = vadd.f32 %v8849, %v9421
    %v9431 = vadd.f32 %v8850, %v9423
    %v9432 = vadd.f32 %v8851, %v9426
    %v9433 = vadd.f32 %v8852, %v9428
    %v9434 = vperm.slane %v7991, 0
    %v9435 = vadd.f32 %v9430, %v9434
    %v9436 = vadd.f32 %v9431, %v9434
    %v9437 = vadd.f32 %v9432, %v9434
    %v9438 = vadd.f32 %v9433, %v9434
    %v9439 = vld [vmem:[%s3 + $0xc] sm:$0x1]
    %v9440 = vld [vmem:[%s3 + $0xd] sm:$0x1]
    %v9441 = vsel %vm6538, %v9435, 0.0
    %9442 = vadd.xlane.f32.xlu0 %v9441
    %v9443 = vpop.xlane.xlu0 %9442
    %v9444 = vsel %vm6538, %v9436, 0.0
    %9445 = vadd.xlane.f32.xlu0 %v9444
    %v9446 = vpop.xlane.xlu0 %9445
    %v9447 = vsel %vm6538, %v9437, 0.0
    %9448 = vadd.xlane.f32.xlu0 %v9447
    %v9449 = vpop.xlane.xlu0 %9448
    %v9450 = vsel %vm6538, %v9438, 0.0
    %9451 = vadd.xlane.f32.xlu0 %v9450
    %v9452 = vpop.xlane.xlu0 %9451
    %v9453 = vmul.f32 %v9443, %v6557
    %v9454 = vmul.f32 %v9446, %v6557
    %v9455 = vmul.f32 %v9449, %v6557
    %v9456 = vmul.f32 %v9452, %v6557
    %v9457 = vsub.f32 %v9435, %v9453
    %v9458 = vsub.f32 %v9436, %v9454
    %v9459 = vsub.f32 %v9437, %v9455
    %v9460 = vsub.f32 %v9438, %v9456
    %v9461 = vmul.f32 %v9457, %v9457
    %v9462 = vmul.f32 %v9458, %v9458
    %v9463 = vmul.f32 %v9459, %v9459
    %v9464 = vmul.f32 %v9460, %v9460
    %v9465 = vsel %vm6538, %v9461, 0.0
    %9466 = vadd.xlane.f32.xlu0 %v9465
    %v9467 = vpop.xlane.xlu0 %9466
    %v9468 = vsel %vm6538, %v9462, 0.0
    %9469 = vadd.xlane.f32.xlu0 %v9468
    %v9470 = vpop.xlane.xlu0 %9469
    %v9471 = vsel %vm6538, %v9463, 0.0
    %9472 = vadd.xlane.f32.xlu0 %v9471
    %v9473 = vpop.xlane.xlu0 %9472
    %v9474 = vsel %vm6538, %v9464, 0.0
    %9475 = vadd.xlane.f32.xlu0 %v9474
    %v9476 = vpop.xlane.xlu0 %9475
    %v9477 = vmul.f32 %v9467, %v6557
    %v9478 = vmul.f32 %v9470, %v6557
    %v9479 = vmul.f32 %v9473, %v6557
    %v9480 = vmul.f32 %v9476, %v6557
    %v9481 = vadd.f32 %v9477, 1e-05
    %v9482 = vadd.f32 %v9478, 1e-05
    %v9483 = vadd.f32 %v9479, 1e-05
    %v9484 = vadd.f32 %v9480, 1e-05
    %v9485 = vrsqrt.pop %v9481
    %v9486 = vmul.f32 %v9485, %v9481
    %v9487 = vmul.f32 %v9486, %v9485
    %v9488 = vmul.f32 0.5, %v9487
    %v9489 = vsub.f32 1.5, %v9488
    %v9490 = vmul.f32 %v9485, %v9489
    %vm9491 = vweird.f32 %v9481
    %vm9492 = vweird.f32 %v9485
    %vm9493 = vmor %vm9491, %vm9492
    %v9494 = vsel %vm9493, %v9485, %v9490
    %v9495 = vrsqrt.pop %v9482
    %v9496 = vmul.f32 %v9495, %v9482
    %v9497 = vmul.f32 %v9496, %v9495
    %v9498 = vmul.f32 0.5, %v9497
    %v9499 = vsub.f32 1.5, %v9498
    %v9500 = vmul.f32 %v9495, %v9499
    %vm9501 = vweird.f32 %v9482
    %vm9502 = vweird.f32 %v9495
    %vm9503 = vmor %vm9501, %vm9502
    %v9504 = vsel %vm9503, %v9495, %v9500
    %v9505 = vrsqrt.pop %v9483
    %v9506 = vmul.f32 %v9505, %v9483
    %v9507 = vmul.f32 %v9506, %v9505
    %v9508 = vmul.f32 0.5, %v9507
    %v9509 = vsub.f32 1.5, %v9508
    %v9510 = vmul.f32 %v9505, %v9509
    %vm9511 = vweird.f32 %v9483
    %vm9512 = vweird.f32 %v9505
    %vm9513 = vmor %vm9511, %vm9512
    %v9514 = vsel %vm9513, %v9505, %v9510
    %v9515 = vrsqrt.pop %v9484
    %v9516 = vmul.f32 %v9515, %v9484
    %v9517 = vmul.f32 %v9516, %v9515
    %v9518 = vmul.f32 0.5, %v9517
    %v9519 = vsub.f32 1.5, %v9518
    %v9520 = vmul.f32 %v9515, %v9519
    %vm9521 = vweird.f32 %v9484
    %vm9522 = vweird.f32 %v9515
    %vm9523 = vmor %vm9521, %vm9522
    %v9524 = vsel %vm9523, %v9515, %v9520
    %v9525 = vmul.f32 %v9457, %v9494
    %v9526 = vmul.f32 %v9458, %v9504
    %v9527 = vmul.f32 %v9459, %v9514
    %v9528 = vmul.f32 %v9460, %v9524
    %v9529 = vperm.slane %v9439, 0
    %v9530 = vmul.f32 %v9525, %v9529
    %v9531 = vmul.f32 %v9526, %v9529
    %v9532 = vmul.f32 %v9527, %v9529
    %v9533 = vmul.f32 %v9528, %v9529
    %v9534 = vperm.slane %v9440, 0
    %v9535 = vadd.f32 %v9530, %v9534
    %v9536 = vadd.f32 %v9531, %v9534
    %v9537 = vadd.f32 %v9532, %v9534
    %v9538 = vadd.f32 %v9533, %v9534
    %v9539 = vld [vmem:[#allocation19] sm:$0xf]
    %v9540 = vld [vmem:[#allocation19 + $0x4] sm:$0xf]
    %v9541 = vld [vmem:[#allocation19 + $0x8] sm:$0xf]
    %v9542 = vld [vmem:[#allocation19 + $0xc] sm:$0xf]
    %v9543 = vld [vmem:[#allocation19 + $0x10] sm:$0xf]
    %v9544 = vld [vmem:[#allocation19 + $0x14] sm:$0xf]
    %v9545 = vld [vmem:[#allocation19 + $0x18] sm:$0xf]
    %v9546 = vld [vmem:[#allocation19 + $0x1c] sm:$0xf]
    %v9547 = vpack.c.bf16 %v9536, %v9535
    %v9548 = vpack.c.bf16 %v9538, %v9537
    %v9557 = vunpack.c.l.b16 %v9539
    %v9558 = vunpack.c.l.b16 %v9540
    %v9559 = vunpack.c.l.b16 %v9541
    %v9560 = vunpack.c.l.b16 %v9542
    %v9561 = vunpack.c.l.b16 %v9543
    %v9562 = vunpack.c.l.b16 %v9544
    %v9563 = vunpack.c.l.b16 %v9545
    %v9564 = vunpack.c.l.b16 %v9546
    %v9565 = vpack.c.b16 %v9558, %v9557
    %v9566 = vpack.c.b16 %v9560, %v9559
    %v9567 = vpack.c.b16 %v9562, %v9561
    %v9568 = vpack.c.b16 %v9564, %v9563
    %v9574 = vsel %vm6538, %v9547, 0
    %v9577 = vsel %vm6538, %v9548, 0
    %9579 = vmatpush.bf16.msra.mxu0 0
    %9580 = vmatpush.bf16.msra.mxu0 0
    %9581 = vmatpush.bf16.msra.mxu0 0
    %9582 = vmatpush.bf16.msra.mxu0 0
    %9583 = vmatpush.bf16.msra.mxu0 %v9568
    %9584 = vmatpush.bf16.msra.mxu0 %v9567
    %9585 = vmatpush.bf16.msra.mxu0 %v9566
    %9586 = vmatpush.bf16.msra.mxu0 %v9565
    %9587 = vmatmul.bf16.gmra.mxu0 %v9574
    %v9588 = vpop.f32.mrf.mxu0
    %v9589 = vadd.f32 0.0, %v9588
    %v9590 = vpop.f32.mrf.mxu0
    %v9591 = vadd.f32 0.0, %v9590
    %9592 = vmatmul.bf16.gmra.mxu0 %v9577
    %v9593 = vpop.f32.mrf.mxu0
    %v9594 = vadd.f32 0.0, %v9593
    %v9595 = vpop.f32.mrf.mxu0
    %v9596 = vadd.f32 0.0, %v9595
    %9597 = vdwg.mxu0
    %v9598 = vld [vmem:[%s20] sm:$0x3]
    %v9600 = vsel %vm351, %v9598, 0
    %9602 = vmatpush.msra.mxu0 0.0
    %9603 = vmatpush.msra.mxu0 0.0
    %9604 = vmatpush.msra.mxu0 0.0
    %9605 = vmatpush.msra.mxu0 0.0
    %9606 = vmatpush.msra.mxu0 0.0
    %9607 = vmatpush.msra.mxu0 0.0
    %9608 = vmatpush.msra.mxu0 0.0
    %9609 = vmatpush.msra.mxu0 0.0
    %9610 = vmatpush.msra.mxu0 0.0
    %9611 = vmatpush.msra.mxu0 0.0
    %9612 = vmatpush.msra.mxu0 0.0
    %9613 = vmatpush.msra.mxu0 0.0
    %9614 = vmatpush.msra.mxu0 %v9596
    %9615 = vmatpush.msra.mxu0 %v9594
    %9616 = vmatpush.msra.mxu0 %v9591
    %9617 = vmatpush.msra.mxu0 %v9589
    %9618 = vmatmul.f32.gmra.mxu0 %v9600
    %v9619 = vpop.f32.mrf.mxu0
    %v9620 = vadd.f32 0.0, %v9619
    %9621 = vdwg.mxu0
    %9622 = vst [vmem:[#allocation20] sm:$0xff] %v9589
    %9623 = vst [vmem:[#allocation20 + $0x8] sm:$0xff] %v9591
    %9624 = vst [vmem:[#allocation20 + $0x10] sm:$0xff] %v9594
    %9625 = vst [vmem:[#allocation20 + $0x18] sm:$0xff] %v9596
    %9626 = vst [vmem:[#allocation20 + $0x20] sm:$0x3] %v9620
    // Predicated region
    $region134: #{tpu_custom_call.1} parent=1 // pred_check
      _
    $region135: #{tpu_custom_call.1} parent=1 // pred_check_branch
      %9628 = sbr.rel (0) target = $region137
    $region136: #{tpu_custom_call.1} parent=1 // pred_region
      %9630 = vsyncadd [#allocation4], 0
      %s9631 = sshll.u32 [#allocation20], 4
      %s9632 = int_to_ptr.vmem [resolvable:$true] %s9631
      %s9633 = sshll.u32 %s22, 4
      %s9634 = int_to_ptr.hbm [resolvable:$true] %s9633
      %9639 = dma.vmem_to_hbm [thread:$0]  %s9632, 640, %s9634, [#allocation4], 128, 128, 8
    $region137: #{tpu_custom_call.1} parent=1 // pred_fallthru
      _
    // Predicated region
    $region138: #{tpu_custom_call.1} parent=1 // pred_check
      _
    $region139: #{tpu_custom_call.1} parent=1 // pred_check_branch
      %9641 = sbr.rel (0) target = $region141
    $region140: #{tpu_custom_call.1} parent=1 // pred_region
      %9643 = dma.done [#allocation4], 640
    $region141: #{tpu_custom_call.1} parent=1 // pred_fallthru
      _
    %9644 = vsyncpa [#allocation3], 1
    %9645 = vsyncpa [#allocation6], 1
    %9646 = vsyncpa [#allocation9], 1
    %9647 = vsyncpa [#allocation12], 1
    %9648 = vsyncpa [#allocation15], 1
    %9649 = vsyncpa [#allocation18], 1
    %9650 = vsyncpa [#allocation4], 1

</llo_original>
